<compile_context>
chip_gen: v5e
topology: v5e:2x2
jax: 0.10.0
libtpu: 0.0.40
codegen_flags: <defaults>
</compile_context>

<pallas_src>
import functools

import jax
import jax.numpy as jnp
from jax.experimental import pallas as pl
from jax.experimental.pallas import tpu as pltpu


# 3x3 tap offsets, tap index t = ki*3 + kj, (di, dj) = (ki-1, kj-1)
_ALL_TAPS = tuple((ki - 1, kj - 1) for ki in range(3) for kj in range(3))
_OFF_IDX = tuple(t for t, (di, dj) in enumerate(_ALL_TAPS) if (di, dj) != (0, 0))
_OFF_TAPS = tuple(_ALL_TAPS[t] for t in _OFF_IDX)      # 8 off-centre taps, in order
_CTR_IDX = _ALL_TAPS.index((0, 0))


def _round_up(x, m):
    return -(-x // m) * m


def _halo_base(W):
    # >= W+1 zero rows above the staged image, rounded to the f32 sublane
    # multiple (8) so the hot staging store / dj==0 tap loads are tile-aligned.
    return _round_up(W + 1, 8)


def _halo_rows(H, W):
    base = _halo_base(W)
    return base + H * W + base                          # symmetric zero border


# ---------------------------------------------------------------------------
# Fused whole-layer kernel
# ---------------------------------------------------------------------------
def _layer_kernel(x_ref, w1o_ref, w1c_ref, w2o_ref, w2c_ref, b1_ref, b2_ref,
                  o_ref, pad_ref, *, num_blocks, H, W, C):
    HW = H * W
    base = _halo_base(W)
    total = pad_ref.shape[0]
    bot = total - (base + HW)

    # Zero only the halo border rows; the middle HW rows are fully overwritten
    # by every staging store, so the border stays zero for the whole kernel.
    pad_ref[pl.ds(0, base), :] = jnp.zeros((base, C), jnp.float32)
    pad_ref[pl.ds(base + HW, bot), :] = jnp.zeros((bot, C), jnp.float32)

    # In-kernel column masks for the dj != 0 taps (vertical out-of-image taps
    # are already handled by the zero halo rows).  Full (HW, C) so the select
    # runs at tap lane occupancy; replaces the lane-padded (9, HW, 1) input.
    col = jax.lax.broadcasted_iota(jnp.int32, (HW, C), 0) % W
    not_left = col > 0                                  # valid for dj == -1 taps
    not_right = col < (W - 1)                           # valid for dj == +1 taps

    def conv3x3(w_off, w_ctr):
        # K-packed im2col: 8 masked off-centre taps concatenated into one
        # (HW, 8*C) bf16 LHS -> single K=8C dot; centre tap as a K=C dot.
        taps = []
        for di, dj in _OFF_TAPS:
            t = pad_ref[pl.ds(base + di * W + dj, HW), :]
            if dj == -1:
                t = jnp.where(not_left, t, 0.0)
            elif dj == 1:
                t = jnp.where(not_right, t, 0.0)
            taps.append(t.astype(jnp.bfloat16))
        lhs = jnp.concatenate(taps, axis=-1)            # (HW, 8*C) bf16, lane-dense
        ctr = pad_ref[pl.ds(base, HW), :].astype(jnp.bfloat16)
        acc = jnp.dot(lhs, w_off, preferred_element_type=jnp.float32)
        return acc + jnp.dot(ctr, w_ctr, preferred_element_type=jnp.float32)

    # Residual / running activation lives in the VMEM-resident output block.
    o_ref[...] = x_ref[...]

    for blk in range(num_blocks):                       # static unrolled block loop
        # conv1 -> folded BN1 -> ReLU
        pad_ref[pl.ds(base, HW), :] = o_ref[...]        # stage block input (f32)
        h = jnp.maximum(conv3x3(w1o_ref[blk], w1c_ref[blk]) + b1_ref[blk], 0.0)
        # conv2 -> folded BN2 -> + residual -> ReLU
        pad_ref[pl.ds(base, HW), :] = h                 # stage h; its live range ends here
        o_ref[...] = jnp.maximum(
            conv3x3(w2o_ref[blk], w2c_ref[blk]) + b2_ref[blk] + o_ref[...], 0.0)


# ---------------------------------------------------------------------------
# Wrapper-side glue: BN folding, K-packed weight layout
# ---------------------------------------------------------------------------
def _bn_fold(gamma, beta, mean, var, eps=1e-5):
    scale = gamma / jnp.sqrt(var + eps)
    return scale, beta - mean * scale


def _conv_w_taps(w):
    # torch (Cout, Cin, 3, 3) -> (3, 3, Cin, Cout) -> (9, Cin, Cout); tap t = ki*3+kj
    cout, cin = w.shape[0], w.shape[1]
    return jnp.transpose(w, (2, 3, 1, 0)).reshape(9, cin, cout)


def resnet_task_layer_forward(x_nchw, task, params):
    """Sequentially applies all task-conditioned basic blocks (NCHW in/out)."""
    B, C, H, W = x_nchw.shape
    HW = H * W
    x2 = jnp.transpose(x_nchw, (0, 2, 3, 1)).astype(jnp.float32).reshape(B * HW, C)

    w1o_l, w1c_l, w2o_l, w2c_l, b1_l, b2_l = [], [], [], [], [], []
    for blk in params:
        s1, b1 = _bn_fold(blk["bn1"]["gamma"][task], blk["bn1"]["beta"][task],
                          blk["bn1"]["mean"][task], blk["bn1"]["var"][task])
        s2, b2 = _bn_fold(blk["bn2"]["gamma"][task], blk["bn2"]["beta"][task],
                          blk["bn2"]["mean"][task], blk["bn2"]["var"][task])
        t1 = _conv_w_taps(blk["w1"]) * s1[None, None, :]     # fold BN scale into weights
        t2 = _conv_w_taps(blk["w2"]) * s2[None, None, :]
        w1o_l.append(jnp.concatenate([t1[t] for t in _OFF_IDX], axis=0))   # (8C, C)
        w1c_l.append(t1[_CTR_IDX])                                         # (C, C)
        w2o_l.append(jnp.concatenate([t2[t] for t in _OFF_IDX], axis=0))
        w2c_l.append(t2[_CTR_IDX])
        b1_l.append(b1[None, :])
        b2_l.append(b2[None, :])

    nb = len(params)
    w1o = jnp.stack(w1o_l).astype(jnp.bfloat16)          # (nb, 8C, C)
    w1c = jnp.stack(w1c_l).astype(jnp.bfloat16)          # (nb, C, C)
    w2o = jnp.stack(w2o_l).astype(jnp.bfloat16)
    w2c = jnp.stack(w2c_l).astype(jnp.bfloat16)
    b1a = jnp.stack(b1_l).astype(jnp.float32)            # (nb, 1, C)
    b2a = jnp.stack(b2_l).astype(jnp.float32)

    kernel = functools.partial(_layer_kernel, num_blocks=nb, H=H, W=W, C=C)
    const = lambda b: (0, 0, 0)
    out2 = pl.pallas_call(
        kernel,
        out_shape=jax.ShapeDtypeStruct((B * HW, C), jnp.float32),
        grid_spec=pltpu.PrefetchScalarGridSpec(
            num_scalar_prefetch=0,
            grid=(B,),
            in_specs=[
                pl.BlockSpec((HW, C), lambda b: (b, 0)),       # image b activation rows
                pl.BlockSpec((nb, 8 * C, C), const),           # conv1 off-centre taps (BN folded)
                pl.BlockSpec((nb, C, C), const),               # conv1 centre tap
                pl.BlockSpec((nb, 8 * C, C), const),           # conv2 off-centre taps (BN folded)
                pl.BlockSpec((nb, C, C), const),               # conv2 centre tap
                pl.BlockSpec((nb, 1, C), const),               # folded BN1 bias
                pl.BlockSpec((nb, 1, C), const),               # folded BN2 bias
            ],
            out_specs=pl.BlockSpec((HW, C), lambda b: (b, 0)),
            scratch_shapes=[pltpu.VMEM((_halo_rows(H, W), C), jnp.float32)],  # zero-halo buffer
        ),
        compiler_params=pltpu.CompilerParams(
            dimension_semantics=("parallel",)),
    )(x2, w1o, w1c, w2o, w2c, b1a, b2a)

    return jnp.transpose(out2.reshape(B, H, W, C), (0, 3, 1, 2))  # NHWC -> NCHW


# ---------------------------------------------------------------------------
# Parameter construction (deterministic, synthetic)
# ---------------------------------------------------------------------------
def make_params(key, num_blocks, channels, num_tasks):
    """Per block: two 3x3 convs + per-task BN params for each conv (eval-mode)."""
    params = []
    for _ in range(num_blocks):
        key, k1, k2, k3, k4, k5, k6 = jax.random.split(key, 7)
        blk = {
            # PyTorch conv weight layout (Cout, Cin, 3, 3)
            "w1": 0.1 * jax.random.normal(k1, (channels, channels, 3, 3), jnp.float32),
            "w2": 0.1 * jax.random.normal(k2, (channels, channels, 3, 3), jnp.float32),
            # task-conditional BN (num_tasks, C) — eval mode (running stats)
            "bn1": {
                "gamma": 1.0 + 0.05 * jax.random.normal(k3, (num_tasks, channels)),
                "beta": 0.05 * jax.random.normal(k4, (num_tasks, channels)),
                "mean": jnp.linspace(-0.1, 0.1, num_tasks * channels).reshape(num_tasks, channels),
                "var": jnp.full((num_tasks, channels), 1.2, jnp.float32),
            },
            "bn2": {
                "gamma": 1.0 + 0.03 * jax.random.normal(k5, (num_tasks, channels)),
                "beta": 0.03 * jax.random.normal(k6, (num_tasks, channels)),
                "mean": jnp.linspace(0.1, -0.1, num_tasks * channels).reshape(num_tasks, channels),
                "var": jnp.full((num_tasks, channels), 0.9, jnp.float32),
            },
        }
        params.append(blk)
    return params


# ---------------------------------------------------------------------------
# Reference (same math, bf16-rounded matmul operands, f32 accumulation)
# ---------------------------------------------------------------------------
def _reference_forward(x_nchw, task, params):
    def rnd(v):  # mirror the kernel's bf16 matmul-operand rounding
        return v.astype(jnp.bfloat16).astype(jnp.float32)

    x = jnp.transpose(x_nchw, (0, 2, 3, 1)).astype(jnp.float32)      # NHWC
    dn = ("NHWC", "HWIO", "NHWC")
    for blk in params:
        s1, b1 = _bn_fold(blk["bn1"]["gamma"][task], blk["bn1"]["beta"][task],
                          blk["bn1"]["mean"][task], blk["bn1"]["var"][task])
        s2, b2 = _bn_fold(blk["bn2"]["gamma"][task], blk["bn2"]["beta"][task],
                          blk["bn2"]["mean"][task], blk["bn2"]["var"][task])
        w1 = jnp.transpose(blk["w1"], (2, 3, 1, 0)) * s1[None, None, None, :]
        w2 = jnp.transpose(blk["w2"], (2, 3, 1, 0)) * s2[None, None, None, :]
        h = jax.lax.conv_general_dilated(rnd(x), rnd(w1), (1, 1), "SAME",
                                         dimension_numbers=dn,
                                         precision=jax.lax.Precision.HIGHEST)
        h = jnp.maximum(h + b1[None, None, None, :], 0.0)
        y = jax.lax.conv_general_dilated(rnd(h), rnd(w2), (1, 1), "SAME",
                                         dimension_numbers=dn,
                                         precision=jax.lax.Precision.HIGHEST)
        x = jnp.maximum(y + b2[None, None, None, :] + x, 0.0)
    return jnp.transpose(x, (0, 3, 1, 2))                            # NCHW


# ---------------------------------------------------------------------------
if __name__ == "__main__":
    key = jax.random.PRNGKey(0)
    kx, kp = jax.random.split(key)

    B, C, H, W = 2, 16, 16, 16       # small shapes; HW = 256 rows per image
    NUM_BLOCKS = 2                   # len(layers)
    NUM_TASKS = 3
    TASK = 1

    x = jax.random.normal(kx, (B, C, H, W), jnp.float32)
    params = make_params(kp, NUM_BLOCKS, C, NUM_TASKS)

    fwd = jax.jit(functools.partial(resnet_task_layer_forward, task=TASK, params=params))
    out = jax.block_until_ready(fwd(x))

    ref = _reference_forward(x, TASK, params)
    assert out.shape == (B, C, H, W)
    max_err = float(jnp.max(jnp.abs(out - ref)))
    assert jnp.allclose(out, ref, atol=5e-3, rtol=5e-3), f"mismatch vs reference (max |diff| = {max_err})"

    print("KERNEL_OK")
</pallas_src>

<mosaic_0001>
module attributes {stable_mosaic.version = 11 : i64} {
  func.func @_layer_kernel(%arg0: i32, %arg1: memref<256x16xf32, #tpu.memory_space<vmem>>, %arg2: memref<2x128x16xbf16, #tpu.memory_space<vmem>>, %arg3: memref<2x16x16xbf16, #tpu.memory_space<vmem>>, %arg4: memref<2x128x16xbf16, #tpu.memory_space<vmem>>, %arg5: memref<2x16x16xbf16, #tpu.memory_space<vmem>>, %arg6: memref<2x1x16xf32, #tpu.memory_space<vmem>>, %arg7: memref<2x1x16xf32, #tpu.memory_space<vmem>>, %arg8: memref<256x16xf32, #tpu.memory_space<vmem>>, %arg9: memref<304x16xf32, #tpu.memory_space<vmem>>) attributes {dimension_semantics = [#tpu.dimension_semantics<parallel>], iteration_bounds = array<i64: 2>, scalar_prefetch = 0 : i64, scratch_operands = 1 : i64, tpu.core_type = #tpu.core_type<tc>, window_params = [{transform_indices = @transform_0, window_bounds = array<i64: 256, 16>}, {pipeline_mode = #tpu.pipeline_mode<synchronous>, transform_indices = @transform_1, window_bounds = array<i64: 2, 128, 16>}, {pipeline_mode = #tpu.pipeline_mode<synchronous>, transform_indices = @transform_2, window_bounds = array<i64: 2, 16, 16>}, {pipeline_mode = #tpu.pipeline_mode<synchronous>, transform_indices = @transform_3, window_bounds = array<i64: 2, 128, 16>}, {pipeline_mode = #tpu.pipeline_mode<synchronous>, transform_indices = @transform_4, window_bounds = array<i64: 2, 16, 16>}, {pipeline_mode = #tpu.pipeline_mode<synchronous>, transform_indices = @transform_5, window_bounds = array<i64: 2, 1, 16>}, {pipeline_mode = #tpu.pipeline_mode<synchronous>, transform_indices = @transform_6, window_bounds = array<i64: 2, 1, 16>}, {transform_indices = @transform_7, window_bounds = array<i64: 256, 16>}]} {
    %cst = arith.constant 0.000000e+00 : f32
    %0 = vector.broadcast %cst : f32 to vector<24x16xf32>
    %c0 = arith.constant 0 : index
    %c0_0 = arith.constant 0 : index
    %1 = vector.load %arg9[%c0, %c0_0] : memref<304x16xf32, #tpu.memory_space<vmem>>, vector<24x16xf32>
    tpu.vector_store %arg9[%c0, %c0_0], %0 {strides = array<i32>} : memref<304x16xf32, #tpu.memory_space<vmem>>, vector<24x16xf32>,
    %cst_1 = arith.constant 0.000000e+00 : f32
    %2 = vector.broadcast %cst_1 : f32 to vector<24x16xf32>
    %c280 = arith.constant 280 : index
    %c0_2 = arith.constant 0 : index
    %3 = vector.load %arg9[%c280, %c0_2] : memref<304x16xf32, #tpu.memory_space<vmem>>, vector<24x16xf32>
    tpu.vector_store %arg9[%c280, %c0_2], %2 {strides = array<i32>} : memref<304x16xf32, #tpu.memory_space<vmem>>, vector<24x16xf32>,
    %4 = tpu.iota {dimensions = array<i32: 0>} : vector<256x16xi32>
    %c16_i32 = arith.constant 16 : i32
    %c0_i32 = arith.constant 0 : i32
    %5 = arith.cmpi eq, %c16_i32, %c0_i32 : i32
    %c1_i32 = arith.constant 1 : i32
    %6 = arith.select %5, %c1_i32, %c16_i32 : i32
    %7 = vector.broadcast %6 : i32 to vector<256x16xi32>
    %8 = arith.remsi %4, %7 : vector<256x16xi32>
    %c0_i32_3 = arith.constant 0 : i32
    %9 = vector.broadcast %c0_i32_3 : i32 to vector<256x16xi32>
    %10 = arith.cmpi ne, %8, %9 : vector<256x16xi32>
    %c0_i32_4 = arith.constant 0 : i32
    %11 = vector.broadcast %c0_i32_4 : i32 to vector<256x16xi32>
    %12 = arith.cmpi slt, %8, %11 : vector<256x16xi32>
    %c0_i32_5 = arith.constant 0 : i32
    %13 = arith.cmpi slt, %6, %c0_i32_5 : i32
    %14 = vector.broadcast %13 : i1 to vector<256x16xi1>
    %15 = vector.broadcast %14 : vector<256x16xi1> to vector<256x16xi1>
    %16 = arith.xori %12, %15 : vector<256x16xi1>
    %17 = arith.andi %16, %10 : vector<256x16xi1>
    %18 = vector.broadcast %6 : i32 to vector<256x16xi32>
    %19 = arith.addi %8, %18 : vector<256x16xi32>
    %20 = arith.select %17, %19, %8 : vector<256x16xi1>, vector<256x16xi32>
    %c0_i32_6 = arith.constant 0 : i32
    %21 = vector.broadcast %c0_i32_6 : i32 to vector<256x16xi32>
    %22 = arith.cmpi sgt, %20, %21 : vector<256x16xi32>
    %c15_i32 = arith.constant 15 : i32
    %23 = vector.broadcast %c15_i32 : i32 to vector<256x16xi32>
    %24 = arith.cmpi slt, %20, %23 : vector<256x16xi32>
    %c0_7 = arith.constant 0 : index
    %c0_8 = arith.constant 0 : index
    %25 = vector.load %arg1[%c0_7, %c0_8] : memref<256x16xf32, #tpu.memory_space<vmem>>, vector<256x16xf32>
    %c0_9 = arith.constant 0 : index
    %c0_10 = arith.constant 0 : index
    %26 = vector.load %arg8[%c0_9, %c0_10] : memref<256x16xf32, #tpu.memory_space<vmem>>, vector<256x16xf32>
    tpu.vector_store %arg8[%c0_9, %c0_10], %25 {strides = array<i32>} : memref<256x16xf32, #tpu.memory_space<vmem>>, vector<256x16xf32>,
    %c0_11 = arith.constant 0 : index
    %c0_12 = arith.constant 0 : index
    %27 = vector.load %arg8[%c0_11, %c0_12] : memref<256x16xf32, #tpu.memory_space<vmem>>, vector<256x16xf32>
    %c24 = arith.constant 24 : index
    %c0_13 = arith.constant 0 : index
    %28 = vector.load %arg9[%c24, %c0_13] : memref<304x16xf32, #tpu.memory_space<vmem>>, vector<256x16xf32>
    tpu.vector_store %arg9[%c24, %c0_13], %27 {strides = array<i32>} : memref<304x16xf32, #tpu.memory_space<vmem>>, vector<256x16xf32>,
    %c0_14 = arith.constant 0 : index
    %c0_15 = arith.constant 0 : index
    %c0_16 = arith.constant 0 : index
    %29 = vector.load %arg2[%c0_14, %c0_15, %c0_16] : memref<2x128x16xbf16, #tpu.memory_space<vmem>>, vector<1x128x16xbf16>
    %30 = vector.shape_cast %29 : vector<1x128x16xbf16> to vector<128x16xbf16>
    %c0_17 = arith.constant 0 : index
    %c0_18 = arith.constant 0 : index
    %c0_19 = arith.constant 0 : index
    %31 = vector.load %arg3[%c0_17, %c0_18, %c0_19] : memref<2x16x16xbf16, #tpu.memory_space<vmem>>, vector<1x16x16xbf16>
    %32 = vector.shape_cast %31 : vector<1x16x16xbf16> to vector<16x16xbf16>
    %c7 = arith.constant 7 : index
    %c0_20 = arith.constant 0 : index
    %33 = vector.load %arg9[%c7, %c0_20] : memref<304x16xf32, #tpu.memory_space<vmem>>, vector<256x16xf32>
    %cst_21 = arith.constant 0.000000e+00 : f32
    %34 = vector.broadcast %cst_21 : f32 to vector<256x16xf32>
    %35 = arith.select %22, %33, %34 : vector<256x16xi1>, vector<256x16xf32>
    %36 = arith.truncf %35 : vector<256x16xf32> to vector<256x16xbf16>
    %c8 = arith.constant 8 : index
    %c0_22 = arith.constant 0 : index
    %37 = vector.load %arg9[%c8, %c0_22] : memref<304x16xf32, #tpu.memory_space<vmem>>, vector<256x16xf32>
    %38 = arith.truncf %37 : vector<256x16xf32> to vector<256x16xbf16>
    %c9 = arith.constant 9 : index
    %c0_23 = arith.constant 0 : index
    %39 = vector.load %arg9[%c9, %c0_23] : memref<304x16xf32, #tpu.memory_space<vmem>>, vector<256x16xf32>
    %cst_24 = arith.constant 0.000000e+00 : f32
    %40 = vector.broadcast %cst_24 : f32 to vector<256x16xf32>
    %41 = arith.select %24, %39, %40 : vector<256x16xi1>, vector<256x16xf32>
    %42 = arith.truncf %41 : vector<256x16xf32> to vector<256x16xbf16>
    %c23 = arith.constant 23 : index
    %c0_25 = arith.constant 0 : index
    %43 = vector.load %arg9[%c23, %c0_25] : memref<304x16xf32, #tpu.memory_space<vmem>>, vector<256x16xf32>
    %cst_26 = arith.constant 0.000000e+00 : f32
    %44 = vector.broadcast %cst_26 : f32 to vector<256x16xf32>
    %45 = arith.select %22, %43, %44 : vector<256x16xi1>, vector<256x16xf32>
    %46 = arith.truncf %45 : vector<256x16xf32> to vector<256x16xbf16>
    %c25 = arith.constant 25 : index
    %c0_27 = arith.constant 0 : index
    %47 = vector.load %arg9[%c25, %c0_27] : memref<304x16xf32, #tpu.memory_space<vmem>>, vector<256x16xf32>
    %cst_28 = arith.constant 0.000000e+00 : f32
    %48 = vector.broadcast %cst_28 : f32 to vector<256x16xf32>
    %49 = arith.select %24, %47, %48 : vector<256x16xi1>, vector<256x16xf32>
    %50 = arith.truncf %49 : vector<256x16xf32> to vector<256x16xbf16>
    %c39 = arith.constant 39 : index
    %c0_29 = arith.constant 0 : index
    %51 = vector.load %arg9[%c39, %c0_29] : memref<304x16xf32, #tpu.memory_space<vmem>>, vector<256x16xf32>
    %cst_30 = arith.constant 0.000000e+00 : f32
    %52 = vector.broadcast %cst_30 : f32 to vector<256x16xf32>
    %53 = arith.select %22, %51, %52 : vector<256x16xi1>, vector<256x16xf32>
    %54 = arith.truncf %53 : vector<256x16xf32> to vector<256x16xbf16>
    %c40 = arith.constant 40 : index
    %c0_31 = arith.constant 0 : index
    %55 = vector.load %arg9[%c40, %c0_31] : memref<304x16xf32, #tpu.memory_space<vmem>>, vector<256x16xf32>
    %56 = arith.truncf %55 : vector<256x16xf32> to vector<256x16xbf16>
    %c41 = arith.constant 41 : index
    %c0_32 = arith.constant 0 : index
    %57 = vector.load %arg9[%c41, %c0_32] : memref<304x16xf32, #tpu.memory_space<vmem>>, vector<256x16xf32>
    %cst_33 = arith.constant 0.000000e+00 : f32
    %58 = vector.broadcast %cst_33 : f32 to vector<256x16xf32>
    %59 = arith.select %24, %57, %58 : vector<256x16xi1>, vector<256x16xf32>
    %60 = arith.truncf %59 : vector<256x16xf32> to vector<256x16xbf16>
    %61 = tpu.concatenate %36, %38, %42, %46, %50, %54, %56, %60 in 1 : vector<256x16xbf16>, vector<256x16xbf16>, vector<256x16xbf16>, vector<256x16xbf16>, vector<256x16xbf16>, vector<256x16xbf16>, vector<256x16xbf16>, vector<256x16xbf16> -> vector<256x128xbf16>
    %c24_34 = arith.constant 24 : index
    %c0_35 = arith.constant 0 : index
    %62 = vector.load %arg9[%c24_34, %c0_35] : memref<304x16xf32, #tpu.memory_space<vmem>>, vector<256x16xf32>
    %63 = arith.truncf %62 : vector<256x16xf32> to vector<256x16xbf16>
    %cst_36 = arith.constant dense<0.000000e+00> : vector<256x16xf32>
    %64 = tpu.matmul %61, %30, %cst_36 {dimension_numbers = #tpu.dot_dimension_numbers<[1], [0], [0], [1], [0, 0, 1, 1], [], []>} : vector<256x128xbf16>, vector<128x16xbf16>, vector<256x16xf32> -> vector<256x16xf32>
    %cst_37 = arith.constant dense<0.000000e+00> : vector<256x16xf32>
    %65 = tpu.matmul %63, %32, %cst_37 {dimension_numbers = #tpu.dot_dimension_numbers<[1], [0], [0], [1], [0, 0, 1, 1], [], []>} : vector<256x16xbf16>, vector<16x16xbf16>, vector<256x16xf32> -> vector<256x16xf32>
    %66 = arith.addf %64, %65 : vector<256x16xf32>
    %c0_38 = arith.constant 0 : index
    %c0_39 = arith.constant 0 : index
    %c0_40 = arith.constant 0 : index
    %67 = vector.load %arg6[%c0_38, %c0_39, %c0_40] : memref<2x1x16xf32, #tpu.memory_space<vmem>>, vector<1x1x16xf32>
    %68 = vector.shape_cast %67 : vector<1x1x16xf32> to vector<1x16xf32>
    %69 = vector.broadcast %68 : vector<1x16xf32> to vector<256x16xf32>
    %70 = arith.addf %66, %69 : vector<256x16xf32>
    %cst_41 = arith.constant 0.000000e+00 : f32
    %71 = vector.broadcast %cst_41 : f32 to vector<256x16xf32>
    %72 = arith.maximumf %70, %71 : vector<256x16xf32>
    %c24_42 = arith.constant 24 : index
    %c0_43 = arith.constant 0 : index
    %73 = vector.load %arg9[%c24_42, %c0_43] : memref<304x16xf32, #tpu.memory_space<vmem>>, vector<256x16xf32>
    tpu.vector_store %arg9[%c24_42, %c0_43], %72 {strides = array<i32>} : memref<304x16xf32, #tpu.memory_space<vmem>>, vector<256x16xf32>,
    %c0_44 = arith.constant 0 : index
    %c0_45 = arith.constant 0 : index
    %c0_46 = arith.constant 0 : index
    %74 = vector.load %arg4[%c0_44, %c0_45, %c0_46] : memref<2x128x16xbf16, #tpu.memory_space<vmem>>, vector<1x128x16xbf16>
    %75 = vector.shape_cast %74 : vector<1x128x16xbf16> to vector<128x16xbf16>
    %c0_47 = arith.constant 0 : index
    %c0_48 = arith.constant 0 : index
    %c0_49 = arith.constant 0 : index
    %76 = vector.load %arg5[%c0_47, %c0_48, %c0_49] : memref<2x16x16xbf16, #tpu.memory_space<vmem>>, vector<1x16x16xbf16>
    %77 = vector.shape_cast %76 : vector<1x16x16xbf16> to vector<16x16xbf16>
    %c7_50 = arith.constant 7 : index
    %c0_51 = arith.constant 0 : index
    %78 = vector.load %arg9[%c7_50, %c0_51] : memref<304x16xf32, #tpu.memory_space<vmem>>, vector<256x16xf32>
    %cst_52 = arith.constant 0.000000e+00 : f32
    %79 = vector.broadcast %cst_52 : f32 to vector<256x16xf32>
    %80 = arith.select %22, %78, %79 : vector<256x16xi1>, vector<256x16xf32>
    %81 = arith.truncf %80 : vector<256x16xf32> to vector<256x16xbf16>
    %c8_53 = arith.constant 8 : index
    %c0_54 = arith.constant 0 : index
    %82 = vector.load %arg9[%c8_53, %c0_54] : memref<304x16xf32, #tpu.memory_space<vmem>>, vector<256x16xf32>
    %83 = arith.truncf %82 : vector<256x16xf32> to vector<256x16xbf16>
    %c9_55 = arith.constant 9 : index
    %c0_56 = arith.constant 0 : index
    %84 = vector.load %arg9[%c9_55, %c0_56] : memref<304x16xf32, #tpu.memory_space<vmem>>, vector<256x16xf32>
    %cst_57 = arith.constant 0.000000e+00 : f32
    %85 = vector.broadcast %cst_57 : f32 to vector<256x16xf32>
    %86 = arith.select %24, %84, %85 : vector<256x16xi1>, vector<256x16xf32>
    %87 = arith.truncf %86 : vector<256x16xf32> to vector<256x16xbf16>
    %c23_58 = arith.constant 23 : index
    %c0_59 = arith.constant 0 : index
    %88 = vector.load %arg9[%c23_58, %c0_59] : memref<304x16xf32, #tpu.memory_space<vmem>>, vector<256x16xf32>
    %cst_60 = arith.constant 0.000000e+00 : f32
    %89 = vector.broadcast %cst_60 : f32 to vector<256x16xf32>
    %90 = arith.select %22, %88, %89 : vector<256x16xi1>, vector<256x16xf32>
    %91 = arith.truncf %90 : vector<256x16xf32> to vector<256x16xbf16>
    %c25_61 = arith.constant 25 : index
    %c0_62 = arith.constant 0 : index
    %92 = vector.load %arg9[%c25_61, %c0_62] : memref<304x16xf32, #tpu.memory_space<vmem>>, vector<256x16xf32>
    %cst_63 = arith.constant 0.000000e+00 : f32
    %93 = vector.broadcast %cst_63 : f32 to vector<256x16xf32>
    %94 = arith.select %24, %92, %93 : vector<256x16xi1>, vector<256x16xf32>
    %95 = arith.truncf %94 : vector<256x16xf32> to vector<256x16xbf16>
    %c39_64 = arith.constant 39 : index
    %c0_65 = arith.constant 0 : index
    %96 = vector.load %arg9[%c39_64, %c0_65] : memref<304x16xf32, #tpu.memory_space<vmem>>, vector<256x16xf32>
    %cst_66 = arith.constant 0.000000e+00 : f32
    %97 = vector.broadcast %cst_66 : f32 to vector<256x16xf32>
    %98 = arith.select %22, %96, %97 : vector<256x16xi1>, vector<256x16xf32>
    %99 = arith.truncf %98 : vector<256x16xf32> to vector<256x16xbf16>
    %c40_67 = arith.constant 40 : index
    %c0_68 = arith.constant 0 : index
    %100 = vector.load %arg9[%c40_67, %c0_68] : memref<304x16xf32, #tpu.memory_space<vmem>>, vector<256x16xf32>
    %101 = arith.truncf %100 : vector<256x16xf32> to vector<256x16xbf16>
    %c41_69 = arith.constant 41 : index
    %c0_70 = arith.constant 0 : index
    %102 = vector.load %arg9[%c41_69, %c0_70] : memref<304x16xf32, #tpu.memory_space<vmem>>, vector<256x16xf32>
    %cst_71 = arith.constant 0.000000e+00 : f32
    %103 = vector.broadcast %cst_71 : f32 to vector<256x16xf32>
    %104 = arith.select %24, %102, %103 : vector<256x16xi1>, vector<256x16xf32>
    %105 = arith.truncf %104 : vector<256x16xf32> to vector<256x16xbf16>
    %106 = tpu.concatenate %81, %83, %87, %91, %95, %99, %101, %105 in 1 : vector<256x16xbf16>, vector<256x16xbf16>, vector<256x16xbf16>, vector<256x16xbf16>, vector<256x16xbf16>, vector<256x16xbf16>, vector<256x16xbf16>, vector<256x16xbf16> -> vector<256x128xbf16>
    %c24_72 = arith.constant 24 : index
    %c0_73 = arith.constant 0 : index
    %107 = vector.load %arg9[%c24_72, %c0_73] : memref<304x16xf32, #tpu.memory_space<vmem>>, vector<256x16xf32>
    %108 = arith.truncf %107 : vector<256x16xf32> to vector<256x16xbf16>
    %cst_74 = arith.constant dense<0.000000e+00> : vector<256x16xf32>
    %109 = tpu.matmul %106, %75, %cst_74 {dimension_numbers = #tpu.dot_dimension_numbers<[1], [0], [0], [1], [0, 0, 1, 1], [], []>} : vector<256x128xbf16>, vector<128x16xbf16>, vector<256x16xf32> -> vector<256x16xf32>
    %cst_75 = arith.constant dense<0.000000e+00> : vector<256x16xf32>
    %110 = tpu.matmul %108, %77, %cst_75 {dimension_numbers = #tpu.dot_dimension_numbers<[1], [0], [0], [1], [0, 0, 1, 1], [], []>} : vector<256x16xbf16>, vector<16x16xbf16>, vector<256x16xf32> -> vector<256x16xf32>
    %111 = arith.addf %109, %110 : vector<256x16xf32>
    %c0_76 = arith.constant 0 : index
    %c0_77 = arith.constant 0 : index
    %c0_78 = arith.constant 0 : index
    %112 = vector.load %arg7[%c0_76, %c0_77, %c0_78] : memref<2x1x16xf32, #tpu.memory_space<vmem>>, vector<1x1x16xf32>
    %113 = vector.shape_cast %112 : vector<1x1x16xf32> to vector<1x16xf32>
    %114 = vector.broadcast %113 : vector<1x16xf32> to vector<256x16xf32>
    %115 = arith.addf %111, %114 : vector<256x16xf32>
    %c0_79 = arith.constant 0 : index
    %c0_80 = arith.constant 0 : index
    %116 = vector.load %arg8[%c0_79, %c0_80] : memref<256x16xf32, #tpu.memory_space<vmem>>, vector<256x16xf32>
    %117 = arith.addf %115, %116 : vector<256x16xf32>
    %cst_81 = arith.constant 0.000000e+00 : f32
    %118 = vector.broadcast %cst_81 : f32 to vector<256x16xf32>
    %119 = arith.maximumf %117, %118 : vector<256x16xf32>
    %c0_82 = arith.constant 0 : index
    %c0_83 = arith.constant 0 : index
    %120 = vector.load %arg8[%c0_82, %c0_83] : memref<256x16xf32, #tpu.memory_space<vmem>>, vector<256x16xf32>
    tpu.vector_store %arg8[%c0_82, %c0_83], %119 {strides = array<i32>} : memref<256x16xf32, #tpu.memory_space<vmem>>, vector<256x16xf32>,
    %c0_84 = arith.constant 0 : index
    %c0_85 = arith.constant 0 : index
    %121 = vector.load %arg8[%c0_84, %c0_85] : memref<256x16xf32, #tpu.memory_space<vmem>>, vector<256x16xf32>
    %c24_86 = arith.constant 24 : index
    %c0_87 = arith.constant 0 : index
    %122 = vector.load %arg9[%c24_86, %c0_87] : memref<304x16xf32, #tpu.memory_space<vmem>>, vector<256x16xf32>
    tpu.vector_store %arg9[%c24_86, %c0_87], %121 {strides = array<i32>} : memref<304x16xf32, #tpu.memory_space<vmem>>, vector<256x16xf32>,
    %c1 = arith.constant 1 : index
    %c0_88 = arith.constant 0 : index
    %c0_89 = arith.constant 0 : index
    %123 = vector.load %arg2[%c1, %c0_88, %c0_89] : memref<2x128x16xbf16, #tpu.memory_space<vmem>>, vector<1x128x16xbf16>
    %124 = vector.shape_cast %123 : vector<1x128x16xbf16> to vector<128x16xbf16>
    %c1_90 = arith.constant 1 : index
    %c0_91 = arith.constant 0 : index
    %c0_92 = arith.constant 0 : index
    %125 = vector.load %arg3[%c1_90, %c0_91, %c0_92] : memref<2x16x16xbf16, #tpu.memory_space<vmem>>, vector<1x16x16xbf16>
    %126 = vector.shape_cast %125 : vector<1x16x16xbf16> to vector<16x16xbf16>
    %c7_93 = arith.constant 7 : index
    %c0_94 = arith.constant 0 : index
    %127 = vector.load %arg9[%c7_93, %c0_94] : memref<304x16xf32, #tpu.memory_space<vmem>>, vector<256x16xf32>
    %cst_95 = arith.constant 0.000000e+00 : f32
    %128 = vector.broadcast %cst_95 : f32 to vector<256x16xf32>
    %129 = arith.select %22, %127, %128 : vector<256x16xi1>, vector<256x16xf32>
    %130 = arith.truncf %129 : vector<256x16xf32> to vector<256x16xbf16>
    %c8_96 = arith.constant 8 : index
    %c0_97 = arith.constant 0 : index
    %131 = vector.load %arg9[%c8_96, %c0_97] : memref<304x16xf32, #tpu.memory_space<vmem>>, vector<256x16xf32>
    %132 = arith.truncf %131 : vector<256x16xf32> to vector<256x16xbf16>
    %c9_98 = arith.constant 9 : index
    %c0_99 = arith.constant 0 : index
    %133 = vector.load %arg9[%c9_98, %c0_99] : memref<304x16xf32, #tpu.memory_space<vmem>>, vector<256x16xf32>
    %cst_100 = arith.constant 0.000000e+00 : f32
    %134 = vector.broadcast %cst_100 : f32 to vector<256x16xf32>
    %135 = arith.select %24, %133, %134 : vector<256x16xi1>, vector<256x16xf32>
    %136 = arith.truncf %135 : vector<256x16xf32> to vector<256x16xbf16>
    %c23_101 = arith.constant 23 : index
    %c0_102 = arith.constant 0 : index
    %137 = vector.load %arg9[%c23_101, %c0_102] : memref<304x16xf32, #tpu.memory_space<vmem>>, vector<256x16xf32>
    %cst_103 = arith.constant 0.000000e+00 : f32
    %138 = vector.broadcast %cst_103 : f32 to vector<256x16xf32>
    %139 = arith.select %22, %137, %138 : vector<256x16xi1>, vector<256x16xf32>
    %140 = arith.truncf %139 : vector<256x16xf32> to vector<256x16xbf16>
    %c25_104 = arith.constant 25 : index
    %c0_105 = arith.constant 0 : index
    %141 = vector.load %arg9[%c25_104, %c0_105] : memref<304x16xf32, #tpu.memory_space<vmem>>, vector<256x16xf32>
    %cst_106 = arith.constant 0.000000e+00 : f32
    %142 = vector.broadcast %cst_106 : f32 to vector<256x16xf32>
    %143 = arith.select %24, %141, %142 : vector<256x16xi1>, vector<256x16xf32>
    %144 = arith.truncf %143 : vector<256x16xf32> to vector<256x16xbf16>
    %c39_107 = arith.constant 39 : index
    %c0_108 = arith.constant 0 : index
    %145 = vector.load %arg9[%c39_107, %c0_108] : memref<304x16xf32, #tpu.memory_space<vmem>>, vector<256x16xf32>
    %cst_109 = arith.constant 0.000000e+00 : f32
    %146 = vector.broadcast %cst_109 : f32 to vector<256x16xf32>
    %147 = arith.select %22, %145, %146 : vector<256x16xi1>, vector<256x16xf32>
    %148 = arith.truncf %147 : vector<256x16xf32> to vector<256x16xbf16>
    %c40_110 = arith.constant 40 : index
    %c0_111 = arith.constant 0 : index
    %149 = vector.load %arg9[%c40_110, %c0_111] : memref<304x16xf32, #tpu.memory_space<vmem>>, vector<256x16xf32>
    %150 = arith.truncf %149 : vector<256x16xf32> to vector<256x16xbf16>
    %c41_112 = arith.constant 41 : index
    %c0_113 = arith.constant 0 : index
    %151 = vector.load %arg9[%c41_112, %c0_113] : memref<304x16xf32, #tpu.memory_space<vmem>>, vector<256x16xf32>
    %cst_114 = arith.constant 0.000000e+00 : f32
    %152 = vector.broadcast %cst_114 : f32 to vector<256x16xf32>
    %153 = arith.select %24, %151, %152 : vector<256x16xi1>, vector<256x16xf32>
    %154 = arith.truncf %153 : vector<256x16xf32> to vector<256x16xbf16>
    %155 = tpu.concatenate %130, %132, %136, %140, %144, %148, %150, %154 in 1 : vector<256x16xbf16>, vector<256x16xbf16>, vector<256x16xbf16>, vector<256x16xbf16>, vector<256x16xbf16>, vector<256x16xbf16>, vector<256x16xbf16>, vector<256x16xbf16> -> vector<256x128xbf16>
    %c24_115 = arith.constant 24 : index
    %c0_116 = arith.constant 0 : index
    %156 = vector.load %arg9[%c24_115, %c0_116] : memref<304x16xf32, #tpu.memory_space<vmem>>, vector<256x16xf32>
    %157 = arith.truncf %156 : vector<256x16xf32> to vector<256x16xbf16>
    %cst_117 = arith.constant dense<0.000000e+00> : vector<256x16xf32>
    %158 = tpu.matmul %155, %124, %cst_117 {dimension_numbers = #tpu.dot_dimension_numbers<[1], [0], [0], [1], [0, 0, 1, 1], [], []>} : vector<256x128xbf16>, vector<128x16xbf16>, vector<256x16xf32> -> vector<256x16xf32>
    %cst_118 = arith.constant dense<0.000000e+00> : vector<256x16xf32>
    %159 = tpu.matmul %157, %126, %cst_118 {dimension_numbers = #tpu.dot_dimension_numbers<[1], [0], [0], [1], [0, 0, 1, 1], [], []>} : vector<256x16xbf16>, vector<16x16xbf16>, vector<256x16xf32> -> vector<256x16xf32>
    %160 = arith.addf %158, %159 : vector<256x16xf32>
    %c1_119 = arith.constant 1 : index
    %c0_120 = arith.constant 0 : index
    %c0_121 = arith.constant 0 : index
    %161 = vector.load %arg6[%c1_119, %c0_120, %c0_121] : memref<2x1x16xf32, #tpu.memory_space<vmem>>, vector<1x1x16xf32>
    %162 = vector.shape_cast %161 : vector<1x1x16xf32> to vector<1x16xf32>
    %163 = vector.broadcast %162 : vector<1x16xf32> to vector<256x16xf32>
    %164 = arith.addf %160, %163 : vector<256x16xf32>
    %cst_122 = arith.constant 0.000000e+00 : f32
    %165 = vector.broadcast %cst_122 : f32 to vector<256x16xf32>
    %166 = arith.maximumf %164, %165 : vector<256x16xf32>
    %c24_123 = arith.constant 24 : index
    %c0_124 = arith.constant 0 : index
    %167 = vector.load %arg9[%c24_123, %c0_124] : memref<304x16xf32, #tpu.memory_space<vmem>>, vector<256x16xf32>
    tpu.vector_store %arg9[%c24_123, %c0_124], %166 {strides = array<i32>} : memref<304x16xf32, #tpu.memory_space<vmem>>, vector<256x16xf32>,
    %c1_125 = arith.constant 1 : index
    %c0_126 = arith.constant 0 : index
    %c0_127 = arith.constant 0 : index
    %168 = vector.load %arg4[%c1_125, %c0_126, %c0_127] : memref<2x128x16xbf16, #tpu.memory_space<vmem>>, vector<1x128x16xbf16>
    %169 = vector.shape_cast %168 : vector<1x128x16xbf16> to vector<128x16xbf16>
    %c1_128 = arith.constant 1 : index
    %c0_129 = arith.constant 0 : index
    %c0_130 = arith.constant 0 : index
    %170 = vector.load %arg5[%c1_128, %c0_129, %c0_130] : memref<2x16x16xbf16, #tpu.memory_space<vmem>>, vector<1x16x16xbf16>
    %171 = vector.shape_cast %170 : vector<1x16x16xbf16> to vector<16x16xbf16>
    %c7_131 = arith.constant 7 : index
    %c0_132 = arith.constant 0 : index
    %172 = vector.load %arg9[%c7_131, %c0_132] : memref<304x16xf32, #tpu.memory_space<vmem>>, vector<256x16xf32>
    %cst_133 = arith.constant 0.000000e+00 : f32
    %173 = vector.broadcast %cst_133 : f32 to vector<256x16xf32>
    %174 = arith.select %22, %172, %173 : vector<256x16xi1>, vector<256x16xf32>
    %175 = arith.truncf %174 : vector<256x16xf32> to vector<256x16xbf16>
    %c8_134 = arith.constant 8 : index
    %c0_135 = arith.constant 0 : index
    %176 = vector.load %arg9[%c8_134, %c0_135] : memref<304x16xf32, #tpu.memory_space<vmem>>, vector<256x16xf32>
    %177 = arith.truncf %176 : vector<256x16xf32> to vector<256x16xbf16>
    %c9_136 = arith.constant 9 : index
    %c0_137 = arith.constant 0 : index
    %178 = vector.load %arg9[%c9_136, %c0_137] : memref<304x16xf32, #tpu.memory_space<vmem>>, vector<256x16xf32>
    %cst_138 = arith.constant 0.000000e+00 : f32
    %179 = vector.broadcast %cst_138 : f32 to vector<256x16xf32>
    %180 = arith.select %24, %178, %179 : vector<256x16xi1>, vector<256x16xf32>
    %181 = arith.truncf %180 : vector<256x16xf32> to vector<256x16xbf16>
    %c23_139 = arith.constant 23 : index
    %c0_140 = arith.constant 0 : index
    %182 = vector.load %arg9[%c23_139, %c0_140] : memref<304x16xf32, #tpu.memory_space<vmem>>, vector<256x16xf32>
    %cst_141 = arith.constant 0.000000e+00 : f32
    %183 = vector.broadcast %cst_141 : f32 to vector<256x16xf32>
    %184 = arith.select %22, %182, %183 : vector<256x16xi1>, vector<256x16xf32>
    %185 = arith.truncf %184 : vector<256x16xf32> to vector<256x16xbf16>
    %c25_142 = arith.constant 25 : index
    %c0_143 = arith.constant 0 : index
    %186 = vector.load %arg9[%c25_142, %c0_143] : memref<304x16xf32, #tpu.memory_space<vmem>>, vector<256x16xf32>
    %cst_144 = arith.constant 0.000000e+00 : f32
    %187 = vector.broadcast %cst_144 : f32 to vector<256x16xf32>
    %188 = arith.select %24, %186, %187 : vector<256x16xi1>, vector<256x16xf32>
    %189 = arith.truncf %188 : vector<256x16xf32> to vector<256x16xbf16>
    %c39_145 = arith.constant 39 : index
    %c0_146 = arith.constant 0 : index
    %190 = vector.load %arg9[%c39_145, %c0_146] : memref<304x16xf32, #tpu.memory_space<vmem>>, vector<256x16xf32>
    %cst_147 = arith.constant 0.000000e+00 : f32
    %191 = vector.broadcast %cst_147 : f32 to vector<256x16xf32>
    %192 = arith.select %22, %190, %191 : vector<256x16xi1>, vector<256x16xf32>
    %193 = arith.truncf %192 : vector<256x16xf32> to vector<256x16xbf16>
    %c40_148 = arith.constant 40 : index
    %c0_149 = arith.constant 0 : index
    %194 = vector.load %arg9[%c40_148, %c0_149] : memref<304x16xf32, #tpu.memory_space<vmem>>, vector<256x16xf32>
    %195 = arith.truncf %194 : vector<256x16xf32> to vector<256x16xbf16>
    %c41_150 = arith.constant 41 : index
    %c0_151 = arith.constant 0 : index
    %196 = vector.load %arg9[%c41_150, %c0_151] : memref<304x16xf32, #tpu.memory_space<vmem>>, vector<256x16xf32>
    %cst_152 = arith.constant 0.000000e+00 : f32
    %197 = vector.broadcast %cst_152 : f32 to vector<256x16xf32>
    %198 = arith.select %24, %196, %197 : vector<256x16xi1>, vector<256x16xf32>
    %199 = arith.truncf %198 : vector<256x16xf32> to vector<256x16xbf16>
    %200 = tpu.concatenate %175, %177, %181, %185, %189, %193, %195, %199 in 1 : vector<256x16xbf16>, vector<256x16xbf16>, vector<256x16xbf16>, vector<256x16xbf16>, vector<256x16xbf16>, vector<256x16xbf16>, vector<256x16xbf16>, vector<256x16xbf16> -> vector<256x128xbf16>
    %c24_153 = arith.constant 24 : index
    %c0_154 = arith.constant 0 : index
    %201 = vector.load %arg9[%c24_153, %c0_154] : memref<304x16xf32, #tpu.memory_space<vmem>>, vector<256x16xf32>
    %202 = arith.truncf %201 : vector<256x16xf32> to vector<256x16xbf16>
    %cst_155 = arith.constant dense<0.000000e+00> : vector<256x16xf32>
    %203 = tpu.matmul %200, %169, %cst_155 {dimension_numbers = #tpu.dot_dimension_numbers<[1], [0], [0], [1], [0, 0, 1, 1], [], []>} : vector<256x128xbf16>, vector<128x16xbf16>, vector<256x16xf32> -> vector<256x16xf32>
    %cst_156 = arith.constant dense<0.000000e+00> : vector<256x16xf32>
    %204 = tpu.matmul %202, %171, %cst_156 {dimension_numbers = #tpu.dot_dimension_numbers<[1], [0], [0], [1], [0, 0, 1, 1], [], []>} : vector<256x16xbf16>, vector<16x16xbf16>, vector<256x16xf32> -> vector<256x16xf32>
    %205 = arith.addf %203, %204 : vector<256x16xf32>
    %c1_157 = arith.constant 1 : index
    %c0_158 = arith.constant 0 : index
    %c0_159 = arith.constant 0 : index
    %206 = vector.load %arg7[%c1_157, %c0_158, %c0_159] : memref<2x1x16xf32, #tpu.memory_space<vmem>>, vector<1x1x16xf32>
    %207 = vector.shape_cast %206 : vector<1x1x16xf32> to vector<1x16xf32>
    %208 = vector.broadcast %207 : vector<1x16xf32> to vector<256x16xf32>
    %209 = arith.addf %205, %208 : vector<256x16xf32>
    %c0_160 = arith.constant 0 : index
    %c0_161 = arith.constant 0 : index
    %210 = vector.load %arg8[%c0_160, %c0_161] : memref<256x16xf32, #tpu.memory_space<vmem>>, vector<256x16xf32>
    %211 = arith.addf %209, %210 : vector<256x16xf32>
    %cst_162 = arith.constant 0.000000e+00 : f32
    %212 = vector.broadcast %cst_162 : f32 to vector<256x16xf32>
    %213 = arith.maximumf %211, %212 : vector<256x16xf32>
    %c0_163 = arith.constant 0 : index
    %c0_164 = arith.constant 0 : index
    %214 = vector.load %arg8[%c0_163, %c0_164] : memref<256x16xf32, #tpu.memory_space<vmem>>, vector<256x16xf32>
    tpu.vector_store %arg8[%c0_163, %c0_164], %213 {strides = array<i32>} : memref<256x16xf32, #tpu.memory_space<vmem>>, vector<256x16xf32>,
    return
  }
  func.func @transform_0(%arg0: i32) -> (i32, i32) {
    %c0_i32 = arith.constant 0 : i32
    %c0_i32_0 = arith.constant 0 : i32
    return %arg0, %c0_i32 : i32, i32
  }
  func.func @transform_1(%arg0: i32) -> (i32, i32, i32) {
    %c0_i32 = arith.constant 0 : i32
    %c0_i32_0 = arith.constant 0 : i32
    %c0_i32_1 = arith.constant 0 : i32
    %c0_i32_2 = arith.constant 0 : i32
    return %c0_i32, %c0_i32_0, %c0_i32_1 : i32, i32, i32
  }
  func.func @transform_2(%arg0: i32) -> (i32, i32, i32) {
    %c0_i32 = arith.constant 0 : i32
    %c0_i32_0 = arith.constant 0 : i32
    %c0_i32_1 = arith.constant 0 : i32
    %c0_i32_2 = arith.constant 0 : i32
    return %c0_i32, %c0_i32_0, %c0_i32_1 : i32, i32, i32
  }
  func.func @transform_3(%arg0: i32) -> (i32, i32, i32) {
    %c0_i32 = arith.constant 0 : i32
    %c0_i32_0 = arith.constant 0 : i32
    %c0_i32_1 = arith.constant 0 : i32
    %c0_i32_2 = arith.constant 0 : i32
    return %c0_i32, %c0_i32_0, %c0_i32_1 : i32, i32, i32
  }
  func.func @transform_4(%arg0: i32) -> (i32, i32, i32) {
    %c0_i32 = arith.constant 0 : i32
    %c0_i32_0 = arith.constant 0 : i32
    %c0_i32_1 = arith.constant 0 : i32
    %c0_i32_2 = arith.constant 0 : i32
    return %c0_i32, %c0_i32_0, %c0_i32_1 : i32, i32, i32
  }
  func.func @transform_5(%arg0: i32) -> (i32, i32, i32) {
    %c0_i32 = arith.constant 0 : i32
    %c0_i32_0 = arith.constant 0 : i32
    %c0_i32_1 = arith.constant 0 : i32
    %c0_i32_2 = arith.constant 0 : i32
    return %c0_i32, %c0_i32_0, %c0_i32_1 : i32, i32, i32
  }
  func.func @transform_6(%arg0: i32) -> (i32, i32, i32) {
    %c0_i32 = arith.constant 0 : i32
    %c0_i32_0 = arith.constant 0 : i32
    %c0_i32_1 = arith.constant 0 : i32
    %c0_i32_2 = arith.constant 0 : i32
    return %c0_i32, %c0_i32_0, %c0_i32_1 : i32, i32, i32
  }
  func.func @transform_7(%arg0: i32) -> (i32, i32) {
    %c0_i32 = arith.constant 0 : i32
    %c0_i32_0 = arith.constant 0 : i32
    return %arg0, %c0_i32 : i32, i32
  }
}

</mosaic_0001>

<llo_original>
// kernel: resnet_task_layer_forward.1
$region0: #{resnet_task_layer_forward.1}
  #allocation0 [shape = 'u32[]', space=smem, size = 0x4, offset = 0x4, fixed_abs, tag = 'smem constant byte address 0x4 - core index']
  #allocation1 [shape = 'u32[72,128]{1,0:T(1,128)}', space=vmem, size = 0x9000, scoped, tag = 'internal scratch']
  #allocation2 [shape = 'f32[304,16]{1,0:T(8,128)}', space=vmem, size = 0x26000, scoped, tag = 'scratch operand']
  %s0 = inlined_call_operand.vmem [shape: f32[512,16], index: 0, kind: input, shape index: {}]
  %s1 = inlined_call_operand.vmem [shape: bf16[2,128,16], index: 1, kind: input, shape index: {}]
  %s2 = inlined_call_operand.vmem [shape: bf16[2,16,16], index: 2, kind: input, shape index: {}]
  %s3 = inlined_call_operand.vmem [shape: bf16[2,128,16], index: 3, kind: input, shape index: {}]
  %s4 = inlined_call_operand.vmem [shape: bf16[2,16,16], index: 4, kind: input, shape index: {}]
  %s5 = inlined_call_operand.vmem [shape: f32[2,1,16], index: 5, kind: input, shape index: {}]
  %s6 = inlined_call_operand.vmem [shape: f32[2,1,16], index: 6, kind: input, shape index: {}]
  %s7 = inlined_call_operand.vmem [shape: f32[512,16], index: 7, kind: output, shape index: {}]
  %s8 = sld [smem:[#allocation0]]
  $region61: #{resnet_task_layer_forward.1} parent=0
    _
  %s10 = ssub.s32 1, %s8
  %s11 = scalar_select 0, %s10, %s8
  loop: start=0, step=1, limit=4
  $region2: #{resnet_task_layer_forward.1} parent=0 // loop_pre_header
    _
  $region3: #{resnet_task_layer_forward.1} parent=0 // loop_header
    %s13 = sphi 0, %s17
    %p14 = scmp.ge.s32.totalorder %s13, 4
    %s23 = sphi 0, %s25
    %s26 = sphi 0, %s23
    %s27 = sphi 0, %s26
    %s43 = sphi 0, %s27
    %s47 = sphi 0, %s47
    %s49 = sphi 0, %s47
    %s50 = sphi 0, %s49
    %s64 = sphi 0, %s50
    %s68 = sphi 0, %s68
    %s70 = sphi 0, %s68
    %s71 = sphi 0, %s70
    %s85 = sphi 0, %s71
    %s89 = sphi 0, %s89
    %s91 = sphi 0, %s89
    %s92 = sphi 0, %s91
    %s106 = sphi 0, %s92
    %s110 = sphi 0, %s110
    %s112 = sphi 0, %s110
    %s113 = sphi 0, %s112
    %s127 = sphi 0, %s113
    %s131 = sphi 0, %s131
    %s133 = sphi 0, %s131
    %s134 = sphi 0, %s133
    %s148 = sphi 0, %s134
    %s152 = sphi 0, %s152
    %s154 = sphi 0, %s152
    %s155 = sphi 0, %s154
    %s169 = sphi 0, %s155
    %s175 = sphi 0, %s177
    %s178 = sphi 0, %s175
    %s179 = sphi 0, %s178
    %s195 = sphi 0, %s179
  $region4: #{resnet_task_layer_forward.1} parent=0 // loop_header_branch
    %16 = sbr.rel (%p14) target = $region8
  $region5: #{resnet_task_layer_forward.1} parent=0 // loop_body
    %s18 = ssub.s32 %s13, 1
    %s19 = ssub.s32 %s13, 2
    %s20 = sadd.s32 %s13, 1
    %s21 = ssub.s32 %s13, %s20
    %p22 = scmp.eq.s32.totalorder %s21, 0
    %s24 = sadd.s32 %s23, 1
    %s25 = scalar_select %p22, %s23, %s24
    %p28 = pneg %p22
    %p29 = scmp.eq.s32.totalorder %s13, 1
    %p30 = por %p28, %p29
    %p31 = scmp.ne.s32.totalorder %s23, %s26
    %p32 = scmp.eq.s32.totalorder %s13, 0
    %p33 = por %p31, %p32
    %p34 = scmp.ne.s32.totalorder %s23, %s26
    %p35 = scmp.eq.s32.totalorder %s18, 1
    %p36 = por %p34, %p35
    %p37 = scmp.ne.s32.totalorder %s26, %s27
    %p38 = scmp.eq.s32.totalorder %s18, 0
    %p39 = por %p37, %p38
    %p40 = scmp.ne.s32.totalorder %s26, %s27
    %p41 = scmp.eq.s32.totalorder %s19, 1
    %p42 = por %p40, %p41
    %p44 = scmp.ne.s32.totalorder %s27, %s43
    %p45 = scmp.eq.s32.totalorder %s19, 0
    %p46 = por %p44, %p45
    %s48 = sadd.s32 %s47, 1
    %p51 = scmp.eq.s32.totalorder %s13, 1
    %p52 = scmp.ne.s32.totalorder %s47, %s49
    %p53 = scmp.eq.s32.totalorder %s13, 0
    %p54 = por %p52, %p53
    %p55 = scmp.ne.s32.totalorder %s47, %s49
    %p56 = scmp.eq.s32.totalorder %s18, 1
    %p57 = por %p55, %p56
    %p58 = scmp.ne.s32.totalorder %s49, %s50
    %p59 = scmp.eq.s32.totalorder %s18, 0
    %p60 = por %p58, %p59
    %p61 = scmp.ne.s32.totalorder %s49, %s50
    %p62 = scmp.eq.s32.totalorder %s19, 1
    %p63 = por %p61, %p62
    %p65 = scmp.ne.s32.totalorder %s50, %s64
    %p66 = scmp.eq.s32.totalorder %s19, 0
    %p67 = por %p65, %p66
    %s69 = sadd.s32 %s68, 1
    %p72 = scmp.eq.s32.totalorder %s13, 1
    %p73 = scmp.ne.s32.totalorder %s68, %s70
    %p74 = scmp.eq.s32.totalorder %s13, 0
    %p75 = por %p73, %p74
    %p76 = scmp.ne.s32.totalorder %s68, %s70
    %p77 = scmp.eq.s32.totalorder %s18, 1
    %p78 = por %p76, %p77
    %p79 = scmp.ne.s32.totalorder %s70, %s71
    %p80 = scmp.eq.s32.totalorder %s18, 0
    %p81 = por %p79, %p80
    %p82 = scmp.ne.s32.totalorder %s70, %s71
    %p83 = scmp.eq.s32.totalorder %s19, 1
    %p84 = por %p82, %p83
    %p86 = scmp.ne.s32.totalorder %s71, %s85
    %p87 = scmp.eq.s32.totalorder %s19, 0
    %p88 = por %p86, %p87
    %s90 = sadd.s32 %s89, 1
    %p93 = scmp.eq.s32.totalorder %s13, 1
    %p94 = scmp.ne.s32.totalorder %s89, %s91
    %p95 = scmp.eq.s32.totalorder %s13, 0
    %p96 = por %p94, %p95
    %p97 = scmp.ne.s32.totalorder %s89, %s91
    %p98 = scmp.eq.s32.totalorder %s18, 1
    %p99 = por %p97, %p98
    %p100 = scmp.ne.s32.totalorder %s91, %s92
    %p101 = scmp.eq.s32.totalorder %s18, 0
    %p102 = por %p100, %p101
    %p103 = scmp.ne.s32.totalorder %s91, %s92
    %p104 = scmp.eq.s32.totalorder %s19, 1
    %p105 = por %p103, %p104
    %p107 = scmp.ne.s32.totalorder %s92, %s106
    %p108 = scmp.eq.s32.totalorder %s19, 0
    %p109 = por %p107, %p108
    %s111 = sadd.s32 %s110, 1
    %p114 = scmp.eq.s32.totalorder %s13, 1
    %p115 = scmp.ne.s32.totalorder %s110, %s112
    %p116 = scmp.eq.s32.totalorder %s13, 0
    %p117 = por %p115, %p116
    %p118 = scmp.ne.s32.totalorder %s110, %s112
    %p119 = scmp.eq.s32.totalorder %s18, 1
    %p120 = por %p118, %p119
    %p121 = scmp.ne.s32.totalorder %s112, %s113
    %p122 = scmp.eq.s32.totalorder %s18, 0
    %p123 = por %p121, %p122
    %p124 = scmp.ne.s32.totalorder %s112, %s113
    %p125 = scmp.eq.s32.totalorder %s19, 1
    %p126 = por %p124, %p125
    %p128 = scmp.ne.s32.totalorder %s113, %s127
    %p129 = scmp.eq.s32.totalorder %s19, 0
    %p130 = por %p128, %p129
    %s132 = sadd.s32 %s131, 1
    %p135 = scmp.eq.s32.totalorder %s13, 1
    %p136 = scmp.ne.s32.totalorder %s131, %s133
    %p137 = scmp.eq.s32.totalorder %s13, 0
    %p138 = por %p136, %p137
    %p139 = scmp.ne.s32.totalorder %s131, %s133
    %p140 = scmp.eq.s32.totalorder %s18, 1
    %p141 = por %p139, %p140
    %p142 = scmp.ne.s32.totalorder %s133, %s134
    %p143 = scmp.eq.s32.totalorder %s18, 0
    %p144 = por %p142, %p143
    %p145 = scmp.ne.s32.totalorder %s133, %s134
    %p146 = scmp.eq.s32.totalorder %s19, 1
    %p147 = por %p145, %p146
    %p149 = scmp.ne.s32.totalorder %s134, %s148
    %p150 = scmp.eq.s32.totalorder %s19, 0
    %p151 = por %p149, %p150
    %s153 = sadd.s32 %s152, 1
    %p156 = scmp.eq.s32.totalorder %s13, 1
    %p157 = scmp.ne.s32.totalorder %s152, %s154
    %p158 = scmp.eq.s32.totalorder %s13, 0
    %p159 = por %p157, %p158
    %p160 = scmp.ne.s32.totalorder %s152, %s154
    %p161 = scmp.eq.s32.totalorder %s18, 1
    %p162 = por %p160, %p161
    %p163 = scmp.ne.s32.totalorder %s154, %s155
    %p164 = scmp.eq.s32.totalorder %s18, 0
    %p165 = por %p163, %p164
    %p166 = scmp.ne.s32.totalorder %s154, %s155
    %p167 = scmp.eq.s32.totalorder %s19, 1
    %p168 = por %p166, %p167
    %p170 = scmp.ne.s32.totalorder %s155, %s169
    %p171 = scmp.eq.s32.totalorder %s19, 0
    %p172 = por %p170, %p171
    %s173 = ssub.s32 %s13, %s20
    %p174 = scmp.eq.s32.totalorder %s173, 0
    %s176 = sadd.s32 %s175, 1
    %s177 = scalar_select %p174, %s175, %s176
    %p180 = pneg %p174
    %p181 = scmp.eq.s32.totalorder %s13, 1
    %p182 = por %p180, %p181
    %p183 = scmp.ne.s32.totalorder %s175, %s178
    %p184 = scmp.eq.s32.totalorder %s13, 0
    %p185 = por %p183, %p184
    %p186 = scmp.ne.s32.totalorder %s175, %s178
    %p187 = scmp.eq.s32.totalorder %s18, 1
    %p188 = por %p186, %p187
    %p189 = scmp.ne.s32.totalorder %s178, %s179
    %p190 = scmp.eq.s32.totalorder %s18, 0
    %p191 = por %p189, %p190
    %p192 = scmp.ne.s32.totalorder %s178, %s179
    %p193 = scmp.eq.s32.totalorder %s19, 1
    %p194 = por %p192, %p193
    %p196 = scmp.ne.s32.totalorder %s179, %s195
    %p197 = scmp.eq.s32.totalorder %s19, 0
    %p198 = por %p196, %p197
    %p199 = scmp.le.s32.totalorder 1, %s13
    %p200 = scmp.lt.s32.totalorder %s13, 3
    %p201 = pnand %p199, %p200
    %p202 = pneg %p201
    // Predicated region
    $region9: #{resnet_task_layer_forward.1} parent=5 // pred_check
      _
    $region10: #{resnet_task_layer_forward.1} parent=5 // pred_check_branch
      %204 = sbr.rel (%p201) target = $region12
    $region11: #{resnet_task_layer_forward.1} parent=5 // pred_region
      %s205 = ssub.s32 %s13, 1
      // Predicated region
      $region13: #{resnet_task_layer_forward.1} parent=11 // pred_check
        %p206 = pneg %p60
      $region14: #{resnet_task_layer_forward.1} parent=11 // pred_check_branch
        %208 = sbr.rel (%p206) target = $region16
      $region15: #{resnet_task_layer_forward.1} parent=11 // pred_region
        _
      $region16: #{resnet_task_layer_forward.1} parent=11 // pred_fallthru
        _
      // Predicated region
      $region17: #{resnet_task_layer_forward.1} parent=11 // pred_check
        %p209 = pneg %p81
      $region18: #{resnet_task_layer_forward.1} parent=11 // pred_check_branch
        %211 = sbr.rel (%p209) target = $region20
      $region19: #{resnet_task_layer_forward.1} parent=11 // pred_region
        _
      $region20: #{resnet_task_layer_forward.1} parent=11 // pred_fallthru
        _
      // Predicated region
      $region21: #{resnet_task_layer_forward.1} parent=11 // pred_check
        %p212 = pneg %p102
      $region22: #{resnet_task_layer_forward.1} parent=11 // pred_check_branch
        %214 = sbr.rel (%p212) target = $region24
      $region23: #{resnet_task_layer_forward.1} parent=11 // pred_region
        _
      $region24: #{resnet_task_layer_forward.1} parent=11 // pred_fallthru
        _
      // Predicated region
      $region25: #{resnet_task_layer_forward.1} parent=11 // pred_check
        %p215 = pneg %p123
      $region26: #{resnet_task_layer_forward.1} parent=11 // pred_check_branch
        %217 = sbr.rel (%p215) target = $region28
      $region27: #{resnet_task_layer_forward.1} parent=11 // pred_region
        _
      $region28: #{resnet_task_layer_forward.1} parent=11 // pred_fallthru
        _
      // Predicated region
      $region29: #{resnet_task_layer_forward.1} parent=11 // pred_check
        %p218 = pneg %p144
      $region30: #{resnet_task_layer_forward.1} parent=11 // pred_check_branch
        %220 = sbr.rel (%p218) target = $region32
      $region31: #{resnet_task_layer_forward.1} parent=11 // pred_region
        _
      $region32: #{resnet_task_layer_forward.1} parent=11 // pred_fallthru
        _
      // Predicated region
      $region33: #{resnet_task_layer_forward.1} parent=11 // pred_check
        %p221 = pneg %p165
      $region34: #{resnet_task_layer_forward.1} parent=11 // pred_check_branch
        %223 = sbr.rel (%p221) target = $region36
      $region35: #{resnet_task_layer_forward.1} parent=11 // pred_region
        _
      $region36: #{resnet_task_layer_forward.1} parent=11 // pred_fallthru
        _
    $region12: #{resnet_task_layer_forward.1} parent=5 // pred_fallthru
      _
    %p224 = scmp.lt.s32.totalorder %s13, 2
    // Predicated region
    $region37: #{resnet_task_layer_forward.1} parent=5 // pred_check
      %p225 = pneg %p224
    $region38: #{resnet_task_layer_forward.1} parent=5 // pred_check_branch
      %227 = sbr.rel (%p225) target = $region40
    $region39: #{resnet_task_layer_forward.1} parent=5 // pred_region
      // Predicated region
      $region41: #{resnet_task_layer_forward.1} parent=39 // pred_check
        %p228 = pneg %p33
      $region42: #{resnet_task_layer_forward.1} parent=39 // pred_check_branch
        %230 = sbr.rel (%p228) target = $region44
      $region43: #{resnet_task_layer_forward.1} parent=39 // pred_region
        %s231 = smul.u32 32, %s13
        %p232 = scmp.lt.s32.totalorder %s231, 63
        %s233 = scalar_select %p232, %s231, 63
        %s234 = smul.addr %s233, 8
        %s235 = scalar_lea.vmem %s0, %s234
        %s236 = smul.u32 32, %s13
      $region44: #{resnet_task_layer_forward.1} parent=39 // pred_fallthru
        _
    $region40: #{resnet_task_layer_forward.1} parent=5 // pred_fallthru
      _
    %p237 = scmp.le.s32.totalorder 1, %s13
    %p238 = scmp.lt.s32.totalorder %s13, 3
    %p239 = pnand %p237, %p238
    %p240 = pneg %p239
    // Predicated region
    $region45: #{resnet_task_layer_forward.1} parent=5 // pred_check
      _
    $region46: #{resnet_task_layer_forward.1} parent=5 // pred_check_branch
      %242 = sbr.rel (%p239) target = $region48
    $region47: #{resnet_task_layer_forward.1} parent=5 // pred_region
      %s243 = ssub.s32 %s13, 1
      %s244 = smul.u32 32, %s18
      %p245 = scmp.lt.s32.totalorder %s244, 63
      %s246 = scalar_select %p245, %s244, 63
      %s247 = smul.addr %s246, 8
      %s248 = scalar_lea.vmem %s0, %s247
      %p249 = pneg %p39
      %p250 = pneg %p36
      %p251 = pneg %p60
      %p252 = pneg %p57
      %p253 = pneg %p81
      %p254 = pneg %p78
      %p255 = pneg %p102
      %p256 = pneg %p99
      %p257 = pneg %p123
      %p258 = pneg %p120
      %p259 = pneg %p144
      %p260 = pneg %p141
      %p261 = pneg %p165
      %p262 = pneg %p162
      %p263 = pneg %p191
      %p264 = pneg %p188
      %s265 = smul.u32 32, %s18
      %p266 = scmp.lt.s32.totalorder %s265, 63
      %s267 = scalar_select %p266, %s265, 63
      %s268 = smul.addr %s267, 8
      %s269 = scalar_lea.vmem %s7, %s268
      %s270 = smul.u32 32, %s18
      %p271 = scmp.lt.s32.totalorder %s270, 63
      %s272 = scalar_select %p271, %s270, 63
      %s273 = smul.addr %s272, 8
      %s274 = scalar_lea.vmem %s0, %s273
      %s275 = smul.u32 32, %s18
      %s276 = smul.u32 32, %s18
      %p277 = scmp.lt.s32.totalorder %s276, 63
      %s278 = scalar_select %p277, %s276, 63
      %s279 = smul.addr %s278, 8
      %s280 = scalar_lea.vmem %s7, %s279
      %s281 = smul.u32 32, %s18
      %vm283 = vcmask 130048
      %284 = vst.msk [vmem:[#allocation2] sm:$0xff] %vm283, 0.0
      %285 = vst.msk [vmem:[#allocation2 + $0x8] sm:$0xff] %vm283, 0.0
      %286 = vst.msk [vmem:[#allocation2 + $0x10] sm:$0xff] %vm283, 0.0
      %287 = vst.msk [vmem:[#allocation2 + $0x118] sm:$0xff] %vm283, 0.0
      %288 = vst.msk [vmem:[#allocation2 + $0x120] sm:$0xff] %vm283, 0.0
      %289 = vst.msk [vmem:[#allocation2 + $0x128] sm:$0xff] %vm283, 0.0
      %v290 = vlaneseq
      %v291 = vshrl.u32 %v290, 7
      %v292 = vadd.s32 %v291, 8
      %v293 = vadd.s32 %v291, 16
      %v294 = vadd.s32 %v291, 24
      %v295 = vadd.s32 %v291, 32
      %v296 = vadd.s32 %v291, 40
      %v297 = vadd.s32 %v291, 48
      %v298 = vadd.s32 %v291, 56
      %v299 = vadd.s32 %v291, 64
      %v300 = vadd.s32 %v291, 72
      %v301 = vadd.s32 %v291, 80
      %v302 = vadd.s32 %v291, 88
      %v303 = vadd.s32 %v291, 96
      %v304 = vadd.s32 %v291, 104
      %v305 = vadd.s32 %v291, 112
      %v306 = vadd.s32 %v291, 120
      %v307 = vadd.s32 %v291, 128
      %v308 = vadd.s32 %v291, 136
      %v309 = vadd.s32 %v291, 144
      %v310 = vadd.s32 %v291, 152
      %v311 = vadd.s32 %v291, 160
      %v312 = vadd.s32 %v291, 168
      %v313 = vadd.s32 %v291, 176
      %v314 = vadd.s32 %v291, 184
      %v315 = vadd.s32 %v291, 192
      %v316 = vadd.s32 %v291, 200
      %v317 = vadd.s32 %v291, 208
      %v318 = vadd.s32 %v291, 216
      %v319 = vadd.s32 %v291, 224
      %v320 = vadd.s32 %v291, 232
      %v321 = vadd.s32 %v291, 240
      %v322 = vadd.s32 %v291, 248
      %vm323 = vcmp.lt.s32.totalorder %v291, 0
      %v324 = vsub.s32 0, %v291
      %v325 = vsel %vm323, %v324, %v291
      %v326 = vshrl.u32 %v325, 4
      %v327 = vand.u32 %v325, 15
      %v328 = vsub.s32 0, %v327
      %v329 = vsel %vm323, %v328, %v327
      %vm330 = vcmp.lt.s32.totalorder %v292, 0
      %v331 = vsub.s32 0, %v292
      %v332 = vsel %vm330, %v331, %v292
      %v333 = vshrl.u32 %v332, 4
      %v334 = vand.u32 %v332, 15
      %v335 = vsub.s32 0, %v334
      %v336 = vsel %vm330, %v335, %v334
      %vm337 = vcmp.lt.s32.totalorder %v293, 0
      %v338 = vsub.s32 0, %v293
      %v339 = vsel %vm337, %v338, %v293
      %v340 = vshrl.u32 %v339, 4
      %v341 = vand.u32 %v339, 15
      %v342 = vsub.s32 0, %v341
      %v343 = vsel %vm337, %v342, %v341
      %vm344 = vcmp.lt.s32.totalorder %v294, 0
      %v345 = vsub.s32 0, %v294
      %v346 = vsel %vm344, %v345, %v294
      %v347 = vshrl.u32 %v346, 4
      %v348 = vand.u32 %v346, 15
      %v349 = vsub.s32 0, %v348
      %v350 = vsel %vm344, %v349, %v348
      %vm351 = vcmp.lt.s32.totalorder %v295, 0
      %v352 = vsub.s32 0, %v295
      %v353 = vsel %vm351, %v352, %v295
      %v354 = vshrl.u32 %v353, 4
      %v355 = vand.u32 %v353, 15
      %v356 = vsub.s32 0, %v355
      %v357 = vsel %vm351, %v356, %v355
      %vm358 = vcmp.lt.s32.totalorder %v296, 0
      %v359 = vsub.s32 0, %v296
      %v360 = vsel %vm358, %v359, %v296
      %v361 = vshrl.u32 %v360, 4
      %v362 = vand.u32 %v360, 15
      %v363 = vsub.s32 0, %v362
      %v364 = vsel %vm358, %v363, %v362
      %vm365 = vcmp.lt.s32.totalorder %v297, 0
      %v366 = vsub.s32 0, %v297
      %v367 = vsel %vm365, %v366, %v297
      %v368 = vshrl.u32 %v367, 4
      %v369 = vand.u32 %v367, 15
      %v370 = vsub.s32 0, %v369
      %v371 = vsel %vm365, %v370, %v369
      %vm372 = vcmp.lt.s32.totalorder %v298, 0
      %v373 = vsub.s32 0, %v298
      %v374 = vsel %vm372, %v373, %v298
      %v375 = vshrl.u32 %v374, 4
      %v376 = vand.u32 %v374, 15
      %v377 = vsub.s32 0, %v376
      %v378 = vsel %vm372, %v377, %v376
      %vm379 = vcmp.lt.s32.totalorder %v299, 0
      %v380 = vsub.s32 0, %v299
      %v381 = vsel %vm379, %v380, %v299
      %v382 = vshrl.u32 %v381, 4
      %v383 = vand.u32 %v381, 15
      %v384 = vsub.s32 0, %v383
      %v385 = vsel %vm379, %v384, %v383
      %vm386 = vcmp.lt.s32.totalorder %v300, 0
      %v387 = vsub.s32 0, %v300
      %v388 = vsel %vm386, %v387, %v300
      %v389 = vshrl.u32 %v388, 4
      %v390 = vand.u32 %v388, 15
      %v391 = vsub.s32 0, %v390
      %v392 = vsel %vm386, %v391, %v390
      %vm393 = vcmp.lt.s32.totalorder %v301, 0
      %v394 = vsub.s32 0, %v301
      %v395 = vsel %vm393, %v394, %v301
      %v396 = vshrl.u32 %v395, 4
      %v397 = vand.u32 %v395, 15
      %v398 = vsub.s32 0, %v397
      %v399 = vsel %vm393, %v398, %v397
      %vm400 = vcmp.lt.s32.totalorder %v302, 0
      %v401 = vsub.s32 0, %v302
      %v402 = vsel %vm400, %v401, %v302
      %v403 = vshrl.u32 %v402, 4
      %v404 = vand.u32 %v402, 15
      %v405 = vsub.s32 0, %v404
      %v406 = vsel %vm400, %v405, %v404
      %vm407 = vcmp.lt.s32.totalorder %v303, 0
      %v408 = vsub.s32 0, %v303
      %v409 = vsel %vm407, %v408, %v303
      %v410 = vshrl.u32 %v409, 4
      %v411 = vand.u32 %v409, 15
      %v412 = vsub.s32 0, %v411
      %v413 = vsel %vm407, %v412, %v411
      %vm414 = vcmp.lt.s32.totalorder %v304, 0
      %v415 = vsub.s32 0, %v304
      %v416 = vsel %vm414, %v415, %v304
      %v417 = vshrl.u32 %v416, 4
      %v418 = vand.u32 %v416, 15
      %v419 = vsub.s32 0, %v418
      %v420 = vsel %vm414, %v419, %v418
      %vm421 = vcmp.lt.s32.totalorder %v305, 0
      %v422 = vsub.s32 0, %v305
      %v423 = vsel %vm421, %v422, %v305
      %v424 = vshrl.u32 %v423, 4
      %v425 = vand.u32 %v423, 15
      %v426 = vsub.s32 0, %v425
      %v427 = vsel %vm421, %v426, %v425
      %vm428 = vcmp.lt.s32.totalorder %v306, 0
      %v429 = vsub.s32 0, %v306
      %v430 = vsel %vm428, %v429, %v306
      %v431 = vshrl.u32 %v430, 4
      %v432 = vand.u32 %v430, 15
      %v433 = vsub.s32 0, %v432
      %v434 = vsel %vm428, %v433, %v432
      %vm435 = vcmp.lt.s32.totalorder %v307, 0
      %v436 = vsub.s32 0, %v307
      %v437 = vsel %vm435, %v436, %v307
      %v438 = vshrl.u32 %v437, 4
      %v439 = vand.u32 %v437, 15
      %v440 = vsub.s32 0, %v439
      %v441 = vsel %vm435, %v440, %v439
      %vm442 = vcmp.lt.s32.totalorder %v308, 0
      %v443 = vsub.s32 0, %v308
      %v444 = vsel %vm442, %v443, %v308
      %v445 = vshrl.u32 %v444, 4
      %v446 = vand.u32 %v444, 15
      %v447 = vsub.s32 0, %v446
      %v448 = vsel %vm442, %v447, %v446
      %vm449 = vcmp.lt.s32.totalorder %v309, 0
      %v450 = vsub.s32 0, %v309
      %v451 = vsel %vm449, %v450, %v309
      %v452 = vshrl.u32 %v451, 4
      %v453 = vand.u32 %v451, 15
      %v454 = vsub.s32 0, %v453
      %v455 = vsel %vm449, %v454, %v453
      %vm456 = vcmp.lt.s32.totalorder %v310, 0
      %v457 = vsub.s32 0, %v310
      %v458 = vsel %vm456, %v457, %v310
      %v459 = vshrl.u32 %v458, 4
      %v460 = vand.u32 %v458, 15
      %v461 = vsub.s32 0, %v460
      %v462 = vsel %vm456, %v461, %v460
      %vm463 = vcmp.lt.s32.totalorder %v311, 0
      %v464 = vsub.s32 0, %v311
      %v465 = vsel %vm463, %v464, %v311
      %v466 = vshrl.u32 %v465, 4
      %v467 = vand.u32 %v465, 15
      %v468 = vsub.s32 0, %v467
      %v469 = vsel %vm463, %v468, %v467
      %vm470 = vcmp.lt.s32.totalorder %v312, 0
      %v471 = vsub.s32 0, %v312
      %v472 = vsel %vm470, %v471, %v312
      %v473 = vshrl.u32 %v472, 4
      %v474 = vand.u32 %v472, 15
      %v475 = vsub.s32 0, %v474
      %v476 = vsel %vm470, %v475, %v474
      %vm477 = vcmp.lt.s32.totalorder %v313, 0
      %v478 = vsub.s32 0, %v313
      %v479 = vsel %vm477, %v478, %v313
      %v480 = vshrl.u32 %v479, 4
      %v481 = vand.u32 %v479, 15
      %v482 = vsub.s32 0, %v481
      %v483 = vsel %vm477, %v482, %v481
      %vm484 = vcmp.lt.s32.totalorder %v314, 0
      %v485 = vsub.s32 0, %v314
      %v486 = vsel %vm484, %v485, %v314
      %v487 = vshrl.u32 %v486, 4
      %v488 = vand.u32 %v486, 15
      %v489 = vsub.s32 0, %v488
      %v490 = vsel %vm484, %v489, %v488
      %vm491 = vcmp.lt.s32.totalorder %v315, 0
      %v492 = vsub.s32 0, %v315
      %v493 = vsel %vm491, %v492, %v315
      %v494 = vshrl.u32 %v493, 4
      %v495 = vand.u32 %v493, 15
      %v496 = vsub.s32 0, %v495
      %v497 = vsel %vm491, %v496, %v495
      %vm498 = vcmp.lt.s32.totalorder %v316, 0
      %v499 = vsub.s32 0, %v316
      %v500 = vsel %vm498, %v499, %v316
      %v501 = vshrl.u32 %v500, 4
      %v502 = vand.u32 %v500, 15
      %v503 = vsub.s32 0, %v502
      %v504 = vsel %vm498, %v503, %v502
      %vm505 = vcmp.lt.s32.totalorder %v317, 0
      %v506 = vsub.s32 0, %v317
      %v507 = vsel %vm505, %v506, %v317
      %v508 = vshrl.u32 %v507, 4
      %v509 = vand.u32 %v507, 15
      %v510 = vsub.s32 0, %v509
      %v511 = vsel %vm505, %v510, %v509
      %vm512 = vcmp.lt.s32.totalorder %v318, 0
      %v513 = vsub.s32 0, %v318
      %v514 = vsel %vm512, %v513, %v318
      %v515 = vshrl.u32 %v514, 4
      %v516 = vand.u32 %v514, 15
      %v517 = vsub.s32 0, %v516
      %v518 = vsel %vm512, %v517, %v516
      %vm519 = vcmp.lt.s32.totalorder %v319, 0
      %v520 = vsub.s32 0, %v319
      %v521 = vsel %vm519, %v520, %v319
      %v522 = vshrl.u32 %v521, 4
      %v523 = vand.u32 %v521, 15
      %v524 = vsub.s32 0, %v523
      %v525 = vsel %vm519, %v524, %v523
      %vm526 = vcmp.lt.s32.totalorder %v320, 0
      %v527 = vsub.s32 0, %v320
      %v528 = vsel %vm526, %v527, %v320
      %v529 = vshrl.u32 %v528, 4
      %v530 = vand.u32 %v528, 15
      %v531 = vsub.s32 0, %v530
      %v532 = vsel %vm526, %v531, %v530
      %vm533 = vcmp.lt.s32.totalorder %v321, 0
      %v534 = vsub.s32 0, %v321
      %v535 = vsel %vm533, %v534, %v321
      %v536 = vshrl.u32 %v535, 4
      %v537 = vand.u32 %v535, 15
      %v538 = vsub.s32 0, %v537
      %v539 = vsel %vm533, %v538, %v537
      %vm540 = vcmp.lt.s32.totalorder %v322, 0
      %v541 = vsub.s32 0, %v322
      %v542 = vsel %vm540, %v541, %v322
      %v543 = vshrl.u32 %v542, 4
      %v544 = vand.u32 %v542, 15
      %v545 = vsub.s32 0, %v544
      %v546 = vsel %vm540, %v545, %v544
      %vm547 = vcmp.ne.s32.totalorder %v329, 0
      %vm548 = vcmp.ne.s32.totalorder %v336, 0
      %vm549 = vcmp.ne.s32.totalorder %v343, 0
      %vm550 = vcmp.ne.s32.totalorder %v350, 0
      %vm551 = vcmp.ne.s32.totalorder %v357, 0
      %vm552 = vcmp.ne.s32.totalorder %v364, 0
      %vm553 = vcmp.ne.s32.totalorder %v371, 0
      %vm554 = vcmp.ne.s32.totalorder %v378, 0
      %vm555 = vcmp.ne.s32.totalorder %v385, 0
      %vm556 = vcmp.ne.s32.totalorder %v392, 0
      %vm557 = vcmp.ne.s32.totalorder %v399, 0
      %vm558 = vcmp.ne.s32.totalorder %v406, 0
      %vm559 = vcmp.ne.s32.totalorder %v413, 0
      %vm560 = vcmp.ne.s32.totalorder %v420, 0
      %vm561 = vcmp.ne.s32.totalorder %v427, 0
      %vm562 = vcmp.ne.s32.totalorder %v434, 0
      %vm563 = vcmp.ne.s32.totalorder %v441, 0
      %vm564 = vcmp.ne.s32.totalorder %v448, 0
      %vm565 = vcmp.ne.s32.totalorder %v455, 0
      %vm566 = vcmp.ne.s32.totalorder %v462, 0
      %vm567 = vcmp.ne.s32.totalorder %v469, 0
      %vm568 = vcmp.ne.s32.totalorder %v476, 0
      %vm569 = vcmp.ne.s32.totalorder %v483, 0
      %vm570 = vcmp.ne.s32.totalorder %v490, 0
      %vm571 = vcmp.ne.s32.totalorder %v497, 0
      %vm572 = vcmp.ne.s32.totalorder %v504, 0
      %vm573 = vcmp.ne.s32.totalorder %v511, 0
      %vm574 = vcmp.ne.s32.totalorder %v518, 0
      %vm575 = vcmp.ne.s32.totalorder %v525, 0
      %vm576 = vcmp.ne.s32.totalorder %v532, 0
      %vm577 = vcmp.ne.s32.totalorder %v539, 0
      %vm578 = vcmp.ne.s32.totalorder %v546, 0
      %vm579 = vcmp.lt.s32.totalorder %v329, 0
      %vm580 = vcmp.lt.s32.totalorder %v336, 0
      %vm581 = vcmp.lt.s32.totalorder %v343, 0
      %vm582 = vcmp.lt.s32.totalorder %v350, 0
      %vm583 = vcmp.lt.s32.totalorder %v357, 0
      %vm584 = vcmp.lt.s32.totalorder %v364, 0
      %vm585 = vcmp.lt.s32.totalorder %v371, 0
      %vm586 = vcmp.lt.s32.totalorder %v378, 0
      %vm587 = vcmp.lt.s32.totalorder %v385, 0
      %vm588 = vcmp.lt.s32.totalorder %v392, 0
      %vm589 = vcmp.lt.s32.totalorder %v399, 0
      %vm590 = vcmp.lt.s32.totalorder %v406, 0
      %vm591 = vcmp.lt.s32.totalorder %v413, 0
      %vm592 = vcmp.lt.s32.totalorder %v420, 0
      %vm593 = vcmp.lt.s32.totalorder %v427, 0
      %vm594 = vcmp.lt.s32.totalorder %v434, 0
      %vm595 = vcmp.lt.s32.totalorder %v441, 0
      %vm596 = vcmp.lt.s32.totalorder %v448, 0
      %vm597 = vcmp.lt.s32.totalorder %v455, 0
      %vm598 = vcmp.lt.s32.totalorder %v462, 0
      %vm599 = vcmp.lt.s32.totalorder %v469, 0
      %vm600 = vcmp.lt.s32.totalorder %v476, 0
      %vm601 = vcmp.lt.s32.totalorder %v483, 0
      %vm602 = vcmp.lt.s32.totalorder %v490, 0
      %vm603 = vcmp.lt.s32.totalorder %v497, 0
      %vm604 = vcmp.lt.s32.totalorder %v504, 0
      %vm605 = vcmp.lt.s32.totalorder %v511, 0
      %vm606 = vcmp.lt.s32.totalorder %v518, 0
      %vm607 = vcmp.lt.s32.totalorder %v525, 0
      %vm608 = vcmp.lt.s32.totalorder %v532, 0
      %vm609 = vcmp.lt.s32.totalorder %v539, 0
      %vm610 = vcmp.lt.s32.totalorder %v546, 0
      %vm611 = vmand %vm579, %vm547
      %vm612 = vmand %vm580, %vm548
      %vm613 = vmand %vm581, %vm549
      %vm614 = vmand %vm582, %vm550
      %vm615 = vmand %vm583, %vm551
      %vm616 = vmand %vm584, %vm552
      %vm617 = vmand %vm585, %vm553
      %vm618 = vmand %vm586, %vm554
      %vm619 = vmand %vm587, %vm555
      %vm620 = vmand %vm588, %vm556
      %vm621 = vmand %vm589, %vm557
      %vm622 = vmand %vm590, %vm558
      %vm623 = vmand %vm591, %vm559
      %vm624 = vmand %vm592, %vm560
      %vm625 = vmand %vm593, %vm561
      %vm626 = vmand %vm594, %vm562
      %vm627 = vmand %vm595, %vm563
      %vm628 = vmand %vm596, %vm564
      %vm629 = vmand %vm597, %vm565
      %vm630 = vmand %vm598, %vm566
      %vm631 = vmand %vm599, %vm567
      %vm632 = vmand %vm600, %vm568
      %vm633 = vmand %vm601, %vm569
      %vm634 = vmand %vm602, %vm570
      %vm635 = vmand %vm603, %vm571
      %vm636 = vmand %vm604, %vm572
      %vm637 = vmand %vm605, %vm573
      %vm638 = vmand %vm606, %vm574
      %vm639 = vmand %vm607, %vm575
      %vm640 = vmand %vm608, %vm576
      %vm641 = vmand %vm609, %vm577
      %vm642 = vmand %vm610, %vm578
      %v643 = vadd.s32 %v329, 16
      %v644 = vadd.s32 %v336, 16
      %v645 = vadd.s32 %v343, 16
      %v646 = vadd.s32 %v350, 16
      %v647 = vadd.s32 %v357, 16
      %v648 = vadd.s32 %v364, 16
      %v649 = vadd.s32 %v371, 16
      %v650 = vadd.s32 %v378, 16
      %v651 = vadd.s32 %v385, 16
      %v652 = vadd.s32 %v392, 16
      %v653 = vadd.s32 %v399, 16
      %v654 = vadd.s32 %v406, 16
      %v655 = vadd.s32 %v413, 16
      %v656 = vadd.s32 %v420, 16
      %v657 = vadd.s32 %v427, 16
      %v658 = vadd.s32 %v434, 16
      %v659 = vadd.s32 %v441, 16
      %v660 = vadd.s32 %v448, 16
      %v661 = vadd.s32 %v455, 16
      %v662 = vadd.s32 %v462, 16
      %v663 = vadd.s32 %v469, 16
      %v664 = vadd.s32 %v476, 16
      %v665 = vadd.s32 %v483, 16
      %v666 = vadd.s32 %v490, 16
      %v667 = vadd.s32 %v497, 16
      %v668 = vadd.s32 %v504, 16
      %v669 = vadd.s32 %v511, 16
      %v670 = vadd.s32 %v518, 16
      %v671 = vadd.s32 %v525, 16
      %v672 = vadd.s32 %v532, 16
      %v673 = vadd.s32 %v539, 16
      %v674 = vadd.s32 %v546, 16
      %v675 = vsel %vm611, %v643, %v329
      %v676 = vsel %vm612, %v644, %v336
      %v677 = vsel %vm613, %v645, %v343
      %v678 = vsel %vm614, %v646, %v350
      %v679 = vsel %vm615, %v647, %v357
      %v680 = vsel %vm616, %v648, %v364
      %v681 = vsel %vm617, %v649, %v371
      %v682 = vsel %vm618, %v650, %v378
      %v683 = vsel %vm619, %v651, %v385
      %v684 = vsel %vm620, %v652, %v392
      %v685 = vsel %vm621, %v653, %v399
      %v686 = vsel %vm622, %v654, %v406
      %v687 = vsel %vm623, %v655, %v413
      %v688 = vsel %vm624, %v656, %v420
      %v689 = vsel %vm625, %v657, %v427
      %v690 = vsel %vm626, %v658, %v434
      %v691 = vsel %vm627, %v659, %v441
      %v692 = vsel %vm628, %v660, %v448
      %v693 = vsel %vm629, %v661, %v455
      %v694 = vsel %vm630, %v662, %v462
      %v695 = vsel %vm631, %v663, %v469
      %v696 = vsel %vm632, %v664, %v476
      %v697 = vsel %vm633, %v665, %v483
      %v698 = vsel %vm634, %v666, %v490
      %v699 = vsel %vm635, %v667, %v497
      %v700 = vsel %vm636, %v668, %v504
      %v701 = vsel %vm637, %v669, %v511
      %v702 = vsel %vm638, %v670, %v518
      %v703 = vsel %vm639, %v671, %v525
      %v704 = vsel %vm640, %v672, %v532
      %v705 = vsel %vm641, %v673, %v539
      %v706 = vsel %vm642, %v674, %v546
      %vm707 = vcmp.gt.s32.totalorder %v675, 0
      %vm708 = vcmp.gt.s32.totalorder %v676, 0
      %vm709 = vcmp.gt.s32.totalorder %v677, 0
      %vm710 = vcmp.gt.s32.totalorder %v678, 0
      %vm711 = vcmp.gt.s32.totalorder %v679, 0
      %vm712 = vcmp.gt.s32.totalorder %v680, 0
      %vm713 = vcmp.gt.s32.totalorder %v681, 0
      %vm714 = vcmp.gt.s32.totalorder %v682, 0
      %vm715 = vcmp.gt.s32.totalorder %v683, 0
      %vm716 = vcmp.gt.s32.totalorder %v684, 0
      %vm717 = vcmp.gt.s32.totalorder %v685, 0
      %vm718 = vcmp.gt.s32.totalorder %v686, 0
      %vm719 = vcmp.gt.s32.totalorder %v687, 0
      %vm720 = vcmp.gt.s32.totalorder %v688, 0
      %vm721 = vcmp.gt.s32.totalorder %v689, 0
      %vm722 = vcmp.gt.s32.totalorder %v690, 0
      %vm723 = vcmp.gt.s32.totalorder %v691, 0
      %vm724 = vcmp.gt.s32.totalorder %v692, 0
      %vm725 = vcmp.gt.s32.totalorder %v693, 0
      %vm726 = vcmp.gt.s32.totalorder %v694, 0
      %vm727 = vcmp.gt.s32.totalorder %v695, 0
      %vm728 = vcmp.gt.s32.totalorder %v696, 0
      %vm729 = vcmp.gt.s32.totalorder %v697, 0
      %vm730 = vcmp.gt.s32.totalorder %v698, 0
      %vm731 = vcmp.gt.s32.totalorder %v699, 0
      %vm732 = vcmp.gt.s32.totalorder %v700, 0
      %vm733 = vcmp.gt.s32.totalorder %v701, 0
      %vm734 = vcmp.gt.s32.totalorder %v702, 0
      %vm735 = vcmp.gt.s32.totalorder %v703, 0
      %vm736 = vcmp.gt.s32.totalorder %v704, 0
      %vm737 = vcmp.gt.s32.totalorder %v705, 0
      %vm738 = vcmp.gt.s32.totalorder %v706, 0
      %vm739 = vcmp.lt.s32.totalorder %v675, 15
      %vm740 = vcmp.lt.s32.totalorder %v676, 15
      %vm741 = vcmp.lt.s32.totalorder %v677, 15
      %vm742 = vcmp.lt.s32.totalorder %v678, 15
      %vm743 = vcmp.lt.s32.totalorder %v679, 15
      %vm744 = vcmp.lt.s32.totalorder %v680, 15
      %vm745 = vcmp.lt.s32.totalorder %v681, 15
      %vm746 = vcmp.lt.s32.totalorder %v682, 15
      %vm747 = vcmp.lt.s32.totalorder %v683, 15
      %vm748 = vcmp.lt.s32.totalorder %v684, 15
      %vm749 = vcmp.lt.s32.totalorder %v685, 15
      %vm750 = vcmp.lt.s32.totalorder %v686, 15
      %vm751 = vcmp.lt.s32.totalorder %v687, 15
      %vm752 = vcmp.lt.s32.totalorder %v688, 15
      %vm753 = vcmp.lt.s32.totalorder %v689, 15
      %vm754 = vcmp.lt.s32.totalorder %v690, 15
      %vm755 = vcmp.lt.s32.totalorder %v691, 15
      %vm756 = vcmp.lt.s32.totalorder %v692, 15
      %vm757 = vcmp.lt.s32.totalorder %v693, 15
      %vm758 = vcmp.lt.s32.totalorder %v694, 15
      %vm759 = vcmp.lt.s32.totalorder %v695, 15
      %vm760 = vcmp.lt.s32.totalorder %v696, 15
      %vm761 = vcmp.lt.s32.totalorder %v697, 15
      %vm762 = vcmp.lt.s32.totalorder %v698, 15
      %vm763 = vcmp.lt.s32.totalorder %v699, 15
      %vm764 = vcmp.lt.s32.totalorder %v700, 15
      %vm765 = vcmp.lt.s32.totalorder %v701, 15
      %vm766 = vcmp.lt.s32.totalorder %v702, 15
      %vm767 = vcmp.lt.s32.totalorder %v703, 15
      %vm768 = vcmp.lt.s32.totalorder %v704, 15
      %vm769 = vcmp.lt.s32.totalorder %v705, 15
      %vm770 = vcmp.lt.s32.totalorder %v706, 15
      %v771 = vld [vmem:[%s274] sm:$0xff]
      %v772 = vld [vmem:[%s274 + $0x8] sm:$0xff]
      %v773 = vld [vmem:[%s274 + $0x10] sm:$0xff]
      %v774 = vld [vmem:[%s274 + $0x18] sm:$0xff]
      %v775 = vld [vmem:[%s274 + $0x20] sm:$0xff]
      %v776 = vld [vmem:[%s274 + $0x28] sm:$0xff]
      %v777 = vld [vmem:[%s274 + $0x30] sm:$0xff]
      %v778 = vld [vmem:[%s274 + $0x38] sm:$0xff]
      %v779 = vld [vmem:[%s274 + $0x40] sm:$0xff]
      %v780 = vld [vmem:[%s274 + $0x48] sm:$0xff]
      %v781 = vld [vmem:[%s274 + $0x50] sm:$0xff]
      %v782 = vld [vmem:[%s274 + $0x58] sm:$0xff]
      %v783 = vld [vmem:[%s274 + $0x60] sm:$0xff]
      %v784 = vld [vmem:[%s274 + $0x68] sm:$0xff]
      %v785 = vld [vmem:[%s274 + $0x70] sm:$0xff]
      %v786 = vld [vmem:[%s274 + $0x78] sm:$0xff]
      %v787 = vld [vmem:[%s274 + $0x80] sm:$0xff]
      %v788 = vld [vmem:[%s274 + $0x88] sm:$0xff]
      %v789 = vld [vmem:[%s274 + $0x90] sm:$0xff]
      %v790 = vld [vmem:[%s274 + $0x98] sm:$0xff]
      %v791 = vld [vmem:[%s274 + $0xa0] sm:$0xff]
      %v792 = vld [vmem:[%s274 + $0xa8] sm:$0xff]
      %v793 = vld [vmem:[%s274 + $0xb0] sm:$0xff]
      %v794 = vld [vmem:[%s274 + $0xb8] sm:$0xff]
      %v795 = vld [vmem:[%s274 + $0xc0] sm:$0xff]
      %v796 = vld [vmem:[%s274 + $0xc8] sm:$0xff]
      %v797 = vld [vmem:[%s274 + $0xd0] sm:$0xff]
      %v798 = vld [vmem:[%s274 + $0xd8] sm:$0xff]
      %v799 = vld [vmem:[%s274 + $0xe0] sm:$0xff]
      %v800 = vld [vmem:[%s274 + $0xe8] sm:$0xff]
      %v801 = vld [vmem:[%s274 + $0xf0] sm:$0xff]
      %v802 = vld [vmem:[%s274 + $0xf8] sm:$0xff]
      %803 = vst.msk [vmem:[%s280] sm:$0xff] %vm283, %v771
      %804 = vst.msk [vmem:[%s280 + $0x8] sm:$0xff] %vm283, %v772
      %805 = vst.msk [vmem:[%s280 + $0x10] sm:$0xff] %vm283, %v773
      %806 = vst.msk [vmem:[%s280 + $0x18] sm:$0xff] %vm283, %v774
      %807 = vst.msk [vmem:[%s280 + $0x20] sm:$0xff] %vm283, %v775
      %808 = vst.msk [vmem:[%s280 + $0x28] sm:$0xff] %vm283, %v776
      %809 = vst.msk [vmem:[%s280 + $0x30] sm:$0xff] %vm283, %v777
      %810 = vst.msk [vmem:[%s280 + $0x38] sm:$0xff] %vm283, %v778
      %811 = vst.msk [vmem:[%s280 + $0x40] sm:$0xff] %vm283, %v779
      %812 = vst.msk [vmem:[%s280 + $0x48] sm:$0xff] %vm283, %v780
      %813 = vst.msk [vmem:[%s280 + $0x50] sm:$0xff] %vm283, %v781
      %814 = vst.msk [vmem:[%s280 + $0x58] sm:$0xff] %vm283, %v782
      %815 = vst.msk [vmem:[%s280 + $0x60] sm:$0xff] %vm283, %v783
      %816 = vst.msk [vmem:[%s280 + $0x68] sm:$0xff] %vm283, %v784
      %817 = vst.msk [vmem:[%s280 + $0x70] sm:$0xff] %vm283, %v785
      %818 = vst.msk [vmem:[%s280 + $0x78] sm:$0xff] %vm283, %v786
      %819 = vst.msk [vmem:[%s280 + $0x80] sm:$0xff] %vm283, %v787
      %820 = vst.msk [vmem:[%s280 + $0x88] sm:$0xff] %vm283, %v788
      %821 = vst.msk [vmem:[%s280 + $0x90] sm:$0xff] %vm283, %v789
      %822 = vst.msk [vmem:[%s280 + $0x98] sm:$0xff] %vm283, %v790
      %823 = vst.msk [vmem:[%s280 + $0xa0] sm:$0xff] %vm283, %v791
      %824 = vst.msk [vmem:[%s280 + $0xa8] sm:$0xff] %vm283, %v792
      %825 = vst.msk [vmem:[%s280 + $0xb0] sm:$0xff] %vm283, %v793
      %826 = vst.msk [vmem:[%s280 + $0xb8] sm:$0xff] %vm283, %v794
      %827 = vst.msk [vmem:[%s280 + $0xc0] sm:$0xff] %vm283, %v795
      %828 = vst.msk [vmem:[%s280 + $0xc8] sm:$0xff] %vm283, %v796
      %829 = vst.msk [vmem:[%s280 + $0xd0] sm:$0xff] %vm283, %v797
      %830 = vst.msk [vmem:[%s280 + $0xd8] sm:$0xff] %vm283, %v798
      %831 = vst.msk [vmem:[%s280 + $0xe0] sm:$0xff] %vm283, %v799
      %832 = vst.msk [vmem:[%s280 + $0xe8] sm:$0xff] %vm283, %v800
      %833 = vst.msk [vmem:[%s280 + $0xf0] sm:$0xff] %vm283, %v801
      %834 = vst.msk [vmem:[%s280 + $0xf8] sm:$0xff] %vm283, %v802
      %v835 = vld [vmem:[%s280] sm:$0xff]
      %v836 = vld [vmem:[%s280 + $0x8] sm:$0xff]
      %v837 = vld [vmem:[%s280 + $0x10] sm:$0xff]
      %v838 = vld [vmem:[%s280 + $0x18] sm:$0xff]
      %v839 = vld [vmem:[%s280 + $0x20] sm:$0xff]
      %v840 = vld [vmem:[%s280 + $0x28] sm:$0xff]
      %v841 = vld [vmem:[%s280 + $0x30] sm:$0xff]
      %v842 = vld [vmem:[%s280 + $0x38] sm:$0xff]
      %v843 = vld [vmem:[%s280 + $0x40] sm:$0xff]
      %v844 = vld [vmem:[%s280 + $0x48] sm:$0xff]
      %v845 = vld [vmem:[%s280 + $0x50] sm:$0xff]
      %v846 = vld [vmem:[%s280 + $0x58] sm:$0xff]
      %v847 = vld [vmem:[%s280 + $0x60] sm:$0xff]
      %v848 = vld [vmem:[%s280 + $0x68] sm:$0xff]
      %v849 = vld [vmem:[%s280 + $0x70] sm:$0xff]
      %v850 = vld [vmem:[%s280 + $0x78] sm:$0xff]
      %v851 = vld [vmem:[%s280 + $0x80] sm:$0xff]
      %v852 = vld [vmem:[%s280 + $0x88] sm:$0xff]
      %v853 = vld [vmem:[%s280 + $0x90] sm:$0xff]
      %v854 = vld [vmem:[%s280 + $0x98] sm:$0xff]
      %v855 = vld [vmem:[%s280 + $0xa0] sm:$0xff]
      %v856 = vld [vmem:[%s280 + $0xa8] sm:$0xff]
      %v857 = vld [vmem:[%s280 + $0xb0] sm:$0xff]
      %v858 = vld [vmem:[%s280 + $0xb8] sm:$0xff]
      %v859 = vld [vmem:[%s280 + $0xc0] sm:$0xff]
      %v860 = vld [vmem:[%s280 + $0xc8] sm:$0xff]
      %v861 = vld [vmem:[%s280 + $0xd0] sm:$0xff]
      %v862 = vld [vmem:[%s280 + $0xd8] sm:$0xff]
      %v863 = vld [vmem:[%s280 + $0xe0] sm:$0xff]
      %v864 = vld [vmem:[%s280 + $0xe8] sm:$0xff]
      %v865 = vld [vmem:[%s280 + $0xf0] sm:$0xff]
      %v866 = vld [vmem:[%s280 + $0xf8] sm:$0xff]
      %867 = vst.msk [vmem:[#allocation2 + $0x18] sm:$0xff] %vm283, %v835
      %868 = vst.msk [vmem:[#allocation2 + $0x20] sm:$0xff] %vm283, %v836
      %869 = vst.msk [vmem:[#allocation2 + $0x28] sm:$0xff] %vm283, %v837
      %870 = vst.msk [vmem:[#allocation2 + $0x30] sm:$0xff] %vm283, %v838
      %871 = vst.msk [vmem:[#allocation2 + $0x38] sm:$0xff] %vm283, %v839
      %872 = vst.msk [vmem:[#allocation2 + $0x40] sm:$0xff] %vm283, %v840
      %873 = vst.msk [vmem:[#allocation2 + $0x48] sm:$0xff] %vm283, %v841
      %874 = vst.msk [vmem:[#allocation2 + $0x50] sm:$0xff] %vm283, %v842
      %875 = vst.msk [vmem:[#allocation2 + $0x58] sm:$0xff] %vm283, %v843
      %876 = vst.msk [vmem:[#allocation2 + $0x60] sm:$0xff] %vm283, %v844
      %877 = vst.msk [vmem:[#allocation2 + $0x68] sm:$0xff] %vm283, %v845
      %878 = vst.msk [vmem:[#allocation2 + $0x70] sm:$0xff] %vm283, %v846
      %879 = vst.msk [vmem:[#allocation2 + $0x78] sm:$0xff] %vm283, %v847
      %880 = vst.msk [vmem:[#allocation2 + $0x80] sm:$0xff] %vm283, %v848
      %881 = vst.msk [vmem:[#allocation2 + $0x88] sm:$0xff] %vm283, %v849
      %882 = vst.msk [vmem:[#allocation2 + $0x90] sm:$0xff] %vm283, %v850
      %883 = vst.msk [vmem:[#allocation2 + $0x98] sm:$0xff] %vm283, %v851
      %884 = vst.msk [vmem:[#allocation2 + $0xa0] sm:$0xff] %vm283, %v852
      %885 = vst.msk [vmem:[#allocation2 + $0xa8] sm:$0xff] %vm283, %v853
      %886 = vst.msk [vmem:[#allocation2 + $0xb0] sm:$0xff] %vm283, %v854
      %887 = vst.msk [vmem:[#allocation2 + $0xb8] sm:$0xff] %vm283, %v855
      %888 = vst.msk [vmem:[#allocation2 + $0xc0] sm:$0xff] %vm283, %v856
      %889 = vst.msk [vmem:[#allocation2 + $0xc8] sm:$0xff] %vm283, %v857
      %890 = vst.msk [vmem:[#allocation2 + $0xd0] sm:$0xff] %vm283, %v858
      %891 = vst.msk [vmem:[#allocation2 + $0xd8] sm:$0xff] %vm283, %v859
      %892 = vst.msk [vmem:[#allocation2 + $0xe0] sm:$0xff] %vm283, %v860
      %893 = vst.msk [vmem:[#allocation2 + $0xe8] sm:$0xff] %vm283, %v861
      %894 = vst.msk [vmem:[#allocation2 + $0xf0] sm:$0xff] %vm283, %v862
      %895 = vst.msk [vmem:[#allocation2 + $0xf8] sm:$0xff] %vm283, %v863
      %896 = vst.msk [vmem:[#allocation2 + $0x100] sm:$0xff] %vm283, %v864
      %897 = vst.msk [vmem:[#allocation2 + $0x108] sm:$0xff] %vm283, %v865
      %898 = vst.msk [vmem:[#allocation2 + $0x110] sm:$0xff] %vm283, %v866
      %v899 = vld [vmem:[%s1] sm:$0xf]
      %v900 = vld [vmem:[%s1 + $0x4] sm:$0xf]
      %v901 = vld [vmem:[%s1 + $0x8] sm:$0xf]
      %v902 = vld [vmem:[%s1 + $0xc] sm:$0xf]
      %v903 = vld [vmem:[%s1 + $0x10] sm:$0xf]
      %v904 = vld [vmem:[%s1 + $0x14] sm:$0xf]
      %v905 = vld [vmem:[%s1 + $0x18] sm:$0xf]
      %v906 = vld [vmem:[%s1 + $0x1c] sm:$0xf]
      %v907 = vld [vmem:[%s1 + $0x20] sm:$0xf]
      %v908 = vld [vmem:[%s1 + $0x24] sm:$0xf]
      %v909 = vld [vmem:[%s1 + $0x28] sm:$0xf]
      %v910 = vld [vmem:[%s1 + $0x2c] sm:$0xf]
      %v911 = vld [vmem:[%s1 + $0x30] sm:$0xf]
      %v912 = vld [vmem:[%s1 + $0x34] sm:$0xf]
      %v913 = vld [vmem:[%s1 + $0x38] sm:$0xf]
      %v914 = vld [vmem:[%s1 + $0x3c] sm:$0xf]
      %v915 = vld [vmem:[%s2] sm:$0xf]
      %v916 = vld [vmem:[%s2 + $0x4] sm:$0xf]
      %v917 = vld [vmem:[#allocation2 + $0x7] sm:$0xff]
      %v918 = vld [vmem:[#allocation2 + $0xf] sm:$0xff]
      %v919 = vld [vmem:[#allocation2 + $0x17] sm:$0xff]
      %v920 = vld [vmem:[#allocation2 + $0x1f] sm:$0xff]
      %v921 = vld [vmem:[#allocation2 + $0x27] sm:$0xff]
      %v922 = vld [vmem:[#allocation2 + $0x2f] sm:$0xff]
      %v923 = vld [vmem:[#allocation2 + $0x37] sm:$0xff]
      %v924 = vld [vmem:[#allocation2 + $0x3f] sm:$0xff]
      %v925 = vld [vmem:[#allocation2 + $0x47] sm:$0xff]
      %v926 = vld [vmem:[#allocation2 + $0x4f] sm:$0xff]
      %v927 = vld [vmem:[#allocation2 + $0x57] sm:$0xff]
      %v928 = vld [vmem:[#allocation2 + $0x5f] sm:$0xff]
      %v929 = vld [vmem:[#allocation2 + $0x67] sm:$0xff]
      %v930 = vld [vmem:[#allocation2 + $0x6f] sm:$0xff]
      %v931 = vld [vmem:[#allocation2 + $0x77] sm:$0xff]
      %v932 = vld [vmem:[#allocation2 + $0x7f] sm:$0xff]
      %v933 = vld [vmem:[#allocation2 + $0x87] sm:$0xff]
      %v934 = vld [vmem:[#allocation2 + $0x8f] sm:$0xff]
      %v935 = vld [vmem:[#allocation2 + $0x97] sm:$0xff]
      %v936 = vld [vmem:[#allocation2 + $0x9f] sm:$0xff]
      %v937 = vld [vmem:[#allocation2 + $0xa7] sm:$0xff]
      %v938 = vld [vmem:[#allocation2 + $0xaf] sm:$0xff]
      %v939 = vld [vmem:[#allocation2 + $0xb7] sm:$0xff]
      %v940 = vld [vmem:[#allocation2 + $0xbf] sm:$0xff]
      %v941 = vld [vmem:[#allocation2 + $0xc7] sm:$0xff]
      %v942 = vld [vmem:[#allocation2 + $0xcf] sm:$0xff]
      %v943 = vld [vmem:[#allocation2 + $0xd7] sm:$0xff]
      %v944 = vld [vmem:[#allocation2 + $0xdf] sm:$0xff]
      %v945 = vld [vmem:[#allocation2 + $0xe7] sm:$0xff]
      %v946 = vld [vmem:[#allocation2 + $0xef] sm:$0xff]
      %v947 = vld [vmem:[#allocation2 + $0xf7] sm:$0xff]
      %v948 = vld [vmem:[#allocation2 + $0xff] sm:$0xff]
      %v949 = vsel %vm707, %v917, 0.0
      %v950 = vsel %vm708, %v918, 0.0
      %v951 = vsel %vm709, %v919, 0.0
      %v952 = vsel %vm710, %v920, 0.0
      %v953 = vsel %vm711, %v921, 0.0
      %v954 = vsel %vm712, %v922, 0.0
      %v955 = vsel %vm713, %v923, 0.0
      %v956 = vsel %vm714, %v924, 0.0
      %v957 = vsel %vm715, %v925, 0.0
      %v958 = vsel %vm716, %v926, 0.0
      %v959 = vsel %vm717, %v927, 0.0
      %v960 = vsel %vm718, %v928, 0.0
      %v961 = vsel %vm719, %v929, 0.0
      %v962 = vsel %vm720, %v930, 0.0
      %v963 = vsel %vm721, %v931, 0.0
      %v964 = vsel %vm722, %v932, 0.0
      %v965 = vsel %vm723, %v933, 0.0
      %v966 = vsel %vm724, %v934, 0.0
      %v967 = vsel %vm725, %v935, 0.0
      %v968 = vsel %vm726, %v936, 0.0
      %v969 = vsel %vm727, %v937, 0.0
      %v970 = vsel %vm728, %v938, 0.0
      %v971 = vsel %vm729, %v939, 0.0
      %v972 = vsel %vm730, %v940, 0.0
      %v973 = vsel %vm731, %v941, 0.0
      %v974 = vsel %vm732, %v942, 0.0
      %v975 = vsel %vm733, %v943, 0.0
      %v976 = vsel %vm734, %v944, 0.0
      %v977 = vsel %vm735, %v945, 0.0
      %v978 = vsel %vm736, %v946, 0.0
      %v979 = vsel %vm737, %v947, 0.0
      %v980 = vsel %vm738, %v948, 0.0
      %v981 = vpack.c.bf16 %v949, %v949
      %v982 = vpack.c.bf16 %v950, %v950
      %v983 = vpack.c.bf16 %v951, %v951
      %v984 = vpack.c.bf16 %v952, %v952
      %v985 = vpack.c.bf16 %v953, %v953
      %v986 = vpack.c.bf16 %v954, %v954
      %v987 = vpack.c.bf16 %v955, %v955
      %v988 = vpack.c.bf16 %v956, %v956
      %v989 = vpack.c.bf16 %v957, %v957
      %v990 = vpack.c.bf16 %v958, %v958
      %v991 = vpack.c.bf16 %v959, %v959
      %v992 = vpack.c.bf16 %v960, %v960
      %v993 = vpack.c.bf16 %v961, %v961
      %v994 = vpack.c.bf16 %v962, %v962
      %v995 = vpack.c.bf16 %v963, %v963
      %v996 = vpack.c.bf16 %v964, %v964
      %v997 = vpack.c.bf16 %v965, %v965
      %v998 = vpack.c.bf16 %v966, %v966
      %v999 = vpack.c.bf16 %v967, %v967
      %v1000 = vpack.c.bf16 %v968, %v968
      %v1001 = vpack.c.bf16 %v969, %v969
      %v1002 = vpack.c.bf16 %v970, %v970
      %v1003 = vpack.c.bf16 %v971, %v971
      %v1004 = vpack.c.bf16 %v972, %v972
      %v1005 = vpack.c.bf16 %v973, %v973
      %v1006 = vpack.c.bf16 %v974, %v974
      %v1007 = vpack.c.bf16 %v975, %v975
      %v1008 = vpack.c.bf16 %v976, %v976
      %v1009 = vpack.c.bf16 %v977, %v977
      %v1010 = vpack.c.bf16 %v978, %v978
      %v1011 = vpack.c.bf16 %v979, %v979
      %v1012 = vpack.c.bf16 %v980, %v980
      %v1013 = vld [vmem:[#allocation2 + $0x8] sm:$0xff]
      %v1014 = vld [vmem:[#allocation2 + $0x10] sm:$0xff]
      %v1015 = vld [vmem:[#allocation2 + $0x18] sm:$0xff]
      %v1016 = vld [vmem:[#allocation2 + $0x20] sm:$0xff]
      %v1017 = vld [vmem:[#allocation2 + $0x28] sm:$0xff]
      %v1018 = vld [vmem:[#allocation2 + $0x30] sm:$0xff]
      %v1019 = vld [vmem:[#allocation2 + $0x38] sm:$0xff]
      %v1020 = vld [vmem:[#allocation2 + $0x40] sm:$0xff]
      %v1021 = vld [vmem:[#allocation2 + $0x48] sm:$0xff]
      %v1022 = vld [vmem:[#allocation2 + $0x50] sm:$0xff]
      %v1023 = vld [vmem:[#allocation2 + $0x58] sm:$0xff]
      %v1024 = vld [vmem:[#allocation2 + $0x60] sm:$0xff]
      %v1025 = vld [vmem:[#allocation2 + $0x68] sm:$0xff]
      %v1026 = vld [vmem:[#allocation2 + $0x70] sm:$0xff]
      %v1027 = vld [vmem:[#allocation2 + $0x78] sm:$0xff]
      %v1028 = vld [vmem:[#allocation2 + $0x80] sm:$0xff]
      %v1029 = vld [vmem:[#allocation2 + $0x88] sm:$0xff]
      %v1030 = vld [vmem:[#allocation2 + $0x90] sm:$0xff]
      %v1031 = vld [vmem:[#allocation2 + $0x98] sm:$0xff]
      %v1032 = vld [vmem:[#allocation2 + $0xa0] sm:$0xff]
      %v1033 = vld [vmem:[#allocation2 + $0xa8] sm:$0xff]
      %v1034 = vld [vmem:[#allocation2 + $0xb0] sm:$0xff]
      %v1035 = vld [vmem:[#allocation2 + $0xb8] sm:$0xff]
      %v1036 = vld [vmem:[#allocation2 + $0xc0] sm:$0xff]
      %v1037 = vld [vmem:[#allocation2 + $0xc8] sm:$0xff]
      %v1038 = vld [vmem:[#allocation2 + $0xd0] sm:$0xff]
      %v1039 = vld [vmem:[#allocation2 + $0xd8] sm:$0xff]
      %v1040 = vld [vmem:[#allocation2 + $0xe0] sm:$0xff]
      %v1041 = vld [vmem:[#allocation2 + $0xe8] sm:$0xff]
      %v1042 = vld [vmem:[#allocation2 + $0xf0] sm:$0xff]
      %v1043 = vld [vmem:[#allocation2 + $0xf8] sm:$0xff]
      %v1044 = vld [vmem:[#allocation2 + $0x100] sm:$0xff]
      %v1045 = vpack.c.bf16 %v1013, %v1013
      %v1046 = vpack.c.bf16 %v1014, %v1014
      %v1047 = vpack.c.bf16 %v1015, %v1015
      %v1048 = vpack.c.bf16 %v1016, %v1016
      %v1049 = vpack.c.bf16 %v1017, %v1017
      %v1050 = vpack.c.bf16 %v1018, %v1018
      %v1051 = vpack.c.bf16 %v1019, %v1019
      %v1052 = vpack.c.bf16 %v1020, %v1020
      %v1053 = vpack.c.bf16 %v1021, %v1021
      %v1054 = vpack.c.bf16 %v1022, %v1022
      %v1055 = vpack.c.bf16 %v1023, %v1023
      %v1056 = vpack.c.bf16 %v1024, %v1024
      %v1057 = vpack.c.bf16 %v1025, %v1025
      %v1058 = vpack.c.bf16 %v1026, %v1026
      %v1059 = vpack.c.bf16 %v1027, %v1027
      %v1060 = vpack.c.bf16 %v1028, %v1028
      %v1061 = vpack.c.bf16 %v1029, %v1029
      %v1062 = vpack.c.bf16 %v1030, %v1030
      %v1063 = vpack.c.bf16 %v1031, %v1031
      %v1064 = vpack.c.bf16 %v1032, %v1032
      %v1065 = vpack.c.bf16 %v1033, %v1033
      %v1066 = vpack.c.bf16 %v1034, %v1034
      %v1067 = vpack.c.bf16 %v1035, %v1035
      %v1068 = vpack.c.bf16 %v1036, %v1036
      %v1069 = vpack.c.bf16 %v1037, %v1037
      %v1070 = vpack.c.bf16 %v1038, %v1038
      %v1071 = vpack.c.bf16 %v1039, %v1039
      %v1072 = vpack.c.bf16 %v1040, %v1040
      %v1073 = vpack.c.bf16 %v1041, %v1041
      %v1074 = vpack.c.bf16 %v1042, %v1042
      %v1075 = vpack.c.bf16 %v1043, %v1043
      %v1076 = vpack.c.bf16 %v1044, %v1044
      %v1077 = vld [vmem:[#allocation2 + $0x9] sm:$0xff]
      %v1078 = vld [vmem:[#allocation2 + $0x11] sm:$0xff]
      %v1079 = vld [vmem:[#allocation2 + $0x19] sm:$0xff]
      %v1080 = vld [vmem:[#allocation2 + $0x21] sm:$0xff]
      %v1081 = vld [vmem:[#allocation2 + $0x29] sm:$0xff]
      %v1082 = vld [vmem:[#allocation2 + $0x31] sm:$0xff]
      %v1083 = vld [vmem:[#allocation2 + $0x39] sm:$0xff]
      %v1084 = vld [vmem:[#allocation2 + $0x41] sm:$0xff]
      %v1085 = vld [vmem:[#allocation2 + $0x49] sm:$0xff]
      %v1086 = vld [vmem:[#allocation2 + $0x51] sm:$0xff]
      %v1087 = vld [vmem:[#allocation2 + $0x59] sm:$0xff]
      %v1088 = vld [vmem:[#allocation2 + $0x61] sm:$0xff]
      %v1089 = vld [vmem:[#allocation2 + $0x69] sm:$0xff]
      %v1090 = vld [vmem:[#allocation2 + $0x71] sm:$0xff]
      %v1091 = vld [vmem:[#allocation2 + $0x79] sm:$0xff]
      %v1092 = vld [vmem:[#allocation2 + $0x81] sm:$0xff]
      %v1093 = vld [vmem:[#allocation2 + $0x89] sm:$0xff]
      %v1094 = vld [vmem:[#allocation2 + $0x91] sm:$0xff]
      %v1095 = vld [vmem:[#allocation2 + $0x99] sm:$0xff]
      %v1096 = vld [vmem:[#allocation2 + $0xa1] sm:$0xff]
      %v1097 = vld [vmem:[#allocation2 + $0xa9] sm:$0xff]
      %v1098 = vld [vmem:[#allocation2 + $0xb1] sm:$0xff]
      %v1099 = vld [vmem:[#allocation2 + $0xb9] sm:$0xff]
      %v1100 = vld [vmem:[#allocation2 + $0xc1] sm:$0xff]
      %v1101 = vld [vmem:[#allocation2 + $0xc9] sm:$0xff]
      %v1102 = vld [vmem:[#allocation2 + $0xd1] sm:$0xff]
      %v1103 = vld [vmem:[#allocation2 + $0xd9] sm:$0xff]
      %v1104 = vld [vmem:[#allocation2 + $0xe1] sm:$0xff]
      %v1105 = vld [vmem:[#allocation2 + $0xe9] sm:$0xff]
      %v1106 = vld [vmem:[#allocation2 + $0xf1] sm:$0xff]
      %v1107 = vld [vmem:[#allocation2 + $0xf9] sm:$0xff]
      %v1108 = vld [vmem:[#allocation2 + $0x101] sm:$0xff]
      %v1109 = vsel %vm739, %v1077, 0.0
      %v1110 = vsel %vm740, %v1078, 0.0
      %v1111 = vsel %vm741, %v1079, 0.0
      %v1112 = vsel %vm742, %v1080, 0.0
      %v1113 = vsel %vm743, %v1081, 0.0
      %v1114 = vsel %vm744, %v1082, 0.0
      %v1115 = vsel %vm745, %v1083, 0.0
      %v1116 = vsel %vm746, %v1084, 0.0
      %v1117 = vsel %vm747, %v1085, 0.0
      %v1118 = vsel %vm748, %v1086, 0.0
      %v1119 = vsel %vm749, %v1087, 0.0
      %v1120 = vsel %vm750, %v1088, 0.0
      %v1121 = vsel %vm751, %v1089, 0.0
      %v1122 = vsel %vm752, %v1090, 0.0
      %v1123 = vsel %vm753, %v1091, 0.0
      %v1124 = vsel %vm754, %v1092, 0.0
      %v1125 = vsel %vm755, %v1093, 0.0
      %v1126 = vsel %vm756, %v1094, 0.0
      %v1127 = vsel %vm757, %v1095, 0.0
      %v1128 = vsel %vm758, %v1096, 0.0
      %v1129 = vsel %vm759, %v1097, 0.0
      %v1130 = vsel %vm760, %v1098, 0.0
      %v1131 = vsel %vm761, %v1099, 0.0
      %v1132 = vsel %vm762, %v1100, 0.0
      %v1133 = vsel %vm763, %v1101, 0.0
      %v1134 = vsel %vm764, %v1102, 0.0
      %v1135 = vsel %vm765, %v1103, 0.0
      %v1136 = vsel %vm766, %v1104, 0.0
      %v1137 = vsel %vm767, %v1105, 0.0
      %v1138 = vsel %vm768, %v1106, 0.0
      %v1139 = vsel %vm769, %v1107, 0.0
      %v1140 = vsel %vm770, %v1108, 0.0
      %v1141 = vpack.c.bf16 %v1109, %v1109
      %v1142 = vpack.c.bf16 %v1110, %v1110
      %v1143 = vpack.c.bf16 %v1111, %v1111
      %v1144 = vpack.c.bf16 %v1112, %v1112
      %v1145 = vpack.c.bf16 %v1113, %v1113
      %v1146 = vpack.c.bf16 %v1114, %v1114
      %v1147 = vpack.c.bf16 %v1115, %v1115
      %v1148 = vpack.c.bf16 %v1116, %v1116
      %v1149 = vpack.c.bf16 %v1117, %v1117
      %v1150 = vpack.c.bf16 %v1118, %v1118
      %v1151 = vpack.c.bf16 %v1119, %v1119
      %v1152 = vpack.c.bf16 %v1120, %v1120
      %v1153 = vpack.c.bf16 %v1121, %v1121
      %v1154 = vpack.c.bf16 %v1122, %v1122
      %v1155 = vpack.c.bf16 %v1123, %v1123
      %v1156 = vpack.c.bf16 %v1124, %v1124
      %v1157 = vpack.c.bf16 %v1125, %v1125
      %v1158 = vpack.c.bf16 %v1126, %v1126
      %v1159 = vpack.c.bf16 %v1127, %v1127
      %v1160 = vpack.c.bf16 %v1128, %v1128
      %v1161 = vpack.c.bf16 %v1129, %v1129
      %v1162 = vpack.c.bf16 %v1130, %v1130
      %v1163 = vpack.c.bf16 %v1131, %v1131
      %v1164 = vpack.c.bf16 %v1132, %v1132
      %v1165 = vpack.c.bf16 %v1133, %v1133
      %v1166 = vpack.c.bf16 %v1134, %v1134
      %v1167 = vpack.c.bf16 %v1135, %v1135
      %v1168 = vpack.c.bf16 %v1136, %v1136
      %v1169 = vpack.c.bf16 %v1137, %v1137
      %v1170 = vpack.c.bf16 %v1138, %v1138
      %v1171 = vpack.c.bf16 %v1139, %v1139
      %v1172 = vpack.c.bf16 %v1140, %v1140
      %v1173 = vld [vmem:[#allocation2 + $0x107] sm:$0xff]
      %v1174 = vld [vmem:[#allocation2 + $0x10f] sm:$0xff]
      %v1175 = vsel %vm707, %v919, 0.0
      %v1176 = vsel %vm708, %v920, 0.0
      %v1177 = vsel %vm709, %v921, 0.0
      %v1178 = vsel %vm710, %v922, 0.0
      %v1179 = vsel %vm711, %v923, 0.0
      %v1180 = vsel %vm712, %v924, 0.0
      %v1181 = vsel %vm713, %v925, 0.0
      %v1182 = vsel %vm714, %v926, 0.0
      %v1183 = vsel %vm715, %v927, 0.0
      %v1184 = vsel %vm716, %v928, 0.0
      %v1185 = vsel %vm717, %v929, 0.0
      %v1186 = vsel %vm718, %v930, 0.0
      %v1187 = vsel %vm719, %v931, 0.0
      %v1188 = vsel %vm720, %v932, 0.0
      %v1189 = vsel %vm721, %v933, 0.0
      %v1190 = vsel %vm722, %v934, 0.0
      %v1191 = vsel %vm723, %v935, 0.0
      %v1192 = vsel %vm724, %v936, 0.0
      %v1193 = vsel %vm725, %v937, 0.0
      %v1194 = vsel %vm726, %v938, 0.0
      %v1195 = vsel %vm727, %v939, 0.0
      %v1196 = vsel %vm728, %v940, 0.0
      %v1197 = vsel %vm729, %v941, 0.0
      %v1198 = vsel %vm730, %v942, 0.0
      %v1199 = vsel %vm731, %v943, 0.0
      %v1200 = vsel %vm732, %v944, 0.0
      %v1201 = vsel %vm733, %v945, 0.0
      %v1202 = vsel %vm734, %v946, 0.0
      %v1203 = vsel %vm735, %v947, 0.0
      %v1204 = vsel %vm736, %v948, 0.0
      %v1205 = vsel %vm737, %v1173, 0.0
      %v1206 = vsel %vm738, %v1174, 0.0
      %v1207 = vpack.c.bf16 %v1175, %v1175
      %v1208 = vpack.c.bf16 %v1176, %v1176
      %v1209 = vpack.c.bf16 %v1177, %v1177
      %v1210 = vpack.c.bf16 %v1178, %v1178
      %v1211 = vpack.c.bf16 %v1179, %v1179
      %v1212 = vpack.c.bf16 %v1180, %v1180
      %v1213 = vpack.c.bf16 %v1181, %v1181
      %v1214 = vpack.c.bf16 %v1182, %v1182
      %v1215 = vpack.c.bf16 %v1183, %v1183
      %v1216 = vpack.c.bf16 %v1184, %v1184
      %v1217 = vpack.c.bf16 %v1185, %v1185
      %v1218 = vpack.c.bf16 %v1186, %v1186
      %v1219 = vpack.c.bf16 %v1187, %v1187
      %v1220 = vpack.c.bf16 %v1188, %v1188
      %v1221 = vpack.c.bf16 %v1189, %v1189
      %v1222 = vpack.c.bf16 %v1190, %v1190
      %v1223 = vpack.c.bf16 %v1191, %v1191
      %v1224 = vpack.c.bf16 %v1192, %v1192
      %v1225 = vpack.c.bf16 %v1193, %v1193
      %v1226 = vpack.c.bf16 %v1194, %v1194
      %v1227 = vpack.c.bf16 %v1195, %v1195
      %v1228 = vpack.c.bf16 %v1196, %v1196
      %v1229 = vpack.c.bf16 %v1197, %v1197
      %v1230 = vpack.c.bf16 %v1198, %v1198
      %v1231 = vpack.c.bf16 %v1199, %v1199
      %v1232 = vpack.c.bf16 %v1200, %v1200
      %v1233 = vpack.c.bf16 %v1201, %v1201
      %v1234 = vpack.c.bf16 %v1202, %v1202
      %v1235 = vpack.c.bf16 %v1203, %v1203
      %v1236 = vpack.c.bf16 %v1204, %v1204
      %v1237 = vpack.c.bf16 %v1205, %v1205
      %v1238 = vpack.c.bf16 %v1206, %v1206
      %v1239 = vld [vmem:[#allocation2 + $0x109] sm:$0xff]
      %v1240 = vld [vmem:[#allocation2 + $0x111] sm:$0xff]
      %v1241 = vsel %vm739, %v1079, 0.0
      %v1242 = vsel %vm740, %v1080, 0.0
      %v1243 = vsel %vm741, %v1081, 0.0
      %v1244 = vsel %vm742, %v1082, 0.0
      %v1245 = vsel %vm743, %v1083, 0.0
      %v1246 = vsel %vm744, %v1084, 0.0
      %v1247 = vsel %vm745, %v1085, 0.0
      %v1248 = vsel %vm746, %v1086, 0.0
      %v1249 = vsel %vm747, %v1087, 0.0
      %v1250 = vsel %vm748, %v1088, 0.0
      %v1251 = vsel %vm749, %v1089, 0.0
      %v1252 = vsel %vm750, %v1090, 0.0
      %v1253 = vsel %vm751, %v1091, 0.0
      %v1254 = vsel %vm752, %v1092, 0.0
      %v1255 = vsel %vm753, %v1093, 0.0
      %v1256 = vsel %vm754, %v1094, 0.0
      %v1257 = vsel %vm755, %v1095, 0.0
      %v1258 = vsel %vm756, %v1096, 0.0
      %v1259 = vsel %vm757, %v1097, 0.0
      %v1260 = vsel %vm758, %v1098, 0.0
      %v1261 = vsel %vm759, %v1099, 0.0
      %v1262 = vsel %vm760, %v1100, 0.0
      %v1263 = vsel %vm761, %v1101, 0.0
      %v1264 = vsel %vm762, %v1102, 0.0
      %v1265 = vsel %vm763, %v1103, 0.0
      %v1266 = vsel %vm764, %v1104, 0.0
      %v1267 = vsel %vm765, %v1105, 0.0
      %v1268 = vsel %vm766, %v1106, 0.0
      %v1269 = vsel %vm767, %v1107, 0.0
      %v1270 = vsel %vm768, %v1108, 0.0
      %v1271 = vsel %vm769, %v1239, 0.0
      %v1272 = vsel %vm770, %v1240, 0.0
      %v1273 = vpack.c.bf16 %v1241, %v1241
      %v1274 = vpack.c.bf16 %v1242, %v1242
      %v1275 = vpack.c.bf16 %v1243, %v1243
      %v1276 = vpack.c.bf16 %v1244, %v1244
      %v1277 = vpack.c.bf16 %v1245, %v1245
      %v1278 = vpack.c.bf16 %v1246, %v1246
      %v1279 = vpack.c.bf16 %v1247, %v1247
      %v1280 = vpack.c.bf16 %v1248, %v1248
      %v1281 = vpack.c.bf16 %v1249, %v1249
      %v1282 = vpack.c.bf16 %v1250, %v1250
      %v1283 = vpack.c.bf16 %v1251, %v1251
      %v1284 = vpack.c.bf16 %v1252, %v1252
      %v1285 = vpack.c.bf16 %v1253, %v1253
      %v1286 = vpack.c.bf16 %v1254, %v1254
      %v1287 = vpack.c.bf16 %v1255, %v1255
      %v1288 = vpack.c.bf16 %v1256, %v1256
      %v1289 = vpack.c.bf16 %v1257, %v1257
      %v1290 = vpack.c.bf16 %v1258, %v1258
      %v1291 = vpack.c.bf16 %v1259, %v1259
      %v1292 = vpack.c.bf16 %v1260, %v1260
      %v1293 = vpack.c.bf16 %v1261, %v1261
      %v1294 = vpack.c.bf16 %v1262, %v1262
      %v1295 = vpack.c.bf16 %v1263, %v1263
      %v1296 = vpack.c.bf16 %v1264, %v1264
      %v1297 = vpack.c.bf16 %v1265, %v1265
      %v1298 = vpack.c.bf16 %v1266, %v1266
      %v1299 = vpack.c.bf16 %v1267, %v1267
      %v1300 = vpack.c.bf16 %v1268, %v1268
      %v1301 = vpack.c.bf16 %v1269, %v1269
      %v1302 = vpack.c.bf16 %v1270, %v1270
      %v1303 = vpack.c.bf16 %v1271, %v1271
      %v1304 = vpack.c.bf16 %v1272, %v1272
      %v1305 = vld [vmem:[#allocation2 + $0x117] sm:$0xff]
      %v1306 = vld [vmem:[#allocation2 + $0x11f] sm:$0xff]
      %v1307 = vsel %vm707, %v921, 0.0
      %v1308 = vsel %vm708, %v922, 0.0
      %v1309 = vsel %vm709, %v923, 0.0
      %v1310 = vsel %vm710, %v924, 0.0
      %v1311 = vsel %vm711, %v925, 0.0
      %v1312 = vsel %vm712, %v926, 0.0
      %v1313 = vsel %vm713, %v927, 0.0
      %v1314 = vsel %vm714, %v928, 0.0
      %v1315 = vsel %vm715, %v929, 0.0
      %v1316 = vsel %vm716, %v930, 0.0
      %v1317 = vsel %vm717, %v931, 0.0
      %v1318 = vsel %vm718, %v932, 0.0
      %v1319 = vsel %vm719, %v933, 0.0
      %v1320 = vsel %vm720, %v934, 0.0
      %v1321 = vsel %vm721, %v935, 0.0
      %v1322 = vsel %vm722, %v936, 0.0
      %v1323 = vsel %vm723, %v937, 0.0
      %v1324 = vsel %vm724, %v938, 0.0
      %v1325 = vsel %vm725, %v939, 0.0
      %v1326 = vsel %vm726, %v940, 0.0
      %v1327 = vsel %vm727, %v941, 0.0
      %v1328 = vsel %vm728, %v942, 0.0
      %v1329 = vsel %vm729, %v943, 0.0
      %v1330 = vsel %vm730, %v944, 0.0
      %v1331 = vsel %vm731, %v945, 0.0
      %v1332 = vsel %vm732, %v946, 0.0
      %v1333 = vsel %vm733, %v947, 0.0
      %v1334 = vsel %vm734, %v948, 0.0
      %v1335 = vsel %vm735, %v1173, 0.0
      %v1336 = vsel %vm736, %v1174, 0.0
      %v1337 = vsel %vm737, %v1305, 0.0
      %v1338 = vsel %vm738, %v1306, 0.0
      %v1339 = vpack.c.bf16 %v1307, %v1307
      %v1340 = vpack.c.bf16 %v1308, %v1308
      %v1341 = vpack.c.bf16 %v1309, %v1309
      %v1342 = vpack.c.bf16 %v1310, %v1310
      %v1343 = vpack.c.bf16 %v1311, %v1311
      %v1344 = vpack.c.bf16 %v1312, %v1312
      %v1345 = vpack.c.bf16 %v1313, %v1313
      %v1346 = vpack.c.bf16 %v1314, %v1314
      %v1347 = vpack.c.bf16 %v1315, %v1315
      %v1348 = vpack.c.bf16 %v1316, %v1316
      %v1349 = vpack.c.bf16 %v1317, %v1317
      %v1350 = vpack.c.bf16 %v1318, %v1318
      %v1351 = vpack.c.bf16 %v1319, %v1319
      %v1352 = vpack.c.bf16 %v1320, %v1320
      %v1353 = vpack.c.bf16 %v1321, %v1321
      %v1354 = vpack.c.bf16 %v1322, %v1322
      %v1355 = vpack.c.bf16 %v1323, %v1323
      %v1356 = vpack.c.bf16 %v1324, %v1324
      %v1357 = vpack.c.bf16 %v1325, %v1325
      %v1358 = vpack.c.bf16 %v1326, %v1326
      %v1359 = vpack.c.bf16 %v1327, %v1327
      %v1360 = vpack.c.bf16 %v1328, %v1328
      %v1361 = vpack.c.bf16 %v1329, %v1329
      %v1362 = vpack.c.bf16 %v1330, %v1330
      %v1363 = vpack.c.bf16 %v1331, %v1331
      %v1364 = vpack.c.bf16 %v1332, %v1332
      %v1365 = vpack.c.bf16 %v1333, %v1333
      %v1366 = vpack.c.bf16 %v1334, %v1334
      %v1367 = vpack.c.bf16 %v1335, %v1335
      %v1368 = vpack.c.bf16 %v1336, %v1336
      %v1369 = vpack.c.bf16 %v1337, %v1337
      %v1370 = vpack.c.bf16 %v1338, %v1338
      %v1371 = vld [vmem:[#allocation2 + $0x108] sm:$0xff]
      %v1372 = vld [vmem:[#allocation2 + $0x110] sm:$0xff]
      %v1373 = vld [vmem:[#allocation2 + $0x118] sm:$0xff]
      %v1374 = vld [vmem:[#allocation2 + $0x120] sm:$0xff]
      %v1375 = vpack.c.bf16 %v1371, %v1371
      %v1376 = vpack.c.bf16 %v1372, %v1372
      %v1377 = vpack.c.bf16 %v1373, %v1373
      %v1378 = vpack.c.bf16 %v1374, %v1374
      %v1379 = vld [vmem:[#allocation2 + $0x119] sm:$0xff]
      %v1380 = vld [vmem:[#allocation2 + $0x121] sm:$0xff]
      %v1381 = vsel %vm739, %v1081, 0.0
      %v1382 = vsel %vm740, %v1082, 0.0
      %v1383 = vsel %vm741, %v1083, 0.0
      %v1384 = vsel %vm742, %v1084, 0.0
      %v1385 = vsel %vm743, %v1085, 0.0
      %v1386 = vsel %vm744, %v1086, 0.0
      %v1387 = vsel %vm745, %v1087, 0.0
      %v1388 = vsel %vm746, %v1088, 0.0
      %v1389 = vsel %vm747, %v1089, 0.0
      %v1390 = vsel %vm748, %v1090, 0.0
      %v1391 = vsel %vm749, %v1091, 0.0
      %v1392 = vsel %vm750, %v1092, 0.0
      %v1393 = vsel %vm751, %v1093, 0.0
      %v1394 = vsel %vm752, %v1094, 0.0
      %v1395 = vsel %vm753, %v1095, 0.0
      %v1396 = vsel %vm754, %v1096, 0.0
      %v1397 = vsel %vm755, %v1097, 0.0
      %v1398 = vsel %vm756, %v1098, 0.0
      %v1399 = vsel %vm757, %v1099, 0.0
      %v1400 = vsel %vm758, %v1100, 0.0
      %v1401 = vsel %vm759, %v1101, 0.0
      %v1402 = vsel %vm760, %v1102, 0.0
      %v1403 = vsel %vm761, %v1103, 0.0
      %v1404 = vsel %vm762, %v1104, 0.0
      %v1405 = vsel %vm763, %v1105, 0.0
      %v1406 = vsel %vm764, %v1106, 0.0
      %v1407 = vsel %vm765, %v1107, 0.0
      %v1408 = vsel %vm766, %v1108, 0.0
      %v1409 = vsel %vm767, %v1239, 0.0
      %v1410 = vsel %vm768, %v1240, 0.0
      %v1411 = vsel %vm769, %v1379, 0.0
      %v1412 = vsel %vm770, %v1380, 0.0
      %v1413 = vpack.c.bf16 %v1381, %v1381
      %v1414 = vpack.c.bf16 %v1382, %v1382
      %v1415 = vpack.c.bf16 %v1383, %v1383
      %v1416 = vpack.c.bf16 %v1384, %v1384
      %v1417 = vpack.c.bf16 %v1385, %v1385
      %v1418 = vpack.c.bf16 %v1386, %v1386
      %v1419 = vpack.c.bf16 %v1387, %v1387
      %v1420 = vpack.c.bf16 %v1388, %v1388
      %v1421 = vpack.c.bf16 %v1389, %v1389
      %v1422 = vpack.c.bf16 %v1390, %v1390
      %v1423 = vpack.c.bf16 %v1391, %v1391
      %v1424 = vpack.c.bf16 %v1392, %v1392
      %v1425 = vpack.c.bf16 %v1393, %v1393
      %v1426 = vpack.c.bf16 %v1394, %v1394
      %v1427 = vpack.c.bf16 %v1395, %v1395
      %v1428 = vpack.c.bf16 %v1396, %v1396
      %v1429 = vpack.c.bf16 %v1397, %v1397
      %v1430 = vpack.c.bf16 %v1398, %v1398
      %v1431 = vpack.c.bf16 %v1399, %v1399
      %v1432 = vpack.c.bf16 %v1400, %v1400
      %v1433 = vpack.c.bf16 %v1401, %v1401
      %v1434 = vpack.c.bf16 %v1402, %v1402
      %v1435 = vpack.c.bf16 %v1403, %v1403
      %v1436 = vpack.c.bf16 %v1404, %v1404
      %v1437 = vpack.c.bf16 %v1405, %v1405
      %v1438 = vpack.c.bf16 %v1406, %v1406
      %v1439 = vpack.c.bf16 %v1407, %v1407
      %v1440 = vpack.c.bf16 %v1408, %v1408
      %v1441 = vpack.c.bf16 %v1409, %v1409
      %v1442 = vpack.c.bf16 %v1410, %v1410
      %v1443 = vpack.c.bf16 %v1411, %v1411
      %v1444 = vpack.c.bf16 %v1412, %v1412
      %v1477 = vunpack.c.l.b16 %v981
      %v1478 = vunpack.c.l.b16 %v982
      %v1479 = vunpack.c.l.b16 %v983
      %v1480 = vunpack.c.l.b16 %v984
      %v1481 = vunpack.c.l.b16 %v985
      %v1482 = vunpack.c.l.b16 %v986
      %v1483 = vunpack.c.l.b16 %v987
      %v1484 = vunpack.c.l.b16 %v988
      %v1485 = vunpack.c.l.b16 %v989
      %v1486 = vunpack.c.l.b16 %v990
      %v1487 = vunpack.c.l.b16 %v991
      %v1488 = vunpack.c.l.b16 %v992
      %v1489 = vunpack.c.l.b16 %v993
      %v1490 = vunpack.c.l.b16 %v994
      %v1491 = vunpack.c.l.b16 %v995
      %v1492 = vunpack.c.l.b16 %v996
      %v1493 = vunpack.c.l.b16 %v997
      %v1494 = vunpack.c.l.b16 %v998
      %v1495 = vunpack.c.l.b16 %v999
      %v1496 = vunpack.c.l.b16 %v1000
      %v1497 = vunpack.c.l.b16 %v1001
      %v1498 = vunpack.c.l.b16 %v1002
      %v1499 = vunpack.c.l.b16 %v1003
      %v1500 = vunpack.c.l.b16 %v1004
      %v1501 = vunpack.c.l.b16 %v1005
      %v1502 = vunpack.c.l.b16 %v1006
      %v1503 = vunpack.c.l.b16 %v1007
      %v1504 = vunpack.c.l.b16 %v1008
      %v1505 = vunpack.c.l.b16 %v1009
      %v1506 = vunpack.c.l.b16 %v1010
      %v1507 = vunpack.c.l.b16 %v1011
      %v1508 = vunpack.c.l.b16 %v1012
      %v1509 = vpack.c.b16 %v1478, %v1477
      %v1510 = vpack.c.b16 %v1480, %v1479
      %v1511 = vpack.c.b16 %v1482, %v1481
      %v1512 = vpack.c.b16 %v1484, %v1483
      %v1513 = vpack.c.b16 %v1486, %v1485
      %v1514 = vpack.c.b16 %v1488, %v1487
      %v1515 = vpack.c.b16 %v1490, %v1489
      %v1516 = vpack.c.b16 %v1492, %v1491
      %v1517 = vpack.c.b16 %v1494, %v1493
      %v1518 = vpack.c.b16 %v1496, %v1495
      %v1519 = vpack.c.b16 %v1498, %v1497
      %v1520 = vpack.c.b16 %v1500, %v1499
      %v1521 = vpack.c.b16 %v1502, %v1501
      %v1522 = vpack.c.b16 %v1504, %v1503
      %v1523 = vpack.c.b16 %v1506, %v1505
      %v1524 = vpack.c.b16 %v1508, %v1507
      %v1557 = vunpack.c.l.b16 %v1045
      %v1558 = vunpack.c.l.b16 %v1046
      %v1559 = vunpack.c.l.b16 %v1047
      %v1560 = vunpack.c.l.b16 %v1048
      %v1561 = vunpack.c.l.b16 %v1049
      %v1562 = vunpack.c.l.b16 %v1050
      %v1563 = vunpack.c.l.b16 %v1051
      %v1564 = vunpack.c.l.b16 %v1052
      %v1565 = vunpack.c.l.b16 %v1053
      %v1566 = vunpack.c.l.b16 %v1054
      %v1567 = vunpack.c.l.b16 %v1055
      %v1568 = vunpack.c.l.b16 %v1056
      %v1569 = vunpack.c.l.b16 %v1057
      %v1570 = vunpack.c.l.b16 %v1058
      %v1571 = vunpack.c.l.b16 %v1059
      %v1572 = vunpack.c.l.b16 %v1060
      %v1573 = vunpack.c.l.b16 %v1061
      %v1574 = vunpack.c.l.b16 %v1062
      %v1575 = vunpack.c.l.b16 %v1063
      %v1576 = vunpack.c.l.b16 %v1064
      %v1577 = vunpack.c.l.b16 %v1065
      %v1578 = vunpack.c.l.b16 %v1066
      %v1579 = vunpack.c.l.b16 %v1067
      %v1580 = vunpack.c.l.b16 %v1068
      %v1581 = vunpack.c.l.b16 %v1069
      %v1582 = vunpack.c.l.b16 %v1070
      %v1583 = vunpack.c.l.b16 %v1071
      %v1584 = vunpack.c.l.b16 %v1072
      %v1585 = vunpack.c.l.b16 %v1073
      %v1586 = vunpack.c.l.b16 %v1074
      %v1587 = vunpack.c.l.b16 %v1075
      %v1588 = vunpack.c.l.b16 %v1076
      %v1589 = vpack.c.b16 %v1558, %v1557
      %v1590 = vpack.c.b16 %v1560, %v1559
      %v1591 = vpack.c.b16 %v1562, %v1561
      %v1592 = vpack.c.b16 %v1564, %v1563
      %v1593 = vpack.c.b16 %v1566, %v1565
      %v1594 = vpack.c.b16 %v1568, %v1567
      %v1595 = vpack.c.b16 %v1570, %v1569
      %v1596 = vpack.c.b16 %v1572, %v1571
      %v1597 = vpack.c.b16 %v1574, %v1573
      %v1598 = vpack.c.b16 %v1576, %v1575
      %v1599 = vpack.c.b16 %v1578, %v1577
      %v1600 = vpack.c.b16 %v1580, %v1579
      %v1601 = vpack.c.b16 %v1582, %v1581
      %v1602 = vpack.c.b16 %v1584, %v1583
      %v1603 = vpack.c.b16 %v1586, %v1585
      %v1604 = vpack.c.b16 %v1588, %v1587
      %1605 = vrot.lane.b32.xlu0 %v1589, 16
      %v1606 = vpop.permute.xlu0 %1605
      %1607 = vrot.lane.b32.xlu0 %v1590, 16
      %v1608 = vpop.permute.xlu0 %1607
      %1609 = vrot.lane.b32.xlu0 %v1591, 16
      %v1610 = vpop.permute.xlu0 %1609
      %1611 = vrot.lane.b32.xlu0 %v1592, 16
      %v1612 = vpop.permute.xlu0 %1611
      %1613 = vrot.lane.b32.xlu0 %v1593, 16
      %v1614 = vpop.permute.xlu0 %1613
      %1615 = vrot.lane.b32.xlu0 %v1594, 16
      %v1616 = vpop.permute.xlu0 %1615
      %1617 = vrot.lane.b32.xlu0 %v1595, 16
      %v1618 = vpop.permute.xlu0 %1617
      %1619 = vrot.lane.b32.xlu0 %v1596, 16
      %v1620 = vpop.permute.xlu0 %1619
      %1621 = vrot.lane.b32.xlu0 %v1597, 16
      %v1622 = vpop.permute.xlu0 %1621
      %1623 = vrot.lane.b32.xlu0 %v1598, 16
      %v1624 = vpop.permute.xlu0 %1623
      %1625 = vrot.lane.b32.xlu0 %v1599, 16
      %v1626 = vpop.permute.xlu0 %1625
      %1627 = vrot.lane.b32.xlu0 %v1600, 16
      %v1628 = vpop.permute.xlu0 %1627
      %1629 = vrot.lane.b32.xlu0 %v1601, 16
      %v1630 = vpop.permute.xlu0 %1629
      %1631 = vrot.lane.b32.xlu0 %v1602, 16
      %v1632 = vpop.permute.xlu0 %1631
      %1633 = vrot.lane.b32.xlu0 %v1603, 16
      %v1634 = vpop.permute.xlu0 %1633
      %1635 = vrot.lane.b32.xlu0 %v1604, 16
      %v1636 = vpop.permute.xlu0 %1635
      %v1669 = vunpack.c.l.b16 %v1141
      %v1670 = vunpack.c.l.b16 %v1142
      %v1671 = vunpack.c.l.b16 %v1143
      %v1672 = vunpack.c.l.b16 %v1144
      %v1673 = vunpack.c.l.b16 %v1145
      %v1674 = vunpack.c.l.b16 %v1146
      %v1675 = vunpack.c.l.b16 %v1147
      %v1676 = vunpack.c.l.b16 %v1148
      %v1677 = vunpack.c.l.b16 %v1149
      %v1678 = vunpack.c.l.b16 %v1150
      %v1679 = vunpack.c.l.b16 %v1151
      %v1680 = vunpack.c.l.b16 %v1152
      %v1681 = vunpack.c.l.b16 %v1153
      %v1682 = vunpack.c.l.b16 %v1154
      %v1683 = vunpack.c.l.b16 %v1155
      %v1684 = vunpack.c.l.b16 %v1156
      %v1685 = vunpack.c.l.b16 %v1157
      %v1686 = vunpack.c.l.b16 %v1158
      %v1687 = vunpack.c.l.b16 %v1159
      %v1688 = vunpack.c.l.b16 %v1160
      %v1689 = vunpack.c.l.b16 %v1161
      %v1690 = vunpack.c.l.b16 %v1162
      %v1691 = vunpack.c.l.b16 %v1163
      %v1692 = vunpack.c.l.b16 %v1164
      %v1693 = vunpack.c.l.b16 %v1165
      %v1694 = vunpack.c.l.b16 %v1166
      %v1695 = vunpack.c.l.b16 %v1167
      %v1696 = vunpack.c.l.b16 %v1168
      %v1697 = vunpack.c.l.b16 %v1169
      %v1698 = vunpack.c.l.b16 %v1170
      %v1699 = vunpack.c.l.b16 %v1171
      %v1700 = vunpack.c.l.b16 %v1172
      %v1701 = vpack.c.b16 %v1670, %v1669
      %v1702 = vpack.c.b16 %v1672, %v1671
      %v1703 = vpack.c.b16 %v1674, %v1673
      %v1704 = vpack.c.b16 %v1676, %v1675
      %v1705 = vpack.c.b16 %v1678, %v1677
      %v1706 = vpack.c.b16 %v1680, %v1679
      %v1707 = vpack.c.b16 %v1682, %v1681
      %v1708 = vpack.c.b16 %v1684, %v1683
      %v1709 = vpack.c.b16 %v1686, %v1685
      %v1710 = vpack.c.b16 %v1688, %v1687
      %v1711 = vpack.c.b16 %v1690, %v1689
      %v1712 = vpack.c.b16 %v1692, %v1691
      %v1713 = vpack.c.b16 %v1694, %v1693
      %v1714 = vpack.c.b16 %v1696, %v1695
      %v1715 = vpack.c.b16 %v1698, %v1697
      %v1716 = vpack.c.b16 %v1700, %v1699
      %1717 = vrot.lane.b32.xlu0 %v1701, 32
      %v1718 = vpop.permute.xlu0 %1717
      %1719 = vrot.lane.b32.xlu0 %v1702, 32
      %v1720 = vpop.permute.xlu0 %1719
      %1721 = vrot.lane.b32.xlu0 %v1703, 32
      %v1722 = vpop.permute.xlu0 %1721
      %1723 = vrot.lane.b32.xlu0 %v1704, 32
      %v1724 = vpop.permute.xlu0 %1723
      %1725 = vrot.lane.b32.xlu0 %v1705, 32
      %v1726 = vpop.permute.xlu0 %1725
      %1727 = vrot.lane.b32.xlu0 %v1706, 32
      %v1728 = vpop.permute.xlu0 %1727
      %1729 = vrot.lane.b32.xlu0 %v1707, 32
      %v1730 = vpop.permute.xlu0 %1729
      %1731 = vrot.lane.b32.xlu0 %v1708, 32
      %v1732 = vpop.permute.xlu0 %1731
      %1733 = vrot.lane.b32.xlu0 %v1709, 32
      %v1734 = vpop.permute.xlu0 %1733
      %1735 = vrot.lane.b32.xlu0 %v1710, 32
      %v1736 = vpop.permute.xlu0 %1735
      %1737 = vrot.lane.b32.xlu0 %v1711, 32
      %v1738 = vpop.permute.xlu0 %1737
      %1739 = vrot.lane.b32.xlu0 %v1712, 32
      %v1740 = vpop.permute.xlu0 %1739
      %1741 = vrot.lane.b32.xlu0 %v1713, 32
      %v1742 = vpop.permute.xlu0 %1741
      %1743 = vrot.lane.b32.xlu0 %v1714, 32
      %v1744 = vpop.permute.xlu0 %1743
      %1745 = vrot.lane.b32.xlu0 %v1715, 32
      %v1746 = vpop.permute.xlu0 %1745
      %1747 = vrot.lane.b32.xlu0 %v1716, 32
      %v1748 = vpop.permute.xlu0 %1747
      %v1781 = vunpack.c.l.b16 %v1207
      %v1782 = vunpack.c.l.b16 %v1208
      %v1783 = vunpack.c.l.b16 %v1209
      %v1784 = vunpack.c.l.b16 %v1210
      %v1785 = vunpack.c.l.b16 %v1211
      %v1786 = vunpack.c.l.b16 %v1212
      %v1787 = vunpack.c.l.b16 %v1213
      %v1788 = vunpack.c.l.b16 %v1214
      %v1789 = vunpack.c.l.b16 %v1215
      %v1790 = vunpack.c.l.b16 %v1216
      %v1791 = vunpack.c.l.b16 %v1217
      %v1792 = vunpack.c.l.b16 %v1218
      %v1793 = vunpack.c.l.b16 %v1219
      %v1794 = vunpack.c.l.b16 %v1220
      %v1795 = vunpack.c.l.b16 %v1221
      %v1796 = vunpack.c.l.b16 %v1222
      %v1797 = vunpack.c.l.b16 %v1223
      %v1798 = vunpack.c.l.b16 %v1224
      %v1799 = vunpack.c.l.b16 %v1225
      %v1800 = vunpack.c.l.b16 %v1226
      %v1801 = vunpack.c.l.b16 %v1227
      %v1802 = vunpack.c.l.b16 %v1228
      %v1803 = vunpack.c.l.b16 %v1229
      %v1804 = vunpack.c.l.b16 %v1230
      %v1805 = vunpack.c.l.b16 %v1231
      %v1806 = vunpack.c.l.b16 %v1232
      %v1807 = vunpack.c.l.b16 %v1233
      %v1808 = vunpack.c.l.b16 %v1234
      %v1809 = vunpack.c.l.b16 %v1235
      %v1810 = vunpack.c.l.b16 %v1236
      %v1811 = vunpack.c.l.b16 %v1237
      %v1812 = vunpack.c.l.b16 %v1238
      %v1813 = vpack.c.b16 %v1782, %v1781
      %v1814 = vpack.c.b16 %v1784, %v1783
      %v1815 = vpack.c.b16 %v1786, %v1785
      %v1816 = vpack.c.b16 %v1788, %v1787
      %v1817 = vpack.c.b16 %v1790, %v1789
      %v1818 = vpack.c.b16 %v1792, %v1791
      %v1819 = vpack.c.b16 %v1794, %v1793
      %v1820 = vpack.c.b16 %v1796, %v1795
      %v1821 = vpack.c.b16 %v1798, %v1797
      %v1822 = vpack.c.b16 %v1800, %v1799
      %v1823 = vpack.c.b16 %v1802, %v1801
      %v1824 = vpack.c.b16 %v1804, %v1803
      %v1825 = vpack.c.b16 %v1806, %v1805
      %v1826 = vpack.c.b16 %v1808, %v1807
      %v1827 = vpack.c.b16 %v1810, %v1809
      %v1828 = vpack.c.b16 %v1812, %v1811
      %1829 = vrot.lane.b32.xlu0 %v1813, 48
      %v1830 = vpop.permute.xlu0 %1829
      %1831 = vrot.lane.b32.xlu0 %v1814, 48
      %v1832 = vpop.permute.xlu0 %1831
      %1833 = vrot.lane.b32.xlu0 %v1815, 48
      %v1834 = vpop.permute.xlu0 %1833
      %1835 = vrot.lane.b32.xlu0 %v1816, 48
      %v1836 = vpop.permute.xlu0 %1835
      %1837 = vrot.lane.b32.xlu0 %v1817, 48
      %v1838 = vpop.permute.xlu0 %1837
      %1839 = vrot.lane.b32.xlu0 %v1818, 48
      %v1840 = vpop.permute.xlu0 %1839
      %1841 = vrot.lane.b32.xlu0 %v1819, 48
      %v1842 = vpop.permute.xlu0 %1841
      %1843 = vrot.lane.b32.xlu0 %v1820, 48
      %v1844 = vpop.permute.xlu0 %1843
      %1845 = vrot.lane.b32.xlu0 %v1821, 48
      %v1846 = vpop.permute.xlu0 %1845
      %1847 = vrot.lane.b32.xlu0 %v1822, 48
      %v1848 = vpop.permute.xlu0 %1847
      %1849 = vrot.lane.b32.xlu0 %v1823, 48
      %v1850 = vpop.permute.xlu0 %1849
      %1851 = vrot.lane.b32.xlu0 %v1824, 48
      %v1852 = vpop.permute.xlu0 %1851
      %1853 = vrot.lane.b32.xlu0 %v1825, 48
      %v1854 = vpop.permute.xlu0 %1853
      %1855 = vrot.lane.b32.xlu0 %v1826, 48
      %v1856 = vpop.permute.xlu0 %1855
      %1857 = vrot.lane.b32.xlu0 %v1827, 48
      %v1858 = vpop.permute.xlu0 %1857
      %1859 = vrot.lane.b32.xlu0 %v1828, 48
      %v1860 = vpop.permute.xlu0 %1859
      %v1893 = vunpack.c.l.b16 %v1273
      %v1894 = vunpack.c.l.b16 %v1274
      %v1895 = vunpack.c.l.b16 %v1275
      %v1896 = vunpack.c.l.b16 %v1276
      %v1897 = vunpack.c.l.b16 %v1277
      %v1898 = vunpack.c.l.b16 %v1278
      %v1899 = vunpack.c.l.b16 %v1279
      %v1900 = vunpack.c.l.b16 %v1280
      %v1901 = vunpack.c.l.b16 %v1281
      %v1902 = vunpack.c.l.b16 %v1282
      %v1903 = vunpack.c.l.b16 %v1283
      %v1904 = vunpack.c.l.b16 %v1284
      %v1905 = vunpack.c.l.b16 %v1285
      %v1906 = vunpack.c.l.b16 %v1286
      %v1907 = vunpack.c.l.b16 %v1287
      %v1908 = vunpack.c.l.b16 %v1288
      %v1909 = vunpack.c.l.b16 %v1289
      %v1910 = vunpack.c.l.b16 %v1290
      %v1911 = vunpack.c.l.b16 %v1291
      %v1912 = vunpack.c.l.b16 %v1292
      %v1913 = vunpack.c.l.b16 %v1293
      %v1914 = vunpack.c.l.b16 %v1294
      %v1915 = vunpack.c.l.b16 %v1295
      %v1916 = vunpack.c.l.b16 %v1296
      %v1917 = vunpack.c.l.b16 %v1297
      %v1918 = vunpack.c.l.b16 %v1298
      %v1919 = vunpack.c.l.b16 %v1299
      %v1920 = vunpack.c.l.b16 %v1300
      %v1921 = vunpack.c.l.b16 %v1301
      %v1922 = vunpack.c.l.b16 %v1302
      %v1923 = vunpack.c.l.b16 %v1303
      %v1924 = vunpack.c.l.b16 %v1304
      %v1925 = vpack.c.b16 %v1894, %v1893
      %v1926 = vpack.c.b16 %v1896, %v1895
      %v1927 = vpack.c.b16 %v1898, %v1897
      %v1928 = vpack.c.b16 %v1900, %v1899
      %v1929 = vpack.c.b16 %v1902, %v1901
      %v1930 = vpack.c.b16 %v1904, %v1903
      %v1931 = vpack.c.b16 %v1906, %v1905
      %v1932 = vpack.c.b16 %v1908, %v1907
      %v1933 = vpack.c.b16 %v1910, %v1909
      %v1934 = vpack.c.b16 %v1912, %v1911
      %v1935 = vpack.c.b16 %v1914, %v1913
      %v1936 = vpack.c.b16 %v1916, %v1915
      %v1937 = vpack.c.b16 %v1918, %v1917
      %v1938 = vpack.c.b16 %v1920, %v1919
      %v1939 = vpack.c.b16 %v1922, %v1921
      %v1940 = vpack.c.b16 %v1924, %v1923
      %1941 = vrot.lane.b32.xlu0 %v1925, 64
      %v1942 = vpop.permute.xlu0 %1941
      %1943 = vrot.lane.b32.xlu0 %v1926, 64
      %v1944 = vpop.permute.xlu0 %1943
      %1945 = vrot.lane.b32.xlu0 %v1927, 64
      %v1946 = vpop.permute.xlu0 %1945
      %1947 = vrot.lane.b32.xlu0 %v1928, 64
      %v1948 = vpop.permute.xlu0 %1947
      %1949 = vrot.lane.b32.xlu0 %v1929, 64
      %v1950 = vpop.permute.xlu0 %1949
      %1951 = vrot.lane.b32.xlu0 %v1930, 64
      %v1952 = vpop.permute.xlu0 %1951
      %1953 = vrot.lane.b32.xlu0 %v1931, 64
      %v1954 = vpop.permute.xlu0 %1953
      %1955 = vrot.lane.b32.xlu0 %v1932, 64
      %v1956 = vpop.permute.xlu0 %1955
      %1957 = vrot.lane.b32.xlu0 %v1933, 64
      %v1958 = vpop.permute.xlu0 %1957
      %1959 = vrot.lane.b32.xlu0 %v1934, 64
      %v1960 = vpop.permute.xlu0 %1959
      %1961 = vrot.lane.b32.xlu0 %v1935, 64
      %v1962 = vpop.permute.xlu0 %1961
      %1963 = vrot.lane.b32.xlu0 %v1936, 64
      %v1964 = vpop.permute.xlu0 %1963
      %1965 = vrot.lane.b32.xlu0 %v1937, 64
      %v1966 = vpop.permute.xlu0 %1965
      %1967 = vrot.lane.b32.xlu0 %v1938, 64
      %v1968 = vpop.permute.xlu0 %1967
      %1969 = vrot.lane.b32.xlu0 %v1939, 64
      %v1970 = vpop.permute.xlu0 %1969
      %1971 = vrot.lane.b32.xlu0 %v1940, 64
      %v1972 = vpop.permute.xlu0 %1971
      %v2005 = vunpack.c.l.b16 %v1339
      %v2006 = vunpack.c.l.b16 %v1340
      %v2007 = vunpack.c.l.b16 %v1341
      %v2008 = vunpack.c.l.b16 %v1342
      %v2009 = vunpack.c.l.b16 %v1343
      %v2010 = vunpack.c.l.b16 %v1344
      %v2011 = vunpack.c.l.b16 %v1345
      %v2012 = vunpack.c.l.b16 %v1346
      %v2013 = vunpack.c.l.b16 %v1347
      %v2014 = vunpack.c.l.b16 %v1348
      %v2015 = vunpack.c.l.b16 %v1349
      %v2016 = vunpack.c.l.b16 %v1350
      %v2017 = vunpack.c.l.b16 %v1351
      %v2018 = vunpack.c.l.b16 %v1352
      %v2019 = vunpack.c.l.b16 %v1353
      %v2020 = vunpack.c.l.b16 %v1354
      %v2021 = vunpack.c.l.b16 %v1355
      %v2022 = vunpack.c.l.b16 %v1356
      %v2023 = vunpack.c.l.b16 %v1357
      %v2024 = vunpack.c.l.b16 %v1358
      %v2025 = vunpack.c.l.b16 %v1359
      %v2026 = vunpack.c.l.b16 %v1360
      %v2027 = vunpack.c.l.b16 %v1361
      %v2028 = vunpack.c.l.b16 %v1362
      %v2029 = vunpack.c.l.b16 %v1363
      %v2030 = vunpack.c.l.b16 %v1364
      %v2031 = vunpack.c.l.b16 %v1365
      %v2032 = vunpack.c.l.b16 %v1366
      %v2033 = vunpack.c.l.b16 %v1367
      %v2034 = vunpack.c.l.b16 %v1368
      %v2035 = vunpack.c.l.b16 %v1369
      %v2036 = vunpack.c.l.b16 %v1370
      %v2037 = vpack.c.b16 %v2006, %v2005
      %v2038 = vpack.c.b16 %v2008, %v2007
      %v2039 = vpack.c.b16 %v2010, %v2009
      %v2040 = vpack.c.b16 %v2012, %v2011
      %v2041 = vpack.c.b16 %v2014, %v2013
      %v2042 = vpack.c.b16 %v2016, %v2015
      %v2043 = vpack.c.b16 %v2018, %v2017
      %v2044 = vpack.c.b16 %v2020, %v2019
      %v2045 = vpack.c.b16 %v2022, %v2021
      %v2046 = vpack.c.b16 %v2024, %v2023
      %v2047 = vpack.c.b16 %v2026, %v2025
      %v2048 = vpack.c.b16 %v2028, %v2027
      %v2049 = vpack.c.b16 %v2030, %v2029
      %v2050 = vpack.c.b16 %v2032, %v2031
      %v2051 = vpack.c.b16 %v2034, %v2033
      %v2052 = vpack.c.b16 %v2036, %v2035
      %2053 = vrot.lane.b32.xlu0 %v2037, 80
      %v2054 = vpop.permute.xlu0 %2053
      %2055 = vrot.lane.b32.xlu0 %v2038, 80
      %v2056 = vpop.permute.xlu0 %2055
      %2057 = vrot.lane.b32.xlu0 %v2039, 80
      %v2058 = vpop.permute.xlu0 %2057
      %2059 = vrot.lane.b32.xlu0 %v2040, 80
      %v2060 = vpop.permute.xlu0 %2059
      %2061 = vrot.lane.b32.xlu0 %v2041, 80
      %v2062 = vpop.permute.xlu0 %2061
      %2063 = vrot.lane.b32.xlu0 %v2042, 80
      %v2064 = vpop.permute.xlu0 %2063
      %2065 = vrot.lane.b32.xlu0 %v2043, 80
      %v2066 = vpop.permute.xlu0 %2065
      %2067 = vrot.lane.b32.xlu0 %v2044, 80
      %v2068 = vpop.permute.xlu0 %2067
      %2069 = vrot.lane.b32.xlu0 %v2045, 80
      %v2070 = vpop.permute.xlu0 %2069
      %2071 = vrot.lane.b32.xlu0 %v2046, 80
      %v2072 = vpop.permute.xlu0 %2071
      %2073 = vrot.lane.b32.xlu0 %v2047, 80
      %v2074 = vpop.permute.xlu0 %2073
      %2075 = vrot.lane.b32.xlu0 %v2048, 80
      %v2076 = vpop.permute.xlu0 %2075
      %2077 = vrot.lane.b32.xlu0 %v2049, 80
      %v2078 = vpop.permute.xlu0 %2077
      %2079 = vrot.lane.b32.xlu0 %v2050, 80
      %v2080 = vpop.permute.xlu0 %2079
      %2081 = vrot.lane.b32.xlu0 %v2051, 80
      %v2082 = vpop.permute.xlu0 %2081
      %2083 = vrot.lane.b32.xlu0 %v2052, 80
      %v2084 = vpop.permute.xlu0 %2083
      %v2089 = vunpack.c.l.b16 %v1375
      %v2090 = vunpack.c.l.b16 %v1376
      %v2091 = vunpack.c.l.b16 %v1377
      %v2092 = vunpack.c.l.b16 %v1378
      %v2093 = vpack.c.b16 %v2090, %v2089
      %v2094 = vpack.c.b16 %v2092, %v2091
      %2095 = vrot.lane.b32.xlu0 %v1591, 96
      %v2096 = vpop.permute.xlu0 %2095
      %2097 = vrot.lane.b32.xlu0 %v1592, 96
      %v2098 = vpop.permute.xlu0 %2097
      %2099 = vrot.lane.b32.xlu0 %v1593, 96
      %v2100 = vpop.permute.xlu0 %2099
      %2101 = vrot.lane.b32.xlu0 %v1594, 96
      %v2102 = vpop.permute.xlu0 %2101
      %2103 = vrot.lane.b32.xlu0 %v1595, 96
      %v2104 = vpop.permute.xlu0 %2103
      %2105 = vrot.lane.b32.xlu0 %v1596, 96
      %v2106 = vpop.permute.xlu0 %2105
      %2107 = vrot.lane.b32.xlu0 %v1597, 96
      %v2108 = vpop.permute.xlu0 %2107
      %2109 = vrot.lane.b32.xlu0 %v1598, 96
      %v2110 = vpop.permute.xlu0 %2109
      %2111 = vrot.lane.b32.xlu0 %v1599, 96
      %v2112 = vpop.permute.xlu0 %2111
      %2113 = vrot.lane.b32.xlu0 %v1600, 96
      %v2114 = vpop.permute.xlu0 %2113
      %2115 = vrot.lane.b32.xlu0 %v1601, 96
      %v2116 = vpop.permute.xlu0 %2115
      %2117 = vrot.lane.b32.xlu0 %v1602, 96
      %v2118 = vpop.permute.xlu0 %2117
      %2119 = vrot.lane.b32.xlu0 %v1603, 96
      %v2120 = vpop.permute.xlu0 %2119
      %2121 = vrot.lane.b32.xlu0 %v1604, 96
      %v2122 = vpop.permute.xlu0 %2121
      %2123 = vrot.lane.b32.xlu0 %v2093, 96
      %v2124 = vpop.permute.xlu0 %2123
      %2125 = vrot.lane.b32.xlu0 %v2094, 96
      %v2126 = vpop.permute.xlu0 %2125
      %v2159 = vunpack.c.l.b16 %v1413
      %v2160 = vunpack.c.l.b16 %v1414
      %v2161 = vunpack.c.l.b16 %v1415
      %v2162 = vunpack.c.l.b16 %v1416
      %v2163 = vunpack.c.l.b16 %v1417
      %v2164 = vunpack.c.l.b16 %v1418
      %v2165 = vunpack.c.l.b16 %v1419
      %v2166 = vunpack.c.l.b16 %v1420
      %v2167 = vunpack.c.l.b16 %v1421
      %v2168 = vunpack.c.l.b16 %v1422
      %v2169 = vunpack.c.l.b16 %v1423
      %v2170 = vunpack.c.l.b16 %v1424
      %v2171 = vunpack.c.l.b16 %v1425
      %v2172 = vunpack.c.l.b16 %v1426
      %v2173 = vunpack.c.l.b16 %v1427
      %v2174 = vunpack.c.l.b16 %v1428
      %v2175 = vunpack.c.l.b16 %v1429
      %v2176 = vunpack.c.l.b16 %v1430
      %v2177 = vunpack.c.l.b16 %v1431
      %v2178 = vunpack.c.l.b16 %v1432
      %v2179 = vunpack.c.l.b16 %v1433
      %v2180 = vunpack.c.l.b16 %v1434
      %v2181 = vunpack.c.l.b16 %v1435
      %v2182 = vunpack.c.l.b16 %v1436
      %v2183 = vunpack.c.l.b16 %v1437
      %v2184 = vunpack.c.l.b16 %v1438
      %v2185 = vunpack.c.l.b16 %v1439
      %v2186 = vunpack.c.l.b16 %v1440
      %v2187 = vunpack.c.l.b16 %v1441
      %v2188 = vunpack.c.l.b16 %v1442
      %v2189 = vunpack.c.l.b16 %v1443
      %v2190 = vunpack.c.l.b16 %v1444
      %v2191 = vpack.c.b16 %v2160, %v2159
      %v2192 = vpack.c.b16 %v2162, %v2161
      %v2193 = vpack.c.b16 %v2164, %v2163
      %v2194 = vpack.c.b16 %v2166, %v2165
      %v2195 = vpack.c.b16 %v2168, %v2167
      %v2196 = vpack.c.b16 %v2170, %v2169
      %v2197 = vpack.c.b16 %v2172, %v2171
      %v2198 = vpack.c.b16 %v2174, %v2173
      %v2199 = vpack.c.b16 %v2176, %v2175
      %v2200 = vpack.c.b16 %v2178, %v2177
      %v2201 = vpack.c.b16 %v2180, %v2179
      %v2202 = vpack.c.b16 %v2182, %v2181
      %v2203 = vpack.c.b16 %v2184, %v2183
      %v2204 = vpack.c.b16 %v2186, %v2185
      %v2205 = vpack.c.b16 %v2188, %v2187
      %v2206 = vpack.c.b16 %v2190, %v2189
      %2207 = vrot.lane.b32.xlu0 %v2191, 112
      %v2208 = vpop.permute.xlu0 %2207
      %2209 = vrot.lane.b32.xlu0 %v2192, 112
      %v2210 = vpop.permute.xlu0 %2209
      %2211 = vrot.lane.b32.xlu0 %v2193, 112
      %v2212 = vpop.permute.xlu0 %2211
      %2213 = vrot.lane.b32.xlu0 %v2194, 112
      %v2214 = vpop.permute.xlu0 %2213
      %2215 = vrot.lane.b32.xlu0 %v2195, 112
      %v2216 = vpop.permute.xlu0 %2215
      %2217 = vrot.lane.b32.xlu0 %v2196, 112
      %v2218 = vpop.permute.xlu0 %2217
      %2219 = vrot.lane.b32.xlu0 %v2197, 112
      %v2220 = vpop.permute.xlu0 %2219
      %2221 = vrot.lane.b32.xlu0 %v2198, 112
      %v2222 = vpop.permute.xlu0 %2221
      %2223 = vrot.lane.b32.xlu0 %v2199, 112
      %v2224 = vpop.permute.xlu0 %2223
      %2225 = vrot.lane.b32.xlu0 %v2200, 112
      %v2226 = vpop.permute.xlu0 %2225
      %2227 = vrot.lane.b32.xlu0 %v2201, 112
      %v2228 = vpop.permute.xlu0 %2227
      %2229 = vrot.lane.b32.xlu0 %v2202, 112
      %v2230 = vpop.permute.xlu0 %2229
      %2231 = vrot.lane.b32.xlu0 %v2203, 112
      %v2232 = vpop.permute.xlu0 %2231
      %2233 = vrot.lane.b32.xlu0 %v2204, 112
      %v2234 = vpop.permute.xlu0 %2233
      %2235 = vrot.lane.b32.xlu0 %v2205, 112
      %v2236 = vpop.permute.xlu0 %2235
      %2237 = vrot.lane.b32.xlu0 %v2206, 112
      %v2238 = vpop.permute.xlu0 %2237
      %v2241 = vsel %vm283, %v1509, %v1606
      %v2244 = vsel %vm283, %v1510, %v1608
      %v2247 = vsel %vm283, %v1511, %v1610
      %v2250 = vsel %vm283, %v1512, %v1612
      %v2253 = vsel %vm283, %v1513, %v1614
      %v2256 = vsel %vm283, %v1514, %v1616
      %v2259 = vsel %vm283, %v1515, %v1618
      %v2262 = vsel %vm283, %v1516, %v1620
      %v2265 = vsel %vm283, %v1517, %v1622
      %v2268 = vsel %vm283, %v1518, %v1624
      %v2271 = vsel %vm283, %v1519, %v1626
      %v2274 = vsel %vm283, %v1520, %v1628
      %v2277 = vsel %vm283, %v1521, %v1630
      %v2280 = vsel %vm283, %v1522, %v1632
      %v2283 = vsel %vm283, %v1523, %v1634
      %v2286 = vsel %vm283, %v1524, %v1636
      %vm2287 = vcmask 261120
      %v2289 = vsel %vm2287, %v2241, %v1718
      %v2291 = vsel %vm2287, %v2244, %v1720
      %v2293 = vsel %vm2287, %v2247, %v1722
      %v2295 = vsel %vm2287, %v2250, %v1724
      %v2297 = vsel %vm2287, %v2253, %v1726
      %v2299 = vsel %vm2287, %v2256, %v1728
      %v2301 = vsel %vm2287, %v2259, %v1730
      %v2303 = vsel %vm2287, %v2262, %v1732
      %v2305 = vsel %vm2287, %v2265, %v1734
      %v2307 = vsel %vm2287, %v2268, %v1736
      %v2309 = vsel %vm2287, %v2271, %v1738
      %v2311 = vsel %vm2287, %v2274, %v1740
      %v2313 = vsel %vm2287, %v2277, %v1742
      %v2315 = vsel %vm2287, %v2280, %v1744
      %v2317 = vsel %vm2287, %v2283, %v1746
      %v2319 = vsel %vm2287, %v2286, %v1748
      %vm2320 = vcmask 392192
      %v2322 = vsel %vm2320, %v2289, %v1830
      %v2324 = vsel %vm2320, %v2291, %v1832
      %v2326 = vsel %vm2320, %v2293, %v1834
      %v2328 = vsel %vm2320, %v2295, %v1836
      %v2330 = vsel %vm2320, %v2297, %v1838
      %v2332 = vsel %vm2320, %v2299, %v1840
      %v2334 = vsel %vm2320, %v2301, %v1842
      %v2336 = vsel %vm2320, %v2303, %v1844
      %v2338 = vsel %vm2320, %v2305, %v1846
      %v2340 = vsel %vm2320, %v2307, %v1848
      %v2342 = vsel %vm2320, %v2309, %v1850
      %v2344 = vsel %vm2320, %v2311, %v1852
      %v2346 = vsel %vm2320, %v2313, %v1854
      %v2348 = vsel %vm2320, %v2315, %v1856
      %v2350 = vsel %vm2320, %v2317, %v1858
      %v2352 = vsel %vm2320, %v2319, %v1860
      %vm2353 = vcmask 523264
      %v2355 = vsel %vm2353, %v2322, %v1942
      %v2357 = vsel %vm2353, %v2324, %v1944
      %v2359 = vsel %vm2353, %v2326, %v1946
      %v2361 = vsel %vm2353, %v2328, %v1948
      %v2363 = vsel %vm2353, %v2330, %v1950
      %v2365 = vsel %vm2353, %v2332, %v1952
      %v2367 = vsel %vm2353, %v2334, %v1954
      %v2369 = vsel %vm2353, %v2336, %v1956
      %v2371 = vsel %vm2353, %v2338, %v1958
      %v2373 = vsel %vm2353, %v2340, %v1960
      %v2375 = vsel %vm2353, %v2342, %v1962
      %v2377 = vsel %vm2353, %v2344, %v1964
      %v2379 = vsel %vm2353, %v2346, %v1966
      %v2381 = vsel %vm2353, %v2348, %v1968
      %v2383 = vsel %vm2353, %v2350, %v1970
      %v2385 = vsel %vm2353, %v2352, %v1972
      %vm2386 = vcmask 654336
      %v2388 = vsel %vm2386, %v2355, %v2054
      %v2390 = vsel %vm2386, %v2357, %v2056
      %v2392 = vsel %vm2386, %v2359, %v2058
      %v2394 = vsel %vm2386, %v2361, %v2060
      %v2396 = vsel %vm2386, %v2363, %v2062
      %v2398 = vsel %vm2386, %v2365, %v2064
      %v2400 = vsel %vm2386, %v2367, %v2066
      %v2402 = vsel %vm2386, %v2369, %v2068
      %v2404 = vsel %vm2386, %v2371, %v2070
      %v2406 = vsel %vm2386, %v2373, %v2072
      %v2408 = vsel %vm2386, %v2375, %v2074
      %v2410 = vsel %vm2386, %v2377, %v2076
      %v2412 = vsel %vm2386, %v2379, %v2078
      %v2414 = vsel %vm2386, %v2381, %v2080
      %v2416 = vsel %vm2386, %v2383, %v2082
      %v2418 = vsel %vm2386, %v2385, %v2084
      %vm2419 = vcmask 785408
      %v2421 = vsel %vm2419, %v2388, %v2096
      %v2423 = vsel %vm2419, %v2390, %v2098
      %v2425 = vsel %vm2419, %v2392, %v2100
      %v2427 = vsel %vm2419, %v2394, %v2102
      %v2429 = vsel %vm2419, %v2396, %v2104
      %v2431 = vsel %vm2419, %v2398, %v2106
      %v2433 = vsel %vm2419, %v2400, %v2108
      %v2435 = vsel %vm2419, %v2402, %v2110
      %v2437 = vsel %vm2419, %v2404, %v2112
      %v2439 = vsel %vm2419, %v2406, %v2114
      %v2441 = vsel %vm2419, %v2408, %v2116
      %v2443 = vsel %vm2419, %v2410, %v2118
      %v2445 = vsel %vm2419, %v2412, %v2120
      %v2447 = vsel %vm2419, %v2414, %v2122
      %v2449 = vsel %vm2419, %v2416, %v2124
      %v2451 = vsel %vm2419, %v2418, %v2126
      %vm2452 = vcmask 916480
      %v2454 = vsel %vm2452, %v2421, %v2208
      %v2457 = vsel %vm2452, %v2423, %v2210
      %v2460 = vsel %vm2452, %v2425, %v2212
      %v2463 = vsel %vm2452, %v2427, %v2214
      %v2466 = vsel %vm2452, %v2429, %v2216
      %v2469 = vsel %vm2452, %v2431, %v2218
      %v2472 = vsel %vm2452, %v2433, %v2220
      %v2475 = vsel %vm2452, %v2435, %v2222
      %v2478 = vsel %vm2452, %v2437, %v2224
      %v2481 = vsel %vm2452, %v2439, %v2226
      %v2484 = vsel %vm2452, %v2441, %v2228
      %v2487 = vsel %vm2452, %v2443, %v2230
      %v2490 = vsel %vm2452, %v2445, %v2232
      %v2493 = vsel %vm2452, %v2447, %v2234
      %v2496 = vsel %vm2452, %v2449, %v2236
      %v2499 = vsel %vm2452, %v2451, %v2238
      %v2501 = vpack.c.bf16 %v1016, %v1015
      %v2502 = vpack.c.bf16 %v1018, %v1017
      %v2503 = vpack.c.bf16 %v1020, %v1019
      %v2504 = vpack.c.bf16 %v1022, %v1021
      %v2505 = vpack.c.bf16 %v1024, %v1023
      %v2506 = vpack.c.bf16 %v1026, %v1025
      %v2507 = vpack.c.bf16 %v1028, %v1027
      %v2508 = vpack.c.bf16 %v1030, %v1029
      %v2509 = vpack.c.bf16 %v1032, %v1031
      %v2510 = vpack.c.bf16 %v1034, %v1033
      %v2511 = vpack.c.bf16 %v1036, %v1035
      %v2512 = vpack.c.bf16 %v1038, %v1037
      %v2513 = vpack.c.bf16 %v1040, %v1039
      %v2514 = vpack.c.bf16 %v1042, %v1041
      %v2515 = vpack.c.bf16 %v1044, %v1043
      %v2516 = vpack.c.bf16 %v1372, %v1371
      %v2519 = vunpack.c.l.b16 %v915
      %v2520 = vunpack.c.l.b16 %v916
      %v2521 = vpack.c.b16 %v2520, %v2519
      %v2524 = vsel %vm283, %v2501, 0
      %v2527 = vsel %vm283, %v2502, 0
      %v2530 = vsel %vm283, %v2503, 0
      %v2533 = vsel %vm283, %v2504, 0
      %v2536 = vsel %vm283, %v2505, 0
      %v2539 = vsel %vm283, %v2506, 0
      %v2542 = vsel %vm283, %v2507, 0
      %v2545 = vsel %vm283, %v2508, 0
      %v2548 = vsel %vm283, %v2509, 0
      %v2551 = vsel %vm283, %v2510, 0
      %v2554 = vsel %vm283, %v2511, 0
      %v2557 = vsel %vm283, %v2512, 0
      %v2560 = vsel %vm283, %v2513, 0
      %v2563 = vsel %vm283, %v2514, 0
      %v2566 = vsel %vm283, %v2515, 0
      %v2569 = vsel %vm283, %v2516, 0
      %2571 = vmatpush.bf16.msra.mxu0 0
      %2572 = vmatpush.bf16.msra.mxu0 0
      %2573 = vmatpush.bf16.msra.mxu0 0
      %2574 = vmatpush.bf16.msra.mxu0 0
      %2575 = vmatpush.bf16.msra.mxu0 0
      %2576 = vmatpush.bf16.msra.mxu0 0
      %2577 = vmatpush.bf16.msra.mxu0 0
      %2578 = vmatpush.bf16.msra.mxu0 %v2521
      %2579 = vmatmul.bf16.gmra.mxu0 %v2524
      %v2580 = vpop.f32.mrf.mxu0
      %v2581 = vadd.f32 0.0, %v2580
      %v2582 = vpop.f32.mrf.mxu0
      %v2583 = vadd.f32 0.0, %v2582
      %2584 = vmatmul.bf16.gmra.mxu0 %v2527
      %v2585 = vpop.f32.mrf.mxu0
      %v2586 = vadd.f32 0.0, %v2585
      %v2587 = vpop.f32.mrf.mxu0
      %v2588 = vadd.f32 0.0, %v2587
      %2589 = vmatmul.bf16.gmra.mxu0 %v2530
      %v2590 = vpop.f32.mrf.mxu0
      %v2591 = vadd.f32 0.0, %v2590
      %v2592 = vpop.f32.mrf.mxu0
      %v2593 = vadd.f32 0.0, %v2592
      %2594 = vmatmul.bf16.gmra.mxu0 %v2533
      %v2595 = vpop.f32.mrf.mxu0
      %v2596 = vadd.f32 0.0, %v2595
      %v2597 = vpop.f32.mrf.mxu0
      %v2598 = vadd.f32 0.0, %v2597
      %2599 = vmatmul.bf16.gmra.mxu0 %v2536
      %v2600 = vpop.f32.mrf.mxu0
      %v2601 = vadd.f32 0.0, %v2600
      %v2602 = vpop.f32.mrf.mxu0
      %v2603 = vadd.f32 0.0, %v2602
      %2604 = vmatmul.bf16.gmra.mxu0 %v2539
      %v2605 = vpop.f32.mrf.mxu0
      %v2606 = vadd.f32 0.0, %v2605
      %v2607 = vpop.f32.mrf.mxu0
      %v2608 = vadd.f32 0.0, %v2607
      %2609 = vmatmul.bf16.gmra.mxu0 %v2542
      %v2610 = vpop.f32.mrf.mxu0
      %v2611 = vadd.f32 0.0, %v2610
      %v2612 = vpop.f32.mrf.mxu0
      %v2613 = vadd.f32 0.0, %v2612
      %2614 = vmatmul.bf16.gmra.mxu0 %v2545
      %v2615 = vpop.f32.mrf.mxu0
      %v2616 = vadd.f32 0.0, %v2615
      %v2617 = vpop.f32.mrf.mxu0
      %v2618 = vadd.f32 0.0, %v2617
      %2619 = vmatmul.bf16.gmra.mxu0 %v2548
      %v2620 = vpop.f32.mrf.mxu0
      %v2621 = vadd.f32 0.0, %v2620
      %v2622 = vpop.f32.mrf.mxu0
      %v2623 = vadd.f32 0.0, %v2622
      %2624 = vmatmul.bf16.gmra.mxu0 %v2551
      %v2625 = vpop.f32.mrf.mxu0
      %v2626 = vadd.f32 0.0, %v2625
      %v2627 = vpop.f32.mrf.mxu0
      %v2628 = vadd.f32 0.0, %v2627
      %2629 = vmatmul.bf16.gmra.mxu0 %v2554
      %v2630 = vpop.f32.mrf.mxu0
      %v2631 = vadd.f32 0.0, %v2630
      %v2632 = vpop.f32.mrf.mxu0
      %v2633 = vadd.f32 0.0, %v2632
      %2634 = vmatmul.bf16.gmra.mxu0 %v2557
      %v2635 = vpop.f32.mrf.mxu0
      %v2636 = vadd.f32 0.0, %v2635
      %v2637 = vpop.f32.mrf.mxu0
      %v2638 = vadd.f32 0.0, %v2637
      %2639 = vmatmul.bf16.gmra.mxu0 %v2560
      %v2640 = vpop.f32.mrf.mxu0
      %v2641 = vadd.f32 0.0, %v2640
      %v2642 = vpop.f32.mrf.mxu0
      %v2643 = vadd.f32 0.0, %v2642
      %2644 = vmatmul.bf16.gmra.mxu0 %v2563
      %v2645 = vpop.f32.mrf.mxu0
      %v2646 = vadd.f32 0.0, %v2645
      %v2647 = vpop.f32.mrf.mxu0
      %v2648 = vadd.f32 0.0, %v2647
      %2649 = vmatmul.bf16.gmra.mxu0 %v2566
      %v2650 = vpop.f32.mrf.mxu0
      %v2651 = vadd.f32 0.0, %v2650
      %v2652 = vpop.f32.mrf.mxu0
      %v2653 = vadd.f32 0.0, %v2652
      %2654 = vmatmul.bf16.gmra.mxu0 %v2569
      %v2655 = vpop.f32.mrf.mxu0
      %v2656 = vadd.f32 0.0, %v2655
      %v2657 = vpop.f32.mrf.mxu0
      %v2658 = vadd.f32 0.0, %v2657
      %2659 = vdwg.mxu0
      %v2676 = vunpack.c.l.b16 %v899
      %v2677 = vunpack.c.l.b16 %v900
      %v2678 = vunpack.c.l.b16 %v901
      %v2679 = vunpack.c.l.b16 %v902
      %v2680 = vunpack.c.l.b16 %v903
      %v2681 = vunpack.c.l.b16 %v904
      %v2682 = vunpack.c.l.b16 %v905
      %v2683 = vunpack.c.l.b16 %v906
      %v2684 = vunpack.c.l.b16 %v907
      %v2685 = vunpack.c.l.b16 %v908
      %v2686 = vunpack.c.l.b16 %v909
      %v2687 = vunpack.c.l.b16 %v910
      %v2688 = vunpack.c.l.b16 %v911
      %v2689 = vunpack.c.l.b16 %v912
      %v2690 = vunpack.c.l.b16 %v913
      %v2691 = vunpack.c.l.b16 %v914
      %v2692 = vpack.c.b16 %v2677, %v2676
      %v2693 = vpack.c.b16 %v2679, %v2678
      %v2694 = vpack.c.b16 %v2681, %v2680
      %v2695 = vpack.c.b16 %v2683, %v2682
      %v2696 = vpack.c.b16 %v2685, %v2684
      %v2697 = vpack.c.b16 %v2687, %v2686
      %v2698 = vpack.c.b16 %v2689, %v2688
      %v2699 = vpack.c.b16 %v2691, %v2690
      %2708 = vmatpush.bf16.msra.mxu0 %v2699
      %2709 = vmatpush.bf16.msra.mxu0 %v2698
      %2710 = vmatpush.bf16.msra.mxu0 %v2697
      %2711 = vmatpush.bf16.msra.mxu0 %v2696
      %2712 = vmatpush.bf16.msra.mxu0 %v2695
      %2713 = vmatpush.bf16.msra.mxu0 %v2694
      %2714 = vmatpush.bf16.msra.mxu0 %v2693
      %2715 = vmatpush.bf16.msra.mxu0 %v2692
      %2716 = vmatmul.bf16.gmra.mxu0 %v2454
      %v2717 = vpop.f32.mrf.mxu0
      %v2718 = vadd.f32 %v2581, %v2717
      %v2719 = vpop.f32.mrf.mxu0
      %v2720 = vadd.f32 %v2583, %v2719
      %2721 = vmatmul.bf16.gmra.mxu0 %v2457
      %v2722 = vpop.f32.mrf.mxu0
      %v2723 = vadd.f32 %v2586, %v2722
      %v2724 = vpop.f32.mrf.mxu0
      %v2725 = vadd.f32 %v2588, %v2724
      %2726 = vmatmul.bf16.gmra.mxu0 %v2460
      %v2727 = vpop.f32.mrf.mxu0
      %v2728 = vadd.f32 %v2591, %v2727
      %v2729 = vpop.f32.mrf.mxu0
      %v2730 = vadd.f32 %v2593, %v2729
      %2731 = vmatmul.bf16.gmra.mxu0 %v2463
      %v2732 = vpop.f32.mrf.mxu0
      %v2733 = vadd.f32 %v2596, %v2732
      %v2734 = vpop.f32.mrf.mxu0
      %v2735 = vadd.f32 %v2598, %v2734
      %2736 = vmatmul.bf16.gmra.mxu0 %v2466
      %v2737 = vpop.f32.mrf.mxu0
      %v2738 = vadd.f32 %v2601, %v2737
      %v2739 = vpop.f32.mrf.mxu0
      %v2740 = vadd.f32 %v2603, %v2739
      %2741 = vmatmul.bf16.gmra.mxu0 %v2469
      %v2742 = vpop.f32.mrf.mxu0
      %v2743 = vadd.f32 %v2606, %v2742
      %v2744 = vpop.f32.mrf.mxu0
      %v2745 = vadd.f32 %v2608, %v2744
      %2746 = vmatmul.bf16.gmra.mxu0 %v2472
      %v2747 = vpop.f32.mrf.mxu0
      %v2748 = vadd.f32 %v2611, %v2747
      %v2749 = vpop.f32.mrf.mxu0
      %v2750 = vadd.f32 %v2613, %v2749
      %2751 = vmatmul.bf16.gmra.mxu0 %v2475
      %v2752 = vpop.f32.mrf.mxu0
      %v2753 = vadd.f32 %v2616, %v2752
      %v2754 = vpop.f32.mrf.mxu0
      %v2755 = vadd.f32 %v2618, %v2754
      %2756 = vmatmul.bf16.gmra.mxu0 %v2478
      %v2757 = vpop.f32.mrf.mxu0
      %v2758 = vadd.f32 %v2621, %v2757
      %v2759 = vpop.f32.mrf.mxu0
      %v2760 = vadd.f32 %v2623, %v2759
      %2761 = vmatmul.bf16.gmra.mxu0 %v2481
      %v2762 = vpop.f32.mrf.mxu0
      %v2763 = vadd.f32 %v2626, %v2762
      %v2764 = vpop.f32.mrf.mxu0
      %v2765 = vadd.f32 %v2628, %v2764
      %2766 = vmatmul.bf16.gmra.mxu0 %v2484
      %v2767 = vpop.f32.mrf.mxu0
      %v2768 = vadd.f32 %v2631, %v2767
      %v2769 = vpop.f32.mrf.mxu0
      %v2770 = vadd.f32 %v2633, %v2769
      %2771 = vmatmul.bf16.gmra.mxu0 %v2487
      %v2772 = vpop.f32.mrf.mxu0
      %v2773 = vadd.f32 %v2636, %v2772
      %v2774 = vpop.f32.mrf.mxu0
      %v2775 = vadd.f32 %v2638, %v2774
      %2776 = vmatmul.bf16.gmra.mxu0 %v2490
      %v2777 = vpop.f32.mrf.mxu0
      %v2778 = vadd.f32 %v2641, %v2777
      %v2779 = vpop.f32.mrf.mxu0
      %v2780 = vadd.f32 %v2643, %v2779
      %2781 = vmatmul.bf16.gmra.mxu0 %v2493
      %v2782 = vpop.f32.mrf.mxu0
      %v2783 = vadd.f32 %v2646, %v2782
      %v2784 = vpop.f32.mrf.mxu0
      %v2785 = vadd.f32 %v2648, %v2784
      %2786 = vmatmul.bf16.gmra.mxu0 %v2496
      %v2787 = vpop.f32.mrf.mxu0
      %v2788 = vadd.f32 %v2651, %v2787
      %v2789 = vpop.f32.mrf.mxu0
      %v2790 = vadd.f32 %v2653, %v2789
      %2791 = vmatmul.bf16.gmra.mxu0 %v2499
      %v2792 = vpop.f32.mrf.mxu0
      %v2793 = vadd.f32 %v2656, %v2792
      %v2794 = vpop.f32.mrf.mxu0
      %v2795 = vadd.f32 %v2658, %v2794
      %2796 = vdwg.mxu0
      %v2797 = vld [vmem:[%s5] sm:$0x1]
      %v2799 = vperm.slane %v2797, 0
      %v2801 = vadd.f32 %v2718, %v2799
      %v2802 = vadd.f32 %v2720, %v2799
      %v2803 = vadd.f32 %v2723, %v2799
      %v2804 = vadd.f32 %v2725, %v2799
      %v2805 = vadd.f32 %v2728, %v2799
      %v2806 = vadd.f32 %v2730, %v2799
      %v2807 = vadd.f32 %v2733, %v2799
      %v2808 = vadd.f32 %v2735, %v2799
      %v2809 = vadd.f32 %v2738, %v2799
      %v2810 = vadd.f32 %v2740, %v2799
      %v2811 = vadd.f32 %v2743, %v2799
      %v2812 = vadd.f32 %v2745, %v2799
      %v2813 = vadd.f32 %v2748, %v2799
      %v2814 = vadd.f32 %v2750, %v2799
      %v2815 = vadd.f32 %v2753, %v2799
      %v2816 = vadd.f32 %v2755, %v2799
      %v2817 = vadd.f32 %v2758, %v2799
      %v2818 = vadd.f32 %v2760, %v2799
      %v2819 = vadd.f32 %v2763, %v2799
      %v2820 = vadd.f32 %v2765, %v2799
      %v2821 = vadd.f32 %v2768, %v2799
      %v2822 = vadd.f32 %v2770, %v2799
      %v2823 = vadd.f32 %v2773, %v2799
      %v2824 = vadd.f32 %v2775, %v2799
      %v2825 = vadd.f32 %v2778, %v2799
      %v2826 = vadd.f32 %v2780, %v2799
      %v2827 = vadd.f32 %v2783, %v2799
      %v2828 = vadd.f32 %v2785, %v2799
      %v2829 = vadd.f32 %v2788, %v2799
      %v2830 = vadd.f32 %v2790, %v2799
      %v2831 = vadd.f32 %v2793, %v2799
      %v2832 = vadd.f32 %v2795, %v2799
      %v2833 = vmax.f32 %v2801, 0.0
      %v2834 = vmax.f32 %v2802, 0.0
      %v2835 = vmax.f32 %v2803, 0.0
      %v2836 = vmax.f32 %v2804, 0.0
      %v2837 = vmax.f32 %v2805, 0.0
      %v2838 = vmax.f32 %v2806, 0.0
      %v2839 = vmax.f32 %v2807, 0.0
      %v2840 = vmax.f32 %v2808, 0.0
      %v2841 = vmax.f32 %v2809, 0.0
      %v2842 = vmax.f32 %v2810, 0.0
      %v2843 = vmax.f32 %v2811, 0.0
      %v2844 = vmax.f32 %v2812, 0.0
      %v2845 = vmax.f32 %v2813, 0.0
      %v2846 = vmax.f32 %v2814, 0.0
      %v2847 = vmax.f32 %v2815, 0.0
      %v2848 = vmax.f32 %v2816, 0.0
      %v2849 = vmax.f32 %v2817, 0.0
      %v2850 = vmax.f32 %v2818, 0.0
      %v2851 = vmax.f32 %v2819, 0.0
      %v2852 = vmax.f32 %v2820, 0.0
      %v2853 = vmax.f32 %v2821, 0.0
      %v2854 = vmax.f32 %v2822, 0.0
      %v2855 = vmax.f32 %v2823, 0.0
      %v2856 = vmax.f32 %v2824, 0.0
      %v2857 = vmax.f32 %v2825, 0.0
      %v2858 = vmax.f32 %v2826, 0.0
      %v2859 = vmax.f32 %v2827, 0.0
      %v2860 = vmax.f32 %v2828, 0.0
      %v2861 = vmax.f32 %v2829, 0.0
      %v2862 = vmax.f32 %v2830, 0.0
      %v2863 = vmax.f32 %v2831, 0.0
      %v2864 = vmax.f32 %v2832, 0.0
      %2865 = vst.msk [vmem:[#allocation2 + $0x18] sm:$0xff] %vm283, %v2833
      %2866 = vst.msk [vmem:[#allocation2 + $0x20] sm:$0xff] %vm283, %v2834
      %2867 = vst.msk [vmem:[#allocation2 + $0x28] sm:$0xff] %vm283, %v2835
      %2868 = vst.msk [vmem:[#allocation2 + $0x30] sm:$0xff] %vm283, %v2836
      %2869 = vst.msk [vmem:[#allocation2 + $0x38] sm:$0xff] %vm283, %v2837
      %2870 = vst.msk [vmem:[#allocation2 + $0x40] sm:$0xff] %vm283, %v2838
      %2871 = vst.msk [vmem:[#allocation2 + $0x48] sm:$0xff] %vm283, %v2839
      %2872 = vst.msk [vmem:[#allocation2 + $0x50] sm:$0xff] %vm283, %v2840
      %2873 = vst.msk [vmem:[#allocation2 + $0x58] sm:$0xff] %vm283, %v2841
      %2874 = vst.msk [vmem:[#allocation2 + $0x60] sm:$0xff] %vm283, %v2842
      %2875 = vst.msk [vmem:[#allocation2 + $0x68] sm:$0xff] %vm283, %v2843
      %2876 = vst.msk [vmem:[#allocation2 + $0x70] sm:$0xff] %vm283, %v2844
      %2877 = vst.msk [vmem:[#allocation2 + $0x78] sm:$0xff] %vm283, %v2845
      %2878 = vst.msk [vmem:[#allocation2 + $0x80] sm:$0xff] %vm283, %v2846
      %2879 = vst.msk [vmem:[#allocation2 + $0x88] sm:$0xff] %vm283, %v2847
      %2880 = vst.msk [vmem:[#allocation2 + $0x90] sm:$0xff] %vm283, %v2848
      %2881 = vst.msk [vmem:[#allocation2 + $0x98] sm:$0xff] %vm283, %v2849
      %2882 = vst.msk [vmem:[#allocation2 + $0xa0] sm:$0xff] %vm283, %v2850
      %2883 = vst.msk [vmem:[#allocation2 + $0xa8] sm:$0xff] %vm283, %v2851
      %2884 = vst.msk [vmem:[#allocation2 + $0xb0] sm:$0xff] %vm283, %v2852
      %2885 = vst.msk [vmem:[#allocation2 + $0xb8] sm:$0xff] %vm283, %v2853
      %2886 = vst.msk [vmem:[#allocation2 + $0xc0] sm:$0xff] %vm283, %v2854
      %2887 = vst.msk [vmem:[#allocation2 + $0xc8] sm:$0xff] %vm283, %v2855
      %2888 = vst.msk [vmem:[#allocation2 + $0xd0] sm:$0xff] %vm283, %v2856
      %2889 = vst.msk [vmem:[#allocation2 + $0xd8] sm:$0xff] %vm283, %v2857
      %2890 = vst.msk [vmem:[#allocation2 + $0xe0] sm:$0xff] %vm283, %v2858
      %2891 = vst.msk [vmem:[#allocation2 + $0xe8] sm:$0xff] %vm283, %v2859
      %2892 = vst.msk [vmem:[#allocation2 + $0xf0] sm:$0xff] %vm283, %v2860
      %2893 = vst.msk [vmem:[#allocation2 + $0xf8] sm:$0xff] %vm283, %v2861
      %2894 = vst.msk [vmem:[#allocation2 + $0x100] sm:$0xff] %vm283, %v2862
      %2895 = vst.msk [vmem:[#allocation2 + $0x108] sm:$0xff] %vm283, %v2863
      %2896 = vst.msk [vmem:[#allocation2 + $0x110] sm:$0xff] %vm283, %v2864
      %v2897 = vld [vmem:[%s3] sm:$0xf]
      %v2898 = vld [vmem:[%s3 + $0x4] sm:$0xf]
      %v2899 = vld [vmem:[%s3 + $0x8] sm:$0xf]
      %v2900 = vld [vmem:[%s3 + $0xc] sm:$0xf]
      %v2901 = vld [vmem:[%s3 + $0x10] sm:$0xf]
      %v2902 = vld [vmem:[%s3 + $0x14] sm:$0xf]
      %v2903 = vld [vmem:[%s3 + $0x18] sm:$0xf]
      %v2904 = vld [vmem:[%s3 + $0x1c] sm:$0xf]
      %v2905 = vld [vmem:[%s3 + $0x20] sm:$0xf]
      %v2906 = vld [vmem:[%s3 + $0x24] sm:$0xf]
      %v2907 = vld [vmem:[%s3 + $0x28] sm:$0xf]
      %v2908 = vld [vmem:[%s3 + $0x2c] sm:$0xf]
      %v2909 = vld [vmem:[%s3 + $0x30] sm:$0xf]
      %v2910 = vld [vmem:[%s3 + $0x34] sm:$0xf]
      %v2911 = vld [vmem:[%s3 + $0x38] sm:$0xf]
      %v2912 = vld [vmem:[%s3 + $0x3c] sm:$0xf]
      %v2913 = vld [vmem:[%s4] sm:$0xf]
      %v2914 = vld [vmem:[%s4 + $0x4] sm:$0xf]
      %v2915 = vld [vmem:[#allocation2 + $0x7] sm:$0xff]
      %v2916 = vld [vmem:[#allocation2 + $0xf] sm:$0xff]
      %v2917 = vld [vmem:[#allocation2 + $0x17] sm:$0xff]
      %v2918 = vld [vmem:[#allocation2 + $0x1f] sm:$0xff]
      %v2919 = vld [vmem:[#allocation2 + $0x27] sm:$0xff]
      %v2920 = vld [vmem:[#allocation2 + $0x2f] sm:$0xff]
      %v2921 = vld [vmem:[#allocation2 + $0x37] sm:$0xff]
      %v2922 = vld [vmem:[#allocation2 + $0x3f] sm:$0xff]
      %v2923 = vld [vmem:[#allocation2 + $0x47] sm:$0xff]
      %v2924 = vld [vmem:[#allocation2 + $0x4f] sm:$0xff]
      %v2925 = vld [vmem:[#allocation2 + $0x57] sm:$0xff]
      %v2926 = vld [vmem:[#allocation2 + $0x5f] sm:$0xff]
      %v2927 = vld [vmem:[#allocation2 + $0x67] sm:$0xff]
      %v2928 = vld [vmem:[#allocation2 + $0x6f] sm:$0xff]
      %v2929 = vld [vmem:[#allocation2 + $0x77] sm:$0xff]
      %v2930 = vld [vmem:[#allocation2 + $0x7f] sm:$0xff]
      %v2931 = vld [vmem:[#allocation2 + $0x87] sm:$0xff]
      %v2932 = vld [vmem:[#allocation2 + $0x8f] sm:$0xff]
      %v2933 = vld [vmem:[#allocation2 + $0x97] sm:$0xff]
      %v2934 = vld [vmem:[#allocation2 + $0x9f] sm:$0xff]
      %v2935 = vld [vmem:[#allocation2 + $0xa7] sm:$0xff]
      %v2936 = vld [vmem:[#allocation2 + $0xaf] sm:$0xff]
      %v2937 = vld [vmem:[#allocation2 + $0xb7] sm:$0xff]
      %v2938 = vld [vmem:[#allocation2 + $0xbf] sm:$0xff]
      %v2939 = vld [vmem:[#allocation2 + $0xc7] sm:$0xff]
      %v2940 = vld [vmem:[#allocation2 + $0xcf] sm:$0xff]
      %v2941 = vld [vmem:[#allocation2 + $0xd7] sm:$0xff]
      %v2942 = vld [vmem:[#allocation2 + $0xdf] sm:$0xff]
      %v2943 = vld [vmem:[#allocation2 + $0xe7] sm:$0xff]
      %v2944 = vld [vmem:[#allocation2 + $0xef] sm:$0xff]
      %v2945 = vld [vmem:[#allocation2 + $0xf7] sm:$0xff]
      %v2946 = vld [vmem:[#allocation2 + $0xff] sm:$0xff]
      %v2947 = vsel %vm707, %v2915, 0.0
      %v2948 = vsel %vm708, %v2916, 0.0
      %v2949 = vsel %vm709, %v2917, 0.0
      %v2950 = vsel %vm710, %v2918, 0.0
      %v2951 = vsel %vm711, %v2919, 0.0
      %v2952 = vsel %vm712, %v2920, 0.0
      %v2953 = vsel %vm713, %v2921, 0.0
      %v2954 = vsel %vm714, %v2922, 0.0
      %v2955 = vsel %vm715, %v2923, 0.0
      %v2956 = vsel %vm716, %v2924, 0.0
      %v2957 = vsel %vm717, %v2925, 0.0
      %v2958 = vsel %vm718, %v2926, 0.0
      %v2959 = vsel %vm719, %v2927, 0.0
      %v2960 = vsel %vm720, %v2928, 0.0
      %v2961 = vsel %vm721, %v2929, 0.0
      %v2962 = vsel %vm722, %v2930, 0.0
      %v2963 = vsel %vm723, %v2931, 0.0
      %v2964 = vsel %vm724, %v2932, 0.0
      %v2965 = vsel %vm725, %v2933, 0.0
      %v2966 = vsel %vm726, %v2934, 0.0
      %v2967 = vsel %vm727, %v2935, 0.0
      %v2968 = vsel %vm728, %v2936, 0.0
      %v2969 = vsel %vm729, %v2937, 0.0
      %v2970 = vsel %vm730, %v2938, 0.0
      %v2971 = vsel %vm731, %v2939, 0.0
      %v2972 = vsel %vm732, %v2940, 0.0
      %v2973 = vsel %vm733, %v2941, 0.0
      %v2974 = vsel %vm734, %v2942, 0.0
      %v2975 = vsel %vm735, %v2943, 0.0
      %v2976 = vsel %vm736, %v2944, 0.0
      %v2977 = vsel %vm737, %v2945, 0.0
      %v2978 = vsel %vm738, %v2946, 0.0
      %v2979 = vpack.c.bf16 %v2947, %v2947
      %v2980 = vpack.c.bf16 %v2948, %v2948
      %v2981 = vpack.c.bf16 %v2949, %v2949
      %v2982 = vpack.c.bf16 %v2950, %v2950
      %v2983 = vpack.c.bf16 %v2951, %v2951
      %v2984 = vpack.c.bf16 %v2952, %v2952
      %v2985 = vpack.c.bf16 %v2953, %v2953
      %v2986 = vpack.c.bf16 %v2954, %v2954
      %v2987 = vpack.c.bf16 %v2955, %v2955
      %v2988 = vpack.c.bf16 %v2956, %v2956
      %v2989 = vpack.c.bf16 %v2957, %v2957
      %v2990 = vpack.c.bf16 %v2958, %v2958
      %v2991 = vpack.c.bf16 %v2959, %v2959
      %v2992 = vpack.c.bf16 %v2960, %v2960
      %v2993 = vpack.c.bf16 %v2961, %v2961
      %v2994 = vpack.c.bf16 %v2962, %v2962
      %v2995 = vpack.c.bf16 %v2963, %v2963
      %v2996 = vpack.c.bf16 %v2964, %v2964
      %v2997 = vpack.c.bf16 %v2965, %v2965
      %v2998 = vpack.c.bf16 %v2966, %v2966
      %v2999 = vpack.c.bf16 %v2967, %v2967
      %v3000 = vpack.c.bf16 %v2968, %v2968
      %v3001 = vpack.c.bf16 %v2969, %v2969
      %v3002 = vpack.c.bf16 %v2970, %v2970
      %v3003 = vpack.c.bf16 %v2971, %v2971
      %v3004 = vpack.c.bf16 %v2972, %v2972
      %v3005 = vpack.c.bf16 %v2973, %v2973
      %v3006 = vpack.c.bf16 %v2974, %v2974
      %v3007 = vpack.c.bf16 %v2975, %v2975
      %v3008 = vpack.c.bf16 %v2976, %v2976
      %v3009 = vpack.c.bf16 %v2977, %v2977
      %v3010 = vpack.c.bf16 %v2978, %v2978
      %v3011 = vld [vmem:[#allocation2 + $0x8] sm:$0xff]
      %v3012 = vld [vmem:[#allocation2 + $0x10] sm:$0xff]
      %v3013 = vld [vmem:[#allocation2 + $0x18] sm:$0xff]
      %v3014 = vld [vmem:[#allocation2 + $0x20] sm:$0xff]
      %v3015 = vld [vmem:[#allocation2 + $0x28] sm:$0xff]
      %v3016 = vld [vmem:[#allocation2 + $0x30] sm:$0xff]
      %v3017 = vld [vmem:[#allocation2 + $0x38] sm:$0xff]
      %v3018 = vld [vmem:[#allocation2 + $0x40] sm:$0xff]
      %v3019 = vld [vmem:[#allocation2 + $0x48] sm:$0xff]
      %v3020 = vld [vmem:[#allocation2 + $0x50] sm:$0xff]
      %v3021 = vld [vmem:[#allocation2 + $0x58] sm:$0xff]
      %v3022 = vld [vmem:[#allocation2 + $0x60] sm:$0xff]
      %v3023 = vld [vmem:[#allocation2 + $0x68] sm:$0xff]
      %v3024 = vld [vmem:[#allocation2 + $0x70] sm:$0xff]
      %v3025 = vld [vmem:[#allocation2 + $0x78] sm:$0xff]
      %v3026 = vld [vmem:[#allocation2 + $0x80] sm:$0xff]
      %v3027 = vld [vmem:[#allocation2 + $0x88] sm:$0xff]
      %v3028 = vld [vmem:[#allocation2 + $0x90] sm:$0xff]
      %v3029 = vld [vmem:[#allocation2 + $0x98] sm:$0xff]
      %v3030 = vld [vmem:[#allocation2 + $0xa0] sm:$0xff]
      %v3031 = vld [vmem:[#allocation2 + $0xa8] sm:$0xff]
      %v3032 = vld [vmem:[#allocation2 + $0xb0] sm:$0xff]
      %v3033 = vld [vmem:[#allocation2 + $0xb8] sm:$0xff]
      %v3034 = vld [vmem:[#allocation2 + $0xc0] sm:$0xff]
      %v3035 = vld [vmem:[#allocation2 + $0xc8] sm:$0xff]
      %v3036 = vld [vmem:[#allocation2 + $0xd0] sm:$0xff]
      %v3037 = vld [vmem:[#allocation2 + $0xd8] sm:$0xff]
      %v3038 = vld [vmem:[#allocation2 + $0xe0] sm:$0xff]
      %v3039 = vld [vmem:[#allocation2 + $0xe8] sm:$0xff]
      %v3040 = vld [vmem:[#allocation2 + $0xf0] sm:$0xff]
      %v3041 = vld [vmem:[#allocation2 + $0xf8] sm:$0xff]
      %v3042 = vld [vmem:[#allocation2 + $0x100] sm:$0xff]
      %v3043 = vpack.c.bf16 %v3011, %v3011
      %v3044 = vpack.c.bf16 %v3012, %v3012
      %v3045 = vpack.c.bf16 %v3013, %v3013
      %v3046 = vpack.c.bf16 %v3014, %v3014
      %v3047 = vpack.c.bf16 %v3015, %v3015
      %v3048 = vpack.c.bf16 %v3016, %v3016
      %v3049 = vpack.c.bf16 %v3017, %v3017
      %v3050 = vpack.c.bf16 %v3018, %v3018
      %v3051 = vpack.c.bf16 %v3019, %v3019
      %v3052 = vpack.c.bf16 %v3020, %v3020
      %v3053 = vpack.c.bf16 %v3021, %v3021
      %v3054 = vpack.c.bf16 %v3022, %v3022
      %v3055 = vpack.c.bf16 %v3023, %v3023
      %v3056 = vpack.c.bf16 %v3024, %v3024
      %v3057 = vpack.c.bf16 %v3025, %v3025
      %v3058 = vpack.c.bf16 %v3026, %v3026
      %v3059 = vpack.c.bf16 %v3027, %v3027
      %v3060 = vpack.c.bf16 %v3028, %v3028
      %v3061 = vpack.c.bf16 %v3029, %v3029
      %v3062 = vpack.c.bf16 %v3030, %v3030
      %v3063 = vpack.c.bf16 %v3031, %v3031
      %v3064 = vpack.c.bf16 %v3032, %v3032
      %v3065 = vpack.c.bf16 %v3033, %v3033
      %v3066 = vpack.c.bf16 %v3034, %v3034
      %v3067 = vpack.c.bf16 %v3035, %v3035
      %v3068 = vpack.c.bf16 %v3036, %v3036
      %v3069 = vpack.c.bf16 %v3037, %v3037
      %v3070 = vpack.c.bf16 %v3038, %v3038
      %v3071 = vpack.c.bf16 %v3039, %v3039
      %v3072 = vpack.c.bf16 %v3040, %v3040
      %v3073 = vpack.c.bf16 %v3041, %v3041
      %v3074 = vpack.c.bf16 %v3042, %v3042
      %v3075 = vld [vmem:[#allocation2 + $0x9] sm:$0xff]
      %v3076 = vld [vmem:[#allocation2 + $0x11] sm:$0xff]
      %v3077 = vld [vmem:[#allocation2 + $0x19] sm:$0xff]
      %v3078 = vld [vmem:[#allocation2 + $0x21] sm:$0xff]
      %v3079 = vld [vmem:[#allocation2 + $0x29] sm:$0xff]
      %v3080 = vld [vmem:[#allocation2 + $0x31] sm:$0xff]
      %v3081 = vld [vmem:[#allocation2 + $0x39] sm:$0xff]
      %v3082 = vld [vmem:[#allocation2 + $0x41] sm:$0xff]
      %v3083 = vld [vmem:[#allocation2 + $0x49] sm:$0xff]
      %v3084 = vld [vmem:[#allocation2 + $0x51] sm:$0xff]
      %v3085 = vld [vmem:[#allocation2 + $0x59] sm:$0xff]
      %v3086 = vld [vmem:[#allocation2 + $0x61] sm:$0xff]
      %v3087 = vld [vmem:[#allocation2 + $0x69] sm:$0xff]
      %v3088 = vld [vmem:[#allocation2 + $0x71] sm:$0xff]
      %v3089 = vld [vmem:[#allocation2 + $0x79] sm:$0xff]
      %v3090 = vld [vmem:[#allocation2 + $0x81] sm:$0xff]
      %v3091 = vld [vmem:[#allocation2 + $0x89] sm:$0xff]
      %v3092 = vld [vmem:[#allocation2 + $0x91] sm:$0xff]
      %v3093 = vld [vmem:[#allocation2 + $0x99] sm:$0xff]
      %v3094 = vld [vmem:[#allocation2 + $0xa1] sm:$0xff]
      %v3095 = vld [vmem:[#allocation2 + $0xa9] sm:$0xff]
      %v3096 = vld [vmem:[#allocation2 + $0xb1] sm:$0xff]
      %v3097 = vld [vmem:[#allocation2 + $0xb9] sm:$0xff]
      %v3098 = vld [vmem:[#allocation2 + $0xc1] sm:$0xff]
      %v3099 = vld [vmem:[#allocation2 + $0xc9] sm:$0xff]
      %v3100 = vld [vmem:[#allocation2 + $0xd1] sm:$0xff]
      %v3101 = vld [vmem:[#allocation2 + $0xd9] sm:$0xff]
      %v3102 = vld [vmem:[#allocation2 + $0xe1] sm:$0xff]
      %v3103 = vld [vmem:[#allocation2 + $0xe9] sm:$0xff]
      %v3104 = vld [vmem:[#allocation2 + $0xf1] sm:$0xff]
      %v3105 = vld [vmem:[#allocation2 + $0xf9] sm:$0xff]
      %v3106 = vld [vmem:[#allocation2 + $0x101] sm:$0xff]
      %v3107 = vsel %vm739, %v3075, 0.0
      %v3108 = vsel %vm740, %v3076, 0.0
      %v3109 = vsel %vm741, %v3077, 0.0
      %v3110 = vsel %vm742, %v3078, 0.0
      %v3111 = vsel %vm743, %v3079, 0.0
      %v3112 = vsel %vm744, %v3080, 0.0
      %v3113 = vsel %vm745, %v3081, 0.0
      %v3114 = vsel %vm746, %v3082, 0.0
      %v3115 = vsel %vm747, %v3083, 0.0
      %v3116 = vsel %vm748, %v3084, 0.0
      %v3117 = vsel %vm749, %v3085, 0.0
      %v3118 = vsel %vm750, %v3086, 0.0
      %v3119 = vsel %vm751, %v3087, 0.0
      %v3120 = vsel %vm752, %v3088, 0.0
      %v3121 = vsel %vm753, %v3089, 0.0
      %v3122 = vsel %vm754, %v3090, 0.0
      %v3123 = vsel %vm755, %v3091, 0.0
      %v3124 = vsel %vm756, %v3092, 0.0
      %v3125 = vsel %vm757, %v3093, 0.0
      %v3126 = vsel %vm758, %v3094, 0.0
      %v3127 = vsel %vm759, %v3095, 0.0
      %v3128 = vsel %vm760, %v3096, 0.0
      %v3129 = vsel %vm761, %v3097, 0.0
      %v3130 = vsel %vm762, %v3098, 0.0
      %v3131 = vsel %vm763, %v3099, 0.0
      %v3132 = vsel %vm764, %v3100, 0.0
      %v3133 = vsel %vm765, %v3101, 0.0
      %v3134 = vsel %vm766, %v3102, 0.0
      %v3135 = vsel %vm767, %v3103, 0.0
      %v3136 = vsel %vm768, %v3104, 0.0
      %v3137 = vsel %vm769, %v3105, 0.0
      %v3138 = vsel %vm770, %v3106, 0.0
      %v3139 = vpack.c.bf16 %v3107, %v3107
      %v3140 = vpack.c.bf16 %v3108, %v3108
      %v3141 = vpack.c.bf16 %v3109, %v3109
      %v3142 = vpack.c.bf16 %v3110, %v3110
      %v3143 = vpack.c.bf16 %v3111, %v3111
      %v3144 = vpack.c.bf16 %v3112, %v3112
      %v3145 = vpack.c.bf16 %v3113, %v3113
      %v3146 = vpack.c.bf16 %v3114, %v3114
      %v3147 = vpack.c.bf16 %v3115, %v3115
      %v3148 = vpack.c.bf16 %v3116, %v3116
      %v3149 = vpack.c.bf16 %v3117, %v3117
      %v3150 = vpack.c.bf16 %v3118, %v3118
      %v3151 = vpack.c.bf16 %v3119, %v3119
      %v3152 = vpack.c.bf16 %v3120, %v3120
      %v3153 = vpack.c.bf16 %v3121, %v3121
      %v3154 = vpack.c.bf16 %v3122, %v3122
      %v3155 = vpack.c.bf16 %v3123, %v3123
      %v3156 = vpack.c.bf16 %v3124, %v3124
      %v3157 = vpack.c.bf16 %v3125, %v3125
      %v3158 = vpack.c.bf16 %v3126, %v3126
      %v3159 = vpack.c.bf16 %v3127, %v3127
      %v3160 = vpack.c.bf16 %v3128, %v3128
      %v3161 = vpack.c.bf16 %v3129, %v3129
      %v3162 = vpack.c.bf16 %v3130, %v3130
      %v3163 = vpack.c.bf16 %v3131, %v3131
      %v3164 = vpack.c.bf16 %v3132, %v3132
      %v3165 = vpack.c.bf16 %v3133, %v3133
      %v3166 = vpack.c.bf16 %v3134, %v3134
      %v3167 = vpack.c.bf16 %v3135, %v3135
      %v3168 = vpack.c.bf16 %v3136, %v3136
      %v3169 = vpack.c.bf16 %v3137, %v3137
      %v3170 = vpack.c.bf16 %v3138, %v3138
      %v3171 = vld [vmem:[#allocation2 + $0x107] sm:$0xff]
      %v3172 = vld [vmem:[#allocation2 + $0x10f] sm:$0xff]
      %v3173 = vsel %vm707, %v2917, 0.0
      %v3174 = vsel %vm708, %v2918, 0.0
      %v3175 = vsel %vm709, %v2919, 0.0
      %v3176 = vsel %vm710, %v2920, 0.0
      %v3177 = vsel %vm711, %v2921, 0.0
      %v3178 = vsel %vm712, %v2922, 0.0
      %v3179 = vsel %vm713, %v2923, 0.0
      %v3180 = vsel %vm714, %v2924, 0.0
      %v3181 = vsel %vm715, %v2925, 0.0
      %v3182 = vsel %vm716, %v2926, 0.0
      %v3183 = vsel %vm717, %v2927, 0.0
      %v3184 = vsel %vm718, %v2928, 0.0
      %v3185 = vsel %vm719, %v2929, 0.0
      %v3186 = vsel %vm720, %v2930, 0.0
      %v3187 = vsel %vm721, %v2931, 0.0
      %v3188 = vsel %vm722, %v2932, 0.0
      %v3189 = vsel %vm723, %v2933, 0.0
      %v3190 = vsel %vm724, %v2934, 0.0
      %v3191 = vsel %vm725, %v2935, 0.0
      %v3192 = vsel %vm726, %v2936, 0.0
      %v3193 = vsel %vm727, %v2937, 0.0
      %v3194 = vsel %vm728, %v2938, 0.0
      %v3195 = vsel %vm729, %v2939, 0.0
      %v3196 = vsel %vm730, %v2940, 0.0
      %v3197 = vsel %vm731, %v2941, 0.0
      %v3198 = vsel %vm732, %v2942, 0.0
      %v3199 = vsel %vm733, %v2943, 0.0
      %v3200 = vsel %vm734, %v2944, 0.0
      %v3201 = vsel %vm735, %v2945, 0.0
      %v3202 = vsel %vm736, %v2946, 0.0
      %v3203 = vsel %vm737, %v3171, 0.0
      %v3204 = vsel %vm738, %v3172, 0.0
      %v3205 = vpack.c.bf16 %v3173, %v3173
      %v3206 = vpack.c.bf16 %v3174, %v3174
      %v3207 = vpack.c.bf16 %v3175, %v3175
      %v3208 = vpack.c.bf16 %v3176, %v3176
      %v3209 = vpack.c.bf16 %v3177, %v3177
      %v3210 = vpack.c.bf16 %v3178, %v3178
      %v3211 = vpack.c.bf16 %v3179, %v3179
      %v3212 = vpack.c.bf16 %v3180, %v3180
      %v3213 = vpack.c.bf16 %v3181, %v3181
      %v3214 = vpack.c.bf16 %v3182, %v3182
      %v3215 = vpack.c.bf16 %v3183, %v3183
      %v3216 = vpack.c.bf16 %v3184, %v3184
      %v3217 = vpack.c.bf16 %v3185, %v3185
      %v3218 = vpack.c.bf16 %v3186, %v3186
      %v3219 = vpack.c.bf16 %v3187, %v3187
      %v3220 = vpack.c.bf16 %v3188, %v3188
      %v3221 = vpack.c.bf16 %v3189, %v3189
      %v3222 = vpack.c.bf16 %v3190, %v3190
      %v3223 = vpack.c.bf16 %v3191, %v3191
      %v3224 = vpack.c.bf16 %v3192, %v3192
      %v3225 = vpack.c.bf16 %v3193, %v3193
      %v3226 = vpack.c.bf16 %v3194, %v3194
      %v3227 = vpack.c.bf16 %v3195, %v3195
      %v3228 = vpack.c.bf16 %v3196, %v3196
      %v3229 = vpack.c.bf16 %v3197, %v3197
      %v3230 = vpack.c.bf16 %v3198, %v3198
      %v3231 = vpack.c.bf16 %v3199, %v3199
      %v3232 = vpack.c.bf16 %v3200, %v3200
      %v3233 = vpack.c.bf16 %v3201, %v3201
      %v3234 = vpack.c.bf16 %v3202, %v3202
      %v3235 = vpack.c.bf16 %v3203, %v3203
      %v3236 = vpack.c.bf16 %v3204, %v3204
      %v3237 = vld [vmem:[#allocation2 + $0x109] sm:$0xff]
      %v3238 = vld [vmem:[#allocation2 + $0x111] sm:$0xff]
      %v3239 = vsel %vm739, %v3077, 0.0
      %v3240 = vsel %vm740, %v3078, 0.0
      %v3241 = vsel %vm741, %v3079, 0.0
      %v3242 = vsel %vm742, %v3080, 0.0
      %v3243 = vsel %vm743, %v3081, 0.0
      %v3244 = vsel %vm744, %v3082, 0.0
      %v3245 = vsel %vm745, %v3083, 0.0
      %v3246 = vsel %vm746, %v3084, 0.0
      %v3247 = vsel %vm747, %v3085, 0.0
      %v3248 = vsel %vm748, %v3086, 0.0
      %v3249 = vsel %vm749, %v3087, 0.0
      %v3250 = vsel %vm750, %v3088, 0.0
      %v3251 = vsel %vm751, %v3089, 0.0
      %v3252 = vsel %vm752, %v3090, 0.0
      %v3253 = vsel %vm753, %v3091, 0.0
      %v3254 = vsel %vm754, %v3092, 0.0
      %v3255 = vsel %vm755, %v3093, 0.0
      %v3256 = vsel %vm756, %v3094, 0.0
      %v3257 = vsel %vm757, %v3095, 0.0
      %v3258 = vsel %vm758, %v3096, 0.0
      %v3259 = vsel %vm759, %v3097, 0.0
      %v3260 = vsel %vm760, %v3098, 0.0
      %v3261 = vsel %vm761, %v3099, 0.0
      %v3262 = vsel %vm762, %v3100, 0.0
      %v3263 = vsel %vm763, %v3101, 0.0
      %v3264 = vsel %vm764, %v3102, 0.0
      %v3265 = vsel %vm765, %v3103, 0.0
      %v3266 = vsel %vm766, %v3104, 0.0
      %v3267 = vsel %vm767, %v3105, 0.0
      %v3268 = vsel %vm768, %v3106, 0.0
      %v3269 = vsel %vm769, %v3237, 0.0
      %v3270 = vsel %vm770, %v3238, 0.0
      %v3271 = vpack.c.bf16 %v3239, %v3239
      %v3272 = vpack.c.bf16 %v3240, %v3240
      %v3273 = vpack.c.bf16 %v3241, %v3241
      %v3274 = vpack.c.bf16 %v3242, %v3242
      %v3275 = vpack.c.bf16 %v3243, %v3243
      %v3276 = vpack.c.bf16 %v3244, %v3244
      %v3277 = vpack.c.bf16 %v3245, %v3245
      %v3278 = vpack.c.bf16 %v3246, %v3246
      %v3279 = vpack.c.bf16 %v3247, %v3247
      %v3280 = vpack.c.bf16 %v3248, %v3248
      %v3281 = vpack.c.bf16 %v3249, %v3249
      %v3282 = vpack.c.bf16 %v3250, %v3250
      %v3283 = vpack.c.bf16 %v3251, %v3251
      %v3284 = vpack.c.bf16 %v3252, %v3252
      %v3285 = vpack.c.bf16 %v3253, %v3253
      %v3286 = vpack.c.bf16 %v3254, %v3254
      %v3287 = vpack.c.bf16 %v3255, %v3255
      %v3288 = vpack.c.bf16 %v3256, %v3256
      %v3289 = vpack.c.bf16 %v3257, %v3257
      %v3290 = vpack.c.bf16 %v3258, %v3258
      %v3291 = vpack.c.bf16 %v3259, %v3259
      %v3292 = vpack.c.bf16 %v3260, %v3260
      %v3293 = vpack.c.bf16 %v3261, %v3261
      %v3294 = vpack.c.bf16 %v3262, %v3262
      %v3295 = vpack.c.bf16 %v3263, %v3263
      %v3296 = vpack.c.bf16 %v3264, %v3264
      %v3297 = vpack.c.bf16 %v3265, %v3265
      %v3298 = vpack.c.bf16 %v3266, %v3266
      %v3299 = vpack.c.bf16 %v3267, %v3267
      %v3300 = vpack.c.bf16 %v3268, %v3268
      %v3301 = vpack.c.bf16 %v3269, %v3269
      %v3302 = vpack.c.bf16 %v3270, %v3270
      %v3303 = vld [vmem:[#allocation2 + $0x117] sm:$0xff]
      %v3304 = vld [vmem:[#allocation2 + $0x11f] sm:$0xff]
      %v3305 = vsel %vm707, %v2919, 0.0
      %v3306 = vsel %vm708, %v2920, 0.0
      %v3307 = vsel %vm709, %v2921, 0.0
      %v3308 = vsel %vm710, %v2922, 0.0
      %v3309 = vsel %vm711, %v2923, 0.0
      %v3310 = vsel %vm712, %v2924, 0.0
      %v3311 = vsel %vm713, %v2925, 0.0
      %v3312 = vsel %vm714, %v2926, 0.0
      %v3313 = vsel %vm715, %v2927, 0.0
      %v3314 = vsel %vm716, %v2928, 0.0
      %v3315 = vsel %vm717, %v2929, 0.0
      %v3316 = vsel %vm718, %v2930, 0.0
      %v3317 = vsel %vm719, %v2931, 0.0
      %v3318 = vsel %vm720, %v2932, 0.0
      %v3319 = vsel %vm721, %v2933, 0.0
      %v3320 = vsel %vm722, %v2934, 0.0
      %v3321 = vsel %vm723, %v2935, 0.0
      %v3322 = vsel %vm724, %v2936, 0.0
      %v3323 = vsel %vm725, %v2937, 0.0
      %v3324 = vsel %vm726, %v2938, 0.0
      %v3325 = vsel %vm727, %v2939, 0.0
      %v3326 = vsel %vm728, %v2940, 0.0
      %v3327 = vsel %vm729, %v2941, 0.0
      %v3328 = vsel %vm730, %v2942, 0.0
      %v3329 = vsel %vm731, %v2943, 0.0
      %v3330 = vsel %vm732, %v2944, 0.0
      %v3331 = vsel %vm733, %v2945, 0.0
      %v3332 = vsel %vm734, %v2946, 0.0
      %v3333 = vsel %vm735, %v3171, 0.0
      %v3334 = vsel %vm736, %v3172, 0.0
      %v3335 = vsel %vm737, %v3303, 0.0
      %v3336 = vsel %vm738, %v3304, 0.0
      %v3337 = vpack.c.bf16 %v3305, %v3305
      %v3338 = vpack.c.bf16 %v3306, %v3306
      %v3339 = vpack.c.bf16 %v3307, %v3307
      %v3340 = vpack.c.bf16 %v3308, %v3308
      %v3341 = vpack.c.bf16 %v3309, %v3309
      %v3342 = vpack.c.bf16 %v3310, %v3310
      %v3343 = vpack.c.bf16 %v3311, %v3311
      %v3344 = vpack.c.bf16 %v3312, %v3312
      %v3345 = vpack.c.bf16 %v3313, %v3313
      %v3346 = vpack.c.bf16 %v3314, %v3314
      %v3347 = vpack.c.bf16 %v3315, %v3315
      %v3348 = vpack.c.bf16 %v3316, %v3316
      %v3349 = vpack.c.bf16 %v3317, %v3317
      %v3350 = vpack.c.bf16 %v3318, %v3318
      %v3351 = vpack.c.bf16 %v3319, %v3319
      %v3352 = vpack.c.bf16 %v3320, %v3320
      %v3353 = vpack.c.bf16 %v3321, %v3321
      %v3354 = vpack.c.bf16 %v3322, %v3322
      %v3355 = vpack.c.bf16 %v3323, %v3323
      %v3356 = vpack.c.bf16 %v3324, %v3324
      %v3357 = vpack.c.bf16 %v3325, %v3325
      %v3358 = vpack.c.bf16 %v3326, %v3326
      %v3359 = vpack.c.bf16 %v3327, %v3327
      %v3360 = vpack.c.bf16 %v3328, %v3328
      %v3361 = vpack.c.bf16 %v3329, %v3329
      %v3362 = vpack.c.bf16 %v3330, %v3330
      %v3363 = vpack.c.bf16 %v3331, %v3331
      %v3364 = vpack.c.bf16 %v3332, %v3332
      %v3365 = vpack.c.bf16 %v3333, %v3333
      %v3366 = vpack.c.bf16 %v3334, %v3334
      %v3367 = vpack.c.bf16 %v3335, %v3335
      %v3368 = vpack.c.bf16 %v3336, %v3336
      %v3369 = vld [vmem:[#allocation2 + $0x108] sm:$0xff]
      %v3370 = vld [vmem:[#allocation2 + $0x110] sm:$0xff]
      %v3371 = vld [vmem:[#allocation2 + $0x118] sm:$0xff]
      %v3372 = vld [vmem:[#allocation2 + $0x120] sm:$0xff]
      %v3373 = vpack.c.bf16 %v3369, %v3369
      %v3374 = vpack.c.bf16 %v3370, %v3370
      %v3375 = vpack.c.bf16 %v3371, %v3371
      %v3376 = vpack.c.bf16 %v3372, %v3372
      %v3377 = vld [vmem:[#allocation2 + $0x119] sm:$0xff]
      %v3378 = vld [vmem:[#allocation2 + $0x121] sm:$0xff]
      %v3379 = vsel %vm739, %v3079, 0.0
      %v3380 = vsel %vm740, %v3080, 0.0
      %v3381 = vsel %vm741, %v3081, 0.0
      %v3382 = vsel %vm742, %v3082, 0.0
      %v3383 = vsel %vm743, %v3083, 0.0
      %v3384 = vsel %vm744, %v3084, 0.0
      %v3385 = vsel %vm745, %v3085, 0.0
      %v3386 = vsel %vm746, %v3086, 0.0
      %v3387 = vsel %vm747, %v3087, 0.0
      %v3388 = vsel %vm748, %v3088, 0.0
      %v3389 = vsel %vm749, %v3089, 0.0
      %v3390 = vsel %vm750, %v3090, 0.0
      %v3391 = vsel %vm751, %v3091, 0.0
      %v3392 = vsel %vm752, %v3092, 0.0
      %v3393 = vsel %vm753, %v3093, 0.0
      %v3394 = vsel %vm754, %v3094, 0.0
      %v3395 = vsel %vm755, %v3095, 0.0
      %v3396 = vsel %vm756, %v3096, 0.0
      %v3397 = vsel %vm757, %v3097, 0.0
      %v3398 = vsel %vm758, %v3098, 0.0
      %v3399 = vsel %vm759, %v3099, 0.0
      %v3400 = vsel %vm760, %v3100, 0.0
      %v3401 = vsel %vm761, %v3101, 0.0
      %v3402 = vsel %vm762, %v3102, 0.0
      %v3403 = vsel %vm763, %v3103, 0.0
      %v3404 = vsel %vm764, %v3104, 0.0
      %v3405 = vsel %vm765, %v3105, 0.0
      %v3406 = vsel %vm766, %v3106, 0.0
      %v3407 = vsel %vm767, %v3237, 0.0
      %v3408 = vsel %vm768, %v3238, 0.0
      %v3409 = vsel %vm769, %v3377, 0.0
      %v3410 = vsel %vm770, %v3378, 0.0
      %v3411 = vpack.c.bf16 %v3379, %v3379
      %v3412 = vpack.c.bf16 %v3380, %v3380
      %v3413 = vpack.c.bf16 %v3381, %v3381
      %v3414 = vpack.c.bf16 %v3382, %v3382
      %v3415 = vpack.c.bf16 %v3383, %v3383
      %v3416 = vpack.c.bf16 %v3384, %v3384
      %v3417 = vpack.c.bf16 %v3385, %v3385
      %v3418 = vpack.c.bf16 %v3386, %v3386
      %v3419 = vpack.c.bf16 %v3387, %v3387
      %v3420 = vpack.c.bf16 %v3388, %v3388
      %v3421 = vpack.c.bf16 %v3389, %v3389
      %v3422 = vpack.c.bf16 %v3390, %v3390
      %v3423 = vpack.c.bf16 %v3391, %v3391
      %v3424 = vpack.c.bf16 %v3392, %v3392
      %v3425 = vpack.c.bf16 %v3393, %v3393
      %v3426 = vpack.c.bf16 %v3394, %v3394
      %v3427 = vpack.c.bf16 %v3395, %v3395
      %v3428 = vpack.c.bf16 %v3396, %v3396
      %v3429 = vpack.c.bf16 %v3397, %v3397
      %v3430 = vpack.c.bf16 %v3398, %v3398
      %v3431 = vpack.c.bf16 %v3399, %v3399
      %v3432 = vpack.c.bf16 %v3400, %v3400
      %v3433 = vpack.c.bf16 %v3401, %v3401
      %v3434 = vpack.c.bf16 %v3402, %v3402
      %v3435 = vpack.c.bf16 %v3403, %v3403
      %v3436 = vpack.c.bf16 %v3404, %v3404
      %v3437 = vpack.c.bf16 %v3405, %v3405
      %v3438 = vpack.c.bf16 %v3406, %v3406
      %v3439 = vpack.c.bf16 %v3407, %v3407
      %v3440 = vpack.c.bf16 %v3408, %v3408
      %v3441 = vpack.c.bf16 %v3409, %v3409
      %v3442 = vpack.c.bf16 %v3410, %v3410
      %v3475 = vunpack.c.l.b16 %v2979
      %v3476 = vunpack.c.l.b16 %v2980
      %v3477 = vunpack.c.l.b16 %v2981
      %v3478 = vunpack.c.l.b16 %v2982
      %v3479 = vunpack.c.l.b16 %v2983
      %v3480 = vunpack.c.l.b16 %v2984
      %v3481 = vunpack.c.l.b16 %v2985
      %v3482 = vunpack.c.l.b16 %v2986
      %v3483 = vunpack.c.l.b16 %v2987
      %v3484 = vunpack.c.l.b16 %v2988
      %v3485 = vunpack.c.l.b16 %v2989
      %v3486 = vunpack.c.l.b16 %v2990
      %v3487 = vunpack.c.l.b16 %v2991
      %v3488 = vunpack.c.l.b16 %v2992
      %v3489 = vunpack.c.l.b16 %v2993
      %v3490 = vunpack.c.l.b16 %v2994
      %v3491 = vunpack.c.l.b16 %v2995
      %v3492 = vunpack.c.l.b16 %v2996
      %v3493 = vunpack.c.l.b16 %v2997
      %v3494 = vunpack.c.l.b16 %v2998
      %v3495 = vunpack.c.l.b16 %v2999
      %v3496 = vunpack.c.l.b16 %v3000
      %v3497 = vunpack.c.l.b16 %v3001
      %v3498 = vunpack.c.l.b16 %v3002
      %v3499 = vunpack.c.l.b16 %v3003
      %v3500 = vunpack.c.l.b16 %v3004
      %v3501 = vunpack.c.l.b16 %v3005
      %v3502 = vunpack.c.l.b16 %v3006
      %v3503 = vunpack.c.l.b16 %v3007
      %v3504 = vunpack.c.l.b16 %v3008
      %v3505 = vunpack.c.l.b16 %v3009
      %v3506 = vunpack.c.l.b16 %v3010
      %v3507 = vpack.c.b16 %v3476, %v3475
      %v3508 = vpack.c.b16 %v3478, %v3477
      %v3509 = vpack.c.b16 %v3480, %v3479
      %v3510 = vpack.c.b16 %v3482, %v3481
      %v3511 = vpack.c.b16 %v3484, %v3483
      %v3512 = vpack.c.b16 %v3486, %v3485
      %v3513 = vpack.c.b16 %v3488, %v3487
      %v3514 = vpack.c.b16 %v3490, %v3489
      %v3515 = vpack.c.b16 %v3492, %v3491
      %v3516 = vpack.c.b16 %v3494, %v3493
      %v3517 = vpack.c.b16 %v3496, %v3495
      %v3518 = vpack.c.b16 %v3498, %v3497
      %v3519 = vpack.c.b16 %v3500, %v3499
      %v3520 = vpack.c.b16 %v3502, %v3501
      %v3521 = vpack.c.b16 %v3504, %v3503
      %v3522 = vpack.c.b16 %v3506, %v3505
      %v3555 = vunpack.c.l.b16 %v3043
      %v3556 = vunpack.c.l.b16 %v3044
      %v3557 = vunpack.c.l.b16 %v3045
      %v3558 = vunpack.c.l.b16 %v3046
      %v3559 = vunpack.c.l.b16 %v3047
      %v3560 = vunpack.c.l.b16 %v3048
      %v3561 = vunpack.c.l.b16 %v3049
      %v3562 = vunpack.c.l.b16 %v3050
      %v3563 = vunpack.c.l.b16 %v3051
      %v3564 = vunpack.c.l.b16 %v3052
      %v3565 = vunpack.c.l.b16 %v3053
      %v3566 = vunpack.c.l.b16 %v3054
      %v3567 = vunpack.c.l.b16 %v3055
      %v3568 = vunpack.c.l.b16 %v3056
      %v3569 = vunpack.c.l.b16 %v3057
      %v3570 = vunpack.c.l.b16 %v3058
      %v3571 = vunpack.c.l.b16 %v3059
      %v3572 = vunpack.c.l.b16 %v3060
      %v3573 = vunpack.c.l.b16 %v3061
      %v3574 = vunpack.c.l.b16 %v3062
      %v3575 = vunpack.c.l.b16 %v3063
      %v3576 = vunpack.c.l.b16 %v3064
      %v3577 = vunpack.c.l.b16 %v3065
      %v3578 = vunpack.c.l.b16 %v3066
      %v3579 = vunpack.c.l.b16 %v3067
      %v3580 = vunpack.c.l.b16 %v3068
      %v3581 = vunpack.c.l.b16 %v3069
      %v3582 = vunpack.c.l.b16 %v3070
      %v3583 = vunpack.c.l.b16 %v3071
      %v3584 = vunpack.c.l.b16 %v3072
      %v3585 = vunpack.c.l.b16 %v3073
      %v3586 = vunpack.c.l.b16 %v3074
      %v3587 = vpack.c.b16 %v3556, %v3555
      %v3588 = vpack.c.b16 %v3558, %v3557
      %v3589 = vpack.c.b16 %v3560, %v3559
      %v3590 = vpack.c.b16 %v3562, %v3561
      %v3591 = vpack.c.b16 %v3564, %v3563
      %v3592 = vpack.c.b16 %v3566, %v3565
      %v3593 = vpack.c.b16 %v3568, %v3567
      %v3594 = vpack.c.b16 %v3570, %v3569
      %v3595 = vpack.c.b16 %v3572, %v3571
      %v3596 = vpack.c.b16 %v3574, %v3573
      %v3597 = vpack.c.b16 %v3576, %v3575
      %v3598 = vpack.c.b16 %v3578, %v3577
      %v3599 = vpack.c.b16 %v3580, %v3579
      %v3600 = vpack.c.b16 %v3582, %v3581
      %v3601 = vpack.c.b16 %v3584, %v3583
      %v3602 = vpack.c.b16 %v3586, %v3585
      %3603 = vrot.lane.b32.xlu0 %v3587, 16
      %v3604 = vpop.permute.xlu0 %3603
      %3605 = vrot.lane.b32.xlu0 %v3588, 16
      %v3606 = vpop.permute.xlu0 %3605
      %3607 = vrot.lane.b32.xlu0 %v3589, 16
      %v3608 = vpop.permute.xlu0 %3607
      %3609 = vrot.lane.b32.xlu0 %v3590, 16
      %v3610 = vpop.permute.xlu0 %3609
      %3611 = vrot.lane.b32.xlu0 %v3591, 16
      %v3612 = vpop.permute.xlu0 %3611
      %3613 = vrot.lane.b32.xlu0 %v3592, 16
      %v3614 = vpop.permute.xlu0 %3613
      %3615 = vrot.lane.b32.xlu0 %v3593, 16
      %v3616 = vpop.permute.xlu0 %3615
      %3617 = vrot.lane.b32.xlu0 %v3594, 16
      %v3618 = vpop.permute.xlu0 %3617
      %3619 = vrot.lane.b32.xlu0 %v3595, 16
      %v3620 = vpop.permute.xlu0 %3619
      %3621 = vrot.lane.b32.xlu0 %v3596, 16
      %v3622 = vpop.permute.xlu0 %3621
      %3623 = vrot.lane.b32.xlu0 %v3597, 16
      %v3624 = vpop.permute.xlu0 %3623
      %3625 = vrot.lane.b32.xlu0 %v3598, 16
      %v3626 = vpop.permute.xlu0 %3625
      %3627 = vrot.lane.b32.xlu0 %v3599, 16
      %v3628 = vpop.permute.xlu0 %3627
      %3629 = vrot.lane.b32.xlu0 %v3600, 16
      %v3630 = vpop.permute.xlu0 %3629
      %3631 = vrot.lane.b32.xlu0 %v3601, 16
      %v3632 = vpop.permute.xlu0 %3631
      %3633 = vrot.lane.b32.xlu0 %v3602, 16
      %v3634 = vpop.permute.xlu0 %3633
      %v3667 = vunpack.c.l.b16 %v3139
      %v3668 = vunpack.c.l.b16 %v3140
      %v3669 = vunpack.c.l.b16 %v3141
      %v3670 = vunpack.c.l.b16 %v3142
      %v3671 = vunpack.c.l.b16 %v3143
      %v3672 = vunpack.c.l.b16 %v3144
      %v3673 = vunpack.c.l.b16 %v3145
      %v3674 = vunpack.c.l.b16 %v3146
      %v3675 = vunpack.c.l.b16 %v3147
      %v3676 = vunpack.c.l.b16 %v3148
      %v3677 = vunpack.c.l.b16 %v3149
      %v3678 = vunpack.c.l.b16 %v3150
      %v3679 = vunpack.c.l.b16 %v3151
      %v3680 = vunpack.c.l.b16 %v3152
      %v3681 = vunpack.c.l.b16 %v3153
      %v3682 = vunpack.c.l.b16 %v3154
      %v3683 = vunpack.c.l.b16 %v3155
      %v3684 = vunpack.c.l.b16 %v3156
      %v3685 = vunpack.c.l.b16 %v3157
      %v3686 = vunpack.c.l.b16 %v3158
      %v3687 = vunpack.c.l.b16 %v3159
      %v3688 = vunpack.c.l.b16 %v3160
      %v3689 = vunpack.c.l.b16 %v3161
      %v3690 = vunpack.c.l.b16 %v3162
      %v3691 = vunpack.c.l.b16 %v3163
      %v3692 = vunpack.c.l.b16 %v3164
      %v3693 = vunpack.c.l.b16 %v3165
      %v3694 = vunpack.c.l.b16 %v3166
      %v3695 = vunpack.c.l.b16 %v3167
      %v3696 = vunpack.c.l.b16 %v3168
      %v3697 = vunpack.c.l.b16 %v3169
      %v3698 = vunpack.c.l.b16 %v3170
      %v3699 = vpack.c.b16 %v3668, %v3667
      %v3700 = vpack.c.b16 %v3670, %v3669
      %v3701 = vpack.c.b16 %v3672, %v3671
      %v3702 = vpack.c.b16 %v3674, %v3673
      %v3703 = vpack.c.b16 %v3676, %v3675
      %v3704 = vpack.c.b16 %v3678, %v3677
      %v3705 = vpack.c.b16 %v3680, %v3679
      %v3706 = vpack.c.b16 %v3682, %v3681
      %v3707 = vpack.c.b16 %v3684, %v3683
      %v3708 = vpack.c.b16 %v3686, %v3685
      %v3709 = vpack.c.b16 %v3688, %v3687
      %v3710 = vpack.c.b16 %v3690, %v3689
      %v3711 = vpack.c.b16 %v3692, %v3691
      %v3712 = vpack.c.b16 %v3694, %v3693
      %v3713 = vpack.c.b16 %v3696, %v3695
      %v3714 = vpack.c.b16 %v3698, %v3697
      %3715 = vrot.lane.b32.xlu0 %v3699, 32
      %v3716 = vpop.permute.xlu0 %3715
      %3717 = vrot.lane.b32.xlu0 %v3700, 32
      %v3718 = vpop.permute.xlu0 %3717
      %3719 = vrot.lane.b32.xlu0 %v3701, 32
      %v3720 = vpop.permute.xlu0 %3719
      %3721 = vrot.lane.b32.xlu0 %v3702, 32
      %v3722 = vpop.permute.xlu0 %3721
      %3723 = vrot.lane.b32.xlu0 %v3703, 32
      %v3724 = vpop.permute.xlu0 %3723
      %3725 = vrot.lane.b32.xlu0 %v3704, 32
      %v3726 = vpop.permute.xlu0 %3725
      %3727 = vrot.lane.b32.xlu0 %v3705, 32
      %v3728 = vpop.permute.xlu0 %3727
      %3729 = vrot.lane.b32.xlu0 %v3706, 32
      %v3730 = vpop.permute.xlu0 %3729
      %3731 = vrot.lane.b32.xlu0 %v3707, 32
      %v3732 = vpop.permute.xlu0 %3731
      %3733 = vrot.lane.b32.xlu0 %v3708, 32
      %v3734 = vpop.permute.xlu0 %3733
      %3735 = vrot.lane.b32.xlu0 %v3709, 32
      %v3736 = vpop.permute.xlu0 %3735
      %3737 = vrot.lane.b32.xlu0 %v3710, 32
      %v3738 = vpop.permute.xlu0 %3737
      %3739 = vrot.lane.b32.xlu0 %v3711, 32
      %v3740 = vpop.permute.xlu0 %3739
      %3741 = vrot.lane.b32.xlu0 %v3712, 32
      %v3742 = vpop.permute.xlu0 %3741
      %3743 = vrot.lane.b32.xlu0 %v3713, 32
      %v3744 = vpop.permute.xlu0 %3743
      %3745 = vrot.lane.b32.xlu0 %v3714, 32
      %v3746 = vpop.permute.xlu0 %3745
      %v3779 = vunpack.c.l.b16 %v3205
      %v3780 = vunpack.c.l.b16 %v3206
      %v3781 = vunpack.c.l.b16 %v3207
      %v3782 = vunpack.c.l.b16 %v3208
      %v3783 = vunpack.c.l.b16 %v3209
      %v3784 = vunpack.c.l.b16 %v3210
      %v3785 = vunpack.c.l.b16 %v3211
      %v3786 = vunpack.c.l.b16 %v3212
      %v3787 = vunpack.c.l.b16 %v3213
      %v3788 = vunpack.c.l.b16 %v3214
      %v3789 = vunpack.c.l.b16 %v3215
      %v3790 = vunpack.c.l.b16 %v3216
      %v3791 = vunpack.c.l.b16 %v3217
      %v3792 = vunpack.c.l.b16 %v3218
      %v3793 = vunpack.c.l.b16 %v3219
      %v3794 = vunpack.c.l.b16 %v3220
      %v3795 = vunpack.c.l.b16 %v3221
      %v3796 = vunpack.c.l.b16 %v3222
      %v3797 = vunpack.c.l.b16 %v3223
      %v3798 = vunpack.c.l.b16 %v3224
      %v3799 = vunpack.c.l.b16 %v3225
      %v3800 = vunpack.c.l.b16 %v3226
      %v3801 = vunpack.c.l.b16 %v3227
      %v3802 = vunpack.c.l.b16 %v3228
      %v3803 = vunpack.c.l.b16 %v3229
      %v3804 = vunpack.c.l.b16 %v3230
      %v3805 = vunpack.c.l.b16 %v3231
      %v3806 = vunpack.c.l.b16 %v3232
      %v3807 = vunpack.c.l.b16 %v3233
      %v3808 = vunpack.c.l.b16 %v3234
      %v3809 = vunpack.c.l.b16 %v3235
      %v3810 = vunpack.c.l.b16 %v3236
      %v3811 = vpack.c.b16 %v3780, %v3779
      %v3812 = vpack.c.b16 %v3782, %v3781
      %v3813 = vpack.c.b16 %v3784, %v3783
      %v3814 = vpack.c.b16 %v3786, %v3785
      %v3815 = vpack.c.b16 %v3788, %v3787
      %v3816 = vpack.c.b16 %v3790, %v3789
      %v3817 = vpack.c.b16 %v3792, %v3791
      %v3818 = vpack.c.b16 %v3794, %v3793
      %v3819 = vpack.c.b16 %v3796, %v3795
      %v3820 = vpack.c.b16 %v3798, %v3797
      %v3821 = vpack.c.b16 %v3800, %v3799
      %v3822 = vpack.c.b16 %v3802, %v3801
      %v3823 = vpack.c.b16 %v3804, %v3803
      %v3824 = vpack.c.b16 %v3806, %v3805
      %v3825 = vpack.c.b16 %v3808, %v3807
      %v3826 = vpack.c.b16 %v3810, %v3809
      %3827 = vrot.lane.b32.xlu0 %v3811, 48
      %v3828 = vpop.permute.xlu0 %3827
      %3829 = vrot.lane.b32.xlu0 %v3812, 48
      %v3830 = vpop.permute.xlu0 %3829
      %3831 = vrot.lane.b32.xlu0 %v3813, 48
      %v3832 = vpop.permute.xlu0 %3831
      %3833 = vrot.lane.b32.xlu0 %v3814, 48
      %v3834 = vpop.permute.xlu0 %3833
      %3835 = vrot.lane.b32.xlu0 %v3815, 48
      %v3836 = vpop.permute.xlu0 %3835
      %3837 = vrot.lane.b32.xlu0 %v3816, 48
      %v3838 = vpop.permute.xlu0 %3837
      %3839 = vrot.lane.b32.xlu0 %v3817, 48
      %v3840 = vpop.permute.xlu0 %3839
      %3841 = vrot.lane.b32.xlu0 %v3818, 48
      %v3842 = vpop.permute.xlu0 %3841
      %3843 = vrot.lane.b32.xlu0 %v3819, 48
      %v3844 = vpop.permute.xlu0 %3843
      %3845 = vrot.lane.b32.xlu0 %v3820, 48
      %v3846 = vpop.permute.xlu0 %3845
      %3847 = vrot.lane.b32.xlu0 %v3821, 48
      %v3848 = vpop.permute.xlu0 %3847
      %3849 = vrot.lane.b32.xlu0 %v3822, 48
      %v3850 = vpop.permute.xlu0 %3849
      %3851 = vrot.lane.b32.xlu0 %v3823, 48
      %v3852 = vpop.permute.xlu0 %3851
      %3853 = vrot.lane.b32.xlu0 %v3824, 48
      %v3854 = vpop.permute.xlu0 %3853
      %3855 = vrot.lane.b32.xlu0 %v3825, 48
      %v3856 = vpop.permute.xlu0 %3855
      %3857 = vrot.lane.b32.xlu0 %v3826, 48
      %v3858 = vpop.permute.xlu0 %3857
      %v3891 = vunpack.c.l.b16 %v3271
      %v3892 = vunpack.c.l.b16 %v3272
      %v3893 = vunpack.c.l.b16 %v3273
      %v3894 = vunpack.c.l.b16 %v3274
      %v3895 = vunpack.c.l.b16 %v3275
      %v3896 = vunpack.c.l.b16 %v3276
      %v3897 = vunpack.c.l.b16 %v3277
      %v3898 = vunpack.c.l.b16 %v3278
      %v3899 = vunpack.c.l.b16 %v3279
      %v3900 = vunpack.c.l.b16 %v3280
      %v3901 = vunpack.c.l.b16 %v3281
      %v3902 = vunpack.c.l.b16 %v3282
      %v3903 = vunpack.c.l.b16 %v3283
      %v3904 = vunpack.c.l.b16 %v3284
      %v3905 = vunpack.c.l.b16 %v3285
      %v3906 = vunpack.c.l.b16 %v3286
      %v3907 = vunpack.c.l.b16 %v3287
      %v3908 = vunpack.c.l.b16 %v3288
      %v3909 = vunpack.c.l.b16 %v3289
      %v3910 = vunpack.c.l.b16 %v3290
      %v3911 = vunpack.c.l.b16 %v3291
      %v3912 = vunpack.c.l.b16 %v3292
      %v3913 = vunpack.c.l.b16 %v3293
      %v3914 = vunpack.c.l.b16 %v3294
      %v3915 = vunpack.c.l.b16 %v3295
      %v3916 = vunpack.c.l.b16 %v3296
      %v3917 = vunpack.c.l.b16 %v3297
      %v3918 = vunpack.c.l.b16 %v3298
      %v3919 = vunpack.c.l.b16 %v3299
      %v3920 = vunpack.c.l.b16 %v3300
      %v3921 = vunpack.c.l.b16 %v3301
      %v3922 = vunpack.c.l.b16 %v3302
      %v3923 = vpack.c.b16 %v3892, %v3891
      %v3924 = vpack.c.b16 %v3894, %v3893
      %v3925 = vpack.c.b16 %v3896, %v3895
      %v3926 = vpack.c.b16 %v3898, %v3897
      %v3927 = vpack.c.b16 %v3900, %v3899
      %v3928 = vpack.c.b16 %v3902, %v3901
      %v3929 = vpack.c.b16 %v3904, %v3903
      %v3930 = vpack.c.b16 %v3906, %v3905
      %v3931 = vpack.c.b16 %v3908, %v3907
      %v3932 = vpack.c.b16 %v3910, %v3909
      %v3933 = vpack.c.b16 %v3912, %v3911
      %v3934 = vpack.c.b16 %v3914, %v3913
      %v3935 = vpack.c.b16 %v3916, %v3915
      %v3936 = vpack.c.b16 %v3918, %v3917
      %v3937 = vpack.c.b16 %v3920, %v3919
      %v3938 = vpack.c.b16 %v3922, %v3921
      %3939 = vrot.lane.b32.xlu0 %v3923, 64
      %v3940 = vpop.permute.xlu0 %3939
      %3941 = vrot.lane.b32.xlu0 %v3924, 64
      %v3942 = vpop.permute.xlu0 %3941
      %3943 = vrot.lane.b32.xlu0 %v3925, 64
      %v3944 = vpop.permute.xlu0 %3943
      %3945 = vrot.lane.b32.xlu0 %v3926, 64
      %v3946 = vpop.permute.xlu0 %3945
      %3947 = vrot.lane.b32.xlu0 %v3927, 64
      %v3948 = vpop.permute.xlu0 %3947
      %3949 = vrot.lane.b32.xlu0 %v3928, 64
      %v3950 = vpop.permute.xlu0 %3949
      %3951 = vrot.lane.b32.xlu0 %v3929, 64
      %v3952 = vpop.permute.xlu0 %3951
      %3953 = vrot.lane.b32.xlu0 %v3930, 64
      %v3954 = vpop.permute.xlu0 %3953
      %3955 = vrot.lane.b32.xlu0 %v3931, 64
      %v3956 = vpop.permute.xlu0 %3955
      %3957 = vrot.lane.b32.xlu0 %v3932, 64
      %v3958 = vpop.permute.xlu0 %3957
      %3959 = vrot.lane.b32.xlu0 %v3933, 64
      %v3960 = vpop.permute.xlu0 %3959
      %3961 = vrot.lane.b32.xlu0 %v3934, 64
      %v3962 = vpop.permute.xlu0 %3961
      %3963 = vrot.lane.b32.xlu0 %v3935, 64
      %v3964 = vpop.permute.xlu0 %3963
      %3965 = vrot.lane.b32.xlu0 %v3936, 64
      %v3966 = vpop.permute.xlu0 %3965
      %3967 = vrot.lane.b32.xlu0 %v3937, 64
      %v3968 = vpop.permute.xlu0 %3967
      %3969 = vrot.lane.b32.xlu0 %v3938, 64
      %v3970 = vpop.permute.xlu0 %3969
      %v4003 = vunpack.c.l.b16 %v3337
      %v4004 = vunpack.c.l.b16 %v3338
      %v4005 = vunpack.c.l.b16 %v3339
      %v4006 = vunpack.c.l.b16 %v3340
      %v4007 = vunpack.c.l.b16 %v3341
      %v4008 = vunpack.c.l.b16 %v3342
      %v4009 = vunpack.c.l.b16 %v3343
      %v4010 = vunpack.c.l.b16 %v3344
      %v4011 = vunpack.c.l.b16 %v3345
      %v4012 = vunpack.c.l.b16 %v3346
      %v4013 = vunpack.c.l.b16 %v3347
      %v4014 = vunpack.c.l.b16 %v3348
      %v4015 = vunpack.c.l.b16 %v3349
      %v4016 = vunpack.c.l.b16 %v3350
      %v4017 = vunpack.c.l.b16 %v3351
      %v4018 = vunpack.c.l.b16 %v3352
      %v4019 = vunpack.c.l.b16 %v3353
      %v4020 = vunpack.c.l.b16 %v3354
      %v4021 = vunpack.c.l.b16 %v3355
      %v4022 = vunpack.c.l.b16 %v3356
      %v4023 = vunpack.c.l.b16 %v3357
      %v4024 = vunpack.c.l.b16 %v3358
      %v4025 = vunpack.c.l.b16 %v3359
      %v4026 = vunpack.c.l.b16 %v3360
      %v4027 = vunpack.c.l.b16 %v3361
      %v4028 = vunpack.c.l.b16 %v3362
      %v4029 = vunpack.c.l.b16 %v3363
      %v4030 = vunpack.c.l.b16 %v3364
      %v4031 = vunpack.c.l.b16 %v3365
      %v4032 = vunpack.c.l.b16 %v3366
      %v4033 = vunpack.c.l.b16 %v3367
      %v4034 = vunpack.c.l.b16 %v3368
      %v4035 = vpack.c.b16 %v4004, %v4003
      %v4036 = vpack.c.b16 %v4006, %v4005
      %v4037 = vpack.c.b16 %v4008, %v4007
      %v4038 = vpack.c.b16 %v4010, %v4009
      %v4039 = vpack.c.b16 %v4012, %v4011
      %v4040 = vpack.c.b16 %v4014, %v4013
      %v4041 = vpack.c.b16 %v4016, %v4015
      %v4042 = vpack.c.b16 %v4018, %v4017
      %v4043 = vpack.c.b16 %v4020, %v4019
      %v4044 = vpack.c.b16 %v4022, %v4021
      %v4045 = vpack.c.b16 %v4024, %v4023
      %v4046 = vpack.c.b16 %v4026, %v4025
      %v4047 = vpack.c.b16 %v4028, %v4027
      %v4048 = vpack.c.b16 %v4030, %v4029
      %v4049 = vpack.c.b16 %v4032, %v4031
      %v4050 = vpack.c.b16 %v4034, %v4033
      %4051 = vrot.lane.b32.xlu0 %v4035, 80
      %v4052 = vpop.permute.xlu0 %4051
      %4053 = vrot.lane.b32.xlu0 %v4036, 80
      %v4054 = vpop.permute.xlu0 %4053
      %4055 = vrot.lane.b32.xlu0 %v4037, 80
      %v4056 = vpop.permute.xlu0 %4055
      %4057 = vrot.lane.b32.xlu0 %v4038, 80
      %v4058 = vpop.permute.xlu0 %4057
      %4059 = vrot.lane.b32.xlu0 %v4039, 80
      %v4060 = vpop.permute.xlu0 %4059
      %4061 = vrot.lane.b32.xlu0 %v4040, 80
      %v4062 = vpop.permute.xlu0 %4061
      %4063 = vrot.lane.b32.xlu0 %v4041, 80
      %v4064 = vpop.permute.xlu0 %4063
      %4065 = vrot.lane.b32.xlu0 %v4042, 80
      %v4066 = vpop.permute.xlu0 %4065
      %4067 = vrot.lane.b32.xlu0 %v4043, 80
      %v4068 = vpop.permute.xlu0 %4067
      %4069 = vrot.lane.b32.xlu0 %v4044, 80
      %v4070 = vpop.permute.xlu0 %4069
      %4071 = vrot.lane.b32.xlu0 %v4045, 80
      %v4072 = vpop.permute.xlu0 %4071
      %4073 = vrot.lane.b32.xlu0 %v4046, 80
      %v4074 = vpop.permute.xlu0 %4073
      %4075 = vrot.lane.b32.xlu0 %v4047, 80
      %v4076 = vpop.permute.xlu0 %4075
      %4077 = vrot.lane.b32.xlu0 %v4048, 80
      %v4078 = vpop.permute.xlu0 %4077
      %4079 = vrot.lane.b32.xlu0 %v4049, 80
      %v4080 = vpop.permute.xlu0 %4079
      %4081 = vrot.lane.b32.xlu0 %v4050, 80
      %v4082 = vpop.permute.xlu0 %4081
      %v4087 = vunpack.c.l.b16 %v3373
      %v4088 = vunpack.c.l.b16 %v3374
      %v4089 = vunpack.c.l.b16 %v3375
      %v4090 = vunpack.c.l.b16 %v3376
      %v4091 = vpack.c.b16 %v4088, %v4087
      %v4092 = vpack.c.b16 %v4090, %v4089
      %4093 = vrot.lane.b32.xlu0 %v3589, 96
      %v4094 = vpop.permute.xlu0 %4093
      %4095 = vrot.lane.b32.xlu0 %v3590, 96
      %v4096 = vpop.permute.xlu0 %4095
      %4097 = vrot.lane.b32.xlu0 %v3591, 96
      %v4098 = vpop.permute.xlu0 %4097
      %4099 = vrot.lane.b32.xlu0 %v3592, 96
      %v4100 = vpop.permute.xlu0 %4099
      %4101 = vrot.lane.b32.xlu0 %v3593, 96
      %v4102 = vpop.permute.xlu0 %4101
      %4103 = vrot.lane.b32.xlu0 %v3594, 96
      %v4104 = vpop.permute.xlu0 %4103
      %4105 = vrot.lane.b32.xlu0 %v3595, 96
      %v4106 = vpop.permute.xlu0 %4105
      %4107 = vrot.lane.b32.xlu0 %v3596, 96
      %v4108 = vpop.permute.xlu0 %4107
      %4109 = vrot.lane.b32.xlu0 %v3597, 96
      %v4110 = vpop.permute.xlu0 %4109
      %4111 = vrot.lane.b32.xlu0 %v3598, 96
      %v4112 = vpop.permute.xlu0 %4111
      %4113 = vrot.lane.b32.xlu0 %v3599, 96
      %v4114 = vpop.permute.xlu0 %4113
      %4115 = vrot.lane.b32.xlu0 %v3600, 96
      %v4116 = vpop.permute.xlu0 %4115
      %4117 = vrot.lane.b32.xlu0 %v3601, 96
      %v4118 = vpop.permute.xlu0 %4117
      %4119 = vrot.lane.b32.xlu0 %v3602, 96
      %v4120 = vpop.permute.xlu0 %4119
      %4121 = vrot.lane.b32.xlu0 %v4091, 96
      %v4122 = vpop.permute.xlu0 %4121
      %4123 = vrot.lane.b32.xlu0 %v4092, 96
      %v4124 = vpop.permute.xlu0 %4123
      %v4157 = vunpack.c.l.b16 %v3411
      %v4158 = vunpack.c.l.b16 %v3412
      %v4159 = vunpack.c.l.b16 %v3413
      %v4160 = vunpack.c.l.b16 %v3414
      %v4161 = vunpack.c.l.b16 %v3415
      %v4162 = vunpack.c.l.b16 %v3416
      %v4163 = vunpack.c.l.b16 %v3417
      %v4164 = vunpack.c.l.b16 %v3418
      %v4165 = vunpack.c.l.b16 %v3419
      %v4166 = vunpack.c.l.b16 %v3420
      %v4167 = vunpack.c.l.b16 %v3421
      %v4168 = vunpack.c.l.b16 %v3422
      %v4169 = vunpack.c.l.b16 %v3423
      %v4170 = vunpack.c.l.b16 %v3424
      %v4171 = vunpack.c.l.b16 %v3425
      %v4172 = vunpack.c.l.b16 %v3426
      %v4173 = vunpack.c.l.b16 %v3427
      %v4174 = vunpack.c.l.b16 %v3428
      %v4175 = vunpack.c.l.b16 %v3429
      %v4176 = vunpack.c.l.b16 %v3430
      %v4177 = vunpack.c.l.b16 %v3431
      %v4178 = vunpack.c.l.b16 %v3432
      %v4179 = vunpack.c.l.b16 %v3433
      %v4180 = vunpack.c.l.b16 %v3434
      %v4181 = vunpack.c.l.b16 %v3435
      %v4182 = vunpack.c.l.b16 %v3436
      %v4183 = vunpack.c.l.b16 %v3437
      %v4184 = vunpack.c.l.b16 %v3438
      %v4185 = vunpack.c.l.b16 %v3439
      %v4186 = vunpack.c.l.b16 %v3440
      %v4187 = vunpack.c.l.b16 %v3441
      %v4188 = vunpack.c.l.b16 %v3442
      %v4189 = vpack.c.b16 %v4158, %v4157
      %v4190 = vpack.c.b16 %v4160, %v4159
      %v4191 = vpack.c.b16 %v4162, %v4161
      %v4192 = vpack.c.b16 %v4164, %v4163
      %v4193 = vpack.c.b16 %v4166, %v4165
      %v4194 = vpack.c.b16 %v4168, %v4167
      %v4195 = vpack.c.b16 %v4170, %v4169
      %v4196 = vpack.c.b16 %v4172, %v4171
      %v4197 = vpack.c.b16 %v4174, %v4173
      %v4198 = vpack.c.b16 %v4176, %v4175
      %v4199 = vpack.c.b16 %v4178, %v4177
      %v4200 = vpack.c.b16 %v4180, %v4179
      %v4201 = vpack.c.b16 %v4182, %v4181
      %v4202 = vpack.c.b16 %v4184, %v4183
      %v4203 = vpack.c.b16 %v4186, %v4185
      %v4204 = vpack.c.b16 %v4188, %v4187
      %4205 = vrot.lane.b32.xlu0 %v4189, 112
      %v4206 = vpop.permute.xlu0 %4205
      %4207 = vrot.lane.b32.xlu0 %v4190, 112
      %v4208 = vpop.permute.xlu0 %4207
      %4209 = vrot.lane.b32.xlu0 %v4191, 112
      %v4210 = vpop.permute.xlu0 %4209
      %4211 = vrot.lane.b32.xlu0 %v4192, 112
      %v4212 = vpop.permute.xlu0 %4211
      %4213 = vrot.lane.b32.xlu0 %v4193, 112
      %v4214 = vpop.permute.xlu0 %4213
      %4215 = vrot.lane.b32.xlu0 %v4194, 112
      %v4216 = vpop.permute.xlu0 %4215
      %4217 = vrot.lane.b32.xlu0 %v4195, 112
      %v4218 = vpop.permute.xlu0 %4217
      %4219 = vrot.lane.b32.xlu0 %v4196, 112
      %v4220 = vpop.permute.xlu0 %4219
      %4221 = vrot.lane.b32.xlu0 %v4197, 112
      %v4222 = vpop.permute.xlu0 %4221
      %4223 = vrot.lane.b32.xlu0 %v4198, 112
      %v4224 = vpop.permute.xlu0 %4223
      %4225 = vrot.lane.b32.xlu0 %v4199, 112
      %v4226 = vpop.permute.xlu0 %4225
      %4227 = vrot.lane.b32.xlu0 %v4200, 112
      %v4228 = vpop.permute.xlu0 %4227
      %4229 = vrot.lane.b32.xlu0 %v4201, 112
      %v4230 = vpop.permute.xlu0 %4229
      %4231 = vrot.lane.b32.xlu0 %v4202, 112
      %v4232 = vpop.permute.xlu0 %4231
      %4233 = vrot.lane.b32.xlu0 %v4203, 112
      %v4234 = vpop.permute.xlu0 %4233
      %4235 = vrot.lane.b32.xlu0 %v4204, 112
      %v4236 = vpop.permute.xlu0 %4235
      %v4239 = vsel %vm283, %v3507, %v3604
      %v4242 = vsel %vm283, %v3508, %v3606
      %v4245 = vsel %vm283, %v3509, %v3608
      %v4248 = vsel %vm283, %v3510, %v3610
      %v4251 = vsel %vm283, %v3511, %v3612
      %v4254 = vsel %vm283, %v3512, %v3614
      %v4257 = vsel %vm283, %v3513, %v3616
      %v4260 = vsel %vm283, %v3514, %v3618
      %v4263 = vsel %vm283, %v3515, %v3620
      %v4266 = vsel %vm283, %v3516, %v3622
      %v4269 = vsel %vm283, %v3517, %v3624
      %v4272 = vsel %vm283, %v3518, %v3626
      %v4275 = vsel %vm283, %v3519, %v3628
      %v4278 = vsel %vm283, %v3520, %v3630
      %v4281 = vsel %vm283, %v3521, %v3632
      %v4284 = vsel %vm283, %v3522, %v3634
      %v4286 = vsel %vm2287, %v4239, %v3716
      %v4288 = vsel %vm2287, %v4242, %v3718
      %v4290 = vsel %vm2287, %v4245, %v3720
      %v4292 = vsel %vm2287, %v4248, %v3722
      %v4294 = vsel %vm2287, %v4251, %v3724
      %v4296 = vsel %vm2287, %v4254, %v3726
      %v4298 = vsel %vm2287, %v4257, %v3728
      %v4300 = vsel %vm2287, %v4260, %v3730
      %v4302 = vsel %vm2287, %v4263, %v3732
      %v4304 = vsel %vm2287, %v4266, %v3734
      %v4306 = vsel %vm2287, %v4269, %v3736
      %v4308 = vsel %vm2287, %v4272, %v3738
      %v4310 = vsel %vm2287, %v4275, %v3740
      %v4312 = vsel %vm2287, %v4278, %v3742
      %v4314 = vsel %vm2287, %v4281, %v3744
      %v4316 = vsel %vm2287, %v4284, %v3746
      %v4318 = vsel %vm2320, %v4286, %v3828
      %v4320 = vsel %vm2320, %v4288, %v3830
      %v4322 = vsel %vm2320, %v4290, %v3832
      %v4324 = vsel %vm2320, %v4292, %v3834
      %v4326 = vsel %vm2320, %v4294, %v3836
      %v4328 = vsel %vm2320, %v4296, %v3838
      %v4330 = vsel %vm2320, %v4298, %v3840
      %v4332 = vsel %vm2320, %v4300, %v3842
      %v4334 = vsel %vm2320, %v4302, %v3844
      %v4336 = vsel %vm2320, %v4304, %v3846
      %v4338 = vsel %vm2320, %v4306, %v3848
      %v4340 = vsel %vm2320, %v4308, %v3850
      %v4342 = vsel %vm2320, %v4310, %v3852
      %v4344 = vsel %vm2320, %v4312, %v3854
      %v4346 = vsel %vm2320, %v4314, %v3856
      %v4348 = vsel %vm2320, %v4316, %v3858
      %v4350 = vsel %vm2353, %v4318, %v3940
      %v4352 = vsel %vm2353, %v4320, %v3942
      %v4354 = vsel %vm2353, %v4322, %v3944
      %v4356 = vsel %vm2353, %v4324, %v3946
      %v4358 = vsel %vm2353, %v4326, %v3948
      %v4360 = vsel %vm2353, %v4328, %v3950
      %v4362 = vsel %vm2353, %v4330, %v3952
      %v4364 = vsel %vm2353, %v4332, %v3954
      %v4366 = vsel %vm2353, %v4334, %v3956
      %v4368 = vsel %vm2353, %v4336, %v3958
      %v4370 = vsel %vm2353, %v4338, %v3960
      %v4372 = vsel %vm2353, %v4340, %v3962
      %v4374 = vsel %vm2353, %v4342, %v3964
      %v4376 = vsel %vm2353, %v4344, %v3966
      %v4378 = vsel %vm2353, %v4346, %v3968
      %v4380 = vsel %vm2353, %v4348, %v3970
      %v4382 = vsel %vm2386, %v4350, %v4052
      %v4384 = vsel %vm2386, %v4352, %v4054
      %v4386 = vsel %vm2386, %v4354, %v4056
      %v4388 = vsel %vm2386, %v4356, %v4058
      %v4390 = vsel %vm2386, %v4358, %v4060
      %v4392 = vsel %vm2386, %v4360, %v4062
      %v4394 = vsel %vm2386, %v4362, %v4064
      %v4396 = vsel %vm2386, %v4364, %v4066
      %v4398 = vsel %vm2386, %v4366, %v4068
      %v4400 = vsel %vm2386, %v4368, %v4070
      %v4402 = vsel %vm2386, %v4370, %v4072
      %v4404 = vsel %vm2386, %v4372, %v4074
      %v4406 = vsel %vm2386, %v4374, %v4076
      %v4408 = vsel %vm2386, %v4376, %v4078
      %v4410 = vsel %vm2386, %v4378, %v4080
      %v4412 = vsel %vm2386, %v4380, %v4082
      %v4414 = vsel %vm2419, %v4382, %v4094
      %v4416 = vsel %vm2419, %v4384, %v4096
      %v4418 = vsel %vm2419, %v4386, %v4098
      %v4420 = vsel %vm2419, %v4388, %v4100
      %v4422 = vsel %vm2419, %v4390, %v4102
      %v4424 = vsel %vm2419, %v4392, %v4104
      %v4426 = vsel %vm2419, %v4394, %v4106
      %v4428 = vsel %vm2419, %v4396, %v4108
      %v4430 = vsel %vm2419, %v4398, %v4110
      %v4432 = vsel %vm2419, %v4400, %v4112
      %v4434 = vsel %vm2419, %v4402, %v4114
      %v4436 = vsel %vm2419, %v4404, %v4116
      %v4438 = vsel %vm2419, %v4406, %v4118
      %v4440 = vsel %vm2419, %v4408, %v4120
      %v4442 = vsel %vm2419, %v4410, %v4122
      %v4444 = vsel %vm2419, %v4412, %v4124
      %v4446 = vsel %vm2452, %v4414, %v4206
      %v4449 = vsel %vm2452, %v4416, %v4208
      %v4452 = vsel %vm2452, %v4418, %v4210
      %v4455 = vsel %vm2452, %v4420, %v4212
      %v4458 = vsel %vm2452, %v4422, %v4214
      %v4461 = vsel %vm2452, %v4424, %v4216
      %v4464 = vsel %vm2452, %v4426, %v4218
      %v4467 = vsel %vm2452, %v4428, %v4220
      %v4470 = vsel %vm2452, %v4430, %v4222
      %v4473 = vsel %vm2452, %v4432, %v4224
      %v4476 = vsel %vm2452, %v4434, %v4226
      %v4479 = vsel %vm2452, %v4436, %v4228
      %v4482 = vsel %vm2452, %v4438, %v4230
      %v4485 = vsel %vm2452, %v4440, %v4232
      %v4488 = vsel %vm2452, %v4442, %v4234
      %v4491 = vsel %vm2452, %v4444, %v4236
      %v4493 = vpack.c.bf16 %v3014, %v3013
      %v4494 = vpack.c.bf16 %v3016, %v3015
      %v4495 = vpack.c.bf16 %v3018, %v3017
      %v4496 = vpack.c.bf16 %v3020, %v3019
      %v4497 = vpack.c.bf16 %v3022, %v3021
      %v4498 = vpack.c.bf16 %v3024, %v3023
      %v4499 = vpack.c.bf16 %v3026, %v3025
      %v4500 = vpack.c.bf16 %v3028, %v3027
      %v4501 = vpack.c.bf16 %v3030, %v3029
      %v4502 = vpack.c.bf16 %v3032, %v3031
      %v4503 = vpack.c.bf16 %v3034, %v3033
      %v4504 = vpack.c.bf16 %v3036, %v3035
      %v4505 = vpack.c.bf16 %v3038, %v3037
      %v4506 = vpack.c.bf16 %v3040, %v3039
      %v4507 = vpack.c.bf16 %v3042, %v3041
      %v4508 = vpack.c.bf16 %v3370, %v3369
      %v4511 = vunpack.c.l.b16 %v2913
      %v4512 = vunpack.c.l.b16 %v2914
      %v4513 = vpack.c.b16 %v4512, %v4511
      %v4516 = vsel %vm283, %v4493, 0
      %v4519 = vsel %vm283, %v4494, 0
      %v4522 = vsel %vm283, %v4495, 0
      %v4525 = vsel %vm283, %v4496, 0
      %v4528 = vsel %vm283, %v4497, 0
      %v4531 = vsel %vm283, %v4498, 0
      %v4534 = vsel %vm283, %v4499, 0
      %v4537 = vsel %vm283, %v4500, 0
      %v4540 = vsel %vm283, %v4501, 0
      %v4543 = vsel %vm283, %v4502, 0
      %v4546 = vsel %vm283, %v4503, 0
      %v4549 = vsel %vm283, %v4504, 0
      %v4552 = vsel %vm283, %v4505, 0
      %v4555 = vsel %vm283, %v4506, 0
      %v4558 = vsel %vm283, %v4507, 0
      %v4561 = vsel %vm283, %v4508, 0
      %4563 = vmatpush.bf16.msra.mxu0 0
      %4564 = vmatpush.bf16.msra.mxu0 0
      %4565 = vmatpush.bf16.msra.mxu0 0
      %4566 = vmatpush.bf16.msra.mxu0 0
      %4567 = vmatpush.bf16.msra.mxu0 0
      %4568 = vmatpush.bf16.msra.mxu0 0
      %4569 = vmatpush.bf16.msra.mxu0 0
      %4570 = vmatpush.bf16.msra.mxu0 %v4513
      %4571 = vmatmul.bf16.gmra.mxu0 %v4516
      %v4572 = vpop.f32.mrf.mxu0
      %v4573 = vadd.f32 0.0, %v4572
      %v4574 = vpop.f32.mrf.mxu0
      %v4575 = vadd.f32 0.0, %v4574
      %4576 = vmatmul.bf16.gmra.mxu0 %v4519
      %v4577 = vpop.f32.mrf.mxu0
      %v4578 = vadd.f32 0.0, %v4577
      %v4579 = vpop.f32.mrf.mxu0
      %v4580 = vadd.f32 0.0, %v4579
      %4581 = vmatmul.bf16.gmra.mxu0 %v4522
      %v4582 = vpop.f32.mrf.mxu0
      %v4583 = vadd.f32 0.0, %v4582
      %v4584 = vpop.f32.mrf.mxu0
      %v4585 = vadd.f32 0.0, %v4584
      %4586 = vmatmul.bf16.gmra.mxu0 %v4525
      %v4587 = vpop.f32.mrf.mxu0
      %v4588 = vadd.f32 0.0, %v4587
      %v4589 = vpop.f32.mrf.mxu0
      %v4590 = vadd.f32 0.0, %v4589
      %4591 = vmatmul.bf16.gmra.mxu0 %v4528
      %v4592 = vpop.f32.mrf.mxu0
      %v4593 = vadd.f32 0.0, %v4592
      %v4594 = vpop.f32.mrf.mxu0
      %v4595 = vadd.f32 0.0, %v4594
      %4596 = vmatmul.bf16.gmra.mxu0 %v4531
      %v4597 = vpop.f32.mrf.mxu0
      %v4598 = vadd.f32 0.0, %v4597
      %v4599 = vpop.f32.mrf.mxu0
      %v4600 = vadd.f32 0.0, %v4599
      %4601 = vmatmul.bf16.gmra.mxu0 %v4534
      %v4602 = vpop.f32.mrf.mxu0
      %v4603 = vadd.f32 0.0, %v4602
      %v4604 = vpop.f32.mrf.mxu0
      %v4605 = vadd.f32 0.0, %v4604
      %4606 = vmatmul.bf16.gmra.mxu0 %v4537
      %v4607 = vpop.f32.mrf.mxu0
      %v4608 = vadd.f32 0.0, %v4607
      %v4609 = vpop.f32.mrf.mxu0
      %v4610 = vadd.f32 0.0, %v4609
      %4611 = vmatmul.bf16.gmra.mxu0 %v4540
      %v4612 = vpop.f32.mrf.mxu0
      %v4613 = vadd.f32 0.0, %v4612
      %v4614 = vpop.f32.mrf.mxu0
      %v4615 = vadd.f32 0.0, %v4614
      %4616 = vmatmul.bf16.gmra.mxu0 %v4543
      %v4617 = vpop.f32.mrf.mxu0
      %v4618 = vadd.f32 0.0, %v4617
      %v4619 = vpop.f32.mrf.mxu0
      %v4620 = vadd.f32 0.0, %v4619
      %4621 = vmatmul.bf16.gmra.mxu0 %v4546
      %v4622 = vpop.f32.mrf.mxu0
      %v4623 = vadd.f32 0.0, %v4622
      %v4624 = vpop.f32.mrf.mxu0
      %v4625 = vadd.f32 0.0, %v4624
      %4626 = vmatmul.bf16.gmra.mxu0 %v4549
      %v4627 = vpop.f32.mrf.mxu0
      %v4628 = vadd.f32 0.0, %v4627
      %v4629 = vpop.f32.mrf.mxu0
      %v4630 = vadd.f32 0.0, %v4629
      %4631 = vmatmul.bf16.gmra.mxu0 %v4552
      %v4632 = vpop.f32.mrf.mxu0
      %v4633 = vadd.f32 0.0, %v4632
      %v4634 = vpop.f32.mrf.mxu0
      %v4635 = vadd.f32 0.0, %v4634
      %4636 = vmatmul.bf16.gmra.mxu0 %v4555
      %v4637 = vpop.f32.mrf.mxu0
      %v4638 = vadd.f32 0.0, %v4637
      %v4639 = vpop.f32.mrf.mxu0
      %v4640 = vadd.f32 0.0, %v4639
      %4641 = vmatmul.bf16.gmra.mxu0 %v4558
      %v4642 = vpop.f32.mrf.mxu0
      %v4643 = vadd.f32 0.0, %v4642
      %v4644 = vpop.f32.mrf.mxu0
      %v4645 = vadd.f32 0.0, %v4644
      %4646 = vmatmul.bf16.gmra.mxu0 %v4561
      %v4647 = vpop.f32.mrf.mxu0
      %v4648 = vadd.f32 0.0, %v4647
      %v4649 = vpop.f32.mrf.mxu0
      %v4650 = vadd.f32 0.0, %v4649
      %4651 = vdwg.mxu0
      %v4668 = vunpack.c.l.b16 %v2897
      %v4669 = vunpack.c.l.b16 %v2898
      %v4670 = vunpack.c.l.b16 %v2899
      %v4671 = vunpack.c.l.b16 %v2900
      %v4672 = vunpack.c.l.b16 %v2901
      %v4673 = vunpack.c.l.b16 %v2902
      %v4674 = vunpack.c.l.b16 %v2903
      %v4675 = vunpack.c.l.b16 %v2904
      %v4676 = vunpack.c.l.b16 %v2905
      %v4677 = vunpack.c.l.b16 %v2906
      %v4678 = vunpack.c.l.b16 %v2907
      %v4679 = vunpack.c.l.b16 %v2908
      %v4680 = vunpack.c.l.b16 %v2909
      %v4681 = vunpack.c.l.b16 %v2910
      %v4682 = vunpack.c.l.b16 %v2911
      %v4683 = vunpack.c.l.b16 %v2912
      %v4684 = vpack.c.b16 %v4669, %v4668
      %v4685 = vpack.c.b16 %v4671, %v4670
      %v4686 = vpack.c.b16 %v4673, %v4672
      %v4687 = vpack.c.b16 %v4675, %v4674
      %v4688 = vpack.c.b16 %v4677, %v4676
      %v4689 = vpack.c.b16 %v4679, %v4678
      %v4690 = vpack.c.b16 %v4681, %v4680
      %v4691 = vpack.c.b16 %v4683, %v4682
      %4700 = vmatpush.bf16.msra.mxu0 %v4691
      %4701 = vmatpush.bf16.msra.mxu0 %v4690
      %4702 = vmatpush.bf16.msra.mxu0 %v4689
      %4703 = vmatpush.bf16.msra.mxu0 %v4688
      %4704 = vmatpush.bf16.msra.mxu0 %v4687
      %4705 = vmatpush.bf16.msra.mxu0 %v4686
      %4706 = vmatpush.bf16.msra.mxu0 %v4685
      %4707 = vmatpush.bf16.msra.mxu0 %v4684
      %4708 = vmatmul.bf16.gmra.mxu0 %v4446
      %v4709 = vpop.f32.mrf.mxu0
      %v4710 = vadd.f32 %v4573, %v4709
      %v4711 = vpop.f32.mrf.mxu0
      %v4712 = vadd.f32 %v4575, %v4711
      %4713 = vmatmul.bf16.gmra.mxu0 %v4449
      %v4714 = vpop.f32.mrf.mxu0
      %v4715 = vadd.f32 %v4578, %v4714
      %v4716 = vpop.f32.mrf.mxu0
      %v4717 = vadd.f32 %v4580, %v4716
      %4718 = vmatmul.bf16.gmra.mxu0 %v4452
      %v4719 = vpop.f32.mrf.mxu0
      %v4720 = vadd.f32 %v4583, %v4719
      %v4721 = vpop.f32.mrf.mxu0
      %v4722 = vadd.f32 %v4585, %v4721
      %4723 = vmatmul.bf16.gmra.mxu0 %v4455
      %v4724 = vpop.f32.mrf.mxu0
      %v4725 = vadd.f32 %v4588, %v4724
      %v4726 = vpop.f32.mrf.mxu0
      %v4727 = vadd.f32 %v4590, %v4726
      %4728 = vmatmul.bf16.gmra.mxu0 %v4458
      %v4729 = vpop.f32.mrf.mxu0
      %v4730 = vadd.f32 %v4593, %v4729
      %v4731 = vpop.f32.mrf.mxu0
      %v4732 = vadd.f32 %v4595, %v4731
      %4733 = vmatmul.bf16.gmra.mxu0 %v4461
      %v4734 = vpop.f32.mrf.mxu0
      %v4735 = vadd.f32 %v4598, %v4734
      %v4736 = vpop.f32.mrf.mxu0
      %v4737 = vadd.f32 %v4600, %v4736
      %4738 = vmatmul.bf16.gmra.mxu0 %v4464
      %v4739 = vpop.f32.mrf.mxu0
      %v4740 = vadd.f32 %v4603, %v4739
      %v4741 = vpop.f32.mrf.mxu0
      %v4742 = vadd.f32 %v4605, %v4741
      %4743 = vmatmul.bf16.gmra.mxu0 %v4467
      %v4744 = vpop.f32.mrf.mxu0
      %v4745 = vadd.f32 %v4608, %v4744
      %v4746 = vpop.f32.mrf.mxu0
      %v4747 = vadd.f32 %v4610, %v4746
      %4748 = vmatmul.bf16.gmra.mxu0 %v4470
      %v4749 = vpop.f32.mrf.mxu0
      %v4750 = vadd.f32 %v4613, %v4749
      %v4751 = vpop.f32.mrf.mxu0
      %v4752 = vadd.f32 %v4615, %v4751
      %4753 = vmatmul.bf16.gmra.mxu0 %v4473
      %v4754 = vpop.f32.mrf.mxu0
      %v4755 = vadd.f32 %v4618, %v4754
      %v4756 = vpop.f32.mrf.mxu0
      %v4757 = vadd.f32 %v4620, %v4756
      %4758 = vmatmul.bf16.gmra.mxu0 %v4476
      %v4759 = vpop.f32.mrf.mxu0
      %v4760 = vadd.f32 %v4623, %v4759
      %v4761 = vpop.f32.mrf.mxu0
      %v4762 = vadd.f32 %v4625, %v4761
      %4763 = vmatmul.bf16.gmra.mxu0 %v4479
      %v4764 = vpop.f32.mrf.mxu0
      %v4765 = vadd.f32 %v4628, %v4764
      %v4766 = vpop.f32.mrf.mxu0
      %v4767 = vadd.f32 %v4630, %v4766
      %4768 = vmatmul.bf16.gmra.mxu0 %v4482
      %v4769 = vpop.f32.mrf.mxu0
      %v4770 = vadd.f32 %v4633, %v4769
      %v4771 = vpop.f32.mrf.mxu0
      %v4772 = vadd.f32 %v4635, %v4771
      %4773 = vmatmul.bf16.gmra.mxu0 %v4485
      %v4774 = vpop.f32.mrf.mxu0
      %v4775 = vadd.f32 %v4638, %v4774
      %v4776 = vpop.f32.mrf.mxu0
      %v4777 = vadd.f32 %v4640, %v4776
      %4778 = vmatmul.bf16.gmra.mxu0 %v4488
      %v4779 = vpop.f32.mrf.mxu0
      %v4780 = vadd.f32 %v4643, %v4779
      %v4781 = vpop.f32.mrf.mxu0
      %v4782 = vadd.f32 %v4645, %v4781
      %4783 = vmatmul.bf16.gmra.mxu0 %v4491
      %v4784 = vpop.f32.mrf.mxu0
      %v4785 = vadd.f32 %v4648, %v4784
      %v4786 = vpop.f32.mrf.mxu0
      %v4787 = vadd.f32 %v4650, %v4786
      %4788 = vdwg.mxu0
      %v4789 = vld [vmem:[%s6] sm:$0x1]
      %v4791 = vperm.slane %v4789, 0
      %v4793 = vadd.f32 %v4710, %v4791
      %v4794 = vadd.f32 %v4712, %v4791
      %v4795 = vadd.f32 %v4715, %v4791
      %v4796 = vadd.f32 %v4717, %v4791
      %v4797 = vadd.f32 %v4720, %v4791
      %v4798 = vadd.f32 %v4722, %v4791
      %v4799 = vadd.f32 %v4725, %v4791
      %v4800 = vadd.f32 %v4727, %v4791
      %v4801 = vadd.f32 %v4730, %v4791
      %v4802 = vadd.f32 %v4732, %v4791
      %v4803 = vadd.f32 %v4735, %v4791
      %v4804 = vadd.f32 %v4737, %v4791
      %v4805 = vadd.f32 %v4740, %v4791
      %v4806 = vadd.f32 %v4742, %v4791
      %v4807 = vadd.f32 %v4745, %v4791
      %v4808 = vadd.f32 %v4747, %v4791
      %v4809 = vadd.f32 %v4750, %v4791
      %v4810 = vadd.f32 %v4752, %v4791
      %v4811 = vadd.f32 %v4755, %v4791
      %v4812 = vadd.f32 %v4757, %v4791
      %v4813 = vadd.f32 %v4760, %v4791
      %v4814 = vadd.f32 %v4762, %v4791
      %v4815 = vadd.f32 %v4765, %v4791
      %v4816 = vadd.f32 %v4767, %v4791
      %v4817 = vadd.f32 %v4770, %v4791
      %v4818 = vadd.f32 %v4772, %v4791
      %v4819 = vadd.f32 %v4775, %v4791
      %v4820 = vadd.f32 %v4777, %v4791
      %v4821 = vadd.f32 %v4780, %v4791
      %v4822 = vadd.f32 %v4782, %v4791
      %v4823 = vadd.f32 %v4785, %v4791
      %v4824 = vadd.f32 %v4787, %v4791
      %v4825 = vld [vmem:[%s280] sm:$0xff]
      %v4826 = vld [vmem:[%s280 + $0x8] sm:$0xff]
      %v4827 = vld [vmem:[%s280 + $0x10] sm:$0xff]
      %v4828 = vld [vmem:[%s280 + $0x18] sm:$0xff]
      %v4829 = vld [vmem:[%s280 + $0x20] sm:$0xff]
      %v4830 = vld [vmem:[%s280 + $0x28] sm:$0xff]
      %v4831 = vld [vmem:[%s280 + $0x30] sm:$0xff]
      %v4832 = vld [vmem:[%s280 + $0x38] sm:$0xff]
      %v4833 = vld [vmem:[%s280 + $0x40] sm:$0xff]
      %v4834 = vld [vmem:[%s280 + $0x48] sm:$0xff]
      %v4835 = vld [vmem:[%s280 + $0x50] sm:$0xff]
      %v4836 = vld [vmem:[%s280 + $0x58] sm:$0xff]
      %v4837 = vld [vmem:[%s280 + $0x60] sm:$0xff]
      %v4838 = vld [vmem:[%s280 + $0x68] sm:$0xff]
      %v4839 = vld [vmem:[%s280 + $0x70] sm:$0xff]
      %v4840 = vld [vmem:[%s280 + $0x78] sm:$0xff]
      %v4841 = vld [vmem:[%s280 + $0x80] sm:$0xff]
      %v4842 = vld [vmem:[%s280 + $0x88] sm:$0xff]
      %v4843 = vld [vmem:[%s280 + $0x90] sm:$0xff]
      %v4844 = vld [vmem:[%s280 + $0x98] sm:$0xff]
      %v4845 = vld [vmem:[%s280 + $0xa0] sm:$0xff]
      %v4846 = vld [vmem:[%s280 + $0xa8] sm:$0xff]
      %v4847 = vld [vmem:[%s280 + $0xb0] sm:$0xff]
      %v4848 = vld [vmem:[%s280 + $0xb8] sm:$0xff]
      %v4849 = vld [vmem:[%s280 + $0xc0] sm:$0xff]
      %v4850 = vld [vmem:[%s280 + $0xc8] sm:$0xff]
      %v4851 = vld [vmem:[%s280 + $0xd0] sm:$0xff]
      %v4852 = vld [vmem:[%s280 + $0xd8] sm:$0xff]
      %v4853 = vld [vmem:[%s280 + $0xe0] sm:$0xff]
      %v4854 = vld [vmem:[%s280 + $0xe8] sm:$0xff]
      %v4855 = vld [vmem:[%s280 + $0xf0] sm:$0xff]
      %v4856 = vld [vmem:[%s280 + $0xf8] sm:$0xff]
      %v4857 = vadd.f32 %v4793, %v4825
      %v4858 = vadd.f32 %v4794, %v4826
      %v4859 = vadd.f32 %v4795, %v4827
      %v4860 = vadd.f32 %v4796, %v4828
      %v4861 = vadd.f32 %v4797, %v4829
      %v4862 = vadd.f32 %v4798, %v4830
      %v4863 = vadd.f32 %v4799, %v4831
      %v4864 = vadd.f32 %v4800, %v4832
      %v4865 = vadd.f32 %v4801, %v4833
      %v4866 = vadd.f32 %v4802, %v4834
      %v4867 = vadd.f32 %v4803, %v4835
      %v4868 = vadd.f32 %v4804, %v4836
      %v4869 = vadd.f32 %v4805, %v4837
      %v4870 = vadd.f32 %v4806, %v4838
      %v4871 = vadd.f32 %v4807, %v4839
      %v4872 = vadd.f32 %v4808, %v4840
      %v4873 = vadd.f32 %v4809, %v4841
      %v4874 = vadd.f32 %v4810, %v4842
      %v4875 = vadd.f32 %v4811, %v4843
      %v4876 = vadd.f32 %v4812, %v4844
      %v4877 = vadd.f32 %v4813, %v4845
      %v4878 = vadd.f32 %v4814, %v4846
      %v4879 = vadd.f32 %v4815, %v4847
      %v4880 = vadd.f32 %v4816, %v4848
      %v4881 = vadd.f32 %v4817, %v4849
      %v4882 = vadd.f32 %v4818, %v4850
      %v4883 = vadd.f32 %v4819, %v4851
      %v4884 = vadd.f32 %v4820, %v4852
      %v4885 = vadd.f32 %v4821, %v4853
      %v4886 = vadd.f32 %v4822, %v4854
      %v4887 = vadd.f32 %v4823, %v4855
      %v4888 = vadd.f32 %v4824, %v4856
      %v4889 = vmax.f32 %v4857, 0.0
      %v4890 = vmax.f32 %v4858, 0.0
      %v4891 = vmax.f32 %v4859, 0.0
      %v4892 = vmax.f32 %v4860, 0.0
      %v4893 = vmax.f32 %v4861, 0.0
      %v4894 = vmax.f32 %v4862, 0.0
      %v4895 = vmax.f32 %v4863, 0.0
      %v4896 = vmax.f32 %v4864, 0.0
      %v4897 = vmax.f32 %v4865, 0.0
      %v4898 = vmax.f32 %v4866, 0.0
      %v4899 = vmax.f32 %v4867, 0.0
      %v4900 = vmax.f32 %v4868, 0.0
      %v4901 = vmax.f32 %v4869, 0.0
      %v4902 = vmax.f32 %v4870, 0.0
      %v4903 = vmax.f32 %v4871, 0.0
      %v4904 = vmax.f32 %v4872, 0.0
      %v4905 = vmax.f32 %v4873, 0.0
      %v4906 = vmax.f32 %v4874, 0.0
      %v4907 = vmax.f32 %v4875, 0.0
      %v4908 = vmax.f32 %v4876, 0.0
      %v4909 = vmax.f32 %v4877, 0.0
      %v4910 = vmax.f32 %v4878, 0.0
      %v4911 = vmax.f32 %v4879, 0.0
      %v4912 = vmax.f32 %v4880, 0.0
      %v4913 = vmax.f32 %v4881, 0.0
      %v4914 = vmax.f32 %v4882, 0.0
      %v4915 = vmax.f32 %v4883, 0.0
      %v4916 = vmax.f32 %v4884, 0.0
      %v4917 = vmax.f32 %v4885, 0.0
      %v4918 = vmax.f32 %v4886, 0.0
      %v4919 = vmax.f32 %v4887, 0.0
      %v4920 = vmax.f32 %v4888, 0.0
      %4921 = vst.msk [vmem:[%s280] sm:$0xff] %vm283, %v4889
      %4922 = vst.msk [vmem:[%s280 + $0x8] sm:$0xff] %vm283, %v4890
      %4923 = vst.msk [vmem:[%s280 + $0x10] sm:$0xff] %vm283, %v4891
      %4924 = vst.msk [vmem:[%s280 + $0x18] sm:$0xff] %vm283, %v4892
      %4925 = vst.msk [vmem:[%s280 + $0x20] sm:$0xff] %vm283, %v4893
      %4926 = vst.msk [vmem:[%s280 + $0x28] sm:$0xff] %vm283, %v4894
      %4927 = vst.msk [vmem:[%s280 + $0x30] sm:$0xff] %vm283, %v4895
      %4928 = vst.msk [vmem:[%s280 + $0x38] sm:$0xff] %vm283, %v4896
      %4929 = vst.msk [vmem:[%s280 + $0x40] sm:$0xff] %vm283, %v4897
      %4930 = vst.msk [vmem:[%s280 + $0x48] sm:$0xff] %vm283, %v4898
      %4931 = vst.msk [vmem:[%s280 + $0x50] sm:$0xff] %vm283, %v4899
      %4932 = vst.msk [vmem:[%s280 + $0x58] sm:$0xff] %vm283, %v4900
      %4933 = vst.msk [vmem:[%s280 + $0x60] sm:$0xff] %vm283, %v4901
      %4934 = vst.msk [vmem:[%s280 + $0x68] sm:$0xff] %vm283, %v4902
      %4935 = vst.msk [vmem:[%s280 + $0x70] sm:$0xff] %vm283, %v4903
      %4936 = vst.msk [vmem:[%s280 + $0x78] sm:$0xff] %vm283, %v4904
      %4937 = vst.msk [vmem:[%s280 + $0x80] sm:$0xff] %vm283, %v4905
      %4938 = vst.msk [vmem:[%s280 + $0x88] sm:$0xff] %vm283, %v4906
      %4939 = vst.msk [vmem:[%s280 + $0x90] sm:$0xff] %vm283, %v4907
      %4940 = vst.msk [vmem:[%s280 + $0x98] sm:$0xff] %vm283, %v4908
      %4941 = vst.msk [vmem:[%s280 + $0xa0] sm:$0xff] %vm283, %v4909
      %4942 = vst.msk [vmem:[%s280 + $0xa8] sm:$0xff] %vm283, %v4910
      %4943 = vst.msk [vmem:[%s280 + $0xb0] sm:$0xff] %vm283, %v4911
      %4944 = vst.msk [vmem:[%s280 + $0xb8] sm:$0xff] %vm283, %v4912
      %4945 = vst.msk [vmem:[%s280 + $0xc0] sm:$0xff] %vm283, %v4913
      %4946 = vst.msk [vmem:[%s280 + $0xc8] sm:$0xff] %vm283, %v4914
      %4947 = vst.msk [vmem:[%s280 + $0xd0] sm:$0xff] %vm283, %v4915
      %4948 = vst.msk [vmem:[%s280 + $0xd8] sm:$0xff] %vm283, %v4916
      %4949 = vst.msk [vmem:[%s280 + $0xe0] sm:$0xff] %vm283, %v4917
      %4950 = vst.msk [vmem:[%s280 + $0xe8] sm:$0xff] %vm283, %v4918
      %4951 = vst.msk [vmem:[%s280 + $0xf0] sm:$0xff] %vm283, %v4919
      %4952 = vst.msk [vmem:[%s280 + $0xf8] sm:$0xff] %vm283, %v4920
      %v4953 = vld [vmem:[%s280] sm:$0xff]
      %v4954 = vld [vmem:[%s280 + $0x8] sm:$0xff]
      %v4955 = vld [vmem:[%s280 + $0x10] sm:$0xff]
      %v4956 = vld [vmem:[%s280 + $0x18] sm:$0xff]
      %v4957 = vld [vmem:[%s280 + $0x20] sm:$0xff]
      %v4958 = vld [vmem:[%s280 + $0x28] sm:$0xff]
      %v4959 = vld [vmem:[%s280 + $0x30] sm:$0xff]
      %v4960 = vld [vmem:[%s280 + $0x38] sm:$0xff]
      %v4961 = vld [vmem:[%s280 + $0x40] sm:$0xff]
      %v4962 = vld [vmem:[%s280 + $0x48] sm:$0xff]
      %v4963 = vld [vmem:[%s280 + $0x50] sm:$0xff]
      %v4964 = vld [vmem:[%s280 + $0x58] sm:$0xff]
      %v4965 = vld [vmem:[%s280 + $0x60] sm:$0xff]
      %v4966 = vld [vmem:[%s280 + $0x68] sm:$0xff]
      %v4967 = vld [vmem:[%s280 + $0x70] sm:$0xff]
      %v4968 = vld [vmem:[%s280 + $0x78] sm:$0xff]
      %v4969 = vld [vmem:[%s280 + $0x80] sm:$0xff]
      %v4970 = vld [vmem:[%s280 + $0x88] sm:$0xff]
      %v4971 = vld [vmem:[%s280 + $0x90] sm:$0xff]
      %v4972 = vld [vmem:[%s280 + $0x98] sm:$0xff]
      %v4973 = vld [vmem:[%s280 + $0xa0] sm:$0xff]
      %v4974 = vld [vmem:[%s280 + $0xa8] sm:$0xff]
      %v4975 = vld [vmem:[%s280 + $0xb0] sm:$0xff]
      %v4976 = vld [vmem:[%s280 + $0xb8] sm:$0xff]
      %v4977 = vld [vmem:[%s280 + $0xc0] sm:$0xff]
      %v4978 = vld [vmem:[%s280 + $0xc8] sm:$0xff]
      %v4979 = vld [vmem:[%s280 + $0xd0] sm:$0xff]
      %v4980 = vld [vmem:[%s280 + $0xd8] sm:$0xff]
      %v4981 = vld [vmem:[%s280 + $0xe0] sm:$0xff]
      %v4982 = vld [vmem:[%s280 + $0xe8] sm:$0xff]
      %v4983 = vld [vmem:[%s280 + $0xf0] sm:$0xff]
      %v4984 = vld [vmem:[%s280 + $0xf8] sm:$0xff]
      %4985 = vst.msk [vmem:[#allocation2 + $0x18] sm:$0xff] %vm283, %v4953
      %4986 = vst.msk [vmem:[#allocation2 + $0x20] sm:$0xff] %vm283, %v4954
      %4987 = vst.msk [vmem:[#allocation2 + $0x28] sm:$0xff] %vm283, %v4955
      %4988 = vst.msk [vmem:[#allocation2 + $0x30] sm:$0xff] %vm283, %v4956
      %4989 = vst.msk [vmem:[#allocation2 + $0x38] sm:$0xff] %vm283, %v4957
      %4990 = vst.msk [vmem:[#allocation2 + $0x40] sm:$0xff] %vm283, %v4958
      %4991 = vst.msk [vmem:[#allocation2 + $0x48] sm:$0xff] %vm283, %v4959
      %4992 = vst.msk [vmem:[#allocation2 + $0x50] sm:$0xff] %vm283, %v4960
      %4993 = vst.msk [vmem:[#allocation2 + $0x58] sm:$0xff] %vm283, %v4961
      %4994 = vst.msk [vmem:[#allocation2 + $0x60] sm:$0xff] %vm283, %v4962
      %4995 = vst.msk [vmem:[#allocation2 + $0x68] sm:$0xff] %vm283, %v4963
      %4996 = vst.msk [vmem:[#allocation2 + $0x70] sm:$0xff] %vm283, %v4964
      %4997 = vst.msk [vmem:[#allocation2 + $0x78] sm:$0xff] %vm283, %v4965
      %4998 = vst.msk [vmem:[#allocation2 + $0x80] sm:$0xff] %vm283, %v4966
      %4999 = vst.msk [vmem:[#allocation2 + $0x88] sm:$0xff] %vm283, %v4967
      %5000 = vst.msk [vmem:[#allocation2 + $0x90] sm:$0xff] %vm283, %v4968
      %5001 = vst.msk [vmem:[#allocation2 + $0x98] sm:$0xff] %vm283, %v4969
      %5002 = vst.msk [vmem:[#allocation2 + $0xa0] sm:$0xff] %vm283, %v4970
      %5003 = vst.msk [vmem:[#allocation2 + $0xa8] sm:$0xff] %vm283, %v4971
      %5004 = vst.msk [vmem:[#allocation2 + $0xb0] sm:$0xff] %vm283, %v4972
      %5005 = vst.msk [vmem:[#allocation2 + $0xb8] sm:$0xff] %vm283, %v4973
      %5006 = vst.msk [vmem:[#allocation2 + $0xc0] sm:$0xff] %vm283, %v4974
      %5007 = vst.msk [vmem:[#allocation2 + $0xc8] sm:$0xff] %vm283, %v4975
      %5008 = vst.msk [vmem:[#allocation2 + $0xd0] sm:$0xff] %vm283, %v4976
      %5009 = vst.msk [vmem:[#allocation2 + $0xd8] sm:$0xff] %vm283, %v4977
      %5010 = vst.msk [vmem:[#allocation2 + $0xe0] sm:$0xff] %vm283, %v4978
      %5011 = vst.msk [vmem:[#allocation2 + $0xe8] sm:$0xff] %vm283, %v4979
      %5012 = vst.msk [vmem:[#allocation2 + $0xf0] sm:$0xff] %vm283, %v4980
      %5013 = vst.msk [vmem:[#allocation2 + $0xf8] sm:$0xff] %vm283, %v4981
      %5014 = vst.msk [vmem:[#allocation2 + $0x100] sm:$0xff] %vm283, %v4982
      %5015 = vst.msk [vmem:[#allocation2 + $0x108] sm:$0xff] %vm283, %v4983
      %5016 = vst.msk [vmem:[#allocation2 + $0x110] sm:$0xff] %vm283, %v4984
      %s5017 = scalar_lea.vmem %s1, 64
      %v5018 = vld [vmem:[%s5017] sm:$0xf]
      %v5019 = vld [vmem:[%s5017 + $0x4] sm:$0xf]
      %v5020 = vld [vmem:[%s5017 + $0x8] sm:$0xf]
      %v5021 = vld [vmem:[%s5017 + $0xc] sm:$0xf]
      %v5022 = vld [vmem:[%s5017 + $0x10] sm:$0xf]
      %v5023 = vld [vmem:[%s5017 + $0x14] sm:$0xf]
      %v5024 = vld [vmem:[%s5017 + $0x18] sm:$0xf]
      %v5025 = vld [vmem:[%s5017 + $0x1c] sm:$0xf]
      %v5026 = vld [vmem:[%s5017 + $0x20] sm:$0xf]
      %v5027 = vld [vmem:[%s5017 + $0x24] sm:$0xf]
      %v5028 = vld [vmem:[%s5017 + $0x28] sm:$0xf]
      %v5029 = vld [vmem:[%s5017 + $0x2c] sm:$0xf]
      %v5030 = vld [vmem:[%s5017 + $0x30] sm:$0xf]
      %v5031 = vld [vmem:[%s5017 + $0x34] sm:$0xf]
      %v5032 = vld [vmem:[%s5017 + $0x38] sm:$0xf]
      %v5033 = vld [vmem:[%s5017 + $0x3c] sm:$0xf]
      %s5034 = scalar_lea.vmem %s2, 8
      %v5035 = vld [vmem:[%s5034] sm:$0xf]
      %v5036 = vld [vmem:[%s5034 + $0x4] sm:$0xf]
      %v5037 = vld [vmem:[#allocation2 + $0x7] sm:$0xff]
      %v5038 = vld [vmem:[#allocation2 + $0xf] sm:$0xff]
      %v5039 = vld [vmem:[#allocation2 + $0x17] sm:$0xff]
      %v5040 = vld [vmem:[#allocation2 + $0x1f] sm:$0xff]
      %v5041 = vld [vmem:[#allocation2 + $0x27] sm:$0xff]
      %v5042 = vld [vmem:[#allocation2 + $0x2f] sm:$0xff]
      %v5043 = vld [vmem:[#allocation2 + $0x37] sm:$0xff]
      %v5044 = vld [vmem:[#allocation2 + $0x3f] sm:$0xff]
      %v5045 = vld [vmem:[#allocation2 + $0x47] sm:$0xff]
      %v5046 = vld [vmem:[#allocation2 + $0x4f] sm:$0xff]
      %v5047 = vld [vmem:[#allocation2 + $0x57] sm:$0xff]
      %v5048 = vld [vmem:[#allocation2 + $0x5f] sm:$0xff]
      %v5049 = vld [vmem:[#allocation2 + $0x67] sm:$0xff]
      %v5050 = vld [vmem:[#allocation2 + $0x6f] sm:$0xff]
      %v5051 = vld [vmem:[#allocation2 + $0x77] sm:$0xff]
      %v5052 = vld [vmem:[#allocation2 + $0x7f] sm:$0xff]
      %v5053 = vld [vmem:[#allocation2 + $0x87] sm:$0xff]
      %v5054 = vld [vmem:[#allocation2 + $0x8f] sm:$0xff]
      %v5055 = vld [vmem:[#allocation2 + $0x97] sm:$0xff]
      %v5056 = vld [vmem:[#allocation2 + $0x9f] sm:$0xff]
      %v5057 = vld [vmem:[#allocation2 + $0xa7] sm:$0xff]
      %v5058 = vld [vmem:[#allocation2 + $0xaf] sm:$0xff]
      %v5059 = vld [vmem:[#allocation2 + $0xb7] sm:$0xff]
      %v5060 = vld [vmem:[#allocation2 + $0xbf] sm:$0xff]
      %v5061 = vld [vmem:[#allocation2 + $0xc7] sm:$0xff]
      %v5062 = vld [vmem:[#allocation2 + $0xcf] sm:$0xff]
      %v5063 = vld [vmem:[#allocation2 + $0xd7] sm:$0xff]
      %v5064 = vld [vmem:[#allocation2 + $0xdf] sm:$0xff]
      %v5065 = vld [vmem:[#allocation2 + $0xe7] sm:$0xff]
      %v5066 = vld [vmem:[#allocation2 + $0xef] sm:$0xff]
      %v5067 = vld [vmem:[#allocation2 + $0xf7] sm:$0xff]
      %v5068 = vld [vmem:[#allocation2 + $0xff] sm:$0xff]
      %v5069 = vsel %vm707, %v5037, 0.0
      %v5070 = vsel %vm708, %v5038, 0.0
      %v5071 = vsel %vm709, %v5039, 0.0
      %v5072 = vsel %vm710, %v5040, 0.0
      %v5073 = vsel %vm711, %v5041, 0.0
      %v5074 = vsel %vm712, %v5042, 0.0
      %v5075 = vsel %vm713, %v5043, 0.0
      %v5076 = vsel %vm714, %v5044, 0.0
      %v5077 = vsel %vm715, %v5045, 0.0
      %v5078 = vsel %vm716, %v5046, 0.0
      %v5079 = vsel %vm717, %v5047, 0.0
      %v5080 = vsel %vm718, %v5048, 0.0
      %v5081 = vsel %vm719, %v5049, 0.0
      %v5082 = vsel %vm720, %v5050, 0.0
      %v5083 = vsel %vm721, %v5051, 0.0
      %v5084 = vsel %vm722, %v5052, 0.0
      %v5085 = vsel %vm723, %v5053, 0.0
      %v5086 = vsel %vm724, %v5054, 0.0
      %v5087 = vsel %vm725, %v5055, 0.0
      %v5088 = vsel %vm726, %v5056, 0.0
      %v5089 = vsel %vm727, %v5057, 0.0
      %v5090 = vsel %vm728, %v5058, 0.0
      %v5091 = vsel %vm729, %v5059, 0.0
      %v5092 = vsel %vm730, %v5060, 0.0
      %v5093 = vsel %vm731, %v5061, 0.0
      %v5094 = vsel %vm732, %v5062, 0.0
      %v5095 = vsel %vm733, %v5063, 0.0
      %v5096 = vsel %vm734, %v5064, 0.0
      %v5097 = vsel %vm735, %v5065, 0.0
      %v5098 = vsel %vm736, %v5066, 0.0
      %v5099 = vsel %vm737, %v5067, 0.0
      %v5100 = vsel %vm738, %v5068, 0.0
      %v5101 = vpack.c.bf16 %v5069, %v5069
      %v5102 = vpack.c.bf16 %v5070, %v5070
      %v5103 = vpack.c.bf16 %v5071, %v5071
      %v5104 = vpack.c.bf16 %v5072, %v5072
      %v5105 = vpack.c.bf16 %v5073, %v5073
      %v5106 = vpack.c.bf16 %v5074, %v5074
      %v5107 = vpack.c.bf16 %v5075, %v5075
      %v5108 = vpack.c.bf16 %v5076, %v5076
      %v5109 = vpack.c.bf16 %v5077, %v5077
      %v5110 = vpack.c.bf16 %v5078, %v5078
      %v5111 = vpack.c.bf16 %v5079, %v5079
      %v5112 = vpack.c.bf16 %v5080, %v5080
      %v5113 = vpack.c.bf16 %v5081, %v5081
      %v5114 = vpack.c.bf16 %v5082, %v5082
      %v5115 = vpack.c.bf16 %v5083, %v5083
      %v5116 = vpack.c.bf16 %v5084, %v5084
      %v5117 = vpack.c.bf16 %v5085, %v5085
      %v5118 = vpack.c.bf16 %v5086, %v5086
      %v5119 = vpack.c.bf16 %v5087, %v5087
      %v5120 = vpack.c.bf16 %v5088, %v5088
      %v5121 = vpack.c.bf16 %v5089, %v5089
      %v5122 = vpack.c.bf16 %v5090, %v5090
      %v5123 = vpack.c.bf16 %v5091, %v5091
      %v5124 = vpack.c.bf16 %v5092, %v5092
      %v5125 = vpack.c.bf16 %v5093, %v5093
      %v5126 = vpack.c.bf16 %v5094, %v5094
      %v5127 = vpack.c.bf16 %v5095, %v5095
      %v5128 = vpack.c.bf16 %v5096, %v5096
      %v5129 = vpack.c.bf16 %v5097, %v5097
      %v5130 = vpack.c.bf16 %v5098, %v5098
      %v5131 = vpack.c.bf16 %v5099, %v5099
      %v5132 = vpack.c.bf16 %v5100, %v5100
      %v5133 = vld [vmem:[#allocation2 + $0x8] sm:$0xff]
      %v5134 = vld [vmem:[#allocation2 + $0x10] sm:$0xff]
      %v5135 = vld [vmem:[#allocation2 + $0x18] sm:$0xff]
      %v5136 = vld [vmem:[#allocation2 + $0x20] sm:$0xff]
      %v5137 = vld [vmem:[#allocation2 + $0x28] sm:$0xff]
      %v5138 = vld [vmem:[#allocation2 + $0x30] sm:$0xff]
      %v5139 = vld [vmem:[#allocation2 + $0x38] sm:$0xff]
      %v5140 = vld [vmem:[#allocation2 + $0x40] sm:$0xff]
      %v5141 = vld [vmem:[#allocation2 + $0x48] sm:$0xff]
      %v5142 = vld [vmem:[#allocation2 + $0x50] sm:$0xff]
      %v5143 = vld [vmem:[#allocation2 + $0x58] sm:$0xff]
      %v5144 = vld [vmem:[#allocation2 + $0x60] sm:$0xff]
      %v5145 = vld [vmem:[#allocation2 + $0x68] sm:$0xff]
      %v5146 = vld [vmem:[#allocation2 + $0x70] sm:$0xff]
      %v5147 = vld [vmem:[#allocation2 + $0x78] sm:$0xff]
      %v5148 = vld [vmem:[#allocation2 + $0x80] sm:$0xff]
      %v5149 = vld [vmem:[#allocation2 + $0x88] sm:$0xff]
      %v5150 = vld [vmem:[#allocation2 + $0x90] sm:$0xff]
      %v5151 = vld [vmem:[#allocation2 + $0x98] sm:$0xff]
      %v5152 = vld [vmem:[#allocation2 + $0xa0] sm:$0xff]
      %v5153 = vld [vmem:[#allocation2 + $0xa8] sm:$0xff]
      %v5154 = vld [vmem:[#allocation2 + $0xb0] sm:$0xff]
      %v5155 = vld [vmem:[#allocation2 + $0xb8] sm:$0xff]
      %v5156 = vld [vmem:[#allocation2 + $0xc0] sm:$0xff]
      %v5157 = vld [vmem:[#allocation2 + $0xc8] sm:$0xff]
      %v5158 = vld [vmem:[#allocation2 + $0xd0] sm:$0xff]
      %v5159 = vld [vmem:[#allocation2 + $0xd8] sm:$0xff]
      %v5160 = vld [vmem:[#allocation2 + $0xe0] sm:$0xff]
      %v5161 = vld [vmem:[#allocation2 + $0xe8] sm:$0xff]
      %v5162 = vld [vmem:[#allocation2 + $0xf0] sm:$0xff]
      %v5163 = vld [vmem:[#allocation2 + $0xf8] sm:$0xff]
      %v5164 = vld [vmem:[#allocation2 + $0x100] sm:$0xff]
      %v5165 = vpack.c.bf16 %v5133, %v5133
      %v5166 = vpack.c.bf16 %v5134, %v5134
      %v5167 = vpack.c.bf16 %v5135, %v5135
      %v5168 = vpack.c.bf16 %v5136, %v5136
      %v5169 = vpack.c.bf16 %v5137, %v5137
      %v5170 = vpack.c.bf16 %v5138, %v5138
      %v5171 = vpack.c.bf16 %v5139, %v5139
      %v5172 = vpack.c.bf16 %v5140, %v5140
      %v5173 = vpack.c.bf16 %v5141, %v5141
      %v5174 = vpack.c.bf16 %v5142, %v5142
      %v5175 = vpack.c.bf16 %v5143, %v5143
      %v5176 = vpack.c.bf16 %v5144, %v5144
      %v5177 = vpack.c.bf16 %v5145, %v5145
      %v5178 = vpack.c.bf16 %v5146, %v5146
      %v5179 = vpack.c.bf16 %v5147, %v5147
      %v5180 = vpack.c.bf16 %v5148, %v5148
      %v5181 = vpack.c.bf16 %v5149, %v5149
      %v5182 = vpack.c.bf16 %v5150, %v5150
      %v5183 = vpack.c.bf16 %v5151, %v5151
      %v5184 = vpack.c.bf16 %v5152, %v5152
      %v5185 = vpack.c.bf16 %v5153, %v5153
      %v5186 = vpack.c.bf16 %v5154, %v5154
      %v5187 = vpack.c.bf16 %v5155, %v5155
      %v5188 = vpack.c.bf16 %v5156, %v5156
      %v5189 = vpack.c.bf16 %v5157, %v5157
      %v5190 = vpack.c.bf16 %v5158, %v5158
      %v5191 = vpack.c.bf16 %v5159, %v5159
      %v5192 = vpack.c.bf16 %v5160, %v5160
      %v5193 = vpack.c.bf16 %v5161, %v5161
      %v5194 = vpack.c.bf16 %v5162, %v5162
      %v5195 = vpack.c.bf16 %v5163, %v5163
      %v5196 = vpack.c.bf16 %v5164, %v5164
      %v5197 = vld [vmem:[#allocation2 + $0x9] sm:$0xff]
      %v5198 = vld [vmem:[#allocation2 + $0x11] sm:$0xff]
      %v5199 = vld [vmem:[#allocation2 + $0x19] sm:$0xff]
      %v5200 = vld [vmem:[#allocation2 + $0x21] sm:$0xff]
      %v5201 = vld [vmem:[#allocation2 + $0x29] sm:$0xff]
      %v5202 = vld [vmem:[#allocation2 + $0x31] sm:$0xff]
      %v5203 = vld [vmem:[#allocation2 + $0x39] sm:$0xff]
      %v5204 = vld [vmem:[#allocation2 + $0x41] sm:$0xff]
      %v5205 = vld [vmem:[#allocation2 + $0x49] sm:$0xff]
      %v5206 = vld [vmem:[#allocation2 + $0x51] sm:$0xff]
      %v5207 = vld [vmem:[#allocation2 + $0x59] sm:$0xff]
      %v5208 = vld [vmem:[#allocation2 + $0x61] sm:$0xff]
      %v5209 = vld [vmem:[#allocation2 + $0x69] sm:$0xff]
      %v5210 = vld [vmem:[#allocation2 + $0x71] sm:$0xff]
      %v5211 = vld [vmem:[#allocation2 + $0x79] sm:$0xff]
      %v5212 = vld [vmem:[#allocation2 + $0x81] sm:$0xff]
      %v5213 = vld [vmem:[#allocation2 + $0x89] sm:$0xff]
      %v5214 = vld [vmem:[#allocation2 + $0x91] sm:$0xff]
      %v5215 = vld [vmem:[#allocation2 + $0x99] sm:$0xff]
      %v5216 = vld [vmem:[#allocation2 + $0xa1] sm:$0xff]
      %v5217 = vld [vmem:[#allocation2 + $0xa9] sm:$0xff]
      %v5218 = vld [vmem:[#allocation2 + $0xb1] sm:$0xff]
      %v5219 = vld [vmem:[#allocation2 + $0xb9] sm:$0xff]
      %v5220 = vld [vmem:[#allocation2 + $0xc1] sm:$0xff]
      %v5221 = vld [vmem:[#allocation2 + $0xc9] sm:$0xff]
      %v5222 = vld [vmem:[#allocation2 + $0xd1] sm:$0xff]
      %v5223 = vld [vmem:[#allocation2 + $0xd9] sm:$0xff]
      %v5224 = vld [vmem:[#allocation2 + $0xe1] sm:$0xff]
      %v5225 = vld [vmem:[#allocation2 + $0xe9] sm:$0xff]
      %v5226 = vld [vmem:[#allocation2 + $0xf1] sm:$0xff]
      %v5227 = vld [vmem:[#allocation2 + $0xf9] sm:$0xff]
      %v5228 = vld [vmem:[#allocation2 + $0x101] sm:$0xff]
      %v5229 = vsel %vm739, %v5197, 0.0
      %v5230 = vsel %vm740, %v5198, 0.0
      %v5231 = vsel %vm741, %v5199, 0.0
      %v5232 = vsel %vm742, %v5200, 0.0
      %v5233 = vsel %vm743, %v5201, 0.0
      %v5234 = vsel %vm744, %v5202, 0.0
      %v5235 = vsel %vm745, %v5203, 0.0
      %v5236 = vsel %vm746, %v5204, 0.0
      %v5237 = vsel %vm747, %v5205, 0.0
      %v5238 = vsel %vm748, %v5206, 0.0
      %v5239 = vsel %vm749, %v5207, 0.0
      %v5240 = vsel %vm750, %v5208, 0.0
      %v5241 = vsel %vm751, %v5209, 0.0
      %v5242 = vsel %vm752, %v5210, 0.0
      %v5243 = vsel %vm753, %v5211, 0.0
      %v5244 = vsel %vm754, %v5212, 0.0
      %v5245 = vsel %vm755, %v5213, 0.0
      %v5246 = vsel %vm756, %v5214, 0.0
      %v5247 = vsel %vm757, %v5215, 0.0
      %v5248 = vsel %vm758, %v5216, 0.0
      %v5249 = vsel %vm759, %v5217, 0.0
      %v5250 = vsel %vm760, %v5218, 0.0
      %v5251 = vsel %vm761, %v5219, 0.0
      %v5252 = vsel %vm762, %v5220, 0.0
      %v5253 = vsel %vm763, %v5221, 0.0
      %v5254 = vsel %vm764, %v5222, 0.0
      %v5255 = vsel %vm765, %v5223, 0.0
      %v5256 = vsel %vm766, %v5224, 0.0
      %v5257 = vsel %vm767, %v5225, 0.0
      %v5258 = vsel %vm768, %v5226, 0.0
      %v5259 = vsel %vm769, %v5227, 0.0
      %v5260 = vsel %vm770, %v5228, 0.0
      %v5261 = vpack.c.bf16 %v5229, %v5229
      %v5262 = vpack.c.bf16 %v5230, %v5230
      %v5263 = vpack.c.bf16 %v5231, %v5231
      %v5264 = vpack.c.bf16 %v5232, %v5232
      %v5265 = vpack.c.bf16 %v5233, %v5233
      %v5266 = vpack.c.bf16 %v5234, %v5234
      %v5267 = vpack.c.bf16 %v5235, %v5235
      %v5268 = vpack.c.bf16 %v5236, %v5236
      %v5269 = vpack.c.bf16 %v5237, %v5237
      %v5270 = vpack.c.bf16 %v5238, %v5238
      %v5271 = vpack.c.bf16 %v5239, %v5239
      %v5272 = vpack.c.bf16 %v5240, %v5240
      %v5273 = vpack.c.bf16 %v5241, %v5241
      %v5274 = vpack.c.bf16 %v5242, %v5242
      %v5275 = vpack.c.bf16 %v5243, %v5243
      %v5276 = vpack.c.bf16 %v5244, %v5244
      %v5277 = vpack.c.bf16 %v5245, %v5245
      %v5278 = vpack.c.bf16 %v5246, %v5246
      %v5279 = vpack.c.bf16 %v5247, %v5247
      %v5280 = vpack.c.bf16 %v5248, %v5248
      %v5281 = vpack.c.bf16 %v5249, %v5249
      %v5282 = vpack.c.bf16 %v5250, %v5250
      %v5283 = vpack.c.bf16 %v5251, %v5251
      %v5284 = vpack.c.bf16 %v5252, %v5252
      %v5285 = vpack.c.bf16 %v5253, %v5253
      %v5286 = vpack.c.bf16 %v5254, %v5254
      %v5287 = vpack.c.bf16 %v5255, %v5255
      %v5288 = vpack.c.bf16 %v5256, %v5256
      %v5289 = vpack.c.bf16 %v5257, %v5257
      %v5290 = vpack.c.bf16 %v5258, %v5258
      %v5291 = vpack.c.bf16 %v5259, %v5259
      %v5292 = vpack.c.bf16 %v5260, %v5260
      %v5293 = vld [vmem:[#allocation2 + $0x107] sm:$0xff]
      %v5294 = vld [vmem:[#allocation2 + $0x10f] sm:$0xff]
      %v5295 = vsel %vm707, %v5039, 0.0
      %v5296 = vsel %vm708, %v5040, 0.0
      %v5297 = vsel %vm709, %v5041, 0.0
      %v5298 = vsel %vm710, %v5042, 0.0
      %v5299 = vsel %vm711, %v5043, 0.0
      %v5300 = vsel %vm712, %v5044, 0.0
      %v5301 = vsel %vm713, %v5045, 0.0
      %v5302 = vsel %vm714, %v5046, 0.0
      %v5303 = vsel %vm715, %v5047, 0.0
      %v5304 = vsel %vm716, %v5048, 0.0
      %v5305 = vsel %vm717, %v5049, 0.0
      %v5306 = vsel %vm718, %v5050, 0.0
      %v5307 = vsel %vm719, %v5051, 0.0
      %v5308 = vsel %vm720, %v5052, 0.0
      %v5309 = vsel %vm721, %v5053, 0.0
      %v5310 = vsel %vm722, %v5054, 0.0
      %v5311 = vsel %vm723, %v5055, 0.0
      %v5312 = vsel %vm724, %v5056, 0.0
      %v5313 = vsel %vm725, %v5057, 0.0
      %v5314 = vsel %vm726, %v5058, 0.0
      %v5315 = vsel %vm727, %v5059, 0.0
      %v5316 = vsel %vm728, %v5060, 0.0
      %v5317 = vsel %vm729, %v5061, 0.0
      %v5318 = vsel %vm730, %v5062, 0.0
      %v5319 = vsel %vm731, %v5063, 0.0
      %v5320 = vsel %vm732, %v5064, 0.0
      %v5321 = vsel %vm733, %v5065, 0.0
      %v5322 = vsel %vm734, %v5066, 0.0
      %v5323 = vsel %vm735, %v5067, 0.0
      %v5324 = vsel %vm736, %v5068, 0.0
      %v5325 = vsel %vm737, %v5293, 0.0
      %v5326 = vsel %vm738, %v5294, 0.0
      %v5327 = vpack.c.bf16 %v5295, %v5295
      %v5328 = vpack.c.bf16 %v5296, %v5296
      %v5329 = vpack.c.bf16 %v5297, %v5297
      %v5330 = vpack.c.bf16 %v5298, %v5298
      %v5331 = vpack.c.bf16 %v5299, %v5299
      %v5332 = vpack.c.bf16 %v5300, %v5300
      %v5333 = vpack.c.bf16 %v5301, %v5301
      %v5334 = vpack.c.bf16 %v5302, %v5302
      %v5335 = vpack.c.bf16 %v5303, %v5303
      %v5336 = vpack.c.bf16 %v5304, %v5304
      %v5337 = vpack.c.bf16 %v5305, %v5305
      %v5338 = vpack.c.bf16 %v5306, %v5306
      %v5339 = vpack.c.bf16 %v5307, %v5307
      %v5340 = vpack.c.bf16 %v5308, %v5308
      %v5341 = vpack.c.bf16 %v5309, %v5309
      %v5342 = vpack.c.bf16 %v5310, %v5310
      %v5343 = vpack.c.bf16 %v5311, %v5311
      %v5344 = vpack.c.bf16 %v5312, %v5312
      %v5345 = vpack.c.bf16 %v5313, %v5313
      %v5346 = vpack.c.bf16 %v5314, %v5314
      %v5347 = vpack.c.bf16 %v5315, %v5315
      %v5348 = vpack.c.bf16 %v5316, %v5316
      %v5349 = vpack.c.bf16 %v5317, %v5317
      %v5350 = vpack.c.bf16 %v5318, %v5318
      %v5351 = vpack.c.bf16 %v5319, %v5319
      %v5352 = vpack.c.bf16 %v5320, %v5320
      %v5353 = vpack.c.bf16 %v5321, %v5321
      %v5354 = vpack.c.bf16 %v5322, %v5322
      %v5355 = vpack.c.bf16 %v5323, %v5323
      %v5356 = vpack.c.bf16 %v5324, %v5324
      %v5357 = vpack.c.bf16 %v5325, %v5325
      %v5358 = vpack.c.bf16 %v5326, %v5326
      %v5359 = vld [vmem:[#allocation2 + $0x109] sm:$0xff]
      %v5360 = vld [vmem:[#allocation2 + $0x111] sm:$0xff]
      %v5361 = vsel %vm739, %v5199, 0.0
      %v5362 = vsel %vm740, %v5200, 0.0
      %v5363 = vsel %vm741, %v5201, 0.0
      %v5364 = vsel %vm742, %v5202, 0.0
      %v5365 = vsel %vm743, %v5203, 0.0
      %v5366 = vsel %vm744, %v5204, 0.0
      %v5367 = vsel %vm745, %v5205, 0.0
      %v5368 = vsel %vm746, %v5206, 0.0
      %v5369 = vsel %vm747, %v5207, 0.0
      %v5370 = vsel %vm748, %v5208, 0.0
      %v5371 = vsel %vm749, %v5209, 0.0
      %v5372 = vsel %vm750, %v5210, 0.0
      %v5373 = vsel %vm751, %v5211, 0.0
      %v5374 = vsel %vm752, %v5212, 0.0
      %v5375 = vsel %vm753, %v5213, 0.0
      %v5376 = vsel %vm754, %v5214, 0.0
      %v5377 = vsel %vm755, %v5215, 0.0
      %v5378 = vsel %vm756, %v5216, 0.0
      %v5379 = vsel %vm757, %v5217, 0.0
      %v5380 = vsel %vm758, %v5218, 0.0
      %v5381 = vsel %vm759, %v5219, 0.0
      %v5382 = vsel %vm760, %v5220, 0.0
      %v5383 = vsel %vm761, %v5221, 0.0
      %v5384 = vsel %vm762, %v5222, 0.0
      %v5385 = vsel %vm763, %v5223, 0.0
      %v5386 = vsel %vm764, %v5224, 0.0
      %v5387 = vsel %vm765, %v5225, 0.0
      %v5388 = vsel %vm766, %v5226, 0.0
      %v5389 = vsel %vm767, %v5227, 0.0
      %v5390 = vsel %vm768, %v5228, 0.0
      %v5391 = vsel %vm769, %v5359, 0.0
      %v5392 = vsel %vm770, %v5360, 0.0
      %v5393 = vpack.c.bf16 %v5361, %v5361
      %v5394 = vpack.c.bf16 %v5362, %v5362
      %v5395 = vpack.c.bf16 %v5363, %v5363
      %v5396 = vpack.c.bf16 %v5364, %v5364
      %v5397 = vpack.c.bf16 %v5365, %v5365
      %v5398 = vpack.c.bf16 %v5366, %v5366
      %v5399 = vpack.c.bf16 %v5367, %v5367
      %v5400 = vpack.c.bf16 %v5368, %v5368
      %v5401 = vpack.c.bf16 %v5369, %v5369
      %v5402 = vpack.c.bf16 %v5370, %v5370
      %v5403 = vpack.c.bf16 %v5371, %v5371
      %v5404 = vpack.c.bf16 %v5372, %v5372
      %v5405 = vpack.c.bf16 %v5373, %v5373
      %v5406 = vpack.c.bf16 %v5374, %v5374
      %v5407 = vpack.c.bf16 %v5375, %v5375
      %v5408 = vpack.c.bf16 %v5376, %v5376
      %v5409 = vpack.c.bf16 %v5377, %v5377
      %v5410 = vpack.c.bf16 %v5378, %v5378
      %v5411 = vpack.c.bf16 %v5379, %v5379
      %v5412 = vpack.c.bf16 %v5380, %v5380
      %v5413 = vpack.c.bf16 %v5381, %v5381
      %v5414 = vpack.c.bf16 %v5382, %v5382
      %v5415 = vpack.c.bf16 %v5383, %v5383
      %v5416 = vpack.c.bf16 %v5384, %v5384
      %v5417 = vpack.c.bf16 %v5385, %v5385
      %v5418 = vpack.c.bf16 %v5386, %v5386
      %v5419 = vpack.c.bf16 %v5387, %v5387
      %v5420 = vpack.c.bf16 %v5388, %v5388
      %v5421 = vpack.c.bf16 %v5389, %v5389
      %v5422 = vpack.c.bf16 %v5390, %v5390
      %v5423 = vpack.c.bf16 %v5391, %v5391
      %v5424 = vpack.c.bf16 %v5392, %v5392
      %v5425 = vld [vmem:[#allocation2 + $0x117] sm:$0xff]
      %v5426 = vld [vmem:[#allocation2 + $0x11f] sm:$0xff]
      %v5427 = vsel %vm707, %v5041, 0.0
      %v5428 = vsel %vm708, %v5042, 0.0
      %v5429 = vsel %vm709, %v5043, 0.0
      %v5430 = vsel %vm710, %v5044, 0.0
      %v5431 = vsel %vm711, %v5045, 0.0
      %v5432 = vsel %vm712, %v5046, 0.0
      %v5433 = vsel %vm713, %v5047, 0.0
      %v5434 = vsel %vm714, %v5048, 0.0
      %v5435 = vsel %vm715, %v5049, 0.0
      %v5436 = vsel %vm716, %v5050, 0.0
      %v5437 = vsel %vm717, %v5051, 0.0
      %v5438 = vsel %vm718, %v5052, 0.0
      %v5439 = vsel %vm719, %v5053, 0.0
      %v5440 = vsel %vm720, %v5054, 0.0
      %v5441 = vsel %vm721, %v5055, 0.0
      %v5442 = vsel %vm722, %v5056, 0.0
      %v5443 = vsel %vm723, %v5057, 0.0
      %v5444 = vsel %vm724, %v5058, 0.0
      %v5445 = vsel %vm725, %v5059, 0.0
      %v5446 = vsel %vm726, %v5060, 0.0
      %v5447 = vsel %vm727, %v5061, 0.0
      %v5448 = vsel %vm728, %v5062, 0.0
      %v5449 = vsel %vm729, %v5063, 0.0
      %v5450 = vsel %vm730, %v5064, 0.0
      %v5451 = vsel %vm731, %v5065, 0.0
      %v5452 = vsel %vm732, %v5066, 0.0
      %v5453 = vsel %vm733, %v5067, 0.0
      %v5454 = vsel %vm734, %v5068, 0.0
      %v5455 = vsel %vm735, %v5293, 0.0
      %v5456 = vsel %vm736, %v5294, 0.0
      %v5457 = vsel %vm737, %v5425, 0.0
      %v5458 = vsel %vm738, %v5426, 0.0
      %v5459 = vpack.c.bf16 %v5427, %v5427
      %v5460 = vpack.c.bf16 %v5428, %v5428
      %v5461 = vpack.c.bf16 %v5429, %v5429
      %v5462 = vpack.c.bf16 %v5430, %v5430
      %v5463 = vpack.c.bf16 %v5431, %v5431
      %v5464 = vpack.c.bf16 %v5432, %v5432
      %v5465 = vpack.c.bf16 %v5433, %v5433
      %v5466 = vpack.c.bf16 %v5434, %v5434
      %v5467 = vpack.c.bf16 %v5435, %v5435
      %v5468 = vpack.c.bf16 %v5436, %v5436
      %v5469 = vpack.c.bf16 %v5437, %v5437
      %v5470 = vpack.c.bf16 %v5438, %v5438
      %v5471 = vpack.c.bf16 %v5439, %v5439
      %v5472 = vpack.c.bf16 %v5440, %v5440
      %v5473 = vpack.c.bf16 %v5441, %v5441
      %v5474 = vpack.c.bf16 %v5442, %v5442
      %v5475 = vpack.c.bf16 %v5443, %v5443
      %v5476 = vpack.c.bf16 %v5444, %v5444
      %v5477 = vpack.c.bf16 %v5445, %v5445
      %v5478 = vpack.c.bf16 %v5446, %v5446
      %v5479 = vpack.c.bf16 %v5447, %v5447
      %v5480 = vpack.c.bf16 %v5448, %v5448
      %v5481 = vpack.c.bf16 %v5449, %v5449
      %v5482 = vpack.c.bf16 %v5450, %v5450
      %v5483 = vpack.c.bf16 %v5451, %v5451
      %v5484 = vpack.c.bf16 %v5452, %v5452
      %v5485 = vpack.c.bf16 %v5453, %v5453
      %v5486 = vpack.c.bf16 %v5454, %v5454
      %v5487 = vpack.c.bf16 %v5455, %v5455
      %v5488 = vpack.c.bf16 %v5456, %v5456
      %v5489 = vpack.c.bf16 %v5457, %v5457
      %v5490 = vpack.c.bf16 %v5458, %v5458
      %v5491 = vld [vmem:[#allocation2 + $0x108] sm:$0xff]
      %v5492 = vld [vmem:[#allocation2 + $0x110] sm:$0xff]
      %v5493 = vld [vmem:[#allocation2 + $0x118] sm:$0xff]
      %v5494 = vld [vmem:[#allocation2 + $0x120] sm:$0xff]
      %v5495 = vpack.c.bf16 %v5491, %v5491
      %v5496 = vpack.c.bf16 %v5492, %v5492
      %v5497 = vpack.c.bf16 %v5493, %v5493
      %v5498 = vpack.c.bf16 %v5494, %v5494
      %v5499 = vld [vmem:[#allocation2 + $0x119] sm:$0xff]
      %v5500 = vld [vmem:[#allocation2 + $0x121] sm:$0xff]
      %v5501 = vsel %vm739, %v5201, 0.0
      %v5502 = vsel %vm740, %v5202, 0.0
      %v5503 = vsel %vm741, %v5203, 0.0
      %v5504 = vsel %vm742, %v5204, 0.0
      %v5505 = vsel %vm743, %v5205, 0.0
      %v5506 = vsel %vm744, %v5206, 0.0
      %v5507 = vsel %vm745, %v5207, 0.0
      %v5508 = vsel %vm746, %v5208, 0.0
      %v5509 = vsel %vm747, %v5209, 0.0
      %v5510 = vsel %vm748, %v5210, 0.0
      %v5511 = vsel %vm749, %v5211, 0.0
      %v5512 = vsel %vm750, %v5212, 0.0
      %v5513 = vsel %vm751, %v5213, 0.0
      %v5514 = vsel %vm752, %v5214, 0.0
      %v5515 = vsel %vm753, %v5215, 0.0
      %v5516 = vsel %vm754, %v5216, 0.0
      %v5517 = vsel %vm755, %v5217, 0.0
      %v5518 = vsel %vm756, %v5218, 0.0
      %v5519 = vsel %vm757, %v5219, 0.0
      %v5520 = vsel %vm758, %v5220, 0.0
      %v5521 = vsel %vm759, %v5221, 0.0
      %v5522 = vsel %vm760, %v5222, 0.0
      %v5523 = vsel %vm761, %v5223, 0.0
      %v5524 = vsel %vm762, %v5224, 0.0
      %v5525 = vsel %vm763, %v5225, 0.0
      %v5526 = vsel %vm764, %v5226, 0.0
      %v5527 = vsel %vm765, %v5227, 0.0
      %v5528 = vsel %vm766, %v5228, 0.0
      %v5529 = vsel %vm767, %v5359, 0.0
      %v5530 = vsel %vm768, %v5360, 0.0
      %v5531 = vsel %vm769, %v5499, 0.0
      %v5532 = vsel %vm770, %v5500, 0.0
      %v5533 = vpack.c.bf16 %v5501, %v5501
      %v5534 = vpack.c.bf16 %v5502, %v5502
      %v5535 = vpack.c.bf16 %v5503, %v5503
      %v5536 = vpack.c.bf16 %v5504, %v5504
      %v5537 = vpack.c.bf16 %v5505, %v5505
      %v5538 = vpack.c.bf16 %v5506, %v5506
      %v5539 = vpack.c.bf16 %v5507, %v5507
      %v5540 = vpack.c.bf16 %v5508, %v5508
      %v5541 = vpack.c.bf16 %v5509, %v5509
      %v5542 = vpack.c.bf16 %v5510, %v5510
      %v5543 = vpack.c.bf16 %v5511, %v5511
      %v5544 = vpack.c.bf16 %v5512, %v5512
      %v5545 = vpack.c.bf16 %v5513, %v5513
      %v5546 = vpack.c.bf16 %v5514, %v5514
      %v5547 = vpack.c.bf16 %v5515, %v5515
      %v5548 = vpack.c.bf16 %v5516, %v5516
      %v5549 = vpack.c.bf16 %v5517, %v5517
      %v5550 = vpack.c.bf16 %v5518, %v5518
      %v5551 = vpack.c.bf16 %v5519, %v5519
      %v5552 = vpack.c.bf16 %v5520, %v5520
      %v5553 = vpack.c.bf16 %v5521, %v5521
      %v5554 = vpack.c.bf16 %v5522, %v5522
      %v5555 = vpack.c.bf16 %v5523, %v5523
      %v5556 = vpack.c.bf16 %v5524, %v5524
      %v5557 = vpack.c.bf16 %v5525, %v5525
      %v5558 = vpack.c.bf16 %v5526, %v5526
      %v5559 = vpack.c.bf16 %v5527, %v5527
      %v5560 = vpack.c.bf16 %v5528, %v5528
      %v5561 = vpack.c.bf16 %v5529, %v5529
      %v5562 = vpack.c.bf16 %v5530, %v5530
      %v5563 = vpack.c.bf16 %v5531, %v5531
      %v5564 = vpack.c.bf16 %v5532, %v5532
      %v5597 = vunpack.c.l.b16 %v5101
      %v5598 = vunpack.c.l.b16 %v5102
      %v5599 = vunpack.c.l.b16 %v5103
      %v5600 = vunpack.c.l.b16 %v5104
      %v5601 = vunpack.c.l.b16 %v5105
      %v5602 = vunpack.c.l.b16 %v5106
      %v5603 = vunpack.c.l.b16 %v5107
      %v5604 = vunpack.c.l.b16 %v5108
      %v5605 = vunpack.c.l.b16 %v5109
      %v5606 = vunpack.c.l.b16 %v5110
      %v5607 = vunpack.c.l.b16 %v5111
      %v5608 = vunpack.c.l.b16 %v5112
      %v5609 = vunpack.c.l.b16 %v5113
      %v5610 = vunpack.c.l.b16 %v5114
      %v5611 = vunpack.c.l.b16 %v5115
      %v5612 = vunpack.c.l.b16 %v5116
      %v5613 = vunpack.c.l.b16 %v5117
      %v5614 = vunpack.c.l.b16 %v5118
      %v5615 = vunpack.c.l.b16 %v5119
      %v5616 = vunpack.c.l.b16 %v5120
      %v5617 = vunpack.c.l.b16 %v5121
      %v5618 = vunpack.c.l.b16 %v5122
      %v5619 = vunpack.c.l.b16 %v5123
      %v5620 = vunpack.c.l.b16 %v5124
      %v5621 = vunpack.c.l.b16 %v5125
      %v5622 = vunpack.c.l.b16 %v5126
      %v5623 = vunpack.c.l.b16 %v5127
      %v5624 = vunpack.c.l.b16 %v5128
      %v5625 = vunpack.c.l.b16 %v5129
      %v5626 = vunpack.c.l.b16 %v5130
      %v5627 = vunpack.c.l.b16 %v5131
      %v5628 = vunpack.c.l.b16 %v5132
      %v5629 = vpack.c.b16 %v5598, %v5597
      %v5630 = vpack.c.b16 %v5600, %v5599
      %v5631 = vpack.c.b16 %v5602, %v5601
      %v5632 = vpack.c.b16 %v5604, %v5603
      %v5633 = vpack.c.b16 %v5606, %v5605
      %v5634 = vpack.c.b16 %v5608, %v5607
      %v5635 = vpack.c.b16 %v5610, %v5609
      %v5636 = vpack.c.b16 %v5612, %v5611
      %v5637 = vpack.c.b16 %v5614, %v5613
      %v5638 = vpack.c.b16 %v5616, %v5615
      %v5639 = vpack.c.b16 %v5618, %v5617
      %v5640 = vpack.c.b16 %v5620, %v5619
      %v5641 = vpack.c.b16 %v5622, %v5621
      %v5642 = vpack.c.b16 %v5624, %v5623
      %v5643 = vpack.c.b16 %v5626, %v5625
      %v5644 = vpack.c.b16 %v5628, %v5627
      %v5677 = vunpack.c.l.b16 %v5165
      %v5678 = vunpack.c.l.b16 %v5166
      %v5679 = vunpack.c.l.b16 %v5167
      %v5680 = vunpack.c.l.b16 %v5168
      %v5681 = vunpack.c.l.b16 %v5169
      %v5682 = vunpack.c.l.b16 %v5170
      %v5683 = vunpack.c.l.b16 %v5171
      %v5684 = vunpack.c.l.b16 %v5172
      %v5685 = vunpack.c.l.b16 %v5173
      %v5686 = vunpack.c.l.b16 %v5174
      %v5687 = vunpack.c.l.b16 %v5175
      %v5688 = vunpack.c.l.b16 %v5176
      %v5689 = vunpack.c.l.b16 %v5177
      %v5690 = vunpack.c.l.b16 %v5178
      %v5691 = vunpack.c.l.b16 %v5179
      %v5692 = vunpack.c.l.b16 %v5180
      %v5693 = vunpack.c.l.b16 %v5181
      %v5694 = vunpack.c.l.b16 %v5182
      %v5695 = vunpack.c.l.b16 %v5183
      %v5696 = vunpack.c.l.b16 %v5184
      %v5697 = vunpack.c.l.b16 %v5185
      %v5698 = vunpack.c.l.b16 %v5186
      %v5699 = vunpack.c.l.b16 %v5187
      %v5700 = vunpack.c.l.b16 %v5188
      %v5701 = vunpack.c.l.b16 %v5189
      %v5702 = vunpack.c.l.b16 %v5190
      %v5703 = vunpack.c.l.b16 %v5191
      %v5704 = vunpack.c.l.b16 %v5192
      %v5705 = vunpack.c.l.b16 %v5193
      %v5706 = vunpack.c.l.b16 %v5194
      %v5707 = vunpack.c.l.b16 %v5195
      %v5708 = vunpack.c.l.b16 %v5196
      %v5709 = vpack.c.b16 %v5678, %v5677
      %v5710 = vpack.c.b16 %v5680, %v5679
      %v5711 = vpack.c.b16 %v5682, %v5681
      %v5712 = vpack.c.b16 %v5684, %v5683
      %v5713 = vpack.c.b16 %v5686, %v5685
      %v5714 = vpack.c.b16 %v5688, %v5687
      %v5715 = vpack.c.b16 %v5690, %v5689
      %v5716 = vpack.c.b16 %v5692, %v5691
      %v5717 = vpack.c.b16 %v5694, %v5693
      %v5718 = vpack.c.b16 %v5696, %v5695
      %v5719 = vpack.c.b16 %v5698, %v5697
      %v5720 = vpack.c.b16 %v5700, %v5699
      %v5721 = vpack.c.b16 %v5702, %v5701
      %v5722 = vpack.c.b16 %v5704, %v5703
      %v5723 = vpack.c.b16 %v5706, %v5705
      %v5724 = vpack.c.b16 %v5708, %v5707
      %5725 = vrot.lane.b32.xlu0 %v5709, 16
      %v5726 = vpop.permute.xlu0 %5725
      %5727 = vrot.lane.b32.xlu0 %v5710, 16
      %v5728 = vpop.permute.xlu0 %5727
      %5729 = vrot.lane.b32.xlu0 %v5711, 16
      %v5730 = vpop.permute.xlu0 %5729
      %5731 = vrot.lane.b32.xlu0 %v5712, 16
      %v5732 = vpop.permute.xlu0 %5731
      %5733 = vrot.lane.b32.xlu0 %v5713, 16
      %v5734 = vpop.permute.xlu0 %5733
      %5735 = vrot.lane.b32.xlu0 %v5714, 16
      %v5736 = vpop.permute.xlu0 %5735
      %5737 = vrot.lane.b32.xlu0 %v5715, 16
      %v5738 = vpop.permute.xlu0 %5737
      %5739 = vrot.lane.b32.xlu0 %v5716, 16
      %v5740 = vpop.permute.xlu0 %5739
      %5741 = vrot.lane.b32.xlu0 %v5717, 16
      %v5742 = vpop.permute.xlu0 %5741
      %5743 = vrot.lane.b32.xlu0 %v5718, 16
      %v5744 = vpop.permute.xlu0 %5743
      %5745 = vrot.lane.b32.xlu0 %v5719, 16
      %v5746 = vpop.permute.xlu0 %5745
      %5747 = vrot.lane.b32.xlu0 %v5720, 16
      %v5748 = vpop.permute.xlu0 %5747
      %5749 = vrot.lane.b32.xlu0 %v5721, 16
      %v5750 = vpop.permute.xlu0 %5749
      %5751 = vrot.lane.b32.xlu0 %v5722, 16
      %v5752 = vpop.permute.xlu0 %5751
      %5753 = vrot.lane.b32.xlu0 %v5723, 16
      %v5754 = vpop.permute.xlu0 %5753
      %5755 = vrot.lane.b32.xlu0 %v5724, 16
      %v5756 = vpop.permute.xlu0 %5755
      %v5789 = vunpack.c.l.b16 %v5261
      %v5790 = vunpack.c.l.b16 %v5262
      %v5791 = vunpack.c.l.b16 %v5263
      %v5792 = vunpack.c.l.b16 %v5264
      %v5793 = vunpack.c.l.b16 %v5265
      %v5794 = vunpack.c.l.b16 %v5266
      %v5795 = vunpack.c.l.b16 %v5267
      %v5796 = vunpack.c.l.b16 %v5268
      %v5797 = vunpack.c.l.b16 %v5269
      %v5798 = vunpack.c.l.b16 %v5270
      %v5799 = vunpack.c.l.b16 %v5271
      %v5800 = vunpack.c.l.b16 %v5272
      %v5801 = vunpack.c.l.b16 %v5273
      %v5802 = vunpack.c.l.b16 %v5274
      %v5803 = vunpack.c.l.b16 %v5275
      %v5804 = vunpack.c.l.b16 %v5276
      %v5805 = vunpack.c.l.b16 %v5277
      %v5806 = vunpack.c.l.b16 %v5278
      %v5807 = vunpack.c.l.b16 %v5279
      %v5808 = vunpack.c.l.b16 %v5280
      %v5809 = vunpack.c.l.b16 %v5281
      %v5810 = vunpack.c.l.b16 %v5282
      %v5811 = vunpack.c.l.b16 %v5283
      %v5812 = vunpack.c.l.b16 %v5284
      %v5813 = vunpack.c.l.b16 %v5285
      %v5814 = vunpack.c.l.b16 %v5286
      %v5815 = vunpack.c.l.b16 %v5287
      %v5816 = vunpack.c.l.b16 %v5288
      %v5817 = vunpack.c.l.b16 %v5289
      %v5818 = vunpack.c.l.b16 %v5290
      %v5819 = vunpack.c.l.b16 %v5291
      %v5820 = vunpack.c.l.b16 %v5292
      %v5821 = vpack.c.b16 %v5790, %v5789
      %v5822 = vpack.c.b16 %v5792, %v5791
      %v5823 = vpack.c.b16 %v5794, %v5793
      %v5824 = vpack.c.b16 %v5796, %v5795
      %v5825 = vpack.c.b16 %v5798, %v5797
      %v5826 = vpack.c.b16 %v5800, %v5799
      %v5827 = vpack.c.b16 %v5802, %v5801
      %v5828 = vpack.c.b16 %v5804, %v5803
      %v5829 = vpack.c.b16 %v5806, %v5805
      %v5830 = vpack.c.b16 %v5808, %v5807
      %v5831 = vpack.c.b16 %v5810, %v5809
      %v5832 = vpack.c.b16 %v5812, %v5811
      %v5833 = vpack.c.b16 %v5814, %v5813
      %v5834 = vpack.c.b16 %v5816, %v5815
      %v5835 = vpack.c.b16 %v5818, %v5817
      %v5836 = vpack.c.b16 %v5820, %v5819
      %5837 = vrot.lane.b32.xlu0 %v5821, 32
      %v5838 = vpop.permute.xlu0 %5837
      %5839 = vrot.lane.b32.xlu0 %v5822, 32
      %v5840 = vpop.permute.xlu0 %5839
      %5841 = vrot.lane.b32.xlu0 %v5823, 32
      %v5842 = vpop.permute.xlu0 %5841
      %5843 = vrot.lane.b32.xlu0 %v5824, 32
      %v5844 = vpop.permute.xlu0 %5843
      %5845 = vrot.lane.b32.xlu0 %v5825, 32
      %v5846 = vpop.permute.xlu0 %5845
      %5847 = vrot.lane.b32.xlu0 %v5826, 32
      %v5848 = vpop.permute.xlu0 %5847
      %5849 = vrot.lane.b32.xlu0 %v5827, 32
      %v5850 = vpop.permute.xlu0 %5849
      %5851 = vrot.lane.b32.xlu0 %v5828, 32
      %v5852 = vpop.permute.xlu0 %5851
      %5853 = vrot.lane.b32.xlu0 %v5829, 32
      %v5854 = vpop.permute.xlu0 %5853
      %5855 = vrot.lane.b32.xlu0 %v5830, 32
      %v5856 = vpop.permute.xlu0 %5855
      %5857 = vrot.lane.b32.xlu0 %v5831, 32
      %v5858 = vpop.permute.xlu0 %5857
      %5859 = vrot.lane.b32.xlu0 %v5832, 32
      %v5860 = vpop.permute.xlu0 %5859
      %5861 = vrot.lane.b32.xlu0 %v5833, 32
      %v5862 = vpop.permute.xlu0 %5861
      %5863 = vrot.lane.b32.xlu0 %v5834, 32
      %v5864 = vpop.permute.xlu0 %5863
      %5865 = vrot.lane.b32.xlu0 %v5835, 32
      %v5866 = vpop.permute.xlu0 %5865
      %5867 = vrot.lane.b32.xlu0 %v5836, 32
      %v5868 = vpop.permute.xlu0 %5867
      %v5901 = vunpack.c.l.b16 %v5327
      %v5902 = vunpack.c.l.b16 %v5328
      %v5903 = vunpack.c.l.b16 %v5329
      %v5904 = vunpack.c.l.b16 %v5330
      %v5905 = vunpack.c.l.b16 %v5331
      %v5906 = vunpack.c.l.b16 %v5332
      %v5907 = vunpack.c.l.b16 %v5333
      %v5908 = vunpack.c.l.b16 %v5334
      %v5909 = vunpack.c.l.b16 %v5335
      %v5910 = vunpack.c.l.b16 %v5336
      %v5911 = vunpack.c.l.b16 %v5337
      %v5912 = vunpack.c.l.b16 %v5338
      %v5913 = vunpack.c.l.b16 %v5339
      %v5914 = vunpack.c.l.b16 %v5340
      %v5915 = vunpack.c.l.b16 %v5341
      %v5916 = vunpack.c.l.b16 %v5342
      %v5917 = vunpack.c.l.b16 %v5343
      %v5918 = vunpack.c.l.b16 %v5344
      %v5919 = vunpack.c.l.b16 %v5345
      %v5920 = vunpack.c.l.b16 %v5346
      %v5921 = vunpack.c.l.b16 %v5347
      %v5922 = vunpack.c.l.b16 %v5348
      %v5923 = vunpack.c.l.b16 %v5349
      %v5924 = vunpack.c.l.b16 %v5350
      %v5925 = vunpack.c.l.b16 %v5351
      %v5926 = vunpack.c.l.b16 %v5352
      %v5927 = vunpack.c.l.b16 %v5353
      %v5928 = vunpack.c.l.b16 %v5354
      %v5929 = vunpack.c.l.b16 %v5355
      %v5930 = vunpack.c.l.b16 %v5356
      %v5931 = vunpack.c.l.b16 %v5357
      %v5932 = vunpack.c.l.b16 %v5358
      %v5933 = vpack.c.b16 %v5902, %v5901
      %v5934 = vpack.c.b16 %v5904, %v5903
      %v5935 = vpack.c.b16 %v5906, %v5905
      %v5936 = vpack.c.b16 %v5908, %v5907
      %v5937 = vpack.c.b16 %v5910, %v5909
      %v5938 = vpack.c.b16 %v5912, %v5911
      %v5939 = vpack.c.b16 %v5914, %v5913
      %v5940 = vpack.c.b16 %v5916, %v5915
      %v5941 = vpack.c.b16 %v5918, %v5917
      %v5942 = vpack.c.b16 %v5920, %v5919
      %v5943 = vpack.c.b16 %v5922, %v5921
      %v5944 = vpack.c.b16 %v5924, %v5923
      %v5945 = vpack.c.b16 %v5926, %v5925
      %v5946 = vpack.c.b16 %v5928, %v5927
      %v5947 = vpack.c.b16 %v5930, %v5929
      %v5948 = vpack.c.b16 %v5932, %v5931
      %5949 = vrot.lane.b32.xlu0 %v5933, 48
      %v5950 = vpop.permute.xlu0 %5949
      %5951 = vrot.lane.b32.xlu0 %v5934, 48
      %v5952 = vpop.permute.xlu0 %5951
      %5953 = vrot.lane.b32.xlu0 %v5935, 48
      %v5954 = vpop.permute.xlu0 %5953
      %5955 = vrot.lane.b32.xlu0 %v5936, 48
      %v5956 = vpop.permute.xlu0 %5955
      %5957 = vrot.lane.b32.xlu0 %v5937, 48
      %v5958 = vpop.permute.xlu0 %5957
      %5959 = vrot.lane.b32.xlu0 %v5938, 48
      %v5960 = vpop.permute.xlu0 %5959
      %5961 = vrot.lane.b32.xlu0 %v5939, 48
      %v5962 = vpop.permute.xlu0 %5961
      %5963 = vrot.lane.b32.xlu0 %v5940, 48
      %v5964 = vpop.permute.xlu0 %5963
      %5965 = vrot.lane.b32.xlu0 %v5941, 48
      %v5966 = vpop.permute.xlu0 %5965
      %5967 = vrot.lane.b32.xlu0 %v5942, 48
      %v5968 = vpop.permute.xlu0 %5967
      %5969 = vrot.lane.b32.xlu0 %v5943, 48
      %v5970 = vpop.permute.xlu0 %5969
      %5971 = vrot.lane.b32.xlu0 %v5944, 48
      %v5972 = vpop.permute.xlu0 %5971
      %5973 = vrot.lane.b32.xlu0 %v5945, 48
      %v5974 = vpop.permute.xlu0 %5973
      %5975 = vrot.lane.b32.xlu0 %v5946, 48
      %v5976 = vpop.permute.xlu0 %5975
      %5977 = vrot.lane.b32.xlu0 %v5947, 48
      %v5978 = vpop.permute.xlu0 %5977
      %5979 = vrot.lane.b32.xlu0 %v5948, 48
      %v5980 = vpop.permute.xlu0 %5979
      %v6013 = vunpack.c.l.b16 %v5393
      %v6014 = vunpack.c.l.b16 %v5394
      %v6015 = vunpack.c.l.b16 %v5395
      %v6016 = vunpack.c.l.b16 %v5396
      %v6017 = vunpack.c.l.b16 %v5397
      %v6018 = vunpack.c.l.b16 %v5398
      %v6019 = vunpack.c.l.b16 %v5399
      %v6020 = vunpack.c.l.b16 %v5400
      %v6021 = vunpack.c.l.b16 %v5401
      %v6022 = vunpack.c.l.b16 %v5402
      %v6023 = vunpack.c.l.b16 %v5403
      %v6024 = vunpack.c.l.b16 %v5404
      %v6025 = vunpack.c.l.b16 %v5405
      %v6026 = vunpack.c.l.b16 %v5406
      %v6027 = vunpack.c.l.b16 %v5407
      %v6028 = vunpack.c.l.b16 %v5408
      %v6029 = vunpack.c.l.b16 %v5409
      %v6030 = vunpack.c.l.b16 %v5410
      %v6031 = vunpack.c.l.b16 %v5411
      %v6032 = vunpack.c.l.b16 %v5412
      %v6033 = vunpack.c.l.b16 %v5413
      %v6034 = vunpack.c.l.b16 %v5414
      %v6035 = vunpack.c.l.b16 %v5415
      %v6036 = vunpack.c.l.b16 %v5416
      %v6037 = vunpack.c.l.b16 %v5417
      %v6038 = vunpack.c.l.b16 %v5418
      %v6039 = vunpack.c.l.b16 %v5419
      %v6040 = vunpack.c.l.b16 %v5420
      %v6041 = vunpack.c.l.b16 %v5421
      %v6042 = vunpack.c.l.b16 %v5422
      %v6043 = vunpack.c.l.b16 %v5423
      %v6044 = vunpack.c.l.b16 %v5424
      %v6045 = vpack.c.b16 %v6014, %v6013
      %v6046 = vpack.c.b16 %v6016, %v6015
      %v6047 = vpack.c.b16 %v6018, %v6017
      %v6048 = vpack.c.b16 %v6020, %v6019
      %v6049 = vpack.c.b16 %v6022, %v6021
      %v6050 = vpack.c.b16 %v6024, %v6023
      %v6051 = vpack.c.b16 %v6026, %v6025
      %v6052 = vpack.c.b16 %v6028, %v6027
      %v6053 = vpack.c.b16 %v6030, %v6029
      %v6054 = vpack.c.b16 %v6032, %v6031
      %v6055 = vpack.c.b16 %v6034, %v6033
      %v6056 = vpack.c.b16 %v6036, %v6035
      %v6057 = vpack.c.b16 %v6038, %v6037
      %v6058 = vpack.c.b16 %v6040, %v6039
      %v6059 = vpack.c.b16 %v6042, %v6041
      %v6060 = vpack.c.b16 %v6044, %v6043
      %6061 = vrot.lane.b32.xlu0 %v6045, 64
      %v6062 = vpop.permute.xlu0 %6061
      %6063 = vrot.lane.b32.xlu0 %v6046, 64
      %v6064 = vpop.permute.xlu0 %6063
      %6065 = vrot.lane.b32.xlu0 %v6047, 64
      %v6066 = vpop.permute.xlu0 %6065
      %6067 = vrot.lane.b32.xlu0 %v6048, 64
      %v6068 = vpop.permute.xlu0 %6067
      %6069 = vrot.lane.b32.xlu0 %v6049, 64
      %v6070 = vpop.permute.xlu0 %6069
      %6071 = vrot.lane.b32.xlu0 %v6050, 64
      %v6072 = vpop.permute.xlu0 %6071
      %6073 = vrot.lane.b32.xlu0 %v6051, 64
      %v6074 = vpop.permute.xlu0 %6073
      %6075 = vrot.lane.b32.xlu0 %v6052, 64
      %v6076 = vpop.permute.xlu0 %6075
      %6077 = vrot.lane.b32.xlu0 %v6053, 64
      %v6078 = vpop.permute.xlu0 %6077
      %6079 = vrot.lane.b32.xlu0 %v6054, 64
      %v6080 = vpop.permute.xlu0 %6079
      %6081 = vrot.lane.b32.xlu0 %v6055, 64
      %v6082 = vpop.permute.xlu0 %6081
      %6083 = vrot.lane.b32.xlu0 %v6056, 64
      %v6084 = vpop.permute.xlu0 %6083
      %6085 = vrot.lane.b32.xlu0 %v6057, 64
      %v6086 = vpop.permute.xlu0 %6085
      %6087 = vrot.lane.b32.xlu0 %v6058, 64
      %v6088 = vpop.permute.xlu0 %6087
      %6089 = vrot.lane.b32.xlu0 %v6059, 64
      %v6090 = vpop.permute.xlu0 %6089
      %6091 = vrot.lane.b32.xlu0 %v6060, 64
      %v6092 = vpop.permute.xlu0 %6091
      %v6125 = vunpack.c.l.b16 %v5459
      %v6126 = vunpack.c.l.b16 %v5460
      %v6127 = vunpack.c.l.b16 %v5461
      %v6128 = vunpack.c.l.b16 %v5462
      %v6129 = vunpack.c.l.b16 %v5463
      %v6130 = vunpack.c.l.b16 %v5464
      %v6131 = vunpack.c.l.b16 %v5465
      %v6132 = vunpack.c.l.b16 %v5466
      %v6133 = vunpack.c.l.b16 %v5467
      %v6134 = vunpack.c.l.b16 %v5468
      %v6135 = vunpack.c.l.b16 %v5469
      %v6136 = vunpack.c.l.b16 %v5470
      %v6137 = vunpack.c.l.b16 %v5471
      %v6138 = vunpack.c.l.b16 %v5472
      %v6139 = vunpack.c.l.b16 %v5473
      %v6140 = vunpack.c.l.b16 %v5474
      %v6141 = vunpack.c.l.b16 %v5475
      %v6142 = vunpack.c.l.b16 %v5476
      %v6143 = vunpack.c.l.b16 %v5477
      %v6144 = vunpack.c.l.b16 %v5478
      %v6145 = vunpack.c.l.b16 %v5479
      %v6146 = vunpack.c.l.b16 %v5480
      %v6147 = vunpack.c.l.b16 %v5481
      %v6148 = vunpack.c.l.b16 %v5482
      %v6149 = vunpack.c.l.b16 %v5483
      %v6150 = vunpack.c.l.b16 %v5484
      %v6151 = vunpack.c.l.b16 %v5485
      %v6152 = vunpack.c.l.b16 %v5486
      %v6153 = vunpack.c.l.b16 %v5487
      %v6154 = vunpack.c.l.b16 %v5488
      %v6155 = vunpack.c.l.b16 %v5489
      %v6156 = vunpack.c.l.b16 %v5490
      %v6157 = vpack.c.b16 %v6126, %v6125
      %v6158 = vpack.c.b16 %v6128, %v6127
      %v6159 = vpack.c.b16 %v6130, %v6129
      %v6160 = vpack.c.b16 %v6132, %v6131
      %v6161 = vpack.c.b16 %v6134, %v6133
      %v6162 = vpack.c.b16 %v6136, %v6135
      %v6163 = vpack.c.b16 %v6138, %v6137
      %v6164 = vpack.c.b16 %v6140, %v6139
      %v6165 = vpack.c.b16 %v6142, %v6141
      %v6166 = vpack.c.b16 %v6144, %v6143
      %v6167 = vpack.c.b16 %v6146, %v6145
      %v6168 = vpack.c.b16 %v6148, %v6147
      %v6169 = vpack.c.b16 %v6150, %v6149
      %v6170 = vpack.c.b16 %v6152, %v6151
      %v6171 = vpack.c.b16 %v6154, %v6153
      %v6172 = vpack.c.b16 %v6156, %v6155
      %6173 = vrot.lane.b32.xlu0 %v6157, 80
      %v6174 = vpop.permute.xlu0 %6173
      %6175 = vrot.lane.b32.xlu0 %v6158, 80
      %v6176 = vpop.permute.xlu0 %6175
      %6177 = vrot.lane.b32.xlu0 %v6159, 80
      %v6178 = vpop.permute.xlu0 %6177
      %6179 = vrot.lane.b32.xlu0 %v6160, 80
      %v6180 = vpop.permute.xlu0 %6179
      %6181 = vrot.lane.b32.xlu0 %v6161, 80
      %v6182 = vpop.permute.xlu0 %6181
      %6183 = vrot.lane.b32.xlu0 %v6162, 80
      %v6184 = vpop.permute.xlu0 %6183
      %6185 = vrot.lane.b32.xlu0 %v6163, 80
      %v6186 = vpop.permute.xlu0 %6185
      %6187 = vrot.lane.b32.xlu0 %v6164, 80
      %v6188 = vpop.permute.xlu0 %6187
      %6189 = vrot.lane.b32.xlu0 %v6165, 80
      %v6190 = vpop.permute.xlu0 %6189
      %6191 = vrot.lane.b32.xlu0 %v6166, 80
      %v6192 = vpop.permute.xlu0 %6191
      %6193 = vrot.lane.b32.xlu0 %v6167, 80
      %v6194 = vpop.permute.xlu0 %6193
      %6195 = vrot.lane.b32.xlu0 %v6168, 80
      %v6196 = vpop.permute.xlu0 %6195
      %6197 = vrot.lane.b32.xlu0 %v6169, 80
      %v6198 = vpop.permute.xlu0 %6197
      %6199 = vrot.lane.b32.xlu0 %v6170, 80
      %v6200 = vpop.permute.xlu0 %6199
      %6201 = vrot.lane.b32.xlu0 %v6171, 80
      %v6202 = vpop.permute.xlu0 %6201
      %6203 = vrot.lane.b32.xlu0 %v6172, 80
      %v6204 = vpop.permute.xlu0 %6203
      %v6209 = vunpack.c.l.b16 %v5495
      %v6210 = vunpack.c.l.b16 %v5496
      %v6211 = vunpack.c.l.b16 %v5497
      %v6212 = vunpack.c.l.b16 %v5498
      %v6213 = vpack.c.b16 %v6210, %v6209
      %v6214 = vpack.c.b16 %v6212, %v6211
      %6215 = vrot.lane.b32.xlu0 %v5711, 96
      %v6216 = vpop.permute.xlu0 %6215
      %6217 = vrot.lane.b32.xlu0 %v5712, 96
      %v6218 = vpop.permute.xlu0 %6217
      %6219 = vrot.lane.b32.xlu0 %v5713, 96
      %v6220 = vpop.permute.xlu0 %6219
      %6221 = vrot.lane.b32.xlu0 %v5714, 96
      %v6222 = vpop.permute.xlu0 %6221
      %6223 = vrot.lane.b32.xlu0 %v5715, 96
      %v6224 = vpop.permute.xlu0 %6223
      %6225 = vrot.lane.b32.xlu0 %v5716, 96
      %v6226 = vpop.permute.xlu0 %6225
      %6227 = vrot.lane.b32.xlu0 %v5717, 96
      %v6228 = vpop.permute.xlu0 %6227
      %6229 = vrot.lane.b32.xlu0 %v5718, 96
      %v6230 = vpop.permute.xlu0 %6229
      %6231 = vrot.lane.b32.xlu0 %v5719, 96
      %v6232 = vpop.permute.xlu0 %6231
      %6233 = vrot.lane.b32.xlu0 %v5720, 96
      %v6234 = vpop.permute.xlu0 %6233
      %6235 = vrot.lane.b32.xlu0 %v5721, 96
      %v6236 = vpop.permute.xlu0 %6235
      %6237 = vrot.lane.b32.xlu0 %v5722, 96
      %v6238 = vpop.permute.xlu0 %6237
      %6239 = vrot.lane.b32.xlu0 %v5723, 96
      %v6240 = vpop.permute.xlu0 %6239
      %6241 = vrot.lane.b32.xlu0 %v5724, 96
      %v6242 = vpop.permute.xlu0 %6241
      %6243 = vrot.lane.b32.xlu0 %v6213, 96
      %v6244 = vpop.permute.xlu0 %6243
      %6245 = vrot.lane.b32.xlu0 %v6214, 96
      %v6246 = vpop.permute.xlu0 %6245
      %v6279 = vunpack.c.l.b16 %v5533
      %v6280 = vunpack.c.l.b16 %v5534
      %v6281 = vunpack.c.l.b16 %v5535
      %v6282 = vunpack.c.l.b16 %v5536
      %v6283 = vunpack.c.l.b16 %v5537
      %v6284 = vunpack.c.l.b16 %v5538
      %v6285 = vunpack.c.l.b16 %v5539
      %v6286 = vunpack.c.l.b16 %v5540
      %v6287 = vunpack.c.l.b16 %v5541
      %v6288 = vunpack.c.l.b16 %v5542
      %v6289 = vunpack.c.l.b16 %v5543
      %v6290 = vunpack.c.l.b16 %v5544
      %v6291 = vunpack.c.l.b16 %v5545
      %v6292 = vunpack.c.l.b16 %v5546
      %v6293 = vunpack.c.l.b16 %v5547
      %v6294 = vunpack.c.l.b16 %v5548
      %v6295 = vunpack.c.l.b16 %v5549
      %v6296 = vunpack.c.l.b16 %v5550
      %v6297 = vunpack.c.l.b16 %v5551
      %v6298 = vunpack.c.l.b16 %v5552
      %v6299 = vunpack.c.l.b16 %v5553
      %v6300 = vunpack.c.l.b16 %v5554
      %v6301 = vunpack.c.l.b16 %v5555
      %v6302 = vunpack.c.l.b16 %v5556
      %v6303 = vunpack.c.l.b16 %v5557
      %v6304 = vunpack.c.l.b16 %v5558
      %v6305 = vunpack.c.l.b16 %v5559
      %v6306 = vunpack.c.l.b16 %v5560
      %v6307 = vunpack.c.l.b16 %v5561
      %v6308 = vunpack.c.l.b16 %v5562
      %v6309 = vunpack.c.l.b16 %v5563
      %v6310 = vunpack.c.l.b16 %v5564
      %v6311 = vpack.c.b16 %v6280, %v6279
      %v6312 = vpack.c.b16 %v6282, %v6281
      %v6313 = vpack.c.b16 %v6284, %v6283
      %v6314 = vpack.c.b16 %v6286, %v6285
      %v6315 = vpack.c.b16 %v6288, %v6287
      %v6316 = vpack.c.b16 %v6290, %v6289
      %v6317 = vpack.c.b16 %v6292, %v6291
      %v6318 = vpack.c.b16 %v6294, %v6293
      %v6319 = vpack.c.b16 %v6296, %v6295
      %v6320 = vpack.c.b16 %v6298, %v6297
      %v6321 = vpack.c.b16 %v6300, %v6299
      %v6322 = vpack.c.b16 %v6302, %v6301
      %v6323 = vpack.c.b16 %v6304, %v6303
      %v6324 = vpack.c.b16 %v6306, %v6305
      %v6325 = vpack.c.b16 %v6308, %v6307
      %v6326 = vpack.c.b16 %v6310, %v6309
      %6327 = vrot.lane.b32.xlu0 %v6311, 112
      %v6328 = vpop.permute.xlu0 %6327
      %6329 = vrot.lane.b32.xlu0 %v6312, 112
      %v6330 = vpop.permute.xlu0 %6329
      %6331 = vrot.lane.b32.xlu0 %v6313, 112
      %v6332 = vpop.permute.xlu0 %6331
      %6333 = vrot.lane.b32.xlu0 %v6314, 112
      %v6334 = vpop.permute.xlu0 %6333
      %6335 = vrot.lane.b32.xlu0 %v6315, 112
      %v6336 = vpop.permute.xlu0 %6335
      %6337 = vrot.lane.b32.xlu0 %v6316, 112
      %v6338 = vpop.permute.xlu0 %6337
      %6339 = vrot.lane.b32.xlu0 %v6317, 112
      %v6340 = vpop.permute.xlu0 %6339
      %6341 = vrot.lane.b32.xlu0 %v6318, 112
      %v6342 = vpop.permute.xlu0 %6341
      %6343 = vrot.lane.b32.xlu0 %v6319, 112
      %v6344 = vpop.permute.xlu0 %6343
      %6345 = vrot.lane.b32.xlu0 %v6320, 112
      %v6346 = vpop.permute.xlu0 %6345
      %6347 = vrot.lane.b32.xlu0 %v6321, 112
      %v6348 = vpop.permute.xlu0 %6347
      %6349 = vrot.lane.b32.xlu0 %v6322, 112
      %v6350 = vpop.permute.xlu0 %6349
      %6351 = vrot.lane.b32.xlu0 %v6323, 112
      %v6352 = vpop.permute.xlu0 %6351
      %6353 = vrot.lane.b32.xlu0 %v6324, 112
      %v6354 = vpop.permute.xlu0 %6353
      %6355 = vrot.lane.b32.xlu0 %v6325, 112
      %v6356 = vpop.permute.xlu0 %6355
      %6357 = vrot.lane.b32.xlu0 %v6326, 112
      %v6358 = vpop.permute.xlu0 %6357
      %v6361 = vsel %vm283, %v5629, %v5726
      %v6364 = vsel %vm283, %v5630, %v5728
      %v6367 = vsel %vm283, %v5631, %v5730
      %v6370 = vsel %vm283, %v5632, %v5732
      %v6373 = vsel %vm283, %v5633, %v5734
      %v6376 = vsel %vm283, %v5634, %v5736
      %v6379 = vsel %vm283, %v5635, %v5738
      %v6382 = vsel %vm283, %v5636, %v5740
      %v6385 = vsel %vm283, %v5637, %v5742
      %v6388 = vsel %vm283, %v5638, %v5744
      %v6391 = vsel %vm283, %v5639, %v5746
      %v6394 = vsel %vm283, %v5640, %v5748
      %v6397 = vsel %vm283, %v5641, %v5750
      %v6400 = vsel %vm283, %v5642, %v5752
      %v6403 = vsel %vm283, %v5643, %v5754
      %v6406 = vsel %vm283, %v5644, %v5756
      %v6408 = vsel %vm2287, %v6361, %v5838
      %v6410 = vsel %vm2287, %v6364, %v5840
      %v6412 = vsel %vm2287, %v6367, %v5842
      %v6414 = vsel %vm2287, %v6370, %v5844
      %v6416 = vsel %vm2287, %v6373, %v5846
      %v6418 = vsel %vm2287, %v6376, %v5848
      %v6420 = vsel %vm2287, %v6379, %v5850
      %v6422 = vsel %vm2287, %v6382, %v5852
      %v6424 = vsel %vm2287, %v6385, %v5854
      %v6426 = vsel %vm2287, %v6388, %v5856
      %v6428 = vsel %vm2287, %v6391, %v5858
      %v6430 = vsel %vm2287, %v6394, %v5860
      %v6432 = vsel %vm2287, %v6397, %v5862
      %v6434 = vsel %vm2287, %v6400, %v5864
      %v6436 = vsel %vm2287, %v6403, %v5866
      %v6438 = vsel %vm2287, %v6406, %v5868
      %v6440 = vsel %vm2320, %v6408, %v5950
      %v6442 = vsel %vm2320, %v6410, %v5952
      %v6444 = vsel %vm2320, %v6412, %v5954
      %v6446 = vsel %vm2320, %v6414, %v5956
      %v6448 = vsel %vm2320, %v6416, %v5958
      %v6450 = vsel %vm2320, %v6418, %v5960
      %v6452 = vsel %vm2320, %v6420, %v5962
      %v6454 = vsel %vm2320, %v6422, %v5964
      %v6456 = vsel %vm2320, %v6424, %v5966
      %v6458 = vsel %vm2320, %v6426, %v5968
      %v6460 = vsel %vm2320, %v6428, %v5970
      %v6462 = vsel %vm2320, %v6430, %v5972
      %v6464 = vsel %vm2320, %v6432, %v5974
      %v6466 = vsel %vm2320, %v6434, %v5976
      %v6468 = vsel %vm2320, %v6436, %v5978
      %v6470 = vsel %vm2320, %v6438, %v5980
      %v6472 = vsel %vm2353, %v6440, %v6062
      %v6474 = vsel %vm2353, %v6442, %v6064
      %v6476 = vsel %vm2353, %v6444, %v6066
      %v6478 = vsel %vm2353, %v6446, %v6068
      %v6480 = vsel %vm2353, %v6448, %v6070
      %v6482 = vsel %vm2353, %v6450, %v6072
      %v6484 = vsel %vm2353, %v6452, %v6074
      %v6486 = vsel %vm2353, %v6454, %v6076
      %v6488 = vsel %vm2353, %v6456, %v6078
      %v6490 = vsel %vm2353, %v6458, %v6080
      %v6492 = vsel %vm2353, %v6460, %v6082
      %v6494 = vsel %vm2353, %v6462, %v6084
      %v6496 = vsel %vm2353, %v6464, %v6086
      %v6498 = vsel %vm2353, %v6466, %v6088
      %v6500 = vsel %vm2353, %v6468, %v6090
      %v6502 = vsel %vm2353, %v6470, %v6092
      %v6504 = vsel %vm2386, %v6472, %v6174
      %v6506 = vsel %vm2386, %v6474, %v6176
      %v6508 = vsel %vm2386, %v6476, %v6178
      %v6510 = vsel %vm2386, %v6478, %v6180
      %v6512 = vsel %vm2386, %v6480, %v6182
      %v6514 = vsel %vm2386, %v6482, %v6184
      %v6516 = vsel %vm2386, %v6484, %v6186
      %v6518 = vsel %vm2386, %v6486, %v6188
      %v6520 = vsel %vm2386, %v6488, %v6190
      %v6522 = vsel %vm2386, %v6490, %v6192
      %v6524 = vsel %vm2386, %v6492, %v6194
      %v6526 = vsel %vm2386, %v6494, %v6196
      %v6528 = vsel %vm2386, %v6496, %v6198
      %v6530 = vsel %vm2386, %v6498, %v6200
      %v6532 = vsel %vm2386, %v6500, %v6202
      %v6534 = vsel %vm2386, %v6502, %v6204
      %v6536 = vsel %vm2419, %v6504, %v6216
      %v6538 = vsel %vm2419, %v6506, %v6218
      %v6540 = vsel %vm2419, %v6508, %v6220
      %v6542 = vsel %vm2419, %v6510, %v6222
      %v6544 = vsel %vm2419, %v6512, %v6224
      %v6546 = vsel %vm2419, %v6514, %v6226
      %v6548 = vsel %vm2419, %v6516, %v6228
      %v6550 = vsel %vm2419, %v6518, %v6230
      %v6552 = vsel %vm2419, %v6520, %v6232
      %v6554 = vsel %vm2419, %v6522, %v6234
      %v6556 = vsel %vm2419, %v6524, %v6236
      %v6558 = vsel %vm2419, %v6526, %v6238
      %v6560 = vsel %vm2419, %v6528, %v6240
      %v6562 = vsel %vm2419, %v6530, %v6242
      %v6564 = vsel %vm2419, %v6532, %v6244
      %v6566 = vsel %vm2419, %v6534, %v6246
      %v6568 = vsel %vm2452, %v6536, %v6328
      %v6571 = vsel %vm2452, %v6538, %v6330
      %v6574 = vsel %vm2452, %v6540, %v6332
      %v6577 = vsel %vm2452, %v6542, %v6334
      %v6580 = vsel %vm2452, %v6544, %v6336
      %v6583 = vsel %vm2452, %v6546, %v6338
      %v6586 = vsel %vm2452, %v6548, %v6340
      %v6589 = vsel %vm2452, %v6550, %v6342
      %v6592 = vsel %vm2452, %v6552, %v6344
      %v6595 = vsel %vm2452, %v6554, %v6346
      %v6598 = vsel %vm2452, %v6556, %v6348
      %v6601 = vsel %vm2452, %v6558, %v6350
      %v6604 = vsel %vm2452, %v6560, %v6352
      %v6607 = vsel %vm2452, %v6562, %v6354
      %v6610 = vsel %vm2452, %v6564, %v6356
      %v6613 = vsel %vm2452, %v6566, %v6358
      %v6615 = vpack.c.bf16 %v5136, %v5135
      %v6616 = vpack.c.bf16 %v5138, %v5137
      %v6617 = vpack.c.bf16 %v5140, %v5139
      %v6618 = vpack.c.bf16 %v5142, %v5141
      %v6619 = vpack.c.bf16 %v5144, %v5143
      %v6620 = vpack.c.bf16 %v5146, %v5145
      %v6621 = vpack.c.bf16 %v5148, %v5147
      %v6622 = vpack.c.bf16 %v5150, %v5149
      %v6623 = vpack.c.bf16 %v5152, %v5151
      %v6624 = vpack.c.bf16 %v5154, %v5153
      %v6625 = vpack.c.bf16 %v5156, %v5155
      %v6626 = vpack.c.bf16 %v5158, %v5157
      %v6627 = vpack.c.bf16 %v5160, %v5159
      %v6628 = vpack.c.bf16 %v5162, %v5161
      %v6629 = vpack.c.bf16 %v5164, %v5163
      %v6630 = vpack.c.bf16 %v5492, %v5491
      %v6633 = vunpack.c.l.b16 %v5035
      %v6634 = vunpack.c.l.b16 %v5036
      %v6635 = vpack.c.b16 %v6634, %v6633
      %v6638 = vsel %vm283, %v6615, 0
      %v6641 = vsel %vm283, %v6616, 0
      %v6644 = vsel %vm283, %v6617, 0
      %v6647 = vsel %vm283, %v6618, 0
      %v6650 = vsel %vm283, %v6619, 0
      %v6653 = vsel %vm283, %v6620, 0
      %v6656 = vsel %vm283, %v6621, 0
      %v6659 = vsel %vm283, %v6622, 0
      %v6662 = vsel %vm283, %v6623, 0
      %v6665 = vsel %vm283, %v6624, 0
      %v6668 = vsel %vm283, %v6625, 0
      %v6671 = vsel %vm283, %v6626, 0
      %v6674 = vsel %vm283, %v6627, 0
      %v6677 = vsel %vm283, %v6628, 0
      %v6680 = vsel %vm283, %v6629, 0
      %v6683 = vsel %vm283, %v6630, 0
      %6685 = vmatpush.bf16.msra.mxu0 0
      %6686 = vmatpush.bf16.msra.mxu0 0
      %6687 = vmatpush.bf16.msra.mxu0 0
      %6688 = vmatpush.bf16.msra.mxu0 0
      %6689 = vmatpush.bf16.msra.mxu0 0
      %6690 = vmatpush.bf16.msra.mxu0 0
      %6691 = vmatpush.bf16.msra.mxu0 0
      %6692 = vmatpush.bf16.msra.mxu0 %v6635
      %6693 = vmatmul.bf16.gmra.mxu0 %v6638
      %v6694 = vpop.f32.mrf.mxu0
      %v6695 = vadd.f32 0.0, %v6694
      %v6696 = vpop.f32.mrf.mxu0
      %v6697 = vadd.f32 0.0, %v6696
      %6698 = vmatmul.bf16.gmra.mxu0 %v6641
      %v6699 = vpop.f32.mrf.mxu0
      %v6700 = vadd.f32 0.0, %v6699
      %v6701 = vpop.f32.mrf.mxu0
      %v6702 = vadd.f32 0.0, %v6701
      %6703 = vmatmul.bf16.gmra.mxu0 %v6644
      %v6704 = vpop.f32.mrf.mxu0
      %v6705 = vadd.f32 0.0, %v6704
      %v6706 = vpop.f32.mrf.mxu0
      %v6707 = vadd.f32 0.0, %v6706
      %6708 = vmatmul.bf16.gmra.mxu0 %v6647
      %v6709 = vpop.f32.mrf.mxu0
      %v6710 = vadd.f32 0.0, %v6709
      %v6711 = vpop.f32.mrf.mxu0
      %v6712 = vadd.f32 0.0, %v6711
      %6713 = vmatmul.bf16.gmra.mxu0 %v6650
      %v6714 = vpop.f32.mrf.mxu0
      %v6715 = vadd.f32 0.0, %v6714
      %v6716 = vpop.f32.mrf.mxu0
      %v6717 = vadd.f32 0.0, %v6716
      %6718 = vmatmul.bf16.gmra.mxu0 %v6653
      %v6719 = vpop.f32.mrf.mxu0
      %v6720 = vadd.f32 0.0, %v6719
      %v6721 = vpop.f32.mrf.mxu0
      %v6722 = vadd.f32 0.0, %v6721
      %6723 = vmatmul.bf16.gmra.mxu0 %v6656
      %v6724 = vpop.f32.mrf.mxu0
      %v6725 = vadd.f32 0.0, %v6724
      %v6726 = vpop.f32.mrf.mxu0
      %v6727 = vadd.f32 0.0, %v6726
      %6728 = vmatmul.bf16.gmra.mxu0 %v6659
      %v6729 = vpop.f32.mrf.mxu0
      %v6730 = vadd.f32 0.0, %v6729
      %v6731 = vpop.f32.mrf.mxu0
      %v6732 = vadd.f32 0.0, %v6731
      %6733 = vmatmul.bf16.gmra.mxu0 %v6662
      %v6734 = vpop.f32.mrf.mxu0
      %v6735 = vadd.f32 0.0, %v6734
      %v6736 = vpop.f32.mrf.mxu0
      %v6737 = vadd.f32 0.0, %v6736
      %6738 = vmatmul.bf16.gmra.mxu0 %v6665
      %v6739 = vpop.f32.mrf.mxu0
      %v6740 = vadd.f32 0.0, %v6739
      %v6741 = vpop.f32.mrf.mxu0
      %v6742 = vadd.f32 0.0, %v6741
      %6743 = vmatmul.bf16.gmra.mxu0 %v6668
      %v6744 = vpop.f32.mrf.mxu0
      %v6745 = vadd.f32 0.0, %v6744
      %v6746 = vpop.f32.mrf.mxu0
      %v6747 = vadd.f32 0.0, %v6746
      %6748 = vmatmul.bf16.gmra.mxu0 %v6671
      %v6749 = vpop.f32.mrf.mxu0
      %v6750 = vadd.f32 0.0, %v6749
      %v6751 = vpop.f32.mrf.mxu0
      %v6752 = vadd.f32 0.0, %v6751
      %6753 = vmatmul.bf16.gmra.mxu0 %v6674
      %v6754 = vpop.f32.mrf.mxu0
      %v6755 = vadd.f32 0.0, %v6754
      %v6756 = vpop.f32.mrf.mxu0
      %v6757 = vadd.f32 0.0, %v6756
      %6758 = vmatmul.bf16.gmra.mxu0 %v6677
      %v6759 = vpop.f32.mrf.mxu0
      %v6760 = vadd.f32 0.0, %v6759
      %v6761 = vpop.f32.mrf.mxu0
      %v6762 = vadd.f32 0.0, %v6761
      %6763 = vmatmul.bf16.gmra.mxu0 %v6680
      %v6764 = vpop.f32.mrf.mxu0
      %v6765 = vadd.f32 0.0, %v6764
      %v6766 = vpop.f32.mrf.mxu0
      %v6767 = vadd.f32 0.0, %v6766
      %6768 = vmatmul.bf16.gmra.mxu0 %v6683
      %v6769 = vpop.f32.mrf.mxu0
      %v6770 = vadd.f32 0.0, %v6769
      %v6771 = vpop.f32.mrf.mxu0
      %v6772 = vadd.f32 0.0, %v6771
      %6773 = vdwg.mxu0
      %v6790 = vunpack.c.l.b16 %v5018
      %v6791 = vunpack.c.l.b16 %v5019
      %v6792 = vunpack.c.l.b16 %v5020
      %v6793 = vunpack.c.l.b16 %v5021
      %v6794 = vunpack.c.l.b16 %v5022
      %v6795 = vunpack.c.l.b16 %v5023
      %v6796 = vunpack.c.l.b16 %v5024
      %v6797 = vunpack.c.l.b16 %v5025
      %v6798 = vunpack.c.l.b16 %v5026
      %v6799 = vunpack.c.l.b16 %v5027
      %v6800 = vunpack.c.l.b16 %v5028
      %v6801 = vunpack.c.l.b16 %v5029
      %v6802 = vunpack.c.l.b16 %v5030
      %v6803 = vunpack.c.l.b16 %v5031
      %v6804 = vunpack.c.l.b16 %v5032
      %v6805 = vunpack.c.l.b16 %v5033
      %v6806 = vpack.c.b16 %v6791, %v6790
      %v6807 = vpack.c.b16 %v6793, %v6792
      %v6808 = vpack.c.b16 %v6795, %v6794
      %v6809 = vpack.c.b16 %v6797, %v6796
      %v6810 = vpack.c.b16 %v6799, %v6798
      %v6811 = vpack.c.b16 %v6801, %v6800
      %v6812 = vpack.c.b16 %v6803, %v6802
      %v6813 = vpack.c.b16 %v6805, %v6804
      %6822 = vmatpush.bf16.msra.mxu0 %v6813
      %6823 = vmatpush.bf16.msra.mxu0 %v6812
      %6824 = vmatpush.bf16.msra.mxu0 %v6811
      %6825 = vmatpush.bf16.msra.mxu0 %v6810
      %6826 = vmatpush.bf16.msra.mxu0 %v6809
      %6827 = vmatpush.bf16.msra.mxu0 %v6808
      %6828 = vmatpush.bf16.msra.mxu0 %v6807
      %6829 = vmatpush.bf16.msra.mxu0 %v6806
      %6830 = vmatmul.bf16.gmra.mxu0 %v6568
      %v6831 = vpop.f32.mrf.mxu0
      %v6832 = vadd.f32 %v6695, %v6831
      %v6833 = vpop.f32.mrf.mxu0
      %v6834 = vadd.f32 %v6697, %v6833
      %6835 = vmatmul.bf16.gmra.mxu0 %v6571
      %v6836 = vpop.f32.mrf.mxu0
      %v6837 = vadd.f32 %v6700, %v6836
      %v6838 = vpop.f32.mrf.mxu0
      %v6839 = vadd.f32 %v6702, %v6838
      %6840 = vmatmul.bf16.gmra.mxu0 %v6574
      %v6841 = vpop.f32.mrf.mxu0
      %v6842 = vadd.f32 %v6705, %v6841
      %v6843 = vpop.f32.mrf.mxu0
      %v6844 = vadd.f32 %v6707, %v6843
      %6845 = vmatmul.bf16.gmra.mxu0 %v6577
      %v6846 = vpop.f32.mrf.mxu0
      %v6847 = vadd.f32 %v6710, %v6846
      %v6848 = vpop.f32.mrf.mxu0
      %v6849 = vadd.f32 %v6712, %v6848
      %6850 = vmatmul.bf16.gmra.mxu0 %v6580
      %v6851 = vpop.f32.mrf.mxu0
      %v6852 = vadd.f32 %v6715, %v6851
      %v6853 = vpop.f32.mrf.mxu0
      %v6854 = vadd.f32 %v6717, %v6853
      %6855 = vmatmul.bf16.gmra.mxu0 %v6583
      %v6856 = vpop.f32.mrf.mxu0
      %v6857 = vadd.f32 %v6720, %v6856
      %v6858 = vpop.f32.mrf.mxu0
      %v6859 = vadd.f32 %v6722, %v6858
      %6860 = vmatmul.bf16.gmra.mxu0 %v6586
      %v6861 = vpop.f32.mrf.mxu0
      %v6862 = vadd.f32 %v6725, %v6861
      %v6863 = vpop.f32.mrf.mxu0
      %v6864 = vadd.f32 %v6727, %v6863
      %6865 = vmatmul.bf16.gmra.mxu0 %v6589
      %v6866 = vpop.f32.mrf.mxu0
      %v6867 = vadd.f32 %v6730, %v6866
      %v6868 = vpop.f32.mrf.mxu0
      %v6869 = vadd.f32 %v6732, %v6868
      %6870 = vmatmul.bf16.gmra.mxu0 %v6592
      %v6871 = vpop.f32.mrf.mxu0
      %v6872 = vadd.f32 %v6735, %v6871
      %v6873 = vpop.f32.mrf.mxu0
      %v6874 = vadd.f32 %v6737, %v6873
      %6875 = vmatmul.bf16.gmra.mxu0 %v6595
      %v6876 = vpop.f32.mrf.mxu0
      %v6877 = vadd.f32 %v6740, %v6876
      %v6878 = vpop.f32.mrf.mxu0
      %v6879 = vadd.f32 %v6742, %v6878
      %6880 = vmatmul.bf16.gmra.mxu0 %v6598
      %v6881 = vpop.f32.mrf.mxu0
      %v6882 = vadd.f32 %v6745, %v6881
      %v6883 = vpop.f32.mrf.mxu0
      %v6884 = vadd.f32 %v6747, %v6883
      %6885 = vmatmul.bf16.gmra.mxu0 %v6601
      %v6886 = vpop.f32.mrf.mxu0
      %v6887 = vadd.f32 %v6750, %v6886
      %v6888 = vpop.f32.mrf.mxu0
      %v6889 = vadd.f32 %v6752, %v6888
      %6890 = vmatmul.bf16.gmra.mxu0 %v6604
      %v6891 = vpop.f32.mrf.mxu0
      %v6892 = vadd.f32 %v6755, %v6891
      %v6893 = vpop.f32.mrf.mxu0
      %v6894 = vadd.f32 %v6757, %v6893
      %6895 = vmatmul.bf16.gmra.mxu0 %v6607
      %v6896 = vpop.f32.mrf.mxu0
      %v6897 = vadd.f32 %v6760, %v6896
      %v6898 = vpop.f32.mrf.mxu0
      %v6899 = vadd.f32 %v6762, %v6898
      %6900 = vmatmul.bf16.gmra.mxu0 %v6610
      %v6901 = vpop.f32.mrf.mxu0
      %v6902 = vadd.f32 %v6765, %v6901
      %v6903 = vpop.f32.mrf.mxu0
      %v6904 = vadd.f32 %v6767, %v6903
      %6905 = vmatmul.bf16.gmra.mxu0 %v6613
      %v6906 = vpop.f32.mrf.mxu0
      %v6907 = vadd.f32 %v6770, %v6906
      %v6908 = vpop.f32.mrf.mxu0
      %v6909 = vadd.f32 %v6772, %v6908
      %6910 = vdwg.mxu0
      %s6911 = scalar_lea.vmem %s5, 1
      %v6912 = vld [vmem:[%s6911] sm:$0x1]
      %v6914 = vperm.slane %v6912, 0
      %v6916 = vadd.f32 %v6832, %v6914
      %v6917 = vadd.f32 %v6834, %v6914
      %v6918 = vadd.f32 %v6837, %v6914
      %v6919 = vadd.f32 %v6839, %v6914
      %v6920 = vadd.f32 %v6842, %v6914
      %v6921 = vadd.f32 %v6844, %v6914
      %v6922 = vadd.f32 %v6847, %v6914
      %v6923 = vadd.f32 %v6849, %v6914
      %v6924 = vadd.f32 %v6852, %v6914
      %v6925 = vadd.f32 %v6854, %v6914
      %v6926 = vadd.f32 %v6857, %v6914
      %v6927 = vadd.f32 %v6859, %v6914
      %v6928 = vadd.f32 %v6862, %v6914
      %v6929 = vadd.f32 %v6864, %v6914
      %v6930 = vadd.f32 %v6867, %v6914
      %v6931 = vadd.f32 %v6869, %v6914
      %v6932 = vadd.f32 %v6872, %v6914
      %v6933 = vadd.f32 %v6874, %v6914
      %v6934 = vadd.f32 %v6877, %v6914
      %v6935 = vadd.f32 %v6879, %v6914
      %v6936 = vadd.f32 %v6882, %v6914
      %v6937 = vadd.f32 %v6884, %v6914
      %v6938 = vadd.f32 %v6887, %v6914
      %v6939 = vadd.f32 %v6889, %v6914
      %v6940 = vadd.f32 %v6892, %v6914
      %v6941 = vadd.f32 %v6894, %v6914
      %v6942 = vadd.f32 %v6897, %v6914
      %v6943 = vadd.f32 %v6899, %v6914
      %v6944 = vadd.f32 %v6902, %v6914
      %v6945 = vadd.f32 %v6904, %v6914
      %v6946 = vadd.f32 %v6907, %v6914
      %v6947 = vadd.f32 %v6909, %v6914
      %v6948 = vmax.f32 %v6916, 0.0
      %v6949 = vmax.f32 %v6917, 0.0
      %v6950 = vmax.f32 %v6918, 0.0
      %v6951 = vmax.f32 %v6919, 0.0
      %v6952 = vmax.f32 %v6920, 0.0
      %v6953 = vmax.f32 %v6921, 0.0
      %v6954 = vmax.f32 %v6922, 0.0
      %v6955 = vmax.f32 %v6923, 0.0
      %v6956 = vmax.f32 %v6924, 0.0
      %v6957 = vmax.f32 %v6925, 0.0
      %v6958 = vmax.f32 %v6926, 0.0
      %v6959 = vmax.f32 %v6927, 0.0
      %v6960 = vmax.f32 %v6928, 0.0
      %v6961 = vmax.f32 %v6929, 0.0
      %v6962 = vmax.f32 %v6930, 0.0
      %v6963 = vmax.f32 %v6931, 0.0
      %v6964 = vmax.f32 %v6932, 0.0
      %v6965 = vmax.f32 %v6933, 0.0
      %v6966 = vmax.f32 %v6934, 0.0
      %v6967 = vmax.f32 %v6935, 0.0
      %v6968 = vmax.f32 %v6936, 0.0
      %v6969 = vmax.f32 %v6937, 0.0
      %v6970 = vmax.f32 %v6938, 0.0
      %v6971 = vmax.f32 %v6939, 0.0
      %v6972 = vmax.f32 %v6940, 0.0
      %v6973 = vmax.f32 %v6941, 0.0
      %v6974 = vmax.f32 %v6942, 0.0
      %v6975 = vmax.f32 %v6943, 0.0
      %v6976 = vmax.f32 %v6944, 0.0
      %v6977 = vmax.f32 %v6945, 0.0
      %v6978 = vmax.f32 %v6946, 0.0
      %v6979 = vmax.f32 %v6947, 0.0
      %6980 = vst.msk [vmem:[#allocation2 + $0x18] sm:$0xff] %vm283, %v6948
      %6981 = vst.msk [vmem:[#allocation2 + $0x20] sm:$0xff] %vm283, %v6949
      %6982 = vst.msk [vmem:[#allocation2 + $0x28] sm:$0xff] %vm283, %v6950
      %6983 = vst.msk [vmem:[#allocation2 + $0x30] sm:$0xff] %vm283, %v6951
      %6984 = vst.msk [vmem:[#allocation2 + $0x38] sm:$0xff] %vm283, %v6952
      %6985 = vst.msk [vmem:[#allocation2 + $0x40] sm:$0xff] %vm283, %v6953
      %6986 = vst.msk [vmem:[#allocation2 + $0x48] sm:$0xff] %vm283, %v6954
      %6987 = vst.msk [vmem:[#allocation2 + $0x50] sm:$0xff] %vm283, %v6955
      %6988 = vst.msk [vmem:[#allocation2 + $0x58] sm:$0xff] %vm283, %v6956
      %6989 = vst.msk [vmem:[#allocation2 + $0x60] sm:$0xff] %vm283, %v6957
      %6990 = vst.msk [vmem:[#allocation2 + $0x68] sm:$0xff] %vm283, %v6958
      %6991 = vst.msk [vmem:[#allocation2 + $0x70] sm:$0xff] %vm283, %v6959
      %6992 = vst.msk [vmem:[#allocation2 + $0x78] sm:$0xff] %vm283, %v6960
      %6993 = vst.msk [vmem:[#allocation2 + $0x80] sm:$0xff] %vm283, %v6961
      %6994 = vst.msk [vmem:[#allocation2 + $0x88] sm:$0xff] %vm283, %v6962
      %6995 = vst.msk [vmem:[#allocation2 + $0x90] sm:$0xff] %vm283, %v6963
      %6996 = vst.msk [vmem:[#allocation2 + $0x98] sm:$0xff] %vm283, %v6964
      %6997 = vst.msk [vmem:[#allocation2 + $0xa0] sm:$0xff] %vm283, %v6965
      %6998 = vst.msk [vmem:[#allocation2 + $0xa8] sm:$0xff] %vm283, %v6966
      %6999 = vst.msk [vmem:[#allocation2 + $0xb0] sm:$0xff] %vm283, %v6967
      %7000 = vst.msk [vmem:[#allocation2 + $0xb8] sm:$0xff] %vm283, %v6968
      %7001 = vst.msk [vmem:[#allocation2 + $0xc0] sm:$0xff] %vm283, %v6969
      %7002 = vst.msk [vmem:[#allocation2 + $0xc8] sm:$0xff] %vm283, %v6970
      %7003 = vst.msk [vmem:[#allocation2 + $0xd0] sm:$0xff] %vm283, %v6971
      %7004 = vst.msk [vmem:[#allocation2 + $0xd8] sm:$0xff] %vm283, %v6972
      %7005 = vst.msk [vmem:[#allocation2 + $0xe0] sm:$0xff] %vm283, %v6973
      %7006 = vst.msk [vmem:[#allocation2 + $0xe8] sm:$0xff] %vm283, %v6974
      %7007 = vst.msk [vmem:[#allocation2 + $0xf0] sm:$0xff] %vm283, %v6975
      %7008 = vst.msk [vmem:[#allocation2 + $0xf8] sm:$0xff] %vm283, %v6976
      %7009 = vst.msk [vmem:[#allocation2 + $0x100] sm:$0xff] %vm283, %v6977
      %7010 = vst.msk [vmem:[#allocation2 + $0x108] sm:$0xff] %vm283, %v6978
      %7011 = vst.msk [vmem:[#allocation2 + $0x110] sm:$0xff] %vm283, %v6979
      %s7012 = scalar_lea.vmem %s3, 64
      %v7013 = vld [vmem:[%s7012] sm:$0xf]
      %v7014 = vld [vmem:[%s7012 + $0x4] sm:$0xf]
      %v7015 = vld [vmem:[%s7012 + $0x8] sm:$0xf]
      %v7016 = vld [vmem:[%s7012 + $0xc] sm:$0xf]
      %v7017 = vld [vmem:[%s7012 + $0x10] sm:$0xf]
      %v7018 = vld [vmem:[%s7012 + $0x14] sm:$0xf]
      %v7019 = vld [vmem:[%s7012 + $0x18] sm:$0xf]
      %v7020 = vld [vmem:[%s7012 + $0x1c] sm:$0xf]
      %v7021 = vld [vmem:[%s7012 + $0x20] sm:$0xf]
      %v7022 = vld [vmem:[%s7012 + $0x24] sm:$0xf]
      %v7023 = vld [vmem:[%s7012 + $0x28] sm:$0xf]
      %v7024 = vld [vmem:[%s7012 + $0x2c] sm:$0xf]
      %v7025 = vld [vmem:[%s7012 + $0x30] sm:$0xf]
      %v7026 = vld [vmem:[%s7012 + $0x34] sm:$0xf]
      %v7027 = vld [vmem:[%s7012 + $0x38] sm:$0xf]
      %v7028 = vld [vmem:[%s7012 + $0x3c] sm:$0xf]
      %s7029 = scalar_lea.vmem %s4, 8
      %v7030 = vld [vmem:[%s7029] sm:$0xf]
      %v7031 = vld [vmem:[%s7029 + $0x4] sm:$0xf]
      %v7032 = vld [vmem:[#allocation2 + $0x7] sm:$0xff]
      %v7033 = vld [vmem:[#allocation2 + $0xf] sm:$0xff]
      %v7034 = vld [vmem:[#allocation2 + $0x17] sm:$0xff]
      %v7035 = vld [vmem:[#allocation2 + $0x1f] sm:$0xff]
      %v7036 = vld [vmem:[#allocation2 + $0x27] sm:$0xff]
      %v7037 = vld [vmem:[#allocation2 + $0x2f] sm:$0xff]
      %v7038 = vld [vmem:[#allocation2 + $0x37] sm:$0xff]
      %v7039 = vld [vmem:[#allocation2 + $0x3f] sm:$0xff]
      %v7040 = vld [vmem:[#allocation2 + $0x47] sm:$0xff]
      %v7041 = vld [vmem:[#allocation2 + $0x4f] sm:$0xff]
      %v7042 = vld [vmem:[#allocation2 + $0x57] sm:$0xff]
      %v7043 = vld [vmem:[#allocation2 + $0x5f] sm:$0xff]
      %v7044 = vld [vmem:[#allocation2 + $0x67] sm:$0xff]
      %v7045 = vld [vmem:[#allocation2 + $0x6f] sm:$0xff]
      %v7046 = vld [vmem:[#allocation2 + $0x77] sm:$0xff]
      %v7047 = vld [vmem:[#allocation2 + $0x7f] sm:$0xff]
      %v7048 = vld [vmem:[#allocation2 + $0x87] sm:$0xff]
      %v7049 = vld [vmem:[#allocation2 + $0x8f] sm:$0xff]
      %v7050 = vld [vmem:[#allocation2 + $0x97] sm:$0xff]
      %v7051 = vld [vmem:[#allocation2 + $0x9f] sm:$0xff]
      %v7052 = vld [vmem:[#allocation2 + $0xa7] sm:$0xff]
      %v7053 = vld [vmem:[#allocation2 + $0xaf] sm:$0xff]
      %v7054 = vld [vmem:[#allocation2 + $0xb7] sm:$0xff]
      %v7055 = vld [vmem:[#allocation2 + $0xbf] sm:$0xff]
      %v7056 = vld [vmem:[#allocation2 + $0xc7] sm:$0xff]
      %v7057 = vld [vmem:[#allocation2 + $0xcf] sm:$0xff]
      %v7058 = vld [vmem:[#allocation2 + $0xd7] sm:$0xff]
      %v7059 = vld [vmem:[#allocation2 + $0xdf] sm:$0xff]
      %v7060 = vld [vmem:[#allocation2 + $0xe7] sm:$0xff]
      %v7061 = vld [vmem:[#allocation2 + $0xef] sm:$0xff]
      %v7062 = vld [vmem:[#allocation2 + $0xf7] sm:$0xff]
      %v7063 = vld [vmem:[#allocation2 + $0xff] sm:$0xff]
      %v7064 = vsel %vm707, %v7032, 0.0
      %v7065 = vsel %vm708, %v7033, 0.0
      %v7066 = vsel %vm709, %v7034, 0.0
      %v7067 = vsel %vm710, %v7035, 0.0
      %v7068 = vsel %vm711, %v7036, 0.0
      %v7069 = vsel %vm712, %v7037, 0.0
      %v7070 = vsel %vm713, %v7038, 0.0
      %v7071 = vsel %vm714, %v7039, 0.0
      %v7072 = vsel %vm715, %v7040, 0.0
      %v7073 = vsel %vm716, %v7041, 0.0
      %v7074 = vsel %vm717, %v7042, 0.0
      %v7075 = vsel %vm718, %v7043, 0.0
      %v7076 = vsel %vm719, %v7044, 0.0
      %v7077 = vsel %vm720, %v7045, 0.0
      %v7078 = vsel %vm721, %v7046, 0.0
      %v7079 = vsel %vm722, %v7047, 0.0
      %v7080 = vsel %vm723, %v7048, 0.0
      %v7081 = vsel %vm724, %v7049, 0.0
      %v7082 = vsel %vm725, %v7050, 0.0
      %v7083 = vsel %vm726, %v7051, 0.0
      %v7084 = vsel %vm727, %v7052, 0.0
      %v7085 = vsel %vm728, %v7053, 0.0
      %v7086 = vsel %vm729, %v7054, 0.0
      %v7087 = vsel %vm730, %v7055, 0.0
      %v7088 = vsel %vm731, %v7056, 0.0
      %v7089 = vsel %vm732, %v7057, 0.0
      %v7090 = vsel %vm733, %v7058, 0.0
      %v7091 = vsel %vm734, %v7059, 0.0
      %v7092 = vsel %vm735, %v7060, 0.0
      %v7093 = vsel %vm736, %v7061, 0.0
      %v7094 = vsel %vm737, %v7062, 0.0
      %v7095 = vsel %vm738, %v7063, 0.0
      %v7096 = vpack.c.bf16 %v7064, %v7064
      %v7097 = vpack.c.bf16 %v7065, %v7065
      %v7098 = vpack.c.bf16 %v7066, %v7066
      %v7099 = vpack.c.bf16 %v7067, %v7067
      %v7100 = vpack.c.bf16 %v7068, %v7068
      %v7101 = vpack.c.bf16 %v7069, %v7069
      %v7102 = vpack.c.bf16 %v7070, %v7070
      %v7103 = vpack.c.bf16 %v7071, %v7071
      %v7104 = vpack.c.bf16 %v7072, %v7072
      %v7105 = vpack.c.bf16 %v7073, %v7073
      %v7106 = vpack.c.bf16 %v7074, %v7074
      %v7107 = vpack.c.bf16 %v7075, %v7075
      %v7108 = vpack.c.bf16 %v7076, %v7076
      %v7109 = vpack.c.bf16 %v7077, %v7077
      %v7110 = vpack.c.bf16 %v7078, %v7078
      %v7111 = vpack.c.bf16 %v7079, %v7079
      %v7112 = vpack.c.bf16 %v7080, %v7080
      %v7113 = vpack.c.bf16 %v7081, %v7081
      %v7114 = vpack.c.bf16 %v7082, %v7082
      %v7115 = vpack.c.bf16 %v7083, %v7083
      %v7116 = vpack.c.bf16 %v7084, %v7084
      %v7117 = vpack.c.bf16 %v7085, %v7085
      %v7118 = vpack.c.bf16 %v7086, %v7086
      %v7119 = vpack.c.bf16 %v7087, %v7087
      %v7120 = vpack.c.bf16 %v7088, %v7088
      %v7121 = vpack.c.bf16 %v7089, %v7089
      %v7122 = vpack.c.bf16 %v7090, %v7090
      %v7123 = vpack.c.bf16 %v7091, %v7091
      %v7124 = vpack.c.bf16 %v7092, %v7092
      %v7125 = vpack.c.bf16 %v7093, %v7093
      %v7126 = vpack.c.bf16 %v7094, %v7094
      %v7127 = vpack.c.bf16 %v7095, %v7095
      %v7128 = vld [vmem:[#allocation2 + $0x8] sm:$0xff]
      %v7129 = vld [vmem:[#allocation2 + $0x10] sm:$0xff]
      %v7130 = vld [vmem:[#allocation2 + $0x18] sm:$0xff]
      %v7131 = vld [vmem:[#allocation2 + $0x20] sm:$0xff]
      %v7132 = vld [vmem:[#allocation2 + $0x28] sm:$0xff]
      %v7133 = vld [vmem:[#allocation2 + $0x30] sm:$0xff]
      %v7134 = vld [vmem:[#allocation2 + $0x38] sm:$0xff]
      %v7135 = vld [vmem:[#allocation2 + $0x40] sm:$0xff]
      %v7136 = vld [vmem:[#allocation2 + $0x48] sm:$0xff]
      %v7137 = vld [vmem:[#allocation2 + $0x50] sm:$0xff]
      %v7138 = vld [vmem:[#allocation2 + $0x58] sm:$0xff]
      %v7139 = vld [vmem:[#allocation2 + $0x60] sm:$0xff]
      %v7140 = vld [vmem:[#allocation2 + $0x68] sm:$0xff]
      %v7141 = vld [vmem:[#allocation2 + $0x70] sm:$0xff]
      %v7142 = vld [vmem:[#allocation2 + $0x78] sm:$0xff]
      %v7143 = vld [vmem:[#allocation2 + $0x80] sm:$0xff]
      %v7144 = vld [vmem:[#allocation2 + $0x88] sm:$0xff]
      %v7145 = vld [vmem:[#allocation2 + $0x90] sm:$0xff]
      %v7146 = vld [vmem:[#allocation2 + $0x98] sm:$0xff]
      %v7147 = vld [vmem:[#allocation2 + $0xa0] sm:$0xff]
      %v7148 = vld [vmem:[#allocation2 + $0xa8] sm:$0xff]
      %v7149 = vld [vmem:[#allocation2 + $0xb0] sm:$0xff]
      %v7150 = vld [vmem:[#allocation2 + $0xb8] sm:$0xff]
      %v7151 = vld [vmem:[#allocation2 + $0xc0] sm:$0xff]
      %v7152 = vld [vmem:[#allocation2 + $0xc8] sm:$0xff]
      %v7153 = vld [vmem:[#allocation2 + $0xd0] sm:$0xff]
      %v7154 = vld [vmem:[#allocation2 + $0xd8] sm:$0xff]
      %v7155 = vld [vmem:[#allocation2 + $0xe0] sm:$0xff]
      %v7156 = vld [vmem:[#allocation2 + $0xe8] sm:$0xff]
      %v7157 = vld [vmem:[#allocation2 + $0xf0] sm:$0xff]
      %v7158 = vld [vmem:[#allocation2 + $0xf8] sm:$0xff]
      %v7159 = vld [vmem:[#allocation2 + $0x100] sm:$0xff]
      %v7160 = vpack.c.bf16 %v7128, %v7128
      %v7161 = vpack.c.bf16 %v7129, %v7129
      %v7162 = vpack.c.bf16 %v7130, %v7130
      %v7163 = vpack.c.bf16 %v7131, %v7131
      %v7164 = vpack.c.bf16 %v7132, %v7132
      %v7165 = vpack.c.bf16 %v7133, %v7133
      %v7166 = vpack.c.bf16 %v7134, %v7134
      %v7167 = vpack.c.bf16 %v7135, %v7135
      %v7168 = vpack.c.bf16 %v7136, %v7136
      %v7169 = vpack.c.bf16 %v7137, %v7137
      %v7170 = vpack.c.bf16 %v7138, %v7138
      %v7171 = vpack.c.bf16 %v7139, %v7139
      %v7172 = vpack.c.bf16 %v7140, %v7140
      %v7173 = vpack.c.bf16 %v7141, %v7141
      %v7174 = vpack.c.bf16 %v7142, %v7142
      %v7175 = vpack.c.bf16 %v7143, %v7143
      %v7176 = vpack.c.bf16 %v7144, %v7144
      %v7177 = vpack.c.bf16 %v7145, %v7145
      %v7178 = vpack.c.bf16 %v7146, %v7146
      %v7179 = vpack.c.bf16 %v7147, %v7147
      %v7180 = vpack.c.bf16 %v7148, %v7148
      %v7181 = vpack.c.bf16 %v7149, %v7149
      %v7182 = vpack.c.bf16 %v7150, %v7150
      %v7183 = vpack.c.bf16 %v7151, %v7151
      %v7184 = vpack.c.bf16 %v7152, %v7152
      %v7185 = vpack.c.bf16 %v7153, %v7153
      %v7186 = vpack.c.bf16 %v7154, %v7154
      %v7187 = vpack.c.bf16 %v7155, %v7155
      %v7188 = vpack.c.bf16 %v7156, %v7156
      %v7189 = vpack.c.bf16 %v7157, %v7157
      %v7190 = vpack.c.bf16 %v7158, %v7158
      %v7191 = vpack.c.bf16 %v7159, %v7159
      %v7192 = vld [vmem:[#allocation2 + $0x9] sm:$0xff]
      %v7193 = vld [vmem:[#allocation2 + $0x11] sm:$0xff]
      %v7194 = vld [vmem:[#allocation2 + $0x19] sm:$0xff]
      %v7195 = vld [vmem:[#allocation2 + $0x21] sm:$0xff]
      %v7196 = vld [vmem:[#allocation2 + $0x29] sm:$0xff]
      %v7197 = vld [vmem:[#allocation2 + $0x31] sm:$0xff]
      %v7198 = vld [vmem:[#allocation2 + $0x39] sm:$0xff]
      %v7199 = vld [vmem:[#allocation2 + $0x41] sm:$0xff]
      %v7200 = vld [vmem:[#allocation2 + $0x49] sm:$0xff]
      %v7201 = vld [vmem:[#allocation2 + $0x51] sm:$0xff]
      %v7202 = vld [vmem:[#allocation2 + $0x59] sm:$0xff]
      %v7203 = vld [vmem:[#allocation2 + $0x61] sm:$0xff]
      %v7204 = vld [vmem:[#allocation2 + $0x69] sm:$0xff]
      %v7205 = vld [vmem:[#allocation2 + $0x71] sm:$0xff]
      %v7206 = vld [vmem:[#allocation2 + $0x79] sm:$0xff]
      %v7207 = vld [vmem:[#allocation2 + $0x81] sm:$0xff]
      %v7208 = vld [vmem:[#allocation2 + $0x89] sm:$0xff]
      %v7209 = vld [vmem:[#allocation2 + $0x91] sm:$0xff]
      %v7210 = vld [vmem:[#allocation2 + $0x99] sm:$0xff]
      %v7211 = vld [vmem:[#allocation2 + $0xa1] sm:$0xff]
      %v7212 = vld [vmem:[#allocation2 + $0xa9] sm:$0xff]
      %v7213 = vld [vmem:[#allocation2 + $0xb1] sm:$0xff]
      %v7214 = vld [vmem:[#allocation2 + $0xb9] sm:$0xff]
      %v7215 = vld [vmem:[#allocation2 + $0xc1] sm:$0xff]
      %v7216 = vld [vmem:[#allocation2 + $0xc9] sm:$0xff]
      %v7217 = vld [vmem:[#allocation2 + $0xd1] sm:$0xff]
      %v7218 = vld [vmem:[#allocation2 + $0xd9] sm:$0xff]
      %v7219 = vld [vmem:[#allocation2 + $0xe1] sm:$0xff]
      %v7220 = vld [vmem:[#allocation2 + $0xe9] sm:$0xff]
      %v7221 = vld [vmem:[#allocation2 + $0xf1] sm:$0xff]
      %v7222 = vld [vmem:[#allocation2 + $0xf9] sm:$0xff]
      %v7223 = vld [vmem:[#allocation2 + $0x101] sm:$0xff]
      %v7224 = vsel %vm739, %v7192, 0.0
      %v7225 = vsel %vm740, %v7193, 0.0
      %v7226 = vsel %vm741, %v7194, 0.0
      %v7227 = vsel %vm742, %v7195, 0.0
      %v7228 = vsel %vm743, %v7196, 0.0
      %v7229 = vsel %vm744, %v7197, 0.0
      %v7230 = vsel %vm745, %v7198, 0.0
      %v7231 = vsel %vm746, %v7199, 0.0
      %v7232 = vsel %vm747, %v7200, 0.0
      %v7233 = vsel %vm748, %v7201, 0.0
      %v7234 = vsel %vm749, %v7202, 0.0
      %v7235 = vsel %vm750, %v7203, 0.0
      %v7236 = vsel %vm751, %v7204, 0.0
      %v7237 = vsel %vm752, %v7205, 0.0
      %v7238 = vsel %vm753, %v7206, 0.0
      %v7239 = vsel %vm754, %v7207, 0.0
      %v7240 = vsel %vm755, %v7208, 0.0
      %v7241 = vsel %vm756, %v7209, 0.0
      %v7242 = vsel %vm757, %v7210, 0.0
      %v7243 = vsel %vm758, %v7211, 0.0
      %v7244 = vsel %vm759, %v7212, 0.0
      %v7245 = vsel %vm760, %v7213, 0.0
      %v7246 = vsel %vm761, %v7214, 0.0
      %v7247 = vsel %vm762, %v7215, 0.0
      %v7248 = vsel %vm763, %v7216, 0.0
      %v7249 = vsel %vm764, %v7217, 0.0
      %v7250 = vsel %vm765, %v7218, 0.0
      %v7251 = vsel %vm766, %v7219, 0.0
      %v7252 = vsel %vm767, %v7220, 0.0
      %v7253 = vsel %vm768, %v7221, 0.0
      %v7254 = vsel %vm769, %v7222, 0.0
      %v7255 = vsel %vm770, %v7223, 0.0
      %v7256 = vpack.c.bf16 %v7224, %v7224
      %v7257 = vpack.c.bf16 %v7225, %v7225
      %v7258 = vpack.c.bf16 %v7226, %v7226
      %v7259 = vpack.c.bf16 %v7227, %v7227
      %v7260 = vpack.c.bf16 %v7228, %v7228
      %v7261 = vpack.c.bf16 %v7229, %v7229
      %v7262 = vpack.c.bf16 %v7230, %v7230
      %v7263 = vpack.c.bf16 %v7231, %v7231
      %v7264 = vpack.c.bf16 %v7232, %v7232
      %v7265 = vpack.c.bf16 %v7233, %v7233
      %v7266 = vpack.c.bf16 %v7234, %v7234
      %v7267 = vpack.c.bf16 %v7235, %v7235
      %v7268 = vpack.c.bf16 %v7236, %v7236
      %v7269 = vpack.c.bf16 %v7237, %v7237
      %v7270 = vpack.c.bf16 %v7238, %v7238
      %v7271 = vpack.c.bf16 %v7239, %v7239
      %v7272 = vpack.c.bf16 %v7240, %v7240
      %v7273 = vpack.c.bf16 %v7241, %v7241
      %v7274 = vpack.c.bf16 %v7242, %v7242
      %v7275 = vpack.c.bf16 %v7243, %v7243
      %v7276 = vpack.c.bf16 %v7244, %v7244
      %v7277 = vpack.c.bf16 %v7245, %v7245
      %v7278 = vpack.c.bf16 %v7246, %v7246
      %v7279 = vpack.c.bf16 %v7247, %v7247
      %v7280 = vpack.c.bf16 %v7248, %v7248
      %v7281 = vpack.c.bf16 %v7249, %v7249
      %v7282 = vpack.c.bf16 %v7250, %v7250
      %v7283 = vpack.c.bf16 %v7251, %v7251
      %v7284 = vpack.c.bf16 %v7252, %v7252
      %v7285 = vpack.c.bf16 %v7253, %v7253
      %v7286 = vpack.c.bf16 %v7254, %v7254
      %v7287 = vpack.c.bf16 %v7255, %v7255
      %v7288 = vld [vmem:[#allocation2 + $0x107] sm:$0xff]
      %v7289 = vld [vmem:[#allocation2 + $0x10f] sm:$0xff]
      %v7290 = vsel %vm707, %v7034, 0.0
      %v7291 = vsel %vm708, %v7035, 0.0
      %v7292 = vsel %vm709, %v7036, 0.0
      %v7293 = vsel %vm710, %v7037, 0.0
      %v7294 = vsel %vm711, %v7038, 0.0
      %v7295 = vsel %vm712, %v7039, 0.0
      %v7296 = vsel %vm713, %v7040, 0.0
      %v7297 = vsel %vm714, %v7041, 0.0
      %v7298 = vsel %vm715, %v7042, 0.0
      %v7299 = vsel %vm716, %v7043, 0.0
      %v7300 = vsel %vm717, %v7044, 0.0
      %v7301 = vsel %vm718, %v7045, 0.0
      %v7302 = vsel %vm719, %v7046, 0.0
      %v7303 = vsel %vm720, %v7047, 0.0
      %v7304 = vsel %vm721, %v7048, 0.0
      %v7305 = vsel %vm722, %v7049, 0.0
      %v7306 = vsel %vm723, %v7050, 0.0
      %v7307 = vsel %vm724, %v7051, 0.0
      %v7308 = vsel %vm725, %v7052, 0.0
      %v7309 = vsel %vm726, %v7053, 0.0
      %v7310 = vsel %vm727, %v7054, 0.0
      %v7311 = vsel %vm728, %v7055, 0.0
      %v7312 = vsel %vm729, %v7056, 0.0
      %v7313 = vsel %vm730, %v7057, 0.0
      %v7314 = vsel %vm731, %v7058, 0.0
      %v7315 = vsel %vm732, %v7059, 0.0
      %v7316 = vsel %vm733, %v7060, 0.0
      %v7317 = vsel %vm734, %v7061, 0.0
      %v7318 = vsel %vm735, %v7062, 0.0
      %v7319 = vsel %vm736, %v7063, 0.0
      %v7320 = vsel %vm737, %v7288, 0.0
      %v7321 = vsel %vm738, %v7289, 0.0
      %v7322 = vpack.c.bf16 %v7290, %v7290
      %v7323 = vpack.c.bf16 %v7291, %v7291
      %v7324 = vpack.c.bf16 %v7292, %v7292
      %v7325 = vpack.c.bf16 %v7293, %v7293
      %v7326 = vpack.c.bf16 %v7294, %v7294
      %v7327 = vpack.c.bf16 %v7295, %v7295
      %v7328 = vpack.c.bf16 %v7296, %v7296
      %v7329 = vpack.c.bf16 %v7297, %v7297
      %v7330 = vpack.c.bf16 %v7298, %v7298
      %v7331 = vpack.c.bf16 %v7299, %v7299
      %v7332 = vpack.c.bf16 %v7300, %v7300
      %v7333 = vpack.c.bf16 %v7301, %v7301
      %v7334 = vpack.c.bf16 %v7302, %v7302
      %v7335 = vpack.c.bf16 %v7303, %v7303
      %v7336 = vpack.c.bf16 %v7304, %v7304
      %v7337 = vpack.c.bf16 %v7305, %v7305
      %v7338 = vpack.c.bf16 %v7306, %v7306
      %v7339 = vpack.c.bf16 %v7307, %v7307
      %v7340 = vpack.c.bf16 %v7308, %v7308
      %v7341 = vpack.c.bf16 %v7309, %v7309
      %v7342 = vpack.c.bf16 %v7310, %v7310
      %v7343 = vpack.c.bf16 %v7311, %v7311
      %v7344 = vpack.c.bf16 %v7312, %v7312
      %v7345 = vpack.c.bf16 %v7313, %v7313
      %v7346 = vpack.c.bf16 %v7314, %v7314
      %v7347 = vpack.c.bf16 %v7315, %v7315
      %v7348 = vpack.c.bf16 %v7316, %v7316
      %v7349 = vpack.c.bf16 %v7317, %v7317
      %v7350 = vpack.c.bf16 %v7318, %v7318
      %v7351 = vpack.c.bf16 %v7319, %v7319
      %v7352 = vpack.c.bf16 %v7320, %v7320
      %v7353 = vpack.c.bf16 %v7321, %v7321
      %v7354 = vld [vmem:[#allocation2 + $0x109] sm:$0xff]
      %v7355 = vld [vmem:[#allocation2 + $0x111] sm:$0xff]
      %v7356 = vsel %vm739, %v7194, 0.0
      %v7357 = vsel %vm740, %v7195, 0.0
      %v7358 = vsel %vm741, %v7196, 0.0
      %v7359 = vsel %vm742, %v7197, 0.0
      %v7360 = vsel %vm743, %v7198, 0.0
      %v7361 = vsel %vm744, %v7199, 0.0
      %v7362 = vsel %vm745, %v7200, 0.0
      %v7363 = vsel %vm746, %v7201, 0.0
      %v7364 = vsel %vm747, %v7202, 0.0
      %v7365 = vsel %vm748, %v7203, 0.0
      %v7366 = vsel %vm749, %v7204, 0.0
      %v7367 = vsel %vm750, %v7205, 0.0
      %v7368 = vsel %vm751, %v7206, 0.0
      %v7369 = vsel %vm752, %v7207, 0.0
      %v7370 = vsel %vm753, %v7208, 0.0
      %v7371 = vsel %vm754, %v7209, 0.0
      %v7372 = vsel %vm755, %v7210, 0.0
      %v7373 = vsel %vm756, %v7211, 0.0
      %v7374 = vsel %vm757, %v7212, 0.0
      %v7375 = vsel %vm758, %v7213, 0.0
      %v7376 = vsel %vm759, %v7214, 0.0
      %v7377 = vsel %vm760, %v7215, 0.0
      %v7378 = vsel %vm761, %v7216, 0.0
      %v7379 = vsel %vm762, %v7217, 0.0
      %v7380 = vsel %vm763, %v7218, 0.0
      %v7381 = vsel %vm764, %v7219, 0.0
      %v7382 = vsel %vm765, %v7220, 0.0
      %v7383 = vsel %vm766, %v7221, 0.0
      %v7384 = vsel %vm767, %v7222, 0.0
      %v7385 = vsel %vm768, %v7223, 0.0
      %v7386 = vsel %vm769, %v7354, 0.0
      %v7387 = vsel %vm770, %v7355, 0.0
      %v7388 = vpack.c.bf16 %v7356, %v7356
      %v7389 = vpack.c.bf16 %v7357, %v7357
      %v7390 = vpack.c.bf16 %v7358, %v7358
      %v7391 = vpack.c.bf16 %v7359, %v7359
      %v7392 = vpack.c.bf16 %v7360, %v7360
      %v7393 = vpack.c.bf16 %v7361, %v7361
      %v7394 = vpack.c.bf16 %v7362, %v7362
      %v7395 = vpack.c.bf16 %v7363, %v7363
      %v7396 = vpack.c.bf16 %v7364, %v7364
      %v7397 = vpack.c.bf16 %v7365, %v7365
      %v7398 = vpack.c.bf16 %v7366, %v7366
      %v7399 = vpack.c.bf16 %v7367, %v7367
      %v7400 = vpack.c.bf16 %v7368, %v7368
      %v7401 = vpack.c.bf16 %v7369, %v7369
      %v7402 = vpack.c.bf16 %v7370, %v7370
      %v7403 = vpack.c.bf16 %v7371, %v7371
      %v7404 = vpack.c.bf16 %v7372, %v7372
      %v7405 = vpack.c.bf16 %v7373, %v7373
      %v7406 = vpack.c.bf16 %v7374, %v7374
      %v7407 = vpack.c.bf16 %v7375, %v7375
      %v7408 = vpack.c.bf16 %v7376, %v7376
      %v7409 = vpack.c.bf16 %v7377, %v7377
      %v7410 = vpack.c.bf16 %v7378, %v7378
      %v7411 = vpack.c.bf16 %v7379, %v7379
      %v7412 = vpack.c.bf16 %v7380, %v7380
      %v7413 = vpack.c.bf16 %v7381, %v7381
      %v7414 = vpack.c.bf16 %v7382, %v7382
      %v7415 = vpack.c.bf16 %v7383, %v7383
      %v7416 = vpack.c.bf16 %v7384, %v7384
      %v7417 = vpack.c.bf16 %v7385, %v7385
      %v7418 = vpack.c.bf16 %v7386, %v7386
      %v7419 = vpack.c.bf16 %v7387, %v7387
      %v7420 = vld [vmem:[#allocation2 + $0x117] sm:$0xff]
      %v7421 = vld [vmem:[#allocation2 + $0x11f] sm:$0xff]
      %v7422 = vsel %vm707, %v7036, 0.0
      %v7423 = vsel %vm708, %v7037, 0.0
      %v7424 = vsel %vm709, %v7038, 0.0
      %v7425 = vsel %vm710, %v7039, 0.0
      %v7426 = vsel %vm711, %v7040, 0.0
      %v7427 = vsel %vm712, %v7041, 0.0
      %v7428 = vsel %vm713, %v7042, 0.0
      %v7429 = vsel %vm714, %v7043, 0.0
      %v7430 = vsel %vm715, %v7044, 0.0
      %v7431 = vsel %vm716, %v7045, 0.0
      %v7432 = vsel %vm717, %v7046, 0.0
      %v7433 = vsel %vm718, %v7047, 0.0
      %v7434 = vsel %vm719, %v7048, 0.0
      %v7435 = vsel %vm720, %v7049, 0.0
      %v7436 = vsel %vm721, %v7050, 0.0
      %v7437 = vsel %vm722, %v7051, 0.0
      %v7438 = vsel %vm723, %v7052, 0.0
      %v7439 = vsel %vm724, %v7053, 0.0
      %v7440 = vsel %vm725, %v7054, 0.0
      %v7441 = vsel %vm726, %v7055, 0.0
      %v7442 = vsel %vm727, %v7056, 0.0
      %v7443 = vsel %vm728, %v7057, 0.0
      %v7444 = vsel %vm729, %v7058, 0.0
      %v7445 = vsel %vm730, %v7059, 0.0
      %v7446 = vsel %vm731, %v7060, 0.0
      %v7447 = vsel %vm732, %v7061, 0.0
      %v7448 = vsel %vm733, %v7062, 0.0
      %v7449 = vsel %vm734, %v7063, 0.0
      %v7450 = vsel %vm735, %v7288, 0.0
      %v7451 = vsel %vm736, %v7289, 0.0
      %v7452 = vsel %vm737, %v7420, 0.0
      %v7453 = vsel %vm738, %v7421, 0.0
      %v7454 = vpack.c.bf16 %v7422, %v7422
      %v7455 = vpack.c.bf16 %v7423, %v7423
      %v7456 = vpack.c.bf16 %v7424, %v7424
      %v7457 = vpack.c.bf16 %v7425, %v7425
      %v7458 = vpack.c.bf16 %v7426, %v7426
      %v7459 = vpack.c.bf16 %v7427, %v7427
      %v7460 = vpack.c.bf16 %v7428, %v7428
      %v7461 = vpack.c.bf16 %v7429, %v7429
      %v7462 = vpack.c.bf16 %v7430, %v7430
      %v7463 = vpack.c.bf16 %v7431, %v7431
      %v7464 = vpack.c.bf16 %v7432, %v7432
      %v7465 = vpack.c.bf16 %v7433, %v7433
      %v7466 = vpack.c.bf16 %v7434, %v7434
      %v7467 = vpack.c.bf16 %v7435, %v7435
      %v7468 = vpack.c.bf16 %v7436, %v7436
      %v7469 = vpack.c.bf16 %v7437, %v7437
      %v7470 = vpack.c.bf16 %v7438, %v7438
      %v7471 = vpack.c.bf16 %v7439, %v7439
      %v7472 = vpack.c.bf16 %v7440, %v7440
      %v7473 = vpack.c.bf16 %v7441, %v7441
      %v7474 = vpack.c.bf16 %v7442, %v7442
      %v7475 = vpack.c.bf16 %v7443, %v7443
      %v7476 = vpack.c.bf16 %v7444, %v7444
      %v7477 = vpack.c.bf16 %v7445, %v7445
      %v7478 = vpack.c.bf16 %v7446, %v7446
      %v7479 = vpack.c.bf16 %v7447, %v7447
      %v7480 = vpack.c.bf16 %v7448, %v7448
      %v7481 = vpack.c.bf16 %v7449, %v7449
      %v7482 = vpack.c.bf16 %v7450, %v7450
      %v7483 = vpack.c.bf16 %v7451, %v7451
      %v7484 = vpack.c.bf16 %v7452, %v7452
      %v7485 = vpack.c.bf16 %v7453, %v7453
      %v7486 = vld [vmem:[#allocation2 + $0x108] sm:$0xff]
      %v7487 = vld [vmem:[#allocation2 + $0x110] sm:$0xff]
      %v7488 = vld [vmem:[#allocation2 + $0x118] sm:$0xff]
      %v7489 = vld [vmem:[#allocation2 + $0x120] sm:$0xff]
      %v7490 = vpack.c.bf16 %v7486, %v7486
      %v7491 = vpack.c.bf16 %v7487, %v7487
      %v7492 = vpack.c.bf16 %v7488, %v7488
      %v7493 = vpack.c.bf16 %v7489, %v7489
      %v7494 = vld [vmem:[#allocation2 + $0x119] sm:$0xff]
      %v7495 = vld [vmem:[#allocation2 + $0x121] sm:$0xff]
      %v7496 = vsel %vm739, %v7196, 0.0
      %v7497 = vsel %vm740, %v7197, 0.0
      %v7498 = vsel %vm741, %v7198, 0.0
      %v7499 = vsel %vm742, %v7199, 0.0
      %v7500 = vsel %vm743, %v7200, 0.0
      %v7501 = vsel %vm744, %v7201, 0.0
      %v7502 = vsel %vm745, %v7202, 0.0
      %v7503 = vsel %vm746, %v7203, 0.0
      %v7504 = vsel %vm747, %v7204, 0.0
      %v7505 = vsel %vm748, %v7205, 0.0
      %v7506 = vsel %vm749, %v7206, 0.0
      %v7507 = vsel %vm750, %v7207, 0.0
      %v7508 = vsel %vm751, %v7208, 0.0
      %v7509 = vsel %vm752, %v7209, 0.0
      %v7510 = vsel %vm753, %v7210, 0.0
      %v7511 = vsel %vm754, %v7211, 0.0
      %v7512 = vsel %vm755, %v7212, 0.0
      %v7513 = vsel %vm756, %v7213, 0.0
      %v7514 = vsel %vm757, %v7214, 0.0
      %v7515 = vsel %vm758, %v7215, 0.0
      %v7516 = vsel %vm759, %v7216, 0.0
      %v7517 = vsel %vm760, %v7217, 0.0
      %v7518 = vsel %vm761, %v7218, 0.0
      %v7519 = vsel %vm762, %v7219, 0.0
      %v7520 = vsel %vm763, %v7220, 0.0
      %v7521 = vsel %vm764, %v7221, 0.0
      %v7522 = vsel %vm765, %v7222, 0.0
      %v7523 = vsel %vm766, %v7223, 0.0
      %v7524 = vsel %vm767, %v7354, 0.0
      %v7525 = vsel %vm768, %v7355, 0.0
      %v7526 = vsel %vm769, %v7494, 0.0
      %v7527 = vsel %vm770, %v7495, 0.0
      %v7528 = vpack.c.bf16 %v7496, %v7496
      %v7529 = vpack.c.bf16 %v7497, %v7497
      %v7530 = vpack.c.bf16 %v7498, %v7498
      %v7531 = vpack.c.bf16 %v7499, %v7499
      %v7532 = vpack.c.bf16 %v7500, %v7500
      %v7533 = vpack.c.bf16 %v7501, %v7501
      %v7534 = vpack.c.bf16 %v7502, %v7502
      %v7535 = vpack.c.bf16 %v7503, %v7503
      %v7536 = vpack.c.bf16 %v7504, %v7504
      %v7537 = vpack.c.bf16 %v7505, %v7505
      %v7538 = vpack.c.bf16 %v7506, %v7506
      %v7539 = vpack.c.bf16 %v7507, %v7507
      %v7540 = vpack.c.bf16 %v7508, %v7508
      %v7541 = vpack.c.bf16 %v7509, %v7509
      %v7542 = vpack.c.bf16 %v7510, %v7510
      %v7543 = vpack.c.bf16 %v7511, %v7511
      %v7544 = vpack.c.bf16 %v7512, %v7512
      %v7545 = vpack.c.bf16 %v7513, %v7513
      %v7546 = vpack.c.bf16 %v7514, %v7514
      %v7547 = vpack.c.bf16 %v7515, %v7515
      %v7548 = vpack.c.bf16 %v7516, %v7516
      %v7549 = vpack.c.bf16 %v7517, %v7517
      %v7550 = vpack.c.bf16 %v7518, %v7518
      %v7551 = vpack.c.bf16 %v7519, %v7519
      %v7552 = vpack.c.bf16 %v7520, %v7520
      %v7553 = vpack.c.bf16 %v7521, %v7521
      %v7554 = vpack.c.bf16 %v7522, %v7522
      %v7555 = vpack.c.bf16 %v7523, %v7523
      %v7556 = vpack.c.bf16 %v7524, %v7524
      %v7557 = vpack.c.bf16 %v7525, %v7525
      %v7558 = vpack.c.bf16 %v7526, %v7526
      %v7559 = vpack.c.bf16 %v7527, %v7527
      %v7592 = vunpack.c.l.b16 %v7096
      %v7593 = vunpack.c.l.b16 %v7097
      %v7594 = vunpack.c.l.b16 %v7098
      %v7595 = vunpack.c.l.b16 %v7099
      %v7596 = vunpack.c.l.b16 %v7100
      %v7597 = vunpack.c.l.b16 %v7101
      %v7598 = vunpack.c.l.b16 %v7102
      %v7599 = vunpack.c.l.b16 %v7103
      %v7600 = vunpack.c.l.b16 %v7104
      %v7601 = vunpack.c.l.b16 %v7105
      %v7602 = vunpack.c.l.b16 %v7106
      %v7603 = vunpack.c.l.b16 %v7107
      %v7604 = vunpack.c.l.b16 %v7108
      %v7605 = vunpack.c.l.b16 %v7109
      %v7606 = vunpack.c.l.b16 %v7110
      %v7607 = vunpack.c.l.b16 %v7111
      %v7608 = vunpack.c.l.b16 %v7112
      %v7609 = vunpack.c.l.b16 %v7113
      %v7610 = vunpack.c.l.b16 %v7114
      %v7611 = vunpack.c.l.b16 %v7115
      %v7612 = vunpack.c.l.b16 %v7116
      %v7613 = vunpack.c.l.b16 %v7117
      %v7614 = vunpack.c.l.b16 %v7118
      %v7615 = vunpack.c.l.b16 %v7119
      %v7616 = vunpack.c.l.b16 %v7120
      %v7617 = vunpack.c.l.b16 %v7121
      %v7618 = vunpack.c.l.b16 %v7122
      %v7619 = vunpack.c.l.b16 %v7123
      %v7620 = vunpack.c.l.b16 %v7124
      %v7621 = vunpack.c.l.b16 %v7125
      %v7622 = vunpack.c.l.b16 %v7126
      %v7623 = vunpack.c.l.b16 %v7127
      %v7624 = vpack.c.b16 %v7593, %v7592
      %v7625 = vpack.c.b16 %v7595, %v7594
      %v7626 = vpack.c.b16 %v7597, %v7596
      %v7627 = vpack.c.b16 %v7599, %v7598
      %v7628 = vpack.c.b16 %v7601, %v7600
      %v7629 = vpack.c.b16 %v7603, %v7602
      %v7630 = vpack.c.b16 %v7605, %v7604
      %v7631 = vpack.c.b16 %v7607, %v7606
      %v7632 = vpack.c.b16 %v7609, %v7608
      %v7633 = vpack.c.b16 %v7611, %v7610
      %v7634 = vpack.c.b16 %v7613, %v7612
      %v7635 = vpack.c.b16 %v7615, %v7614
      %v7636 = vpack.c.b16 %v7617, %v7616
      %v7637 = vpack.c.b16 %v7619, %v7618
      %v7638 = vpack.c.b16 %v7621, %v7620
      %v7639 = vpack.c.b16 %v7623, %v7622
      %v7672 = vunpack.c.l.b16 %v7160
      %v7673 = vunpack.c.l.b16 %v7161
      %v7674 = vunpack.c.l.b16 %v7162
      %v7675 = vunpack.c.l.b16 %v7163
      %v7676 = vunpack.c.l.b16 %v7164
      %v7677 = vunpack.c.l.b16 %v7165
      %v7678 = vunpack.c.l.b16 %v7166
      %v7679 = vunpack.c.l.b16 %v7167
      %v7680 = vunpack.c.l.b16 %v7168
      %v7681 = vunpack.c.l.b16 %v7169
      %v7682 = vunpack.c.l.b16 %v7170
      %v7683 = vunpack.c.l.b16 %v7171
      %v7684 = vunpack.c.l.b16 %v7172
      %v7685 = vunpack.c.l.b16 %v7173
      %v7686 = vunpack.c.l.b16 %v7174
      %v7687 = vunpack.c.l.b16 %v7175
      %v7688 = vunpack.c.l.b16 %v7176
      %v7689 = vunpack.c.l.b16 %v7177
      %v7690 = vunpack.c.l.b16 %v7178
      %v7691 = vunpack.c.l.b16 %v7179
      %v7692 = vunpack.c.l.b16 %v7180
      %v7693 = vunpack.c.l.b16 %v7181
      %v7694 = vunpack.c.l.b16 %v7182
      %v7695 = vunpack.c.l.b16 %v7183
      %v7696 = vunpack.c.l.b16 %v7184
      %v7697 = vunpack.c.l.b16 %v7185
      %v7698 = vunpack.c.l.b16 %v7186
      %v7699 = vunpack.c.l.b16 %v7187
      %v7700 = vunpack.c.l.b16 %v7188
      %v7701 = vunpack.c.l.b16 %v7189
      %v7702 = vunpack.c.l.b16 %v7190
      %v7703 = vunpack.c.l.b16 %v7191
      %v7704 = vpack.c.b16 %v7673, %v7672
      %v7705 = vpack.c.b16 %v7675, %v7674
      %v7706 = vpack.c.b16 %v7677, %v7676
      %v7707 = vpack.c.b16 %v7679, %v7678
      %v7708 = vpack.c.b16 %v7681, %v7680
      %v7709 = vpack.c.b16 %v7683, %v7682
      %v7710 = vpack.c.b16 %v7685, %v7684
      %v7711 = vpack.c.b16 %v7687, %v7686
      %v7712 = vpack.c.b16 %v7689, %v7688
      %v7713 = vpack.c.b16 %v7691, %v7690
      %v7714 = vpack.c.b16 %v7693, %v7692
      %v7715 = vpack.c.b16 %v7695, %v7694
      %v7716 = vpack.c.b16 %v7697, %v7696
      %v7717 = vpack.c.b16 %v7699, %v7698
      %v7718 = vpack.c.b16 %v7701, %v7700
      %v7719 = vpack.c.b16 %v7703, %v7702
      %7720 = vrot.lane.b32.xlu0 %v7704, 16
      %v7721 = vpop.permute.xlu0 %7720
      %7722 = vrot.lane.b32.xlu0 %v7705, 16
      %v7723 = vpop.permute.xlu0 %7722
      %7724 = vrot.lane.b32.xlu0 %v7706, 16
      %v7725 = vpop.permute.xlu0 %7724
      %7726 = vrot.lane.b32.xlu0 %v7707, 16
      %v7727 = vpop.permute.xlu0 %7726
      %7728 = vrot.lane.b32.xlu0 %v7708, 16
      %v7729 = vpop.permute.xlu0 %7728
      %7730 = vrot.lane.b32.xlu0 %v7709, 16
      %v7731 = vpop.permute.xlu0 %7730
      %7732 = vrot.lane.b32.xlu0 %v7710, 16
      %v7733 = vpop.permute.xlu0 %7732
      %7734 = vrot.lane.b32.xlu0 %v7711, 16
      %v7735 = vpop.permute.xlu0 %7734
      %7736 = vrot.lane.b32.xlu0 %v7712, 16
      %v7737 = vpop.permute.xlu0 %7736
      %7738 = vrot.lane.b32.xlu0 %v7713, 16
      %v7739 = vpop.permute.xlu0 %7738
      %7740 = vrot.lane.b32.xlu0 %v7714, 16
      %v7741 = vpop.permute.xlu0 %7740
      %7742 = vrot.lane.b32.xlu0 %v7715, 16
      %v7743 = vpop.permute.xlu0 %7742
      %7744 = vrot.lane.b32.xlu0 %v7716, 16
      %v7745 = vpop.permute.xlu0 %7744
      %7746 = vrot.lane.b32.xlu0 %v7717, 16
      %v7747 = vpop.permute.xlu0 %7746
      %7748 = vrot.lane.b32.xlu0 %v7718, 16
      %v7749 = vpop.permute.xlu0 %7748
      %7750 = vrot.lane.b32.xlu0 %v7719, 16
      %v7751 = vpop.permute.xlu0 %7750
      %v7784 = vunpack.c.l.b16 %v7256
      %v7785 = vunpack.c.l.b16 %v7257
      %v7786 = vunpack.c.l.b16 %v7258
      %v7787 = vunpack.c.l.b16 %v7259
      %v7788 = vunpack.c.l.b16 %v7260
      %v7789 = vunpack.c.l.b16 %v7261
      %v7790 = vunpack.c.l.b16 %v7262
      %v7791 = vunpack.c.l.b16 %v7263
      %v7792 = vunpack.c.l.b16 %v7264
      %v7793 = vunpack.c.l.b16 %v7265
      %v7794 = vunpack.c.l.b16 %v7266
      %v7795 = vunpack.c.l.b16 %v7267
      %v7796 = vunpack.c.l.b16 %v7268
      %v7797 = vunpack.c.l.b16 %v7269
      %v7798 = vunpack.c.l.b16 %v7270
      %v7799 = vunpack.c.l.b16 %v7271
      %v7800 = vunpack.c.l.b16 %v7272
      %v7801 = vunpack.c.l.b16 %v7273
      %v7802 = vunpack.c.l.b16 %v7274
      %v7803 = vunpack.c.l.b16 %v7275
      %v7804 = vunpack.c.l.b16 %v7276
      %v7805 = vunpack.c.l.b16 %v7277
      %v7806 = vunpack.c.l.b16 %v7278
      %v7807 = vunpack.c.l.b16 %v7279
      %v7808 = vunpack.c.l.b16 %v7280
      %v7809 = vunpack.c.l.b16 %v7281
      %v7810 = vunpack.c.l.b16 %v7282
      %v7811 = vunpack.c.l.b16 %v7283
      %v7812 = vunpack.c.l.b16 %v7284
      %v7813 = vunpack.c.l.b16 %v7285
      %v7814 = vunpack.c.l.b16 %v7286
      %v7815 = vunpack.c.l.b16 %v7287
      %v7816 = vpack.c.b16 %v7785, %v7784
      %v7817 = vpack.c.b16 %v7787, %v7786
      %v7818 = vpack.c.b16 %v7789, %v7788
      %v7819 = vpack.c.b16 %v7791, %v7790
      %v7820 = vpack.c.b16 %v7793, %v7792
      %v7821 = vpack.c.b16 %v7795, %v7794
      %v7822 = vpack.c.b16 %v7797, %v7796
      %v7823 = vpack.c.b16 %v7799, %v7798
      %v7824 = vpack.c.b16 %v7801, %v7800
      %v7825 = vpack.c.b16 %v7803, %v7802
      %v7826 = vpack.c.b16 %v7805, %v7804
      %v7827 = vpack.c.b16 %v7807, %v7806
      %v7828 = vpack.c.b16 %v7809, %v7808
      %v7829 = vpack.c.b16 %v7811, %v7810
      %v7830 = vpack.c.b16 %v7813, %v7812
      %v7831 = vpack.c.b16 %v7815, %v7814
      %7832 = vrot.lane.b32.xlu0 %v7816, 32
      %v7833 = vpop.permute.xlu0 %7832
      %7834 = vrot.lane.b32.xlu0 %v7817, 32
      %v7835 = vpop.permute.xlu0 %7834
      %7836 = vrot.lane.b32.xlu0 %v7818, 32
      %v7837 = vpop.permute.xlu0 %7836
      %7838 = vrot.lane.b32.xlu0 %v7819, 32
      %v7839 = vpop.permute.xlu0 %7838
      %7840 = vrot.lane.b32.xlu0 %v7820, 32
      %v7841 = vpop.permute.xlu0 %7840
      %7842 = vrot.lane.b32.xlu0 %v7821, 32
      %v7843 = vpop.permute.xlu0 %7842
      %7844 = vrot.lane.b32.xlu0 %v7822, 32
      %v7845 = vpop.permute.xlu0 %7844
      %7846 = vrot.lane.b32.xlu0 %v7823, 32
      %v7847 = vpop.permute.xlu0 %7846
      %7848 = vrot.lane.b32.xlu0 %v7824, 32
      %v7849 = vpop.permute.xlu0 %7848
      %7850 = vrot.lane.b32.xlu0 %v7825, 32
      %v7851 = vpop.permute.xlu0 %7850
      %7852 = vrot.lane.b32.xlu0 %v7826, 32
      %v7853 = vpop.permute.xlu0 %7852
      %7854 = vrot.lane.b32.xlu0 %v7827, 32
      %v7855 = vpop.permute.xlu0 %7854
      %7856 = vrot.lane.b32.xlu0 %v7828, 32
      %v7857 = vpop.permute.xlu0 %7856
      %7858 = vrot.lane.b32.xlu0 %v7829, 32
      %v7859 = vpop.permute.xlu0 %7858
      %7860 = vrot.lane.b32.xlu0 %v7830, 32
      %v7861 = vpop.permute.xlu0 %7860
      %7862 = vrot.lane.b32.xlu0 %v7831, 32
      %v7863 = vpop.permute.xlu0 %7862
      %v7896 = vunpack.c.l.b16 %v7322
      %v7897 = vunpack.c.l.b16 %v7323
      %v7898 = vunpack.c.l.b16 %v7324
      %v7899 = vunpack.c.l.b16 %v7325
      %v7900 = vunpack.c.l.b16 %v7326
      %v7901 = vunpack.c.l.b16 %v7327
      %v7902 = vunpack.c.l.b16 %v7328
      %v7903 = vunpack.c.l.b16 %v7329
      %v7904 = vunpack.c.l.b16 %v7330
      %v7905 = vunpack.c.l.b16 %v7331
      %v7906 = vunpack.c.l.b16 %v7332
      %v7907 = vunpack.c.l.b16 %v7333
      %v7908 = vunpack.c.l.b16 %v7334
      %v7909 = vunpack.c.l.b16 %v7335
      %v7910 = vunpack.c.l.b16 %v7336
      %v7911 = vunpack.c.l.b16 %v7337
      %v7912 = vunpack.c.l.b16 %v7338
      %v7913 = vunpack.c.l.b16 %v7339
      %v7914 = vunpack.c.l.b16 %v7340
      %v7915 = vunpack.c.l.b16 %v7341
      %v7916 = vunpack.c.l.b16 %v7342
      %v7917 = vunpack.c.l.b16 %v7343
      %v7918 = vunpack.c.l.b16 %v7344
      %v7919 = vunpack.c.l.b16 %v7345
      %v7920 = vunpack.c.l.b16 %v7346
      %v7921 = vunpack.c.l.b16 %v7347
      %v7922 = vunpack.c.l.b16 %v7348
      %v7923 = vunpack.c.l.b16 %v7349
      %v7924 = vunpack.c.l.b16 %v7350
      %v7925 = vunpack.c.l.b16 %v7351
      %v7926 = vunpack.c.l.b16 %v7352
      %v7927 = vunpack.c.l.b16 %v7353
      %v7928 = vpack.c.b16 %v7897, %v7896
      %v7929 = vpack.c.b16 %v7899, %v7898
      %v7930 = vpack.c.b16 %v7901, %v7900
      %v7931 = vpack.c.b16 %v7903, %v7902
      %v7932 = vpack.c.b16 %v7905, %v7904
      %v7933 = vpack.c.b16 %v7907, %v7906
      %v7934 = vpack.c.b16 %v7909, %v7908
      %v7935 = vpack.c.b16 %v7911, %v7910
      %v7936 = vpack.c.b16 %v7913, %v7912
      %v7937 = vpack.c.b16 %v7915, %v7914
      %v7938 = vpack.c.b16 %v7917, %v7916
      %v7939 = vpack.c.b16 %v7919, %v7918
      %v7940 = vpack.c.b16 %v7921, %v7920
      %v7941 = vpack.c.b16 %v7923, %v7922
      %v7942 = vpack.c.b16 %v7925, %v7924
      %v7943 = vpack.c.b16 %v7927, %v7926
      %7944 = vrot.lane.b32.xlu0 %v7928, 48
      %v7945 = vpop.permute.xlu0 %7944
      %7946 = vrot.lane.b32.xlu0 %v7929, 48
      %v7947 = vpop.permute.xlu0 %7946
      %7948 = vrot.lane.b32.xlu0 %v7930, 48
      %v7949 = vpop.permute.xlu0 %7948
      %7950 = vrot.lane.b32.xlu0 %v7931, 48
      %v7951 = vpop.permute.xlu0 %7950
      %7952 = vrot.lane.b32.xlu0 %v7932, 48
      %v7953 = vpop.permute.xlu0 %7952
      %7954 = vrot.lane.b32.xlu0 %v7933, 48
      %v7955 = vpop.permute.xlu0 %7954
      %7956 = vrot.lane.b32.xlu0 %v7934, 48
      %v7957 = vpop.permute.xlu0 %7956
      %7958 = vrot.lane.b32.xlu0 %v7935, 48
      %v7959 = vpop.permute.xlu0 %7958
      %7960 = vrot.lane.b32.xlu0 %v7936, 48
      %v7961 = vpop.permute.xlu0 %7960
      %7962 = vrot.lane.b32.xlu0 %v7937, 48
      %v7963 = vpop.permute.xlu0 %7962
      %7964 = vrot.lane.b32.xlu0 %v7938, 48
      %v7965 = vpop.permute.xlu0 %7964
      %7966 = vrot.lane.b32.xlu0 %v7939, 48
      %v7967 = vpop.permute.xlu0 %7966
      %7968 = vrot.lane.b32.xlu0 %v7940, 48
      %v7969 = vpop.permute.xlu0 %7968
      %7970 = vrot.lane.b32.xlu0 %v7941, 48
      %v7971 = vpop.permute.xlu0 %7970
      %7972 = vrot.lane.b32.xlu0 %v7942, 48
      %v7973 = vpop.permute.xlu0 %7972
      %7974 = vrot.lane.b32.xlu0 %v7943, 48
      %v7975 = vpop.permute.xlu0 %7974
      %v8008 = vunpack.c.l.b16 %v7388
      %v8009 = vunpack.c.l.b16 %v7389
      %v8010 = vunpack.c.l.b16 %v7390
      %v8011 = vunpack.c.l.b16 %v7391
      %v8012 = vunpack.c.l.b16 %v7392
      %v8013 = vunpack.c.l.b16 %v7393
      %v8014 = vunpack.c.l.b16 %v7394
      %v8015 = vunpack.c.l.b16 %v7395
      %v8016 = vunpack.c.l.b16 %v7396
      %v8017 = vunpack.c.l.b16 %v7397
      %v8018 = vunpack.c.l.b16 %v7398
      %v8019 = vunpack.c.l.b16 %v7399
      %v8020 = vunpack.c.l.b16 %v7400
      %v8021 = vunpack.c.l.b16 %v7401
      %v8022 = vunpack.c.l.b16 %v7402
      %v8023 = vunpack.c.l.b16 %v7403
      %v8024 = vunpack.c.l.b16 %v7404
      %v8025 = vunpack.c.l.b16 %v7405
      %v8026 = vunpack.c.l.b16 %v7406
      %v8027 = vunpack.c.l.b16 %v7407
      %v8028 = vunpack.c.l.b16 %v7408
      %v8029 = vunpack.c.l.b16 %v7409
      %v8030 = vunpack.c.l.b16 %v7410
      %v8031 = vunpack.c.l.b16 %v7411
      %v8032 = vunpack.c.l.b16 %v7412
      %v8033 = vunpack.c.l.b16 %v7413
      %v8034 = vunpack.c.l.b16 %v7414
      %v8035 = vunpack.c.l.b16 %v7415
      %v8036 = vunpack.c.l.b16 %v7416
      %v8037 = vunpack.c.l.b16 %v7417
      %v8038 = vunpack.c.l.b16 %v7418
      %v8039 = vunpack.c.l.b16 %v7419
      %v8040 = vpack.c.b16 %v8009, %v8008
      %v8041 = vpack.c.b16 %v8011, %v8010
      %v8042 = vpack.c.b16 %v8013, %v8012
      %v8043 = vpack.c.b16 %v8015, %v8014
      %v8044 = vpack.c.b16 %v8017, %v8016
      %v8045 = vpack.c.b16 %v8019, %v8018
      %v8046 = vpack.c.b16 %v8021, %v8020
      %v8047 = vpack.c.b16 %v8023, %v8022
      %v8048 = vpack.c.b16 %v8025, %v8024
      %v8049 = vpack.c.b16 %v8027, %v8026
      %v8050 = vpack.c.b16 %v8029, %v8028
      %v8051 = vpack.c.b16 %v8031, %v8030
      %v8052 = vpack.c.b16 %v8033, %v8032
      %v8053 = vpack.c.b16 %v8035, %v8034
      %v8054 = vpack.c.b16 %v8037, %v8036
      %v8055 = vpack.c.b16 %v8039, %v8038
      %8056 = vrot.lane.b32.xlu0 %v8040, 64
      %v8057 = vpop.permute.xlu0 %8056
      %8058 = vrot.lane.b32.xlu0 %v8041, 64
      %v8059 = vpop.permute.xlu0 %8058
      %8060 = vrot.lane.b32.xlu0 %v8042, 64
      %v8061 = vpop.permute.xlu0 %8060
      %8062 = vrot.lane.b32.xlu0 %v8043, 64
      %v8063 = vpop.permute.xlu0 %8062
      %8064 = vrot.lane.b32.xlu0 %v8044, 64
      %v8065 = vpop.permute.xlu0 %8064
      %8066 = vrot.lane.b32.xlu0 %v8045, 64
      %v8067 = vpop.permute.xlu0 %8066
      %8068 = vrot.lane.b32.xlu0 %v8046, 64
      %v8069 = vpop.permute.xlu0 %8068
      %8070 = vrot.lane.b32.xlu0 %v8047, 64
      %v8071 = vpop.permute.xlu0 %8070
      %8072 = vrot.lane.b32.xlu0 %v8048, 64
      %v8073 = vpop.permute.xlu0 %8072
      %8074 = vrot.lane.b32.xlu0 %v8049, 64
      %v8075 = vpop.permute.xlu0 %8074
      %8076 = vrot.lane.b32.xlu0 %v8050, 64
      %v8077 = vpop.permute.xlu0 %8076
      %8078 = vrot.lane.b32.xlu0 %v8051, 64
      %v8079 = vpop.permute.xlu0 %8078
      %8080 = vrot.lane.b32.xlu0 %v8052, 64
      %v8081 = vpop.permute.xlu0 %8080
      %8082 = vrot.lane.b32.xlu0 %v8053, 64
      %v8083 = vpop.permute.xlu0 %8082
      %8084 = vrot.lane.b32.xlu0 %v8054, 64
      %v8085 = vpop.permute.xlu0 %8084
      %8086 = vrot.lane.b32.xlu0 %v8055, 64
      %v8087 = vpop.permute.xlu0 %8086
      %v8120 = vunpack.c.l.b16 %v7454
      %v8121 = vunpack.c.l.b16 %v7455
      %v8122 = vunpack.c.l.b16 %v7456
      %v8123 = vunpack.c.l.b16 %v7457
      %v8124 = vunpack.c.l.b16 %v7458
      %v8125 = vunpack.c.l.b16 %v7459
      %v8126 = vunpack.c.l.b16 %v7460
      %v8127 = vunpack.c.l.b16 %v7461
      %v8128 = vunpack.c.l.b16 %v7462
      %v8129 = vunpack.c.l.b16 %v7463
      %v8130 = vunpack.c.l.b16 %v7464
      %v8131 = vunpack.c.l.b16 %v7465
      %v8132 = vunpack.c.l.b16 %v7466
      %v8133 = vunpack.c.l.b16 %v7467
      %v8134 = vunpack.c.l.b16 %v7468
      %v8135 = vunpack.c.l.b16 %v7469
      %v8136 = vunpack.c.l.b16 %v7470
      %v8137 = vunpack.c.l.b16 %v7471
      %v8138 = vunpack.c.l.b16 %v7472
      %v8139 = vunpack.c.l.b16 %v7473
      %v8140 = vunpack.c.l.b16 %v7474
      %v8141 = vunpack.c.l.b16 %v7475
      %v8142 = vunpack.c.l.b16 %v7476
      %v8143 = vunpack.c.l.b16 %v7477
      %v8144 = vunpack.c.l.b16 %v7478
      %v8145 = vunpack.c.l.b16 %v7479
      %v8146 = vunpack.c.l.b16 %v7480
      %v8147 = vunpack.c.l.b16 %v7481
      %v8148 = vunpack.c.l.b16 %v7482
      %v8149 = vunpack.c.l.b16 %v7483
      %v8150 = vunpack.c.l.b16 %v7484
      %v8151 = vunpack.c.l.b16 %v7485
      %v8152 = vpack.c.b16 %v8121, %v8120
      %v8153 = vpack.c.b16 %v8123, %v8122
      %v8154 = vpack.c.b16 %v8125, %v8124
      %v8155 = vpack.c.b16 %v8127, %v8126
      %v8156 = vpack.c.b16 %v8129, %v8128
      %v8157 = vpack.c.b16 %v8131, %v8130
      %v8158 = vpack.c.b16 %v8133, %v8132
      %v8159 = vpack.c.b16 %v8135, %v8134
      %v8160 = vpack.c.b16 %v8137, %v8136
      %v8161 = vpack.c.b16 %v8139, %v8138
      %v8162 = vpack.c.b16 %v8141, %v8140
      %v8163 = vpack.c.b16 %v8143, %v8142
      %v8164 = vpack.c.b16 %v8145, %v8144
      %v8165 = vpack.c.b16 %v8147, %v8146
      %v8166 = vpack.c.b16 %v8149, %v8148
      %v8167 = vpack.c.b16 %v8151, %v8150
      %8168 = vrot.lane.b32.xlu0 %v8152, 80
      %v8169 = vpop.permute.xlu0 %8168
      %8170 = vrot.lane.b32.xlu0 %v8153, 80
      %v8171 = vpop.permute.xlu0 %8170
      %8172 = vrot.lane.b32.xlu0 %v8154, 80
      %v8173 = vpop.permute.xlu0 %8172
      %8174 = vrot.lane.b32.xlu0 %v8155, 80
      %v8175 = vpop.permute.xlu0 %8174
      %8176 = vrot.lane.b32.xlu0 %v8156, 80
      %v8177 = vpop.permute.xlu0 %8176
      %8178 = vrot.lane.b32.xlu0 %v8157, 80
      %v8179 = vpop.permute.xlu0 %8178
      %8180 = vrot.lane.b32.xlu0 %v8158, 80
      %v8181 = vpop.permute.xlu0 %8180
      %8182 = vrot.lane.b32.xlu0 %v8159, 80
      %v8183 = vpop.permute.xlu0 %8182
      %8184 = vrot.lane.b32.xlu0 %v8160, 80
      %v8185 = vpop.permute.xlu0 %8184
      %8186 = vrot.lane.b32.xlu0 %v8161, 80
      %v8187 = vpop.permute.xlu0 %8186
      %8188 = vrot.lane.b32.xlu0 %v8162, 80
      %v8189 = vpop.permute.xlu0 %8188
      %8190 = vrot.lane.b32.xlu0 %v8163, 80
      %v8191 = vpop.permute.xlu0 %8190
      %8192 = vrot.lane.b32.xlu0 %v8164, 80
      %v8193 = vpop.permute.xlu0 %8192
      %8194 = vrot.lane.b32.xlu0 %v8165, 80
      %v8195 = vpop.permute.xlu0 %8194
      %8196 = vrot.lane.b32.xlu0 %v8166, 80
      %v8197 = vpop.permute.xlu0 %8196
      %8198 = vrot.lane.b32.xlu0 %v8167, 80
      %v8199 = vpop.permute.xlu0 %8198
      %v8204 = vunpack.c.l.b16 %v7490
      %v8205 = vunpack.c.l.b16 %v7491
      %v8206 = vunpack.c.l.b16 %v7492
      %v8207 = vunpack.c.l.b16 %v7493
      %v8208 = vpack.c.b16 %v8205, %v8204
      %v8209 = vpack.c.b16 %v8207, %v8206
      %8210 = vrot.lane.b32.xlu0 %v7706, 96
      %v8211 = vpop.permute.xlu0 %8210
      %8212 = vrot.lane.b32.xlu0 %v7707, 96
      %v8213 = vpop.permute.xlu0 %8212
      %8214 = vrot.lane.b32.xlu0 %v7708, 96
      %v8215 = vpop.permute.xlu0 %8214
      %8216 = vrot.lane.b32.xlu0 %v7709, 96
      %v8217 = vpop.permute.xlu0 %8216
      %8218 = vrot.lane.b32.xlu0 %v7710, 96
      %v8219 = vpop.permute.xlu0 %8218
      %8220 = vrot.lane.b32.xlu0 %v7711, 96
      %v8221 = vpop.permute.xlu0 %8220
      %8222 = vrot.lane.b32.xlu0 %v7712, 96
      %v8223 = vpop.permute.xlu0 %8222
      %8224 = vrot.lane.b32.xlu0 %v7713, 96
      %v8225 = vpop.permute.xlu0 %8224
      %8226 = vrot.lane.b32.xlu0 %v7714, 96
      %v8227 = vpop.permute.xlu0 %8226
      %8228 = vrot.lane.b32.xlu0 %v7715, 96
      %v8229 = vpop.permute.xlu0 %8228
      %8230 = vrot.lane.b32.xlu0 %v7716, 96
      %v8231 = vpop.permute.xlu0 %8230
      %8232 = vrot.lane.b32.xlu0 %v7717, 96
      %v8233 = vpop.permute.xlu0 %8232
      %8234 = vrot.lane.b32.xlu0 %v7718, 96
      %v8235 = vpop.permute.xlu0 %8234
      %8236 = vrot.lane.b32.xlu0 %v7719, 96
      %v8237 = vpop.permute.xlu0 %8236
      %8238 = vrot.lane.b32.xlu0 %v8208, 96
      %v8239 = vpop.permute.xlu0 %8238
      %8240 = vrot.lane.b32.xlu0 %v8209, 96
      %v8241 = vpop.permute.xlu0 %8240
      %v8274 = vunpack.c.l.b16 %v7528
      %v8275 = vunpack.c.l.b16 %v7529
      %v8276 = vunpack.c.l.b16 %v7530
      %v8277 = vunpack.c.l.b16 %v7531
      %v8278 = vunpack.c.l.b16 %v7532
      %v8279 = vunpack.c.l.b16 %v7533
      %v8280 = vunpack.c.l.b16 %v7534
      %v8281 = vunpack.c.l.b16 %v7535
      %v8282 = vunpack.c.l.b16 %v7536
      %v8283 = vunpack.c.l.b16 %v7537
      %v8284 = vunpack.c.l.b16 %v7538
      %v8285 = vunpack.c.l.b16 %v7539
      %v8286 = vunpack.c.l.b16 %v7540
      %v8287 = vunpack.c.l.b16 %v7541
      %v8288 = vunpack.c.l.b16 %v7542
      %v8289 = vunpack.c.l.b16 %v7543
      %v8290 = vunpack.c.l.b16 %v7544
      %v8291 = vunpack.c.l.b16 %v7545
      %v8292 = vunpack.c.l.b16 %v7546
      %v8293 = vunpack.c.l.b16 %v7547
      %v8294 = vunpack.c.l.b16 %v7548
      %v8295 = vunpack.c.l.b16 %v7549
      %v8296 = vunpack.c.l.b16 %v7550
      %v8297 = vunpack.c.l.b16 %v7551
      %v8298 = vunpack.c.l.b16 %v7552
      %v8299 = vunpack.c.l.b16 %v7553
      %v8300 = vunpack.c.l.b16 %v7554
      %v8301 = vunpack.c.l.b16 %v7555
      %v8302 = vunpack.c.l.b16 %v7556
      %v8303 = vunpack.c.l.b16 %v7557
      %v8304 = vunpack.c.l.b16 %v7558
      %v8305 = vunpack.c.l.b16 %v7559
      %v8306 = vpack.c.b16 %v8275, %v8274
      %v8307 = vpack.c.b16 %v8277, %v8276
      %v8308 = vpack.c.b16 %v8279, %v8278
      %v8309 = vpack.c.b16 %v8281, %v8280
      %v8310 = vpack.c.b16 %v8283, %v8282
      %v8311 = vpack.c.b16 %v8285, %v8284
      %v8312 = vpack.c.b16 %v8287, %v8286
      %v8313 = vpack.c.b16 %v8289, %v8288
      %v8314 = vpack.c.b16 %v8291, %v8290
      %v8315 = vpack.c.b16 %v8293, %v8292
      %v8316 = vpack.c.b16 %v8295, %v8294
      %v8317 = vpack.c.b16 %v8297, %v8296
      %v8318 = vpack.c.b16 %v8299, %v8298
      %v8319 = vpack.c.b16 %v8301, %v8300
      %v8320 = vpack.c.b16 %v8303, %v8302
      %v8321 = vpack.c.b16 %v8305, %v8304
      %8322 = vrot.lane.b32.xlu0 %v8306, 112
      %v8323 = vpop.permute.xlu0 %8322
      %8324 = vrot.lane.b32.xlu0 %v8307, 112
      %v8325 = vpop.permute.xlu0 %8324
      %8326 = vrot.lane.b32.xlu0 %v8308, 112
      %v8327 = vpop.permute.xlu0 %8326
      %8328 = vrot.lane.b32.xlu0 %v8309, 112
      %v8329 = vpop.permute.xlu0 %8328
      %8330 = vrot.lane.b32.xlu0 %v8310, 112
      %v8331 = vpop.permute.xlu0 %8330
      %8332 = vrot.lane.b32.xlu0 %v8311, 112
      %v8333 = vpop.permute.xlu0 %8332
      %8334 = vrot.lane.b32.xlu0 %v8312, 112
      %v8335 = vpop.permute.xlu0 %8334
      %8336 = vrot.lane.b32.xlu0 %v8313, 112
      %v8337 = vpop.permute.xlu0 %8336
      %8338 = vrot.lane.b32.xlu0 %v8314, 112
      %v8339 = vpop.permute.xlu0 %8338
      %8340 = vrot.lane.b32.xlu0 %v8315, 112
      %v8341 = vpop.permute.xlu0 %8340
      %8342 = vrot.lane.b32.xlu0 %v8316, 112
      %v8343 = vpop.permute.xlu0 %8342
      %8344 = vrot.lane.b32.xlu0 %v8317, 112
      %v8345 = vpop.permute.xlu0 %8344
      %8346 = vrot.lane.b32.xlu0 %v8318, 112
      %v8347 = vpop.permute.xlu0 %8346
      %8348 = vrot.lane.b32.xlu0 %v8319, 112
      %v8349 = vpop.permute.xlu0 %8348
      %8350 = vrot.lane.b32.xlu0 %v8320, 112
      %v8351 = vpop.permute.xlu0 %8350
      %8352 = vrot.lane.b32.xlu0 %v8321, 112
      %v8353 = vpop.permute.xlu0 %8352
      %v8356 = vsel %vm283, %v7624, %v7721
      %v8359 = vsel %vm283, %v7625, %v7723
      %v8362 = vsel %vm283, %v7626, %v7725
      %v8365 = vsel %vm283, %v7627, %v7727
      %v8368 = vsel %vm283, %v7628, %v7729
      %v8371 = vsel %vm283, %v7629, %v7731
      %v8374 = vsel %vm283, %v7630, %v7733
      %v8377 = vsel %vm283, %v7631, %v7735
      %v8380 = vsel %vm283, %v7632, %v7737
      %v8383 = vsel %vm283, %v7633, %v7739
      %v8386 = vsel %vm283, %v7634, %v7741
      %v8389 = vsel %vm283, %v7635, %v7743
      %v8392 = vsel %vm283, %v7636, %v7745
      %v8395 = vsel %vm283, %v7637, %v7747
      %v8398 = vsel %vm283, %v7638, %v7749
      %v8401 = vsel %vm283, %v7639, %v7751
      %v8403 = vsel %vm2287, %v8356, %v7833
      %v8405 = vsel %vm2287, %v8359, %v7835
      %v8407 = vsel %vm2287, %v8362, %v7837
      %v8409 = vsel %vm2287, %v8365, %v7839
      %v8411 = vsel %vm2287, %v8368, %v7841
      %v8413 = vsel %vm2287, %v8371, %v7843
      %v8415 = vsel %vm2287, %v8374, %v7845
      %v8417 = vsel %vm2287, %v8377, %v7847
      %v8419 = vsel %vm2287, %v8380, %v7849
      %v8421 = vsel %vm2287, %v8383, %v7851
      %v8423 = vsel %vm2287, %v8386, %v7853
      %v8425 = vsel %vm2287, %v8389, %v7855
      %v8427 = vsel %vm2287, %v8392, %v7857
      %v8429 = vsel %vm2287, %v8395, %v7859
      %v8431 = vsel %vm2287, %v8398, %v7861
      %v8433 = vsel %vm2287, %v8401, %v7863
      %v8435 = vsel %vm2320, %v8403, %v7945
      %v8437 = vsel %vm2320, %v8405, %v7947
      %v8439 = vsel %vm2320, %v8407, %v7949
      %v8441 = vsel %vm2320, %v8409, %v7951
      %v8443 = vsel %vm2320, %v8411, %v7953
      %v8445 = vsel %vm2320, %v8413, %v7955
      %v8447 = vsel %vm2320, %v8415, %v7957
      %v8449 = vsel %vm2320, %v8417, %v7959
      %v8451 = vsel %vm2320, %v8419, %v7961
      %v8453 = vsel %vm2320, %v8421, %v7963
      %v8455 = vsel %vm2320, %v8423, %v7965
      %v8457 = vsel %vm2320, %v8425, %v7967
      %v8459 = vsel %vm2320, %v8427, %v7969
      %v8461 = vsel %vm2320, %v8429, %v7971
      %v8463 = vsel %vm2320, %v8431, %v7973
      %v8465 = vsel %vm2320, %v8433, %v7975
      %v8467 = vsel %vm2353, %v8435, %v8057
      %v8469 = vsel %vm2353, %v8437, %v8059
      %v8471 = vsel %vm2353, %v8439, %v8061
      %v8473 = vsel %vm2353, %v8441, %v8063
      %v8475 = vsel %vm2353, %v8443, %v8065
      %v8477 = vsel %vm2353, %v8445, %v8067
      %v8479 = vsel %vm2353, %v8447, %v8069
      %v8481 = vsel %vm2353, %v8449, %v8071
      %v8483 = vsel %vm2353, %v8451, %v8073
      %v8485 = vsel %vm2353, %v8453, %v8075
      %v8487 = vsel %vm2353, %v8455, %v8077
      %v8489 = vsel %vm2353, %v8457, %v8079
      %v8491 = vsel %vm2353, %v8459, %v8081
      %v8493 = vsel %vm2353, %v8461, %v8083
      %v8495 = vsel %vm2353, %v8463, %v8085
      %v8497 = vsel %vm2353, %v8465, %v8087
      %v8499 = vsel %vm2386, %v8467, %v8169
      %v8501 = vsel %vm2386, %v8469, %v8171
      %v8503 = vsel %vm2386, %v8471, %v8173
      %v8505 = vsel %vm2386, %v8473, %v8175
      %v8507 = vsel %vm2386, %v8475, %v8177
      %v8509 = vsel %vm2386, %v8477, %v8179
      %v8511 = vsel %vm2386, %v8479, %v8181
      %v8513 = vsel %vm2386, %v8481, %v8183
      %v8515 = vsel %vm2386, %v8483, %v8185
      %v8517 = vsel %vm2386, %v8485, %v8187
      %v8519 = vsel %vm2386, %v8487, %v8189
      %v8521 = vsel %vm2386, %v8489, %v8191
      %v8523 = vsel %vm2386, %v8491, %v8193
      %v8525 = vsel %vm2386, %v8493, %v8195
      %v8527 = vsel %vm2386, %v8495, %v8197
      %v8529 = vsel %vm2386, %v8497, %v8199
      %v8531 = vsel %vm2419, %v8499, %v8211
      %v8533 = vsel %vm2419, %v8501, %v8213
      %v8535 = vsel %vm2419, %v8503, %v8215
      %v8537 = vsel %vm2419, %v8505, %v8217
      %v8539 = vsel %vm2419, %v8507, %v8219
      %v8541 = vsel %vm2419, %v8509, %v8221
      %v8543 = vsel %vm2419, %v8511, %v8223
      %v8545 = vsel %vm2419, %v8513, %v8225
      %v8547 = vsel %vm2419, %v8515, %v8227
      %v8549 = vsel %vm2419, %v8517, %v8229
      %v8551 = vsel %vm2419, %v8519, %v8231
      %v8553 = vsel %vm2419, %v8521, %v8233
      %v8555 = vsel %vm2419, %v8523, %v8235
      %v8557 = vsel %vm2419, %v8525, %v8237
      %v8559 = vsel %vm2419, %v8527, %v8239
      %v8561 = vsel %vm2419, %v8529, %v8241
      %v8563 = vsel %vm2452, %v8531, %v8323
      %v8566 = vsel %vm2452, %v8533, %v8325
      %v8569 = vsel %vm2452, %v8535, %v8327
      %v8572 = vsel %vm2452, %v8537, %v8329
      %v8575 = vsel %vm2452, %v8539, %v8331
      %v8578 = vsel %vm2452, %v8541, %v8333
      %v8581 = vsel %vm2452, %v8543, %v8335
      %v8584 = vsel %vm2452, %v8545, %v8337
      %v8587 = vsel %vm2452, %v8547, %v8339
      %v8590 = vsel %vm2452, %v8549, %v8341
      %v8593 = vsel %vm2452, %v8551, %v8343
      %v8596 = vsel %vm2452, %v8553, %v8345
      %v8599 = vsel %vm2452, %v8555, %v8347
      %v8602 = vsel %vm2452, %v8557, %v8349
      %v8605 = vsel %vm2452, %v8559, %v8351
      %v8608 = vsel %vm2452, %v8561, %v8353
      %v8610 = vpack.c.bf16 %v7131, %v7130
      %v8611 = vpack.c.bf16 %v7133, %v7132
      %v8612 = vpack.c.bf16 %v7135, %v7134
      %v8613 = vpack.c.bf16 %v7137, %v7136
      %v8614 = vpack.c.bf16 %v7139, %v7138
      %v8615 = vpack.c.bf16 %v7141, %v7140
      %v8616 = vpack.c.bf16 %v7143, %v7142
      %v8617 = vpack.c.bf16 %v7145, %v7144
      %v8618 = vpack.c.bf16 %v7147, %v7146
      %v8619 = vpack.c.bf16 %v7149, %v7148
      %v8620 = vpack.c.bf16 %v7151, %v7150
      %v8621 = vpack.c.bf16 %v7153, %v7152
      %v8622 = vpack.c.bf16 %v7155, %v7154
      %v8623 = vpack.c.bf16 %v7157, %v7156
      %v8624 = vpack.c.bf16 %v7159, %v7158
      %v8625 = vpack.c.bf16 %v7487, %v7486
      %v8628 = vunpack.c.l.b16 %v7030
      %v8629 = vunpack.c.l.b16 %v7031
      %v8630 = vpack.c.b16 %v8629, %v8628
      %v8633 = vsel %vm283, %v8610, 0
      %v8636 = vsel %vm283, %v8611, 0
      %v8639 = vsel %vm283, %v8612, 0
      %v8642 = vsel %vm283, %v8613, 0
      %v8645 = vsel %vm283, %v8614, 0
      %v8648 = vsel %vm283, %v8615, 0
      %v8651 = vsel %vm283, %v8616, 0
      %v8654 = vsel %vm283, %v8617, 0
      %v8657 = vsel %vm283, %v8618, 0
      %v8660 = vsel %vm283, %v8619, 0
      %v8663 = vsel %vm283, %v8620, 0
      %v8666 = vsel %vm283, %v8621, 0
      %v8669 = vsel %vm283, %v8622, 0
      %v8672 = vsel %vm283, %v8623, 0
      %v8675 = vsel %vm283, %v8624, 0
      %v8678 = vsel %vm283, %v8625, 0
      %8680 = vmatpush.bf16.msra.mxu0 0
      %8681 = vmatpush.bf16.msra.mxu0 0
      %8682 = vmatpush.bf16.msra.mxu0 0
      %8683 = vmatpush.bf16.msra.mxu0 0
      %8684 = vmatpush.bf16.msra.mxu0 0
      %8685 = vmatpush.bf16.msra.mxu0 0
      %8686 = vmatpush.bf16.msra.mxu0 0
      %8687 = vmatpush.bf16.msra.mxu0 %v8630
      %8688 = vmatmul.bf16.gmra.mxu0 %v8633
      %v8689 = vpop.f32.mrf.mxu0
      %v8690 = vadd.f32 0.0, %v8689
      %v8691 = vpop.f32.mrf.mxu0
      %v8692 = vadd.f32 0.0, %v8691
      %8693 = vmatmul.bf16.gmra.mxu0 %v8636
      %v8694 = vpop.f32.mrf.mxu0
      %v8695 = vadd.f32 0.0, %v8694
      %v8696 = vpop.f32.mrf.mxu0
      %v8697 = vadd.f32 0.0, %v8696
      %8698 = vmatmul.bf16.gmra.mxu0 %v8639
      %v8699 = vpop.f32.mrf.mxu0
      %v8700 = vadd.f32 0.0, %v8699
      %v8701 = vpop.f32.mrf.mxu0
      %v8702 = vadd.f32 0.0, %v8701
      %8703 = vmatmul.bf16.gmra.mxu0 %v8642
      %v8704 = vpop.f32.mrf.mxu0
      %v8705 = vadd.f32 0.0, %v8704
      %v8706 = vpop.f32.mrf.mxu0
      %v8707 = vadd.f32 0.0, %v8706
      %8708 = vmatmul.bf16.gmra.mxu0 %v8645
      %v8709 = vpop.f32.mrf.mxu0
      %v8710 = vadd.f32 0.0, %v8709
      %v8711 = vpop.f32.mrf.mxu0
      %v8712 = vadd.f32 0.0, %v8711
      %8713 = vmatmul.bf16.gmra.mxu0 %v8648
      %v8714 = vpop.f32.mrf.mxu0
      %v8715 = vadd.f32 0.0, %v8714
      %v8716 = vpop.f32.mrf.mxu0
      %v8717 = vadd.f32 0.0, %v8716
      %8718 = vmatmul.bf16.gmra.mxu0 %v8651
      %v8719 = vpop.f32.mrf.mxu0
      %v8720 = vadd.f32 0.0, %v8719
      %v8721 = vpop.f32.mrf.mxu0
      %v8722 = vadd.f32 0.0, %v8721
      %8723 = vmatmul.bf16.gmra.mxu0 %v8654
      %v8724 = vpop.f32.mrf.mxu0
      %v8725 = vadd.f32 0.0, %v8724
      %v8726 = vpop.f32.mrf.mxu0
      %v8727 = vadd.f32 0.0, %v8726
      %8728 = vmatmul.bf16.gmra.mxu0 %v8657
      %v8729 = vpop.f32.mrf.mxu0
      %v8730 = vadd.f32 0.0, %v8729
      %v8731 = vpop.f32.mrf.mxu0
      %v8732 = vadd.f32 0.0, %v8731
      %8733 = vmatmul.bf16.gmra.mxu0 %v8660
      %v8734 = vpop.f32.mrf.mxu0
      %v8735 = vadd.f32 0.0, %v8734
      %v8736 = vpop.f32.mrf.mxu0
      %v8737 = vadd.f32 0.0, %v8736
      %8738 = vmatmul.bf16.gmra.mxu0 %v8663
      %v8739 = vpop.f32.mrf.mxu0
      %v8740 = vadd.f32 0.0, %v8739
      %v8741 = vpop.f32.mrf.mxu0
      %v8742 = vadd.f32 0.0, %v8741
      %8743 = vmatmul.bf16.gmra.mxu0 %v8666
      %v8744 = vpop.f32.mrf.mxu0
      %v8745 = vadd.f32 0.0, %v8744
      %v8746 = vpop.f32.mrf.mxu0
      %v8747 = vadd.f32 0.0, %v8746
      %8748 = vmatmul.bf16.gmra.mxu0 %v8669
      %v8749 = vpop.f32.mrf.mxu0
      %v8750 = vadd.f32 0.0, %v8749
      %v8751 = vpop.f32.mrf.mxu0
      %v8752 = vadd.f32 0.0, %v8751
      %8753 = vmatmul.bf16.gmra.mxu0 %v8672
      %v8754 = vpop.f32.mrf.mxu0
      %v8755 = vadd.f32 0.0, %v8754
      %v8756 = vpop.f32.mrf.mxu0
      %v8757 = vadd.f32 0.0, %v8756
      %8758 = vmatmul.bf16.gmra.mxu0 %v8675
      %v8759 = vpop.f32.mrf.mxu0
      %v8760 = vadd.f32 0.0, %v8759
      %v8761 = vpop.f32.mrf.mxu0
      %v8762 = vadd.f32 0.0, %v8761
      %8763 = vmatmul.bf16.gmra.mxu0 %v8678
      %v8764 = vpop.f32.mrf.mxu0
      %v8765 = vadd.f32 0.0, %v8764
      %v8766 = vpop.f32.mrf.mxu0
      %v8767 = vadd.f32 0.0, %v8766
      %8768 = vdwg.mxu0
      %v8785 = vunpack.c.l.b16 %v7013
      %v8786 = vunpack.c.l.b16 %v7014
      %v8787 = vunpack.c.l.b16 %v7015
      %v8788 = vunpack.c.l.b16 %v7016
      %v8789 = vunpack.c.l.b16 %v7017
      %v8790 = vunpack.c.l.b16 %v7018
      %v8791 = vunpack.c.l.b16 %v7019
      %v8792 = vunpack.c.l.b16 %v7020
      %v8793 = vunpack.c.l.b16 %v7021
      %v8794 = vunpack.c.l.b16 %v7022
      %v8795 = vunpack.c.l.b16 %v7023
      %v8796 = vunpack.c.l.b16 %v7024
      %v8797 = vunpack.c.l.b16 %v7025
      %v8798 = vunpack.c.l.b16 %v7026
      %v8799 = vunpack.c.l.b16 %v7027
      %v8800 = vunpack.c.l.b16 %v7028
      %v8801 = vpack.c.b16 %v8786, %v8785
      %v8802 = vpack.c.b16 %v8788, %v8787
      %v8803 = vpack.c.b16 %v8790, %v8789
      %v8804 = vpack.c.b16 %v8792, %v8791
      %v8805 = vpack.c.b16 %v8794, %v8793
      %v8806 = vpack.c.b16 %v8796, %v8795
      %v8807 = vpack.c.b16 %v8798, %v8797
      %v8808 = vpack.c.b16 %v8800, %v8799
      %8817 = vmatpush.bf16.msra.mxu0 %v8808
      %8818 = vmatpush.bf16.msra.mxu0 %v8807
      %8819 = vmatpush.bf16.msra.mxu0 %v8806
      %8820 = vmatpush.bf16.msra.mxu0 %v8805
      %8821 = vmatpush.bf16.msra.mxu0 %v8804
      %8822 = vmatpush.bf16.msra.mxu0 %v8803
      %8823 = vmatpush.bf16.msra.mxu0 %v8802
      %8824 = vmatpush.bf16.msra.mxu0 %v8801
      %8825 = vmatmul.bf16.gmra.mxu0 %v8563
      %v8826 = vpop.f32.mrf.mxu0
      %v8827 = vadd.f32 %v8690, %v8826
      %v8828 = vpop.f32.mrf.mxu0
      %v8829 = vadd.f32 %v8692, %v8828
      %8830 = vmatmul.bf16.gmra.mxu0 %v8566
      %v8831 = vpop.f32.mrf.mxu0
      %v8832 = vadd.f32 %v8695, %v8831
      %v8833 = vpop.f32.mrf.mxu0
      %v8834 = vadd.f32 %v8697, %v8833
      %8835 = vmatmul.bf16.gmra.mxu0 %v8569
      %v8836 = vpop.f32.mrf.mxu0
      %v8837 = vadd.f32 %v8700, %v8836
      %v8838 = vpop.f32.mrf.mxu0
      %v8839 = vadd.f32 %v8702, %v8838
      %8840 = vmatmul.bf16.gmra.mxu0 %v8572
      %v8841 = vpop.f32.mrf.mxu0
      %v8842 = vadd.f32 %v8705, %v8841
      %v8843 = vpop.f32.mrf.mxu0
      %v8844 = vadd.f32 %v8707, %v8843
      %8845 = vmatmul.bf16.gmra.mxu0 %v8575
      %v8846 = vpop.f32.mrf.mxu0
      %v8847 = vadd.f32 %v8710, %v8846
      %v8848 = vpop.f32.mrf.mxu0
      %v8849 = vadd.f32 %v8712, %v8848
      %8850 = vmatmul.bf16.gmra.mxu0 %v8578
      %v8851 = vpop.f32.mrf.mxu0
      %v8852 = vadd.f32 %v8715, %v8851
      %v8853 = vpop.f32.mrf.mxu0
      %v8854 = vadd.f32 %v8717, %v8853
      %8855 = vmatmul.bf16.gmra.mxu0 %v8581
      %v8856 = vpop.f32.mrf.mxu0
      %v8857 = vadd.f32 %v8720, %v8856
      %v8858 = vpop.f32.mrf.mxu0
      %v8859 = vadd.f32 %v8722, %v8858
      %8860 = vmatmul.bf16.gmra.mxu0 %v8584
      %v8861 = vpop.f32.mrf.mxu0
      %v8862 = vadd.f32 %v8725, %v8861
      %v8863 = vpop.f32.mrf.mxu0
      %v8864 = vadd.f32 %v8727, %v8863
      %8865 = vmatmul.bf16.gmra.mxu0 %v8587
      %v8866 = vpop.f32.mrf.mxu0
      %v8867 = vadd.f32 %v8730, %v8866
      %v8868 = vpop.f32.mrf.mxu0
      %v8869 = vadd.f32 %v8732, %v8868
      %8870 = vmatmul.bf16.gmra.mxu0 %v8590
      %v8871 = vpop.f32.mrf.mxu0
      %v8872 = vadd.f32 %v8735, %v8871
      %v8873 = vpop.f32.mrf.mxu0
      %v8874 = vadd.f32 %v8737, %v8873
      %8875 = vmatmul.bf16.gmra.mxu0 %v8593
      %v8876 = vpop.f32.mrf.mxu0
      %v8877 = vadd.f32 %v8740, %v8876
      %v8878 = vpop.f32.mrf.mxu0
      %v8879 = vadd.f32 %v8742, %v8878
      %8880 = vmatmul.bf16.gmra.mxu0 %v8596
      %v8881 = vpop.f32.mrf.mxu0
      %v8882 = vadd.f32 %v8745, %v8881
      %v8883 = vpop.f32.mrf.mxu0
      %v8884 = vadd.f32 %v8747, %v8883
      %8885 = vmatmul.bf16.gmra.mxu0 %v8599
      %v8886 = vpop.f32.mrf.mxu0
      %v8887 = vadd.f32 %v8750, %v8886
      %v8888 = vpop.f32.mrf.mxu0
      %v8889 = vadd.f32 %v8752, %v8888
      %8890 = vmatmul.bf16.gmra.mxu0 %v8602
      %v8891 = vpop.f32.mrf.mxu0
      %v8892 = vadd.f32 %v8755, %v8891
      %v8893 = vpop.f32.mrf.mxu0
      %v8894 = vadd.f32 %v8757, %v8893
      %8895 = vmatmul.bf16.gmra.mxu0 %v8605
      %v8896 = vpop.f32.mrf.mxu0
      %v8897 = vadd.f32 %v8760, %v8896
      %v8898 = vpop.f32.mrf.mxu0
      %v8899 = vadd.f32 %v8762, %v8898
      %8900 = vmatmul.bf16.gmra.mxu0 %v8608
      %v8901 = vpop.f32.mrf.mxu0
      %v8902 = vadd.f32 %v8765, %v8901
      %v8903 = vpop.f32.mrf.mxu0
      %v8904 = vadd.f32 %v8767, %v8903
      %8905 = vdwg.mxu0
      %s8906 = scalar_lea.vmem %s6, 1
      %v8907 = vld [vmem:[%s8906] sm:$0x1]
      %v8909 = vperm.slane %v8907, 0
      %v8911 = vadd.f32 %v8827, %v8909
      %v8912 = vadd.f32 %v8829, %v8909
      %v8913 = vadd.f32 %v8832, %v8909
      %v8914 = vadd.f32 %v8834, %v8909
      %v8915 = vadd.f32 %v8837, %v8909
      %v8916 = vadd.f32 %v8839, %v8909
      %v8917 = vadd.f32 %v8842, %v8909
      %v8918 = vadd.f32 %v8844, %v8909
      %v8919 = vadd.f32 %v8847, %v8909
      %v8920 = vadd.f32 %v8849, %v8909
      %v8921 = vadd.f32 %v8852, %v8909
      %v8922 = vadd.f32 %v8854, %v8909
      %v8923 = vadd.f32 %v8857, %v8909
      %v8924 = vadd.f32 %v8859, %v8909
      %v8925 = vadd.f32 %v8862, %v8909
      %v8926 = vadd.f32 %v8864, %v8909
      %v8927 = vadd.f32 %v8867, %v8909
      %v8928 = vadd.f32 %v8869, %v8909
      %v8929 = vadd.f32 %v8872, %v8909
      %v8930 = vadd.f32 %v8874, %v8909
      %v8931 = vadd.f32 %v8877, %v8909
      %v8932 = vadd.f32 %v8879, %v8909
      %v8933 = vadd.f32 %v8882, %v8909
      %v8934 = vadd.f32 %v8884, %v8909
      %v8935 = vadd.f32 %v8887, %v8909
      %v8936 = vadd.f32 %v8889, %v8909
      %v8937 = vadd.f32 %v8892, %v8909
      %v8938 = vadd.f32 %v8894, %v8909
      %v8939 = vadd.f32 %v8897, %v8909
      %v8940 = vadd.f32 %v8899, %v8909
      %v8941 = vadd.f32 %v8902, %v8909
      %v8942 = vadd.f32 %v8904, %v8909
      %v8943 = vld [vmem:[%s280] sm:$0xff]
      %v8944 = vld [vmem:[%s280 + $0x8] sm:$0xff]
      %v8945 = vld [vmem:[%s280 + $0x10] sm:$0xff]
      %v8946 = vld [vmem:[%s280 + $0x18] sm:$0xff]
      %v8947 = vld [vmem:[%s280 + $0x20] sm:$0xff]
      %v8948 = vld [vmem:[%s280 + $0x28] sm:$0xff]
      %v8949 = vld [vmem:[%s280 + $0x30] sm:$0xff]
      %v8950 = vld [vmem:[%s280 + $0x38] sm:$0xff]
      %v8951 = vld [vmem:[%s280 + $0x40] sm:$0xff]
      %v8952 = vld [vmem:[%s280 + $0x48] sm:$0xff]
      %v8953 = vld [vmem:[%s280 + $0x50] sm:$0xff]
      %v8954 = vld [vmem:[%s280 + $0x58] sm:$0xff]
      %v8955 = vld [vmem:[%s280 + $0x60] sm:$0xff]
      %v8956 = vld [vmem:[%s280 + $0x68] sm:$0xff]
      %v8957 = vld [vmem:[%s280 + $0x70] sm:$0xff]
      %v8958 = vld [vmem:[%s280 + $0x78] sm:$0xff]
      %v8959 = vld [vmem:[%s280 + $0x80] sm:$0xff]
      %v8960 = vld [vmem:[%s280 + $0x88] sm:$0xff]
      %v8961 = vld [vmem:[%s280 + $0x90] sm:$0xff]
      %v8962 = vld [vmem:[%s280 + $0x98] sm:$0xff]
      %v8963 = vld [vmem:[%s280 + $0xa0] sm:$0xff]
      %v8964 = vld [vmem:[%s280 + $0xa8] sm:$0xff]
      %v8965 = vld [vmem:[%s280 + $0xb0] sm:$0xff]
      %v8966 = vld [vmem:[%s280 + $0xb8] sm:$0xff]
      %v8967 = vld [vmem:[%s280 + $0xc0] sm:$0xff]
      %v8968 = vld [vmem:[%s280 + $0xc8] sm:$0xff]
      %v8969 = vld [vmem:[%s280 + $0xd0] sm:$0xff]
      %v8970 = vld [vmem:[%s280 + $0xd8] sm:$0xff]
      %v8971 = vld [vmem:[%s280 + $0xe0] sm:$0xff]
      %v8972 = vld [vmem:[%s280 + $0xe8] sm:$0xff]
      %v8973 = vld [vmem:[%s280 + $0xf0] sm:$0xff]
      %v8974 = vld [vmem:[%s280 + $0xf8] sm:$0xff]
      %v8975 = vadd.f32 %v8911, %v8943
      %v8976 = vadd.f32 %v8912, %v8944
      %v8977 = vadd.f32 %v8913, %v8945
      %v8978 = vadd.f32 %v8914, %v8946
      %v8979 = vadd.f32 %v8915, %v8947
      %v8980 = vadd.f32 %v8916, %v8948
      %v8981 = vadd.f32 %v8917, %v8949
      %v8982 = vadd.f32 %v8918, %v8950
      %v8983 = vadd.f32 %v8919, %v8951
      %v8984 = vadd.f32 %v8920, %v8952
      %v8985 = vadd.f32 %v8921, %v8953
      %v8986 = vadd.f32 %v8922, %v8954
      %v8987 = vadd.f32 %v8923, %v8955
      %v8988 = vadd.f32 %v8924, %v8956
      %v8989 = vadd.f32 %v8925, %v8957
      %v8990 = vadd.f32 %v8926, %v8958
      %v8991 = vadd.f32 %v8927, %v8959
      %v8992 = vadd.f32 %v8928, %v8960
      %v8993 = vadd.f32 %v8929, %v8961
      %v8994 = vadd.f32 %v8930, %v8962
      %v8995 = vadd.f32 %v8931, %v8963
      %v8996 = vadd.f32 %v8932, %v8964
      %v8997 = vadd.f32 %v8933, %v8965
      %v8998 = vadd.f32 %v8934, %v8966
      %v8999 = vadd.f32 %v8935, %v8967
      %v9000 = vadd.f32 %v8936, %v8968
      %v9001 = vadd.f32 %v8937, %v8969
      %v9002 = vadd.f32 %v8938, %v8970
      %v9003 = vadd.f32 %v8939, %v8971
      %v9004 = vadd.f32 %v8940, %v8972
      %v9005 = vadd.f32 %v8941, %v8973
      %v9006 = vadd.f32 %v8942, %v8974
      %v9007 = vmax.f32 %v8975, 0.0
      %v9008 = vmax.f32 %v8976, 0.0
      %v9009 = vmax.f32 %v8977, 0.0
      %v9010 = vmax.f32 %v8978, 0.0
      %v9011 = vmax.f32 %v8979, 0.0
      %v9012 = vmax.f32 %v8980, 0.0
      %v9013 = vmax.f32 %v8981, 0.0
      %v9014 = vmax.f32 %v8982, 0.0
      %v9015 = vmax.f32 %v8983, 0.0
      %v9016 = vmax.f32 %v8984, 0.0
      %v9017 = vmax.f32 %v8985, 0.0
      %v9018 = vmax.f32 %v8986, 0.0
      %v9019 = vmax.f32 %v8987, 0.0
      %v9020 = vmax.f32 %v8988, 0.0
      %v9021 = vmax.f32 %v8989, 0.0
      %v9022 = vmax.f32 %v8990, 0.0
      %v9023 = vmax.f32 %v8991, 0.0
      %v9024 = vmax.f32 %v8992, 0.0
      %v9025 = vmax.f32 %v8993, 0.0
      %v9026 = vmax.f32 %v8994, 0.0
      %v9027 = vmax.f32 %v8995, 0.0
      %v9028 = vmax.f32 %v8996, 0.0
      %v9029 = vmax.f32 %v8997, 0.0
      %v9030 = vmax.f32 %v8998, 0.0
      %v9031 = vmax.f32 %v8999, 0.0
      %v9032 = vmax.f32 %v9000, 0.0
      %v9033 = vmax.f32 %v9001, 0.0
      %v9034 = vmax.f32 %v9002, 0.0
      %v9035 = vmax.f32 %v9003, 0.0
      %v9036 = vmax.f32 %v9004, 0.0
      %v9037 = vmax.f32 %v9005, 0.0
      %v9038 = vmax.f32 %v9006, 0.0
      %9039 = vst.msk [vmem:[%s280] sm:$0xff] %vm283, %v9007
      %9040 = vst.msk [vmem:[%s280 + $0x8] sm:$0xff] %vm283, %v9008
      %9041 = vst.msk [vmem:[%s280 + $0x10] sm:$0xff] %vm283, %v9009
      %9042 = vst.msk [vmem:[%s280 + $0x18] sm:$0xff] %vm283, %v9010
      %9043 = vst.msk [vmem:[%s280 + $0x20] sm:$0xff] %vm283, %v9011
      %9044 = vst.msk [vmem:[%s280 + $0x28] sm:$0xff] %vm283, %v9012
      %9045 = vst.msk [vmem:[%s280 + $0x30] sm:$0xff] %vm283, %v9013
      %9046 = vst.msk [vmem:[%s280 + $0x38] sm:$0xff] %vm283, %v9014
      %9047 = vst.msk [vmem:[%s280 + $0x40] sm:$0xff] %vm283, %v9015
      %9048 = vst.msk [vmem:[%s280 + $0x48] sm:$0xff] %vm283, %v9016
      %9049 = vst.msk [vmem:[%s280 + $0x50] sm:$0xff] %vm283, %v9017
      %9050 = vst.msk [vmem:[%s280 + $0x58] sm:$0xff] %vm283, %v9018
      %9051 = vst.msk [vmem:[%s280 + $0x60] sm:$0xff] %vm283, %v9019
      %9052 = vst.msk [vmem:[%s280 + $0x68] sm:$0xff] %vm283, %v9020
      %9053 = vst.msk [vmem:[%s280 + $0x70] sm:$0xff] %vm283, %v9021
      %9054 = vst.msk [vmem:[%s280 + $0x78] sm:$0xff] %vm283, %v9022
      %9055 = vst.msk [vmem:[%s280 + $0x80] sm:$0xff] %vm283, %v9023
      %9056 = vst.msk [vmem:[%s280 + $0x88] sm:$0xff] %vm283, %v9024
      %9057 = vst.msk [vmem:[%s280 + $0x90] sm:$0xff] %vm283, %v9025
      %9058 = vst.msk [vmem:[%s280 + $0x98] sm:$0xff] %vm283, %v9026
      %9059 = vst.msk [vmem:[%s280 + $0xa0] sm:$0xff] %vm283, %v9027
      %9060 = vst.msk [vmem:[%s280 + $0xa8] sm:$0xff] %vm283, %v9028
      %9061 = vst.msk [vmem:[%s280 + $0xb0] sm:$0xff] %vm283, %v9029
      %9062 = vst.msk [vmem:[%s280 + $0xb8] sm:$0xff] %vm283, %v9030
      %9063 = vst.msk [vmem:[%s280 + $0xc0] sm:$0xff] %vm283, %v9031
      %9064 = vst.msk [vmem:[%s280 + $0xc8] sm:$0xff] %vm283, %v9032
      %9065 = vst.msk [vmem:[%s280 + $0xd0] sm:$0xff] %vm283, %v9033
      %9066 = vst.msk [vmem:[%s280 + $0xd8] sm:$0xff] %vm283, %v9034
      %9067 = vst.msk [vmem:[%s280 + $0xe0] sm:$0xff] %vm283, %v9035
      %9068 = vst.msk [vmem:[%s280 + $0xe8] sm:$0xff] %vm283, %v9036
      %9069 = vst.msk [vmem:[%s280 + $0xf0] sm:$0xff] %vm283, %v9037
      %9070 = vst.msk [vmem:[%s280 + $0xf8] sm:$0xff] %vm283, %v9038
      %s9071 = smul.u32 32, %s18
      %p9072 = scmp.lt.s32.totalorder %s9071, 63
      %s9073 = scalar_select %p9072, %s9071, 63
      %s9074 = smul.addr %s9073, 8
      %s9075 = scalar_lea.vmem %s7, %s9074
      // Predicated region
      $region49: #{resnet_task_layer_forward.1} parent=47 // pred_check
        %p9076 = pneg %p188
      $region50: #{resnet_task_layer_forward.1} parent=47 // pred_check_branch
        %9078 = sbr.rel (%p9076) target = $region52
      $region51: #{resnet_task_layer_forward.1} parent=47 // pred_region
        %s9079 = smul.u32 32, %s18
      $region52: #{resnet_task_layer_forward.1} parent=47 // pred_fallthru
        _
    $region48: #{resnet_task_layer_forward.1} parent=5 // pred_fallthru
      _
    %p9080 = scmp.le.s32.totalorder 2, %s13
    // Predicated region
    $region53: #{resnet_task_layer_forward.1} parent=5 // pred_check
      %p9081 = pneg %p9080
    $region54: #{resnet_task_layer_forward.1} parent=5 // pred_check_branch
      %9083 = sbr.rel (%p9081) target = $region56
    $region55: #{resnet_task_layer_forward.1} parent=5 // pred_region
      %s9084 = ssub.s32 %s13, 2
      // Predicated region
      $region57: #{resnet_task_layer_forward.1} parent=55 // pred_check
        %p9085 = pneg %p194
      $region58: #{resnet_task_layer_forward.1} parent=55 // pred_check_branch
        %9087 = sbr.rel (%p9085) target = $region60
      $region59: #{resnet_task_layer_forward.1} parent=55 // pred_region
        %s9088 = smul.u32 32, %s19
        %p9089 = scmp.lt.s32.totalorder %s9088, 63
        %s9090 = scalar_select %p9089, %s9088, 63
        %s9091 = smul.addr %s9090, 8
        %s9092 = scalar_lea.vmem %s7, %s9091
      $region60: #{resnet_task_layer_forward.1} parent=55 // pred_fallthru
        _
    $region56: #{resnet_task_layer_forward.1} parent=5 // pred_fallthru
      _
  $region6: #{resnet_task_layer_forward.1} parent=0 // loop_footer
    %s17 = sadd.s32 1, %s13
  $region7: #{resnet_task_layer_forward.1} parent=0 // loop_footer_branch
    %12 = sbr.rel target = $region3
  $region8: #{resnet_task_layer_forward.1} parent=0 // loop_exit
    _

</llo_original>
